<compile_context>
chip_gen: v7x
topology: tpu7x:2x2x1
jax: 0.10.0
libtpu: 0.0.40
codegen_flags: <defaults>
</compile_context>

<pallas_src>
import jax
import jax.numpy as jnp
from jax import lax
from jax.experimental import pallas as pl
from jax.experimental.pallas import tpu as pltpu

EPS = 1e-5


def _bn_kernel(x_ref, gb_ref, o_ref):
    # x_ref: (Ct, L) tile; gb_ref: (Ct, 2) with col 0 = gamma, col 1 = beta.
    x = x_ref[...].astype(jnp.float32)
    L = x.shape[1]
    inv_l = 1.0 / float(L)

    # Skinny MXU dots against a ones column: keeps the reduction off the XLU
    # (which was the saturating slot) and on the otherwise-idle MXU.
    ones = jnp.ones((L, 1), jnp.float32)

    # Two-pass stats (biased variance, training-mode semantics).
    mean = jnp.dot(x, ones, preferred_element_type=jnp.float32) * inv_l  # (Ct,1)
    xc = x - mean                                                        # (Ct,L)
    var = jnp.dot(xc * xc, ones, preferred_element_type=jnp.float32) * inv_l

    gamma = gb_ref[:, 0:1]
    beta = gb_ref[:, 1:2]

    # Fold affine into per-channel scale on the small (Ct,1) vectors; reuse
    # the already-centered tile for the output: y = (x - mean)*scale + beta.
    scale = gamma * lax.rsqrt(var + EPS)                                 # (Ct,1)
    o_ref[...] = (xc * scale + beta).astype(o_ref.dtype)


def batchnorm2d(x_nchw, gamma, beta, *, c_tile=1456):
    N, C, H, W = x_nchw.shape
    L = N * H * W

    if N == 1:
        # Free relabel: (1, C, H, W) -> (C, H*W), no data movement.
        x2d = x_nchw.reshape(C, L)
    else:
        # TODO(synk): for N > 1, index NCHW directly via BlockSpec (grid over C,
        # block (c_tile, N, H, W)) instead of materializing this transpose.
        x2d = jnp.transpose(x_nchw, (1, 0, 2, 3)).reshape(C, L)

    # Consolidate gamma/beta into one (C, 2) array -> one small DMA per step.
    gb = jnp.stack(
        [gamma.astype(jnp.float32), beta.astype(jnp.float32)], axis=1
    )

    assert c_tile % 8 == 0
    grid = (pl.cdiv(C, c_tile),)  # ragged last block is fine (row-independent)

    itemsize = jnp.dtype(x2d.dtype).itemsize
    cost = pl.CostEstimate(
        flops=8 * C * L,
        transcendentals=C,  # one rsqrt per channel
        bytes_accessed=2 * C * L * itemsize + C * 2 * 4,
    )

    out2d = pl.pallas_call(
        _bn_kernel,
        out_shape=jax.ShapeDtypeStruct((C, L), x2d.dtype),
        grid_spec=pltpu.PrefetchScalarGridSpec(
            num_scalar_prefetch=0,
            grid=grid,
            in_specs=[
                pl.BlockSpec((c_tile, L), lambda i: (i, 0)),
                pl.BlockSpec((c_tile, 2), lambda i: (i, 0)),
            ],
            out_specs=pl.BlockSpec((c_tile, L), lambda i: (i, 0)),
        ),
        compiler_params=pltpu.CompilerParams(
            dimension_semantics=("parallel",)
        ),
        cost_estimate=cost,
    )(x2d, gb)

    if N == 1:
        return out2d.reshape(N, C, H, W)
    return jnp.transpose(out2d.reshape(C, N, H, W), (1, 0, 2, 3))


if __name__ == "__main__":
    key = jax.random.PRNGKey(0)
    kx, kg, kb = jax.random.split(key, 3)

    N, C, H, W = 1, 2904, 14, 14
    x = jax.random.normal(kx, (N, C, H, W), dtype=jnp.float32)
    # PyTorch default affine init is ones/zeros; use seeded randoms so the
    # affine path is actually exercised.
    gamma = 1.0 + 0.1 * jax.random.normal(kg, (C,), dtype=jnp.float32)
    beta = 0.1 * jax.random.normal(kb, (C,), dtype=jnp.float32)

    out = batchnorm2d(x, gamma, beta)
    out = jax.block_until_ready(out)

    # Reference check: pure-JAX training-mode batchnorm semantics.
    mean = jnp.mean(x, axis=(0, 2, 3), keepdims=True)
    var = jnp.mean((x - mean) ** 2, axis=(0, 2, 3), keepdims=True)
    ref = (x - mean) * jax.lax.rsqrt(var + EPS) * gamma.reshape(1, C, 1, 1) \
        + beta.reshape(1, C, 1, 1)

    assert out.shape == (N, C, H, W)
    assert jnp.allclose(out, ref, atol=1e-4, rtol=1e-4)

    print("KERNEL_OK")
</pallas_src>

<mosaic_0001>
module attributes {stable_mosaic.version = 11 : i64} {
  func.func @_bn_kernel(%arg0: i32, %arg1: memref<1456x196xf32, #tpu.memory_space<vmem>>, %arg2: memref<1456x2xf32, #tpu.memory_space<vmem>>, %arg3: memref<1456x196xf32, #tpu.memory_space<vmem>>) attributes {dimension_semantics = [#tpu.dimension_semantics<parallel>], iteration_bounds = array<i64: 2>, scalar_prefetch = 0 : i64, scratch_operands = 0 : i64, tpu.core_type = #tpu.core_type<tc>, window_params = [{transform_indices = @transform_0, window_bounds = array<i64: 1456, 196>}, {transform_indices = @transform_1, window_bounds = array<i64: 1456, 2>}, {transform_indices = @transform_2, window_bounds = array<i64: 1456, 196>}]} {
    %c0 = arith.constant 0 : index
    %c0_0 = arith.constant 0 : index
    %0 = vector.load %arg1[%c0, %c0_0] : memref<1456x196xf32, #tpu.memory_space<vmem>>, vector<1456x196xf32>
    %cst = arith.constant 1.000000e+00 : f32
    %1 = vector.broadcast %cst : f32 to vector<196x1xf32>
    %cst_1 = arith.constant dense<0.000000e+00> : vector<1456x1xf32>
    %2 = tpu.matmul %0, %1, %cst_1 {dimension_numbers = #tpu.dot_dimension_numbers<[1], [0], [0], [1], [0, 0, 1, 1], [], []>} : vector<1456x196xf32>, vector<196x1xf32>, vector<1456x1xf32> -> vector<1456x1xf32>
    %cst_2 = arith.constant 0.00510204071 : f32
    %3 = vector.broadcast %cst_2 : f32 to vector<1456x1xf32>
    %4 = arith.mulf %2, %3 : vector<1456x1xf32>
    %5 = vector.broadcast %4 : vector<1456x1xf32> to vector<1456x196xf32>
    %6 = arith.subf %0, %5 : vector<1456x196xf32>
    %7 = arith.mulf %6, %6 : vector<1456x196xf32>
    %cst_3 = arith.constant dense<0.000000e+00> : vector<1456x1xf32>
    %8 = tpu.matmul %7, %1, %cst_3 {dimension_numbers = #tpu.dot_dimension_numbers<[1], [0], [0], [1], [0, 0, 1, 1], [], []>} : vector<1456x196xf32>, vector<196x1xf32>, vector<1456x1xf32> -> vector<1456x1xf32>
    %cst_4 = arith.constant 0.00510204071 : f32
    %9 = vector.broadcast %cst_4 : f32 to vector<1456x1xf32>
    %10 = arith.mulf %8, %9 : vector<1456x1xf32>
    %c0_5 = arith.constant 0 : index
    %c0_6 = arith.constant 0 : index
    %11 = vector.load %arg2[%c0_5, %c0_6] : memref<1456x2xf32, #tpu.memory_space<vmem>>, vector<1456x1xf32>
    %c0_7 = arith.constant 0 : index
    %c1 = arith.constant 1 : index
    %12 = vector.load %arg2[%c0_7, %c1] : memref<1456x2xf32, #tpu.memory_space<vmem>>, vector<1456x1xf32>
    %cst_8 = arith.constant 9.99999974E-6 : f32
    %13 = vector.broadcast %cst_8 : f32 to vector<1456x1xf32>
    %14 = arith.addf %10, %13 : vector<1456x1xf32>
    %15 = math.rsqrt %14 : vector<1456x1xf32>
    %16 = arith.mulf %11, %15 : vector<1456x1xf32>
    %17 = vector.broadcast %16 : vector<1456x1xf32> to vector<1456x196xf32>
    %18 = arith.mulf %6, %17 : vector<1456x196xf32>
    %19 = vector.broadcast %12 : vector<1456x1xf32> to vector<1456x196xf32>
    %20 = arith.addf %18, %19 : vector<1456x196xf32>
    %c0_9 = arith.constant 0 : index
    %c0_10 = arith.constant 0 : index
    %21 = vector.load %arg3[%c0_9, %c0_10] : memref<1456x196xf32, #tpu.memory_space<vmem>>, vector<1456x196xf32>
    tpu.vector_store %arg3[%c0_9, %c0_10], %20 {strides = array<i32>} : memref<1456x196xf32, #tpu.memory_space<vmem>>, vector<1456x196xf32>,
    return
  }
  func.func @transform_0(%arg0: i32) -> (i32, i32) {
    %c0_i32 = arith.constant 0 : i32
    %c0_i32_0 = arith.constant 0 : i32
    return %arg0, %c0_i32 : i32, i32
  }
  func.func @transform_1(%arg0: i32) -> (i32, i32) {
    %c0_i32 = arith.constant 0 : i32
    %c0_i32_0 = arith.constant 0 : i32
    return %arg0, %c0_i32 : i32, i32
  }
  func.func @transform_2(%arg0: i32) -> (i32, i32) {
    %c0_i32 = arith.constant 0 : i32
    %c0_i32_0 = arith.constant 0 : i32
    return %arg0, %c0_i32 : i32, i32
  }
}

</mosaic_0001>

<llo_original>
// kernel: tpu_custom_call.1
$region0: #{tpu_custom_call.1}
  #allocation0 [shape = 'u32[]', space=smem, size = 0x4, offset = 0x4, fixed_abs, tag = 'smem constant byte address 0x4 - core index']
  #allocation1 [shape = 'u32[144,128]{1,0:T(1,128)}', space=vmem, size = 0x12000, scoped, tag = 'internal scratch']
  %s0 = inlined_call_operand.vmem [shape: f32[2904,196], index: 0, kind: input, shape index: {}]
  %s1 = inlined_call_operand.vmem [shape: f32[2904,2], index: 1, kind: input, shape index: {}]
  %s2 = inlined_call_operand.vmem [shape: f32[2904,196], index: 2, kind: output, shape index: {}]
  %s3 = sld [smem:[#allocation0]]
  $region67: #{tpu_custom_call.1} parent=0
    _
  %s5 = ssub.s32 1, %s3
  %s6 = scalar_select 0, %s5, %s3
  $region1: #{tpu_custom_call.1} parent=0
    #allocation2 [shape = 'u8[2981888]{0}', space=vmem, size = 0x2d8000, scoped, tag = 'output window, operand 0']
    loop: start=0, step=1, limit=4
    $region2: #{tpu_custom_call.1} parent=1 // loop_pre_header
      _
    $region3: #{tpu_custom_call.1} parent=1 // loop_header
      %s8 = sphi 0, %s12
      %p9 = scmp.ge.s32.totalorder %s8, 4
      %s18 = sphi 0, %s20
      %s21 = sphi 0, %s18
      %s22 = sphi 0, %s21
      %s38 = sphi 0, %s22
      %s44 = sphi 0, %s46
      %s47 = sphi 0, %s44
      %s48 = sphi 0, %s47
      %s64 = sphi 0, %s48
      %s70 = sphi 0, %s72
      %s73 = sphi 0, %s70
      %s74 = sphi 0, %s73
      %s90 = sphi 0, %s74
    $region4: #{tpu_custom_call.1} parent=1 // loop_header_branch
      %11 = sbr.rel (%p9) target = $region8
    $region5: #{tpu_custom_call.1} parent=1 // loop_body
      %s13 = ssub.s32 %s8, 1
      %s14 = ssub.s32 %s8, 2
      %s15 = sadd.s32 %s8, 1
      %s16 = ssub.s32 %s8, %s15
      %p17 = scmp.eq.s32.totalorder %s16, 0
      %s19 = sadd.s32 %s18, 1
      %s20 = scalar_select %p17, %s18, %s19
      %p23 = pneg %p17
      %p24 = scmp.eq.s32.totalorder %s8, 1
      %p25 = por %p23, %p24
      %p26 = scmp.ne.s32.totalorder %s18, %s21
      %p27 = scmp.eq.s32.totalorder %s8, 0
      %p28 = por %p26, %p27
      %p29 = scmp.ne.s32.totalorder %s18, %s21
      %p30 = scmp.eq.s32.totalorder %s13, 1
      %p31 = por %p29, %p30
      %p32 = scmp.ne.s32.totalorder %s21, %s22
      %p33 = scmp.eq.s32.totalorder %s13, 0
      %p34 = por %p32, %p33
      %p35 = scmp.ne.s32.totalorder %s21, %s22
      %p36 = scmp.eq.s32.totalorder %s14, 1
      %p37 = por %p35, %p36
      %p39 = scmp.ne.s32.totalorder %s22, %s38
      %p40 = scmp.eq.s32.totalorder %s14, 0
      %p41 = por %p39, %p40
      %s42 = ssub.s32 %s8, %s15
      %p43 = scmp.eq.s32.totalorder %s42, 0
      %s45 = sadd.s32 %s44, 1
      %s46 = scalar_select %p43, %s44, %s45
      %p49 = pneg %p43
      %p50 = scmp.eq.s32.totalorder %s8, 1
      %p51 = por %p49, %p50
      %p52 = scmp.ne.s32.totalorder %s44, %s47
      %p53 = scmp.eq.s32.totalorder %s8, 0
      %p54 = por %p52, %p53
      %p55 = scmp.ne.s32.totalorder %s44, %s47
      %p56 = scmp.eq.s32.totalorder %s13, 1
      %p57 = por %p55, %p56
      %p58 = scmp.ne.s32.totalorder %s47, %s48
      %p59 = scmp.eq.s32.totalorder %s13, 0
      %p60 = por %p58, %p59
      %p61 = scmp.ne.s32.totalorder %s47, %s48
      %p62 = scmp.eq.s32.totalorder %s14, 1
      %p63 = por %p61, %p62
      %p65 = scmp.ne.s32.totalorder %s48, %s64
      %p66 = scmp.eq.s32.totalorder %s14, 0
      %p67 = por %p65, %p66
      %s68 = ssub.s32 %s8, %s15
      %p69 = scmp.eq.s32.totalorder %s68, 0
      %s71 = sadd.s32 %s70, 1
      %s72 = scalar_select %p69, %s70, %s71
      %p75 = pneg %p69
      %p76 = scmp.eq.s32.totalorder %s8, 1
      %p77 = por %p75, %p76
      %p78 = scmp.ne.s32.totalorder %s70, %s73
      %p79 = scmp.eq.s32.totalorder %s8, 0
      %p80 = por %p78, %p79
      %p81 = scmp.ne.s32.totalorder %s70, %s73
      %p82 = scmp.eq.s32.totalorder %s13, 1
      %p83 = por %p81, %p82
      %p84 = scmp.ne.s32.totalorder %s73, %s74
      %p85 = scmp.eq.s32.totalorder %s13, 0
      %p86 = por %p84, %p85
      %p87 = scmp.ne.s32.totalorder %s73, %s74
      %p88 = scmp.eq.s32.totalorder %s14, 1
      %p89 = por %p87, %p88
      %p91 = scmp.ne.s32.totalorder %s74, %s90
      %p92 = scmp.eq.s32.totalorder %s14, 0
      %p93 = por %p91, %p92
      %p94 = scmp.le.s32.totalorder 1, %s8
      %p95 = scmp.lt.s32.totalorder %s8, 3
      %p96 = pnand %p94, %p95
      %p97 = pneg %p96
      // Predicated region
      $region9: #{tpu_custom_call.1} parent=5 // pred_check
        _
      $region10: #{tpu_custom_call.1} parent=5 // pred_check_branch
        %99 = sbr.rel (%p96) target = $region12
      $region11: #{tpu_custom_call.1} parent=5 // pred_region
        %s100 = ssub.s32 %s8, 1
      $region12: #{tpu_custom_call.1} parent=5 // pred_fallthru
        _
      %p101 = scmp.lt.s32.totalorder %s8, 2
      // Predicated region
      $region13: #{tpu_custom_call.1} parent=5 // pred_check
        %p102 = pneg %p101
      $region14: #{tpu_custom_call.1} parent=5 // pred_check_branch
        %104 = sbr.rel (%p102) target = $region16
      $region15: #{tpu_custom_call.1} parent=5 // pred_region
        // Predicated region
        $region17: #{tpu_custom_call.1} parent=15 // pred_check
          %p105 = pneg %p28
        $region18: #{tpu_custom_call.1} parent=15 // pred_check_branch
          %107 = sbr.rel (%p105) target = $region20
        $region19: #{tpu_custom_call.1} parent=15 // pred_region
          %s108 = smul.u32 182, %s8
          %s109 = ssub.s32 363, %s108
          %p110 = scmp.lt.s32.totalorder %s109, 182
          %s111 = scalar_select %p110, %s109, 182
          %s112 = smul.u32 128, %s111
          %s113 = smul.u32 %s112, 2
          %p114 = scmp.lt.s32.totalorder %s108, 362
          %s115 = scalar_select %p114, %s108, 362
          %s116 = smul.addr %s115, 2
          %s117 = smul.addr %s116, 8
          %s118 = scalar_lea.vmem %s0, %s117
          %s119 = smul.u32 182, %s8
          %s120 = ssub.s32 363, %s119
          %p121 = scmp.lt.s32.totalorder %s120, 182
          %s122 = scalar_select %p121, %s120, 182
          %s123 = smul.u32 128, %s122
          %s124 = smul.u32 %s123, 2
        $region20: #{tpu_custom_call.1} parent=15 // pred_fallthru
          _
        // Predicated region
        $region21: #{tpu_custom_call.1} parent=15 // pred_check
          %p125 = pneg %p54
        $region22: #{tpu_custom_call.1} parent=15 // pred_check_branch
          %127 = sbr.rel (%p125) target = $region24
        $region23: #{tpu_custom_call.1} parent=15 // pred_region
          %s128 = smul.u32 182, %s8
          %s129 = ssub.s32 363, %s128
          %p130 = scmp.lt.s32.totalorder %s129, 182
          %s131 = scalar_select %p130, %s129, 182
          %s132 = smul.u32 128, %s131
          %p133 = scmp.lt.s32.totalorder %s128, 362
          %s134 = scalar_select %p133, %s128, 362
          %s135 = smul.addr %s134, 8
          %s136 = scalar_lea.vmem %s1, %s135
          %s137 = smul.u32 182, %s8
          %s138 = ssub.s32 363, %s137
          %p139 = scmp.lt.s32.totalorder %s138, 182
          %s140 = scalar_select %p139, %s138, 182
          %s141 = smul.u32 128, %s140
        $region24: #{tpu_custom_call.1} parent=15 // pred_fallthru
          _
      $region16: #{tpu_custom_call.1} parent=5 // pred_fallthru
        _
      %p142 = scmp.le.s32.totalorder 1, %s8
      %p143 = scmp.lt.s32.totalorder %s8, 3
      %p144 = pnand %p142, %p143
      %p145 = pneg %p144
      // Predicated region
      $region25: #{tpu_custom_call.1} parent=5 // pred_check
        _
      $region26: #{tpu_custom_call.1} parent=5 // pred_check_branch
        %147 = sbr.rel (%p144) target = $region28
      $region27: #{tpu_custom_call.1} parent=5 // pred_region
        %s148 = ssub.s32 %s8, 1
        %s149 = smul.u32 182, %s13
        %s150 = ssub.s32 363, %s149
        %p151 = scmp.lt.s32.totalorder %s150, 182
        %s152 = scalar_select %p151, %s150, 182
        %s153 = smul.u32 128, %s152
        %s154 = smul.u32 %s153, 2
        %p155 = scmp.lt.s32.totalorder %s149, 362
        %s156 = scalar_select %p155, %s149, 362
        %s157 = smul.addr %s156, 2
        %s158 = smul.addr %s157, 8
        %s159 = scalar_lea.vmem %s0, %s158
        %p160 = pneg %p34
        %p161 = pneg %p31
        %s162 = smul.u32 182, %s13
        %s163 = ssub.s32 363, %s162
        %p164 = scmp.lt.s32.totalorder %s163, 182
        %s165 = scalar_select %p164, %s163, 182
        %s166 = smul.u32 128, %s165
        %p167 = scmp.lt.s32.totalorder %s162, 362
        %s168 = scalar_select %p167, %s162, 362
        %s169 = smul.addr %s168, 8
        %s170 = scalar_lea.vmem %s1, %s169
        %p171 = pneg %p60
        %p172 = pneg %p57
        %p173 = pneg %p86
        %p174 = pneg %p83
        %s175 = sand.u32 %s73, 1
        %s176 = sand.u32 %s73, 1
        %s177 = smul.addr %s176, 2912
        %s178 = scalar_lea.vmem [#allocation2], %s177
        %s179 = smul.u32 182, %s13
        %s180 = ssub.s32 363, %s179
        %p181 = scmp.lt.s32.totalorder %s180, 182
        %s182 = scalar_select %p181, %s180, 182
        %s183 = smul.u32 128, %s182
        %s184 = smul.u32 %s183, 2
        %p185 = scmp.lt.s32.totalorder %s179, 362
        %s186 = scalar_select %p185, %s179, 362
        %s187 = smul.addr %s186, 2
        %s188 = smul.addr %s187, 8
        %s189 = scalar_lea.vmem %s0, %s188
        %s190 = smul.u32 182, %s13
        %s191 = ssub.s32 363, %s190
        %p192 = scmp.lt.s32.totalorder %s191, 182
        %s193 = scalar_select %p192, %s191, 182
        %s194 = smul.u32 128, %s193
        %s195 = smul.u32 %s194, 2
        %s196 = smul.u32 182, %s13
        %s197 = ssub.s32 363, %s196
        %p198 = scmp.lt.s32.totalorder %s197, 182
        %s199 = scalar_select %p198, %s197, 182
        %s200 = smul.u32 128, %s199
        %p201 = scmp.lt.s32.totalorder %s196, 362
        %s202 = scalar_select %p201, %s196, 362
        %s203 = smul.addr %s202, 8
        %s204 = scalar_lea.vmem %s1, %s203
        %s205 = smul.u32 182, %s13
        %s206 = ssub.s32 363, %s205
        %p207 = scmp.lt.s32.totalorder %s206, 182
        %s208 = scalar_select %p207, %s206, 182
        %s209 = smul.u32 128, %s208
        %s210 = smul.u32 182, %s13
        %s211 = ssub.s32 363, %s210
        %p212 = scmp.lt.s32.totalorder %s211, 182
        %s213 = scalar_select %p212, %s211, 182
        %s214 = smul.u32 128, %s213
        %s215 = smul.u32 %s214, 2
        %v216 = vld [vmem:[%s189] sm:$0xff]
        %v217 = vld [vmem:[%s189 + $0x8] sm:$0xff]
        %v218 = vld [vmem:[%s189 + $0x10] sm:$0xff]
        %v219 = vld [vmem:[%s189 + $0x18] sm:$0xff]
        %v220 = vld [vmem:[%s189 + $0x20] sm:$0xff]
        %v221 = vld [vmem:[%s189 + $0x28] sm:$0xff]
        %v222 = vld [vmem:[%s189 + $0x30] sm:$0xff]
        %v223 = vld [vmem:[%s189 + $0x38] sm:$0xff]
        %v224 = vld [vmem:[%s189 + $0x40] sm:$0xff]
        %v225 = vld [vmem:[%s189 + $0x48] sm:$0xff]
        %v226 = vld [vmem:[%s189 + $0x50] sm:$0xff]
        %v227 = vld [vmem:[%s189 + $0x58] sm:$0xff]
        %v228 = vld [vmem:[%s189 + $0x60] sm:$0xff]
        %v229 = vld [vmem:[%s189 + $0x68] sm:$0xff]
        %v230 = vld [vmem:[%s189 + $0x70] sm:$0xff]
        %v231 = vld [vmem:[%s189 + $0x78] sm:$0xff]
        %v232 = vld [vmem:[%s189 + $0x80] sm:$0xff]
        %v233 = vld [vmem:[%s189 + $0x88] sm:$0xff]
        %v234 = vld [vmem:[%s189 + $0x90] sm:$0xff]
        %v235 = vld [vmem:[%s189 + $0x98] sm:$0xff]
        %v236 = vld [vmem:[%s189 + $0xa0] sm:$0xff]
        %v237 = vld [vmem:[%s189 + $0xa8] sm:$0xff]
        %v238 = vld [vmem:[%s189 + $0xb0] sm:$0xff]
        %v239 = vld [vmem:[%s189 + $0xb8] sm:$0xff]
        %v240 = vld [vmem:[%s189 + $0xc0] sm:$0xff]
        %v241 = vld [vmem:[%s189 + $0xc8] sm:$0xff]
        %v242 = vld [vmem:[%s189 + $0xd0] sm:$0xff]
        %v243 = vld [vmem:[%s189 + $0xd8] sm:$0xff]
        %v244 = vld [vmem:[%s189 + $0xe0] sm:$0xff]
        %v245 = vld [vmem:[%s189 + $0xe8] sm:$0xff]
        %v246 = vld [vmem:[%s189 + $0xf0] sm:$0xff]
        %v247 = vld [vmem:[%s189 + $0xf8] sm:$0xff]
        %v248 = vld [vmem:[%s189 + $0x100] sm:$0xff]
        %v249 = vld [vmem:[%s189 + $0x108] sm:$0xff]
        %v250 = vld [vmem:[%s189 + $0x110] sm:$0xff]
        %v251 = vld [vmem:[%s189 + $0x118] sm:$0xff]
        %v252 = vld [vmem:[%s189 + $0x120] sm:$0xff]
        %v253 = vld [vmem:[%s189 + $0x128] sm:$0xff]
        %v254 = vld [vmem:[%s189 + $0x130] sm:$0xff]
        %v255 = vld [vmem:[%s189 + $0x138] sm:$0xff]
        %v256 = vld [vmem:[%s189 + $0x140] sm:$0xff]
        %v257 = vld [vmem:[%s189 + $0x148] sm:$0xff]
        %v258 = vld [vmem:[%s189 + $0x150] sm:$0xff]
        %v259 = vld [vmem:[%s189 + $0x158] sm:$0xff]
        %v260 = vld [vmem:[%s189 + $0x160] sm:$0xff]
        %v261 = vld [vmem:[%s189 + $0x168] sm:$0xff]
        %v262 = vld [vmem:[%s189 + $0x170] sm:$0xff]
        %v263 = vld [vmem:[%s189 + $0x178] sm:$0xff]
        %v264 = vld [vmem:[%s189 + $0x180] sm:$0xff]
        %v265 = vld [vmem:[%s189 + $0x188] sm:$0xff]
        %v266 = vld [vmem:[%s189 + $0x190] sm:$0xff]
        %v267 = vld [vmem:[%s189 + $0x198] sm:$0xff]
        %v268 = vld [vmem:[%s189 + $0x1a0] sm:$0xff]
        %v269 = vld [vmem:[%s189 + $0x1a8] sm:$0xff]
        %v270 = vld [vmem:[%s189 + $0x1b0] sm:$0xff]
        %v271 = vld [vmem:[%s189 + $0x1b8] sm:$0xff]
        %v272 = vld [vmem:[%s189 + $0x1c0] sm:$0xff]
        %v273 = vld [vmem:[%s189 + $0x1c8] sm:$0xff]
        %v274 = vld [vmem:[%s189 + $0x1d0] sm:$0xff]
        %v275 = vld [vmem:[%s189 + $0x1d8] sm:$0xff]
        %v276 = vld [vmem:[%s189 + $0x1e0] sm:$0xff]
        %v277 = vld [vmem:[%s189 + $0x1e8] sm:$0xff]
        %v278 = vld [vmem:[%s189 + $0x1f0] sm:$0xff]
        %v279 = vld [vmem:[%s189 + $0x1f8] sm:$0xff]
        %v280 = vld [vmem:[%s189 + $0x200] sm:$0xff]
        %v281 = vld [vmem:[%s189 + $0x208] sm:$0xff]
        %v282 = vld [vmem:[%s189 + $0x210] sm:$0xff]
        %v283 = vld [vmem:[%s189 + $0x218] sm:$0xff]
        %v284 = vld [vmem:[%s189 + $0x220] sm:$0xff]
        %v285 = vld [vmem:[%s189 + $0x228] sm:$0xff]
        %v286 = vld [vmem:[%s189 + $0x230] sm:$0xff]
        %v287 = vld [vmem:[%s189 + $0x238] sm:$0xff]
        %v288 = vld [vmem:[%s189 + $0x240] sm:$0xff]
        %v289 = vld [vmem:[%s189 + $0x248] sm:$0xff]
        %v290 = vld [vmem:[%s189 + $0x250] sm:$0xff]
        %v291 = vld [vmem:[%s189 + $0x258] sm:$0xff]
        %v292 = vld [vmem:[%s189 + $0x260] sm:$0xff]
        %v293 = vld [vmem:[%s189 + $0x268] sm:$0xff]
        %v294 = vld [vmem:[%s189 + $0x270] sm:$0xff]
        %v295 = vld [vmem:[%s189 + $0x278] sm:$0xff]
        %v296 = vld [vmem:[%s189 + $0x280] sm:$0xff]
        %v297 = vld [vmem:[%s189 + $0x288] sm:$0xff]
        %v298 = vld [vmem:[%s189 + $0x290] sm:$0xff]
        %v299 = vld [vmem:[%s189 + $0x298] sm:$0xff]
        %v300 = vld [vmem:[%s189 + $0x2a0] sm:$0xff]
        %v301 = vld [vmem:[%s189 + $0x2a8] sm:$0xff]
        %v302 = vld [vmem:[%s189 + $0x2b0] sm:$0xff]
        %v303 = vld [vmem:[%s189 + $0x2b8] sm:$0xff]
        %v304 = vld [vmem:[%s189 + $0x2c0] sm:$0xff]
        %v305 = vld [vmem:[%s189 + $0x2c8] sm:$0xff]
        %v306 = vld [vmem:[%s189 + $0x2d0] sm:$0xff]
        %v307 = vld [vmem:[%s189 + $0x2d8] sm:$0xff]
        %v308 = vld [vmem:[%s189 + $0x2e0] sm:$0xff]
        %v309 = vld [vmem:[%s189 + $0x2e8] sm:$0xff]
        %v310 = vld [vmem:[%s189 + $0x2f0] sm:$0xff]
        %v311 = vld [vmem:[%s189 + $0x2f8] sm:$0xff]
        %v312 = vld [vmem:[%s189 + $0x300] sm:$0xff]
        %v313 = vld [vmem:[%s189 + $0x308] sm:$0xff]
        %v314 = vld [vmem:[%s189 + $0x310] sm:$0xff]
        %v315 = vld [vmem:[%s189 + $0x318] sm:$0xff]
        %v316 = vld [vmem:[%s189 + $0x320] sm:$0xff]
        %v317 = vld [vmem:[%s189 + $0x328] sm:$0xff]
        %v318 = vld [vmem:[%s189 + $0x330] sm:$0xff]
        %v319 = vld [vmem:[%s189 + $0x338] sm:$0xff]
        %v320 = vld [vmem:[%s189 + $0x340] sm:$0xff]
        %v321 = vld [vmem:[%s189 + $0x348] sm:$0xff]
        %v322 = vld [vmem:[%s189 + $0x350] sm:$0xff]
        %v323 = vld [vmem:[%s189 + $0x358] sm:$0xff]
        %v324 = vld [vmem:[%s189 + $0x360] sm:$0xff]
        %v325 = vld [vmem:[%s189 + $0x368] sm:$0xff]
        %v326 = vld [vmem:[%s189 + $0x370] sm:$0xff]
        %v327 = vld [vmem:[%s189 + $0x378] sm:$0xff]
        %v328 = vld [vmem:[%s189 + $0x380] sm:$0xff]
        %v329 = vld [vmem:[%s189 + $0x388] sm:$0xff]
        %v330 = vld [vmem:[%s189 + $0x390] sm:$0xff]
        %v331 = vld [vmem:[%s189 + $0x398] sm:$0xff]
        %v332 = vld [vmem:[%s189 + $0x3a0] sm:$0xff]
        %v333 = vld [vmem:[%s189 + $0x3a8] sm:$0xff]
        %v334 = vld [vmem:[%s189 + $0x3b0] sm:$0xff]
        %v335 = vld [vmem:[%s189 + $0x3b8] sm:$0xff]
        %v336 = vld [vmem:[%s189 + $0x3c0] sm:$0xff]
        %v337 = vld [vmem:[%s189 + $0x3c8] sm:$0xff]
        %v338 = vld [vmem:[%s189 + $0x3d0] sm:$0xff]
        %v339 = vld [vmem:[%s189 + $0x3d8] sm:$0xff]
        %v340 = vld [vmem:[%s189 + $0x3e0] sm:$0xff]
        %v341 = vld [vmem:[%s189 + $0x3e8] sm:$0xff]
        %v342 = vld [vmem:[%s189 + $0x3f0] sm:$0xff]
        %v343 = vld [vmem:[%s189 + $0x3f8] sm:$0xff]
        %v344 = vld [vmem:[%s189 + $0x400] sm:$0xff]
        %v345 = vld [vmem:[%s189 + $0x408] sm:$0xff]
        %v346 = vld [vmem:[%s189 + $0x410] sm:$0xff]
        %v347 = vld [vmem:[%s189 + $0x418] sm:$0xff]
        %v348 = vld [vmem:[%s189 + $0x420] sm:$0xff]
        %v349 = vld [vmem:[%s189 + $0x428] sm:$0xff]
        %v350 = vld [vmem:[%s189 + $0x430] sm:$0xff]
        %v351 = vld [vmem:[%s189 + $0x438] sm:$0xff]
        %v352 = vld [vmem:[%s189 + $0x440] sm:$0xff]
        %v353 = vld [vmem:[%s189 + $0x448] sm:$0xff]
        %v354 = vld [vmem:[%s189 + $0x450] sm:$0xff]
        %v355 = vld [vmem:[%s189 + $0x458] sm:$0xff]
        %v356 = vld [vmem:[%s189 + $0x460] sm:$0xff]
        %v357 = vld [vmem:[%s189 + $0x468] sm:$0xff]
        %v358 = vld [vmem:[%s189 + $0x470] sm:$0xff]
        %v359 = vld [vmem:[%s189 + $0x478] sm:$0xff]
        %v360 = vld [vmem:[%s189 + $0x480] sm:$0xff]
        %v361 = vld [vmem:[%s189 + $0x488] sm:$0xff]
        %v362 = vld [vmem:[%s189 + $0x490] sm:$0xff]
        %v363 = vld [vmem:[%s189 + $0x498] sm:$0xff]
        %v364 = vld [vmem:[%s189 + $0x4a0] sm:$0xff]
        %v365 = vld [vmem:[%s189 + $0x4a8] sm:$0xff]
        %v366 = vld [vmem:[%s189 + $0x4b0] sm:$0xff]
        %v367 = vld [vmem:[%s189 + $0x4b8] sm:$0xff]
        %v368 = vld [vmem:[%s189 + $0x4c0] sm:$0xff]
        %v369 = vld [vmem:[%s189 + $0x4c8] sm:$0xff]
        %v370 = vld [vmem:[%s189 + $0x4d0] sm:$0xff]
        %v371 = vld [vmem:[%s189 + $0x4d8] sm:$0xff]
        %v372 = vld [vmem:[%s189 + $0x4e0] sm:$0xff]
        %v373 = vld [vmem:[%s189 + $0x4e8] sm:$0xff]
        %v374 = vld [vmem:[%s189 + $0x4f0] sm:$0xff]
        %v375 = vld [vmem:[%s189 + $0x4f8] sm:$0xff]
        %v376 = vld [vmem:[%s189 + $0x500] sm:$0xff]
        %v377 = vld [vmem:[%s189 + $0x508] sm:$0xff]
        %v378 = vld [vmem:[%s189 + $0x510] sm:$0xff]
        %v379 = vld [vmem:[%s189 + $0x518] sm:$0xff]
        %v380 = vld [vmem:[%s189 + $0x520] sm:$0xff]
        %v381 = vld [vmem:[%s189 + $0x528] sm:$0xff]
        %v382 = vld [vmem:[%s189 + $0x530] sm:$0xff]
        %v383 = vld [vmem:[%s189 + $0x538] sm:$0xff]
        %v384 = vld [vmem:[%s189 + $0x540] sm:$0xff]
        %v385 = vld [vmem:[%s189 + $0x548] sm:$0xff]
        %v386 = vld [vmem:[%s189 + $0x550] sm:$0xff]
        %v387 = vld [vmem:[%s189 + $0x558] sm:$0xff]
        %v388 = vld [vmem:[%s189 + $0x560] sm:$0xff]
        %v389 = vld [vmem:[%s189 + $0x568] sm:$0xff]
        %v390 = vld [vmem:[%s189 + $0x570] sm:$0xff]
        %v391 = vld [vmem:[%s189 + $0x578] sm:$0xff]
        %v392 = vld [vmem:[%s189 + $0x580] sm:$0xff]
        %v393 = vld [vmem:[%s189 + $0x588] sm:$0xff]
        %v394 = vld [vmem:[%s189 + $0x590] sm:$0xff]
        %v395 = vld [vmem:[%s189 + $0x598] sm:$0xff]
        %v396 = vld [vmem:[%s189 + $0x5a0] sm:$0xff]
        %v397 = vld [vmem:[%s189 + $0x5a8] sm:$0xff]
        %v398 = vld [vmem:[%s189 + $0x5b0] sm:$0xff]
        %v399 = vld [vmem:[%s189 + $0x5b8] sm:$0xff]
        %v400 = vld [vmem:[%s189 + $0x5c0] sm:$0xff]
        %v401 = vld [vmem:[%s189 + $0x5c8] sm:$0xff]
        %v402 = vld [vmem:[%s189 + $0x5d0] sm:$0xff]
        %v403 = vld [vmem:[%s189 + $0x5d8] sm:$0xff]
        %v404 = vld [vmem:[%s189 + $0x5e0] sm:$0xff]
        %v405 = vld [vmem:[%s189 + $0x5e8] sm:$0xff]
        %v406 = vld [vmem:[%s189 + $0x5f0] sm:$0xff]
        %v407 = vld [vmem:[%s189 + $0x5f8] sm:$0xff]
        %v408 = vld [vmem:[%s189 + $0x600] sm:$0xff]
        %v409 = vld [vmem:[%s189 + $0x608] sm:$0xff]
        %v410 = vld [vmem:[%s189 + $0x610] sm:$0xff]
        %v411 = vld [vmem:[%s189 + $0x618] sm:$0xff]
        %v412 = vld [vmem:[%s189 + $0x620] sm:$0xff]
        %v413 = vld [vmem:[%s189 + $0x628] sm:$0xff]
        %v414 = vld [vmem:[%s189 + $0x630] sm:$0xff]
        %v415 = vld [vmem:[%s189 + $0x638] sm:$0xff]
        %v416 = vld [vmem:[%s189 + $0x640] sm:$0xff]
        %v417 = vld [vmem:[%s189 + $0x648] sm:$0xff]
        %v418 = vld [vmem:[%s189 + $0x650] sm:$0xff]
        %v419 = vld [vmem:[%s189 + $0x658] sm:$0xff]
        %v420 = vld [vmem:[%s189 + $0x660] sm:$0xff]
        %v421 = vld [vmem:[%s189 + $0x668] sm:$0xff]
        %v422 = vld [vmem:[%s189 + $0x670] sm:$0xff]
        %v423 = vld [vmem:[%s189 + $0x678] sm:$0xff]
        %v424 = vld [vmem:[%s189 + $0x680] sm:$0xff]
        %v425 = vld [vmem:[%s189 + $0x688] sm:$0xff]
        %v426 = vld [vmem:[%s189 + $0x690] sm:$0xff]
        %v427 = vld [vmem:[%s189 + $0x698] sm:$0xff]
        %v428 = vld [vmem:[%s189 + $0x6a0] sm:$0xff]
        %v429 = vld [vmem:[%s189 + $0x6a8] sm:$0xff]
        %v430 = vld [vmem:[%s189 + $0x6b0] sm:$0xff]
        %v431 = vld [vmem:[%s189 + $0x6b8] sm:$0xff]
        %v432 = vld [vmem:[%s189 + $0x6c0] sm:$0xff]
        %v433 = vld [vmem:[%s189 + $0x6c8] sm:$0xff]
        %v434 = vld [vmem:[%s189 + $0x6d0] sm:$0xff]
        %v435 = vld [vmem:[%s189 + $0x6d8] sm:$0xff]
        %v436 = vld [vmem:[%s189 + $0x6e0] sm:$0xff]
        %v437 = vld [vmem:[%s189 + $0x6e8] sm:$0xff]
        %v438 = vld [vmem:[%s189 + $0x6f0] sm:$0xff]
        %v439 = vld [vmem:[%s189 + $0x6f8] sm:$0xff]
        %v440 = vld [vmem:[%s189 + $0x700] sm:$0xff]
        %v441 = vld [vmem:[%s189 + $0x708] sm:$0xff]
        %v442 = vld [vmem:[%s189 + $0x710] sm:$0xff]
        %v443 = vld [vmem:[%s189 + $0x718] sm:$0xff]
        %v444 = vld [vmem:[%s189 + $0x720] sm:$0xff]
        %v445 = vld [vmem:[%s189 + $0x728] sm:$0xff]
        %v446 = vld [vmem:[%s189 + $0x730] sm:$0xff]
        %v447 = vld [vmem:[%s189 + $0x738] sm:$0xff]
        %v448 = vld [vmem:[%s189 + $0x740] sm:$0xff]
        %v449 = vld [vmem:[%s189 + $0x748] sm:$0xff]
        %v450 = vld [vmem:[%s189 + $0x750] sm:$0xff]
        %v451 = vld [vmem:[%s189 + $0x758] sm:$0xff]
        %v452 = vld [vmem:[%s189 + $0x760] sm:$0xff]
        %v453 = vld [vmem:[%s189 + $0x768] sm:$0xff]
        %v454 = vld [vmem:[%s189 + $0x770] sm:$0xff]
        %v455 = vld [vmem:[%s189 + $0x778] sm:$0xff]
        %v456 = vld [vmem:[%s189 + $0x780] sm:$0xff]
        %v457 = vld [vmem:[%s189 + $0x788] sm:$0xff]
        %v458 = vld [vmem:[%s189 + $0x790] sm:$0xff]
        %v459 = vld [vmem:[%s189 + $0x798] sm:$0xff]
        %v460 = vld [vmem:[%s189 + $0x7a0] sm:$0xff]
        %v461 = vld [vmem:[%s189 + $0x7a8] sm:$0xff]
        %v462 = vld [vmem:[%s189 + $0x7b0] sm:$0xff]
        %v463 = vld [vmem:[%s189 + $0x7b8] sm:$0xff]
        %v464 = vld [vmem:[%s189 + $0x7c0] sm:$0xff]
        %v465 = vld [vmem:[%s189 + $0x7c8] sm:$0xff]
        %v466 = vld [vmem:[%s189 + $0x7d0] sm:$0xff]
        %v467 = vld [vmem:[%s189 + $0x7d8] sm:$0xff]
        %v468 = vld [vmem:[%s189 + $0x7e0] sm:$0xff]
        %v469 = vld [vmem:[%s189 + $0x7e8] sm:$0xff]
        %v470 = vld [vmem:[%s189 + $0x7f0] sm:$0xff]
        %v471 = vld [vmem:[%s189 + $0x7f8] sm:$0xff]
        %v472 = vld [vmem:[%s189 + $0x800] sm:$0xff]
        %v473 = vld [vmem:[%s189 + $0x808] sm:$0xff]
        %v474 = vld [vmem:[%s189 + $0x810] sm:$0xff]
        %v475 = vld [vmem:[%s189 + $0x818] sm:$0xff]
        %v476 = vld [vmem:[%s189 + $0x820] sm:$0xff]
        %v477 = vld [vmem:[%s189 + $0x828] sm:$0xff]
        %v478 = vld [vmem:[%s189 + $0x830] sm:$0xff]
        %v479 = vld [vmem:[%s189 + $0x838] sm:$0xff]
        %v480 = vld [vmem:[%s189 + $0x840] sm:$0xff]
        %v481 = vld [vmem:[%s189 + $0x848] sm:$0xff]
        %v482 = vld [vmem:[%s189 + $0x850] sm:$0xff]
        %v483 = vld [vmem:[%s189 + $0x858] sm:$0xff]
        %v484 = vld [vmem:[%s189 + $0x860] sm:$0xff]
        %v485 = vld [vmem:[%s189 + $0x868] sm:$0xff]
        %v486 = vld [vmem:[%s189 + $0x870] sm:$0xff]
        %v487 = vld [vmem:[%s189 + $0x878] sm:$0xff]
        %v488 = vld [vmem:[%s189 + $0x880] sm:$0xff]
        %v489 = vld [vmem:[%s189 + $0x888] sm:$0xff]
        %v490 = vld [vmem:[%s189 + $0x890] sm:$0xff]
        %v491 = vld [vmem:[%s189 + $0x898] sm:$0xff]
        %v492 = vld [vmem:[%s189 + $0x8a0] sm:$0xff]
        %v493 = vld [vmem:[%s189 + $0x8a8] sm:$0xff]
        %v494 = vld [vmem:[%s189 + $0x8b0] sm:$0xff]
        %v495 = vld [vmem:[%s189 + $0x8b8] sm:$0xff]
        %v496 = vld [vmem:[%s189 + $0x8c0] sm:$0xff]
        %v497 = vld [vmem:[%s189 + $0x8c8] sm:$0xff]
        %v498 = vld [vmem:[%s189 + $0x8d0] sm:$0xff]
        %v499 = vld [vmem:[%s189 + $0x8d8] sm:$0xff]
        %v500 = vld [vmem:[%s189 + $0x8e0] sm:$0xff]
        %v501 = vld [vmem:[%s189 + $0x8e8] sm:$0xff]
        %v502 = vld [vmem:[%s189 + $0x8f0] sm:$0xff]
        %v503 = vld [vmem:[%s189 + $0x8f8] sm:$0xff]
        %v504 = vld [vmem:[%s189 + $0x900] sm:$0xff]
        %v505 = vld [vmem:[%s189 + $0x908] sm:$0xff]
        %v506 = vld [vmem:[%s189 + $0x910] sm:$0xff]
        %v507 = vld [vmem:[%s189 + $0x918] sm:$0xff]
        %v508 = vld [vmem:[%s189 + $0x920] sm:$0xff]
        %v509 = vld [vmem:[%s189 + $0x928] sm:$0xff]
        %v510 = vld [vmem:[%s189 + $0x930] sm:$0xff]
        %v511 = vld [vmem:[%s189 + $0x938] sm:$0xff]
        %v512 = vld [vmem:[%s189 + $0x940] sm:$0xff]
        %v513 = vld [vmem:[%s189 + $0x948] sm:$0xff]
        %v514 = vld [vmem:[%s189 + $0x950] sm:$0xff]
        %v515 = vld [vmem:[%s189 + $0x958] sm:$0xff]
        %v516 = vld [vmem:[%s189 + $0x960] sm:$0xff]
        %v517 = vld [vmem:[%s189 + $0x968] sm:$0xff]
        %v518 = vld [vmem:[%s189 + $0x970] sm:$0xff]
        %v519 = vld [vmem:[%s189 + $0x978] sm:$0xff]
        %v520 = vld [vmem:[%s189 + $0x980] sm:$0xff]
        %v521 = vld [vmem:[%s189 + $0x988] sm:$0xff]
        %v522 = vld [vmem:[%s189 + $0x990] sm:$0xff]
        %v523 = vld [vmem:[%s189 + $0x998] sm:$0xff]
        %v524 = vld [vmem:[%s189 + $0x9a0] sm:$0xff]
        %v525 = vld [vmem:[%s189 + $0x9a8] sm:$0xff]
        %v526 = vld [vmem:[%s189 + $0x9b0] sm:$0xff]
        %v527 = vld [vmem:[%s189 + $0x9b8] sm:$0xff]
        %v528 = vld [vmem:[%s189 + $0x9c0] sm:$0xff]
        %v529 = vld [vmem:[%s189 + $0x9c8] sm:$0xff]
        %v530 = vld [vmem:[%s189 + $0x9d0] sm:$0xff]
        %v531 = vld [vmem:[%s189 + $0x9d8] sm:$0xff]
        %v532 = vld [vmem:[%s189 + $0x9e0] sm:$0xff]
        %v533 = vld [vmem:[%s189 + $0x9e8] sm:$0xff]
        %v534 = vld [vmem:[%s189 + $0x9f0] sm:$0xff]
        %v535 = vld [vmem:[%s189 + $0x9f8] sm:$0xff]
        %v536 = vld [vmem:[%s189 + $0xa00] sm:$0xff]
        %v537 = vld [vmem:[%s189 + $0xa08] sm:$0xff]
        %v538 = vld [vmem:[%s189 + $0xa10] sm:$0xff]
        %v539 = vld [vmem:[%s189 + $0xa18] sm:$0xff]
        %v540 = vld [vmem:[%s189 + $0xa20] sm:$0xff]
        %v541 = vld [vmem:[%s189 + $0xa28] sm:$0xff]
        %v542 = vld [vmem:[%s189 + $0xa30] sm:$0xff]
        %v543 = vld [vmem:[%s189 + $0xa38] sm:$0xff]
        %v544 = vld [vmem:[%s189 + $0xa40] sm:$0xff]
        %v545 = vld [vmem:[%s189 + $0xa48] sm:$0xff]
        %v546 = vld [vmem:[%s189 + $0xa50] sm:$0xff]
        %v547 = vld [vmem:[%s189 + $0xa58] sm:$0xff]
        %v548 = vld [vmem:[%s189 + $0xa60] sm:$0xff]
        %v549 = vld [vmem:[%s189 + $0xa68] sm:$0xff]
        %v550 = vld [vmem:[%s189 + $0xa70] sm:$0xff]
        %v551 = vld [vmem:[%s189 + $0xa78] sm:$0xff]
        %v552 = vld [vmem:[%s189 + $0xa80] sm:$0xff]
        %v553 = vld [vmem:[%s189 + $0xa88] sm:$0xff]
        %v554 = vld [vmem:[%s189 + $0xa90] sm:$0xff]
        %v555 = vld [vmem:[%s189 + $0xa98] sm:$0xff]
        %v556 = vld [vmem:[%s189 + $0xaa0] sm:$0xff]
        %v557 = vld [vmem:[%s189 + $0xaa8] sm:$0xff]
        %v558 = vld [vmem:[%s189 + $0xab0] sm:$0xff]
        %v559 = vld [vmem:[%s189 + $0xab8] sm:$0xff]
        %v560 = vld [vmem:[%s189 + $0xac0] sm:$0xff]
        %v561 = vld [vmem:[%s189 + $0xac8] sm:$0xff]
        %v562 = vld [vmem:[%s189 + $0xad0] sm:$0xff]
        %v563 = vld [vmem:[%s189 + $0xad8] sm:$0xff]
        %v564 = vld [vmem:[%s189 + $0xae0] sm:$0xff]
        %v565 = vld [vmem:[%s189 + $0xae8] sm:$0xff]
        %v566 = vld [vmem:[%s189 + $0xaf0] sm:$0xff]
        %v567 = vld [vmem:[%s189 + $0xaf8] sm:$0xff]
        %v568 = vld [vmem:[%s189 + $0xb00] sm:$0xff]
        %v569 = vld [vmem:[%s189 + $0xb08] sm:$0xff]
        %v570 = vld [vmem:[%s189 + $0xb10] sm:$0xff]
        %v571 = vld [vmem:[%s189 + $0xb18] sm:$0xff]
        %v572 = vld [vmem:[%s189 + $0xb20] sm:$0xff]
        %v573 = vld [vmem:[%s189 + $0xb28] sm:$0xff]
        %v574 = vld [vmem:[%s189 + $0xb30] sm:$0xff]
        %v575 = vld [vmem:[%s189 + $0xb38] sm:$0xff]
        %v576 = vld [vmem:[%s189 + $0xb40] sm:$0xff]
        %v577 = vld [vmem:[%s189 + $0xb48] sm:$0xff]
        %v578 = vld [vmem:[%s189 + $0xb50] sm:$0xff]
        %v579 = vld [vmem:[%s189 + $0xb58] sm:$0xff]
        %vm580 = vcmask 556032
        %v582 = vsel %vm580, %v217, 0
        %v585 = vsel %vm580, %v219, 0
        %v588 = vsel %vm580, %v221, 0
        %v591 = vsel %vm580, %v223, 0
        %v594 = vsel %vm580, %v225, 0
        %v597 = vsel %vm580, %v227, 0
        %v600 = vsel %vm580, %v229, 0
        %v603 = vsel %vm580, %v231, 0
        %v606 = vsel %vm580, %v233, 0
        %v609 = vsel %vm580, %v235, 0
        %v612 = vsel %vm580, %v237, 0
        %v615 = vsel %vm580, %v239, 0
        %v618 = vsel %vm580, %v241, 0
        %v621 = vsel %vm580, %v243, 0
        %v624 = vsel %vm580, %v245, 0
        %v627 = vsel %vm580, %v247, 0
        %v630 = vsel %vm580, %v249, 0
        %v633 = vsel %vm580, %v251, 0
        %v636 = vsel %vm580, %v253, 0
        %v639 = vsel %vm580, %v255, 0
        %v642 = vsel %vm580, %v257, 0
        %v645 = vsel %vm580, %v259, 0
        %v648 = vsel %vm580, %v261, 0
        %v651 = vsel %vm580, %v263, 0
        %v654 = vsel %vm580, %v265, 0
        %v657 = vsel %vm580, %v267, 0
        %v660 = vsel %vm580, %v269, 0
        %v663 = vsel %vm580, %v271, 0
        %v666 = vsel %vm580, %v273, 0
        %v669 = vsel %vm580, %v275, 0
        %v672 = vsel %vm580, %v277, 0
        %v675 = vsel %vm580, %v279, 0
        %v678 = vsel %vm580, %v281, 0
        %v681 = vsel %vm580, %v283, 0
        %v684 = vsel %vm580, %v285, 0
        %v687 = vsel %vm580, %v287, 0
        %v690 = vsel %vm580, %v289, 0
        %v693 = vsel %vm580, %v291, 0
        %v696 = vsel %vm580, %v293, 0
        %v699 = vsel %vm580, %v295, 0
        %v702 = vsel %vm580, %v297, 0
        %v705 = vsel %vm580, %v299, 0
        %v708 = vsel %vm580, %v301, 0
        %v711 = vsel %vm580, %v303, 0
        %v714 = vsel %vm580, %v305, 0
        %v717 = vsel %vm580, %v307, 0
        %v720 = vsel %vm580, %v309, 0
        %v723 = vsel %vm580, %v311, 0
        %v726 = vsel %vm580, %v313, 0
        %v729 = vsel %vm580, %v315, 0
        %v732 = vsel %vm580, %v317, 0
        %v735 = vsel %vm580, %v319, 0
        %v738 = vsel %vm580, %v321, 0
        %v741 = vsel %vm580, %v323, 0
        %v744 = vsel %vm580, %v325, 0
        %v747 = vsel %vm580, %v327, 0
        %v750 = vsel %vm580, %v329, 0
        %v753 = vsel %vm580, %v331, 0
        %v756 = vsel %vm580, %v333, 0
        %v759 = vsel %vm580, %v335, 0
        %v762 = vsel %vm580, %v337, 0
        %v765 = vsel %vm580, %v339, 0
        %v768 = vsel %vm580, %v341, 0
        %v771 = vsel %vm580, %v343, 0
        %v774 = vsel %vm580, %v345, 0
        %v777 = vsel %vm580, %v347, 0
        %v780 = vsel %vm580, %v349, 0
        %v783 = vsel %vm580, %v351, 0
        %v786 = vsel %vm580, %v353, 0
        %v789 = vsel %vm580, %v355, 0
        %v792 = vsel %vm580, %v357, 0
        %v795 = vsel %vm580, %v359, 0
        %v798 = vsel %vm580, %v361, 0
        %v801 = vsel %vm580, %v363, 0
        %v804 = vsel %vm580, %v365, 0
        %v807 = vsel %vm580, %v367, 0
        %v810 = vsel %vm580, %v369, 0
        %v813 = vsel %vm580, %v371, 0
        %v816 = vsel %vm580, %v373, 0
        %v819 = vsel %vm580, %v375, 0
        %v822 = vsel %vm580, %v377, 0
        %v825 = vsel %vm580, %v379, 0
        %v828 = vsel %vm580, %v381, 0
        %v831 = vsel %vm580, %v383, 0
        %v834 = vsel %vm580, %v385, 0
        %v837 = vsel %vm580, %v387, 0
        %v840 = vsel %vm580, %v389, 0
        %v843 = vsel %vm580, %v391, 0
        %v846 = vsel %vm580, %v393, 0
        %v849 = vsel %vm580, %v395, 0
        %v852 = vsel %vm580, %v397, 0
        %v855 = vsel %vm580, %v399, 0
        %v858 = vsel %vm580, %v401, 0
        %v861 = vsel %vm580, %v403, 0
        %v864 = vsel %vm580, %v405, 0
        %v867 = vsel %vm580, %v407, 0
        %v870 = vsel %vm580, %v409, 0
        %v873 = vsel %vm580, %v411, 0
        %v876 = vsel %vm580, %v413, 0
        %v879 = vsel %vm580, %v415, 0
        %v882 = vsel %vm580, %v417, 0
        %v885 = vsel %vm580, %v419, 0
        %v888 = vsel %vm580, %v421, 0
        %v891 = vsel %vm580, %v423, 0
        %v894 = vsel %vm580, %v425, 0
        %v897 = vsel %vm580, %v427, 0
        %v900 = vsel %vm580, %v429, 0
        %v903 = vsel %vm580, %v431, 0
        %v906 = vsel %vm580, %v433, 0
        %v909 = vsel %vm580, %v435, 0
        %v912 = vsel %vm580, %v437, 0
        %v915 = vsel %vm580, %v439, 0
        %v918 = vsel %vm580, %v441, 0
        %v921 = vsel %vm580, %v443, 0
        %v924 = vsel %vm580, %v445, 0
        %v927 = vsel %vm580, %v447, 0
        %v930 = vsel %vm580, %v449, 0
        %v933 = vsel %vm580, %v451, 0
        %v936 = vsel %vm580, %v453, 0
        %v939 = vsel %vm580, %v455, 0
        %v942 = vsel %vm580, %v457, 0
        %v945 = vsel %vm580, %v459, 0
        %v948 = vsel %vm580, %v461, 0
        %v951 = vsel %vm580, %v463, 0
        %v954 = vsel %vm580, %v465, 0
        %v957 = vsel %vm580, %v467, 0
        %v960 = vsel %vm580, %v469, 0
        %v963 = vsel %vm580, %v471, 0
        %v966 = vsel %vm580, %v473, 0
        %v969 = vsel %vm580, %v475, 0
        %v972 = vsel %vm580, %v477, 0
        %v975 = vsel %vm580, %v479, 0
        %v978 = vsel %vm580, %v481, 0
        %v981 = vsel %vm580, %v483, 0
        %v984 = vsel %vm580, %v485, 0
        %v987 = vsel %vm580, %v487, 0
        %v990 = vsel %vm580, %v489, 0
        %v993 = vsel %vm580, %v491, 0
        %v996 = vsel %vm580, %v493, 0
        %v999 = vsel %vm580, %v495, 0
        %v1002 = vsel %vm580, %v497, 0
        %v1005 = vsel %vm580, %v499, 0
        %v1008 = vsel %vm580, %v501, 0
        %v1011 = vsel %vm580, %v503, 0
        %v1014 = vsel %vm580, %v505, 0
        %v1017 = vsel %vm580, %v507, 0
        %v1020 = vsel %vm580, %v509, 0
        %v1023 = vsel %vm580, %v511, 0
        %v1026 = vsel %vm580, %v513, 0
        %v1029 = vsel %vm580, %v515, 0
        %v1032 = vsel %vm580, %v517, 0
        %v1035 = vsel %vm580, %v519, 0
        %v1038 = vsel %vm580, %v521, 0
        %v1041 = vsel %vm580, %v523, 0
        %v1044 = vsel %vm580, %v525, 0
        %v1047 = vsel %vm580, %v527, 0
        %v1050 = vsel %vm580, %v529, 0
        %v1053 = vsel %vm580, %v531, 0
        %v1056 = vsel %vm580, %v533, 0
        %v1059 = vsel %vm580, %v535, 0
        %v1062 = vsel %vm580, %v537, 0
        %v1065 = vsel %vm580, %v539, 0
        %v1068 = vsel %vm580, %v541, 0
        %v1071 = vsel %vm580, %v543, 0
        %v1074 = vsel %vm580, %v545, 0
        %v1077 = vsel %vm580, %v547, 0
        %v1080 = vsel %vm580, %v549, 0
        %v1083 = vsel %vm580, %v551, 0
        %v1086 = vsel %vm580, %v553, 0
        %v1089 = vsel %vm580, %v555, 0
        %v1092 = vsel %vm580, %v557, 0
        %v1095 = vsel %vm580, %v559, 0
        %v1098 = vsel %vm580, %v561, 0
        %v1101 = vsel %vm580, %v563, 0
        %v1104 = vsel %vm580, %v565, 0
        %v1107 = vsel %vm580, %v567, 0
        %v1110 = vsel %vm580, %v569, 0
        %v1113 = vsel %vm580, %v571, 0
        %v1116 = vsel %vm580, %v573, 0
        %v1119 = vsel %vm580, %v575, 0
        %v1122 = vsel %vm580, %v577, 0
        %v1125 = vsel %vm580, %v579, 0
        %vm1127 = vcmask 1043456
        %v1129 = vsel %vm1127, 1.0, 0
        %1131 = vmatprep.subr.mxu0 0.0
        %1132 = vmatpush1.msra.mxu0 1.0
        %1133 = vmatprep.subr.mxu0 0.0
        %1134 = vmatpush1.msra.mxu0 1.0
        %1135 = vmatprep.subr.mxu0 0.0
        %1136 = vmatpush1.msra.mxu0 1.0
        %1137 = vmatprep.subr.mxu0 0.0
        %1138 = vmatpush1.msra.mxu0 1.0
        %1139 = vmatprep.subr.mxu0 0.0
        %1140 = vmatpush1.msra.mxu0 1.0
        %1141 = vmatprep.subr.mxu0 0.0
        %1142 = vmatpush1.msra.mxu0 1.0
        %1143 = vmatprep.subr.mxu0 0.0
        %1144 = vmatpush1.msra.mxu0 1.0
        %1145 = vmatprep.subr.mxu0 0.0
        %1146 = vmatpush1.msra.mxu0 1.0
        %1147 = vmatprep.subr.mxu0 0.0
        %1148 = vmatpush1.msra.mxu0 1.0
        %1149 = vmatprep.subr.mxu0 0.0
        %1150 = vmatpush1.msra.mxu0 1.0
        %1151 = vmatprep.subr.mxu0 0.0
        %1152 = vmatpush1.msra.mxu0 1.0
        %1153 = vmatprep.subr.mxu0 0.0
        %1154 = vmatpush1.msra.mxu0 1.0
        %1155 = vmatprep.subr.mxu0 0.0
        %1156 = vmatpush1.msra.mxu0 1.0
        %1157 = vmatprep.subr.mxu0 0.0
        %1158 = vmatpush1.msra.mxu0 1.0
        %1159 = vmatprep.subr.mxu0 0.0
        %1160 = vmatpush1.msra.mxu0 1.0
        %1161 = vmatprep.subr.mxu0 0.0
        %1162 = vmatpush1.msra.mxu0 1.0
        %1163 = vmatprep.subr.mxu0 0.0
        %1164 = vmatpush1.msra.mxu0 1.0
        %1165 = vmatprep.subr.mxu0 0.0
        %1166 = vmatpush1.msra.mxu0 1.0
        %1167 = vmatprep.subr.mxu0 0.0
        %1168 = vmatpush1.msra.mxu0 1.0
        %1169 = vmatprep.subr.mxu0 0.0
        %1170 = vmatpush1.msra.mxu0 1.0
        %1171 = vmatprep.subr.mxu0 0.0
        %1172 = vmatpush1.msra.mxu0 1.0
        %1173 = vmatprep.subr.mxu0 0.0
        %1174 = vmatpush1.msra.mxu0 1.0
        %1175 = vmatprep.subr.mxu0 0.0
        %1176 = vmatpush1.msra.mxu0 1.0
        %1177 = vmatprep.subr.mxu0 0.0
        %1178 = vmatpush1.msra.mxu0 1.0
        %1179 = vmatprep.subr.mxu0 0.0
        %1180 = vmatpush1.msra.mxu0 %v1129
        %1181 = vmatprep.subr.mxu0 0.0
        %1182 = vmatpush1.msra.mxu0 0.0
        %1183 = vmatprep.subr.mxu0 0.0
        %1184 = vmatpush1.msra.mxu0 0.0
        %1185 = vmatprep.subr.mxu0 0.0
        %1186 = vmatpush1.msra.mxu0 0.0
        %1187 = vmatprep.subr.mxu0 0.0
        %1188 = vmatpush1.msra.mxu0 0.0
        %1189 = vmatprep.subr.mxu0 0.0
        %1190 = vmatpush1.msra.mxu0 0.0
        %1191 = vmatprep.subr.mxu0 0.0
        %1192 = vmatpush1.msra.mxu0 0.0
        %1193 = vmatprep.subr.mxu0 0.0
        %1194 = vmatpush1.msra.mxu0 0.0
        %1195 = vmatprep.mubr.f32.mxu0 %v582
        %1196 = vmatmul.mubr.f32.gmra.mrb[0].mxu0 %v216
        %v1197 = vpop.f32.mrb[0].mxu0
        %v1198 = vadd.f32 0.0, %v1197
        %v1199 = vpop.f32.mrb[0].mxu0
        %1200 = vmatprep.mubr.f32.mxu0 %v585
        %1201 = vmatmul.mubr.f32.gmra.mrb[0].mxu0 %v218
        %v1202 = vpop.f32.mrb[0].mxu0
        %v1203 = vadd.f32 0.0, %v1202
        %v1204 = vpop.f32.mrb[0].mxu0
        %1205 = vmatprep.mubr.f32.mxu0 %v588
        %1206 = vmatmul.mubr.f32.gmra.mrb[0].mxu0 %v220
        %v1207 = vpop.f32.mrb[0].mxu0
        %v1208 = vadd.f32 0.0, %v1207
        %v1209 = vpop.f32.mrb[0].mxu0
        %1210 = vmatprep.mubr.f32.mxu0 %v591
        %1211 = vmatmul.mubr.f32.gmra.mrb[0].mxu0 %v222
        %v1212 = vpop.f32.mrb[0].mxu0
        %v1213 = vadd.f32 0.0, %v1212
        %v1214 = vpop.f32.mrb[0].mxu0
        %1215 = vmatprep.mubr.f32.mxu0 %v594
        %1216 = vmatmul.mubr.f32.gmra.mrb[0].mxu0 %v224
        %v1217 = vpop.f32.mrb[0].mxu0
        %v1218 = vadd.f32 0.0, %v1217
        %v1219 = vpop.f32.mrb[0].mxu0
        %1220 = vmatprep.mubr.f32.mxu0 %v597
        %1221 = vmatmul.mubr.f32.gmra.mrb[0].mxu0 %v226
        %v1222 = vpop.f32.mrb[0].mxu0
        %v1223 = vadd.f32 0.0, %v1222
        %v1224 = vpop.f32.mrb[0].mxu0
        %1225 = vmatprep.mubr.f32.mxu0 %v600
        %1226 = vmatmul.mubr.f32.gmra.mrb[0].mxu0 %v228
        %v1227 = vpop.f32.mrb[0].mxu0
        %v1228 = vadd.f32 0.0, %v1227
        %v1229 = vpop.f32.mrb[0].mxu0
        %1230 = vmatprep.mubr.f32.mxu0 %v603
        %1231 = vmatmul.mubr.f32.gmra.mrb[0].mxu0 %v230
        %v1232 = vpop.f32.mrb[0].mxu0
        %v1233 = vadd.f32 0.0, %v1232
        %v1234 = vpop.f32.mrb[0].mxu0
        %1235 = vmatprep.mubr.f32.mxu0 %v606
        %1236 = vmatmul.mubr.f32.gmra.mrb[0].mxu0 %v232
        %v1237 = vpop.f32.mrb[0].mxu0
        %v1238 = vadd.f32 0.0, %v1237
        %v1239 = vpop.f32.mrb[0].mxu0
        %1240 = vmatprep.mubr.f32.mxu0 %v609
        %1241 = vmatmul.mubr.f32.gmra.mrb[0].mxu0 %v234
        %v1242 = vpop.f32.mrb[0].mxu0
        %v1243 = vadd.f32 0.0, %v1242
        %v1244 = vpop.f32.mrb[0].mxu0
        %1245 = vmatprep.mubr.f32.mxu0 %v612
        %1246 = vmatmul.mubr.f32.gmra.mrb[0].mxu0 %v236
        %v1247 = vpop.f32.mrb[0].mxu0
        %v1248 = vadd.f32 0.0, %v1247
        %v1249 = vpop.f32.mrb[0].mxu0
        %1250 = vmatprep.mubr.f32.mxu0 %v615
        %1251 = vmatmul.mubr.f32.gmra.mrb[0].mxu0 %v238
        %v1252 = vpop.f32.mrb[0].mxu0
        %v1253 = vadd.f32 0.0, %v1252
        %v1254 = vpop.f32.mrb[0].mxu0
        %1255 = vmatprep.mubr.f32.mxu0 %v618
        %1256 = vmatmul.mubr.f32.gmra.mrb[0].mxu0 %v240
        %v1257 = vpop.f32.mrb[0].mxu0
        %v1258 = vadd.f32 0.0, %v1257
        %v1259 = vpop.f32.mrb[0].mxu0
        %1260 = vmatprep.mubr.f32.mxu0 %v621
        %1261 = vmatmul.mubr.f32.gmra.mrb[0].mxu0 %v242
        %v1262 = vpop.f32.mrb[0].mxu0
        %v1263 = vadd.f32 0.0, %v1262
        %v1264 = vpop.f32.mrb[0].mxu0
        %1265 = vmatprep.mubr.f32.mxu0 %v624
        %1266 = vmatmul.mubr.f32.gmra.mrb[0].mxu0 %v244
        %v1267 = vpop.f32.mrb[0].mxu0
        %v1268 = vadd.f32 0.0, %v1267
        %v1269 = vpop.f32.mrb[0].mxu0
        %1270 = vmatprep.mubr.f32.mxu0 %v627
        %1271 = vmatmul.mubr.f32.gmra.mrb[0].mxu0 %v246
        %v1272 = vpop.f32.mrb[0].mxu0
        %v1273 = vadd.f32 0.0, %v1272
        %v1274 = vpop.f32.mrb[0].mxu0
        %1275 = vmatprep.mubr.f32.mxu0 %v630
        %1276 = vmatmul.mubr.f32.gmra.mrb[0].mxu0 %v248
        %v1277 = vpop.f32.mrb[0].mxu0
        %v1278 = vadd.f32 0.0, %v1277
        %v1279 = vpop.f32.mrb[0].mxu0
        %1280 = vmatprep.mubr.f32.mxu0 %v633
        %1281 = vmatmul.mubr.f32.gmra.mrb[0].mxu0 %v250
        %v1282 = vpop.f32.mrb[0].mxu0
        %v1283 = vadd.f32 0.0, %v1282
        %v1284 = vpop.f32.mrb[0].mxu0
        %1285 = vmatprep.mubr.f32.mxu0 %v636
        %1286 = vmatmul.mubr.f32.gmra.mrb[0].mxu0 %v252
        %v1287 = vpop.f32.mrb[0].mxu0
        %v1288 = vadd.f32 0.0, %v1287
        %v1289 = vpop.f32.mrb[0].mxu0
        %1290 = vmatprep.mubr.f32.mxu0 %v639
        %1291 = vmatmul.mubr.f32.gmra.mrb[0].mxu0 %v254
        %v1292 = vpop.f32.mrb[0].mxu0
        %v1293 = vadd.f32 0.0, %v1292
        %v1294 = vpop.f32.mrb[0].mxu0
        %1295 = vmatprep.mubr.f32.mxu0 %v642
        %1296 = vmatmul.mubr.f32.gmra.mrb[0].mxu0 %v256
        %v1297 = vpop.f32.mrb[0].mxu0
        %v1298 = vadd.f32 0.0, %v1297
        %v1299 = vpop.f32.mrb[0].mxu0
        %1300 = vmatprep.mubr.f32.mxu0 %v645
        %1301 = vmatmul.mubr.f32.gmra.mrb[0].mxu0 %v258
        %v1302 = vpop.f32.mrb[0].mxu0
        %v1303 = vadd.f32 0.0, %v1302
        %v1304 = vpop.f32.mrb[0].mxu0
        %1305 = vmatprep.mubr.f32.mxu0 %v648
        %1306 = vmatmul.mubr.f32.gmra.mrb[0].mxu0 %v260
        %v1307 = vpop.f32.mrb[0].mxu0
        %v1308 = vadd.f32 0.0, %v1307
        %v1309 = vpop.f32.mrb[0].mxu0
        %1310 = vmatprep.mubr.f32.mxu0 %v651
        %1311 = vmatmul.mubr.f32.gmra.mrb[0].mxu0 %v262
        %v1312 = vpop.f32.mrb[0].mxu0
        %v1313 = vadd.f32 0.0, %v1312
        %v1314 = vpop.f32.mrb[0].mxu0
        %1315 = vmatprep.mubr.f32.mxu0 %v654
        %1316 = vmatmul.mubr.f32.gmra.mrb[0].mxu0 %v264
        %v1317 = vpop.f32.mrb[0].mxu0
        %v1318 = vadd.f32 0.0, %v1317
        %v1319 = vpop.f32.mrb[0].mxu0
        %1320 = vmatprep.mubr.f32.mxu0 %v657
        %1321 = vmatmul.mubr.f32.gmra.mrb[0].mxu0 %v266
        %v1322 = vpop.f32.mrb[0].mxu0
        %v1323 = vadd.f32 0.0, %v1322
        %v1324 = vpop.f32.mrb[0].mxu0
        %1325 = vmatprep.mubr.f32.mxu0 %v660
        %1326 = vmatmul.mubr.f32.gmra.mrb[0].mxu0 %v268
        %v1327 = vpop.f32.mrb[0].mxu0
        %v1328 = vadd.f32 0.0, %v1327
        %v1329 = vpop.f32.mrb[0].mxu0
        %1330 = vmatprep.mubr.f32.mxu0 %v663
        %1331 = vmatmul.mubr.f32.gmra.mrb[0].mxu0 %v270
        %v1332 = vpop.f32.mrb[0].mxu0
        %v1333 = vadd.f32 0.0, %v1332
        %v1334 = vpop.f32.mrb[0].mxu0
        %1335 = vmatprep.mubr.f32.mxu0 %v666
        %1336 = vmatmul.mubr.f32.gmra.mrb[0].mxu0 %v272
        %v1337 = vpop.f32.mrb[0].mxu0
        %v1338 = vadd.f32 0.0, %v1337
        %v1339 = vpop.f32.mrb[0].mxu0
        %1340 = vmatprep.mubr.f32.mxu0 %v669
        %1341 = vmatmul.mubr.f32.gmra.mrb[0].mxu0 %v274
        %v1342 = vpop.f32.mrb[0].mxu0
        %v1343 = vadd.f32 0.0, %v1342
        %v1344 = vpop.f32.mrb[0].mxu0
        %1345 = vmatprep.mubr.f32.mxu0 %v672
        %1346 = vmatmul.mubr.f32.gmra.mrb[0].mxu0 %v276
        %v1347 = vpop.f32.mrb[0].mxu0
        %v1348 = vadd.f32 0.0, %v1347
        %v1349 = vpop.f32.mrb[0].mxu0
        %1350 = vmatprep.mubr.f32.mxu0 %v675
        %1351 = vmatmul.mubr.f32.gmra.mrb[0].mxu0 %v278
        %v1352 = vpop.f32.mrb[0].mxu0
        %v1353 = vadd.f32 0.0, %v1352
        %v1354 = vpop.f32.mrb[0].mxu0
        %1355 = vmatprep.mubr.f32.mxu0 %v678
        %1356 = vmatmul.mubr.f32.gmra.mrb[0].mxu0 %v280
        %v1357 = vpop.f32.mrb[0].mxu0
        %v1358 = vadd.f32 0.0, %v1357
        %v1359 = vpop.f32.mrb[0].mxu0
        %1360 = vmatprep.mubr.f32.mxu0 %v681
        %1361 = vmatmul.mubr.f32.gmra.mrb[0].mxu0 %v282
        %v1362 = vpop.f32.mrb[0].mxu0
        %v1363 = vadd.f32 0.0, %v1362
        %v1364 = vpop.f32.mrb[0].mxu0
        %1365 = vmatprep.mubr.f32.mxu0 %v684
        %1366 = vmatmul.mubr.f32.gmra.mrb[0].mxu0 %v284
        %v1367 = vpop.f32.mrb[0].mxu0
        %v1368 = vadd.f32 0.0, %v1367
        %v1369 = vpop.f32.mrb[0].mxu0
        %1370 = vmatprep.mubr.f32.mxu0 %v687
        %1371 = vmatmul.mubr.f32.gmra.mrb[0].mxu0 %v286
        %v1372 = vpop.f32.mrb[0].mxu0
        %v1373 = vadd.f32 0.0, %v1372
        %v1374 = vpop.f32.mrb[0].mxu0
        %1375 = vmatprep.mubr.f32.mxu0 %v690
        %1376 = vmatmul.mubr.f32.gmra.mrb[0].mxu0 %v288
        %v1377 = vpop.f32.mrb[0].mxu0
        %v1378 = vadd.f32 0.0, %v1377
        %v1379 = vpop.f32.mrb[0].mxu0
        %1380 = vmatprep.mubr.f32.mxu0 %v693
        %1381 = vmatmul.mubr.f32.gmra.mrb[0].mxu0 %v290
        %v1382 = vpop.f32.mrb[0].mxu0
        %v1383 = vadd.f32 0.0, %v1382
        %v1384 = vpop.f32.mrb[0].mxu0
        %1385 = vmatprep.mubr.f32.mxu0 %v696
        %1386 = vmatmul.mubr.f32.gmra.mrb[0].mxu0 %v292
        %v1387 = vpop.f32.mrb[0].mxu0
        %v1388 = vadd.f32 0.0, %v1387
        %v1389 = vpop.f32.mrb[0].mxu0
        %1390 = vmatprep.mubr.f32.mxu0 %v699
        %1391 = vmatmul.mubr.f32.gmra.mrb[0].mxu0 %v294
        %v1392 = vpop.f32.mrb[0].mxu0
        %v1393 = vadd.f32 0.0, %v1392
        %v1394 = vpop.f32.mrb[0].mxu0
        %1395 = vmatprep.mubr.f32.mxu0 %v702
        %1396 = vmatmul.mubr.f32.gmra.mrb[0].mxu0 %v296
        %v1397 = vpop.f32.mrb[0].mxu0
        %v1398 = vadd.f32 0.0, %v1397
        %v1399 = vpop.f32.mrb[0].mxu0
        %1400 = vmatprep.mubr.f32.mxu0 %v705
        %1401 = vmatmul.mubr.f32.gmra.mrb[0].mxu0 %v298
        %v1402 = vpop.f32.mrb[0].mxu0
        %v1403 = vadd.f32 0.0, %v1402
        %v1404 = vpop.f32.mrb[0].mxu0
        %1405 = vmatprep.mubr.f32.mxu0 %v708
        %1406 = vmatmul.mubr.f32.gmra.mrb[0].mxu0 %v300
        %v1407 = vpop.f32.mrb[0].mxu0
        %v1408 = vadd.f32 0.0, %v1407
        %v1409 = vpop.f32.mrb[0].mxu0
        %1410 = vmatprep.mubr.f32.mxu0 %v711
        %1411 = vmatmul.mubr.f32.gmra.mrb[0].mxu0 %v302
        %v1412 = vpop.f32.mrb[0].mxu0
        %v1413 = vadd.f32 0.0, %v1412
        %v1414 = vpop.f32.mrb[0].mxu0
        %1415 = vmatprep.mubr.f32.mxu0 %v714
        %1416 = vmatmul.mubr.f32.gmra.mrb[0].mxu0 %v304
        %v1417 = vpop.f32.mrb[0].mxu0
        %v1418 = vadd.f32 0.0, %v1417
        %v1419 = vpop.f32.mrb[0].mxu0
        %1420 = vmatprep.mubr.f32.mxu0 %v717
        %1421 = vmatmul.mubr.f32.gmra.mrb[0].mxu0 %v306
        %v1422 = vpop.f32.mrb[0].mxu0
        %v1423 = vadd.f32 0.0, %v1422
        %v1424 = vpop.f32.mrb[0].mxu0
        %1425 = vmatprep.mubr.f32.mxu0 %v720
        %1426 = vmatmul.mubr.f32.gmra.mrb[0].mxu0 %v308
        %v1427 = vpop.f32.mrb[0].mxu0
        %v1428 = vadd.f32 0.0, %v1427
        %v1429 = vpop.f32.mrb[0].mxu0
        %1430 = vmatprep.mubr.f32.mxu0 %v723
        %1431 = vmatmul.mubr.f32.gmra.mrb[0].mxu0 %v310
        %v1432 = vpop.f32.mrb[0].mxu0
        %v1433 = vadd.f32 0.0, %v1432
        %v1434 = vpop.f32.mrb[0].mxu0
        %1435 = vmatprep.mubr.f32.mxu0 %v726
        %1436 = vmatmul.mubr.f32.gmra.mrb[0].mxu0 %v312
        %v1437 = vpop.f32.mrb[0].mxu0
        %v1438 = vadd.f32 0.0, %v1437
        %v1439 = vpop.f32.mrb[0].mxu0
        %1440 = vmatprep.mubr.f32.mxu0 %v729
        %1441 = vmatmul.mubr.f32.gmra.mrb[0].mxu0 %v314
        %v1442 = vpop.f32.mrb[0].mxu0
        %v1443 = vadd.f32 0.0, %v1442
        %v1444 = vpop.f32.mrb[0].mxu0
        %1445 = vmatprep.mubr.f32.mxu0 %v732
        %1446 = vmatmul.mubr.f32.gmra.mrb[0].mxu0 %v316
        %v1447 = vpop.f32.mrb[0].mxu0
        %v1448 = vadd.f32 0.0, %v1447
        %v1449 = vpop.f32.mrb[0].mxu0
        %1450 = vmatprep.mubr.f32.mxu0 %v735
        %1451 = vmatmul.mubr.f32.gmra.mrb[0].mxu0 %v318
        %v1452 = vpop.f32.mrb[0].mxu0
        %v1453 = vadd.f32 0.0, %v1452
        %v1454 = vpop.f32.mrb[0].mxu0
        %1455 = vmatprep.mubr.f32.mxu0 %v738
        %1456 = vmatmul.mubr.f32.gmra.mrb[0].mxu0 %v320
        %v1457 = vpop.f32.mrb[0].mxu0
        %v1458 = vadd.f32 0.0, %v1457
        %v1459 = vpop.f32.mrb[0].mxu0
        %1460 = vmatprep.mubr.f32.mxu0 %v741
        %1461 = vmatmul.mubr.f32.gmra.mrb[0].mxu0 %v322
        %v1462 = vpop.f32.mrb[0].mxu0
        %v1463 = vadd.f32 0.0, %v1462
        %v1464 = vpop.f32.mrb[0].mxu0
        %1465 = vmatprep.mubr.f32.mxu0 %v744
        %1466 = vmatmul.mubr.f32.gmra.mrb[0].mxu0 %v324
        %v1467 = vpop.f32.mrb[0].mxu0
        %v1468 = vadd.f32 0.0, %v1467
        %v1469 = vpop.f32.mrb[0].mxu0
        %1470 = vmatprep.mubr.f32.mxu0 %v747
        %1471 = vmatmul.mubr.f32.gmra.mrb[0].mxu0 %v326
        %v1472 = vpop.f32.mrb[0].mxu0
        %v1473 = vadd.f32 0.0, %v1472
        %v1474 = vpop.f32.mrb[0].mxu0
        %1475 = vmatprep.mubr.f32.mxu0 %v750
        %1476 = vmatmul.mubr.f32.gmra.mrb[0].mxu0 %v328
        %v1477 = vpop.f32.mrb[0].mxu0
        %v1478 = vadd.f32 0.0, %v1477
        %v1479 = vpop.f32.mrb[0].mxu0
        %1480 = vmatprep.mubr.f32.mxu0 %v753
        %1481 = vmatmul.mubr.f32.gmra.mrb[0].mxu0 %v330
        %v1482 = vpop.f32.mrb[0].mxu0
        %v1483 = vadd.f32 0.0, %v1482
        %v1484 = vpop.f32.mrb[0].mxu0
        %1485 = vmatprep.mubr.f32.mxu0 %v756
        %1486 = vmatmul.mubr.f32.gmra.mrb[0].mxu0 %v332
        %v1487 = vpop.f32.mrb[0].mxu0
        %v1488 = vadd.f32 0.0, %v1487
        %v1489 = vpop.f32.mrb[0].mxu0
        %1490 = vmatprep.mubr.f32.mxu0 %v759
        %1491 = vmatmul.mubr.f32.gmra.mrb[0].mxu0 %v334
        %v1492 = vpop.f32.mrb[0].mxu0
        %v1493 = vadd.f32 0.0, %v1492
        %v1494 = vpop.f32.mrb[0].mxu0
        %1495 = vmatprep.mubr.f32.mxu0 %v762
        %1496 = vmatmul.mubr.f32.gmra.mrb[0].mxu0 %v336
        %v1497 = vpop.f32.mrb[0].mxu0
        %v1498 = vadd.f32 0.0, %v1497
        %v1499 = vpop.f32.mrb[0].mxu0
        %1500 = vmatprep.mubr.f32.mxu0 %v765
        %1501 = vmatmul.mubr.f32.gmra.mrb[0].mxu0 %v338
        %v1502 = vpop.f32.mrb[0].mxu0
        %v1503 = vadd.f32 0.0, %v1502
        %v1504 = vpop.f32.mrb[0].mxu0
        %1505 = vmatprep.mubr.f32.mxu0 %v768
        %1506 = vmatmul.mubr.f32.gmra.mrb[0].mxu0 %v340
        %v1507 = vpop.f32.mrb[0].mxu0
        %v1508 = vadd.f32 0.0, %v1507
        %v1509 = vpop.f32.mrb[0].mxu0
        %1510 = vmatprep.mubr.f32.mxu0 %v771
        %1511 = vmatmul.mubr.f32.gmra.mrb[0].mxu0 %v342
        %v1512 = vpop.f32.mrb[0].mxu0
        %v1513 = vadd.f32 0.0, %v1512
        %v1514 = vpop.f32.mrb[0].mxu0
        %1515 = vmatprep.mubr.f32.mxu0 %v774
        %1516 = vmatmul.mubr.f32.gmra.mrb[0].mxu0 %v344
        %v1517 = vpop.f32.mrb[0].mxu0
        %v1518 = vadd.f32 0.0, %v1517
        %v1519 = vpop.f32.mrb[0].mxu0
        %1520 = vmatprep.mubr.f32.mxu0 %v777
        %1521 = vmatmul.mubr.f32.gmra.mrb[0].mxu0 %v346
        %v1522 = vpop.f32.mrb[0].mxu0
        %v1523 = vadd.f32 0.0, %v1522
        %v1524 = vpop.f32.mrb[0].mxu0
        %1525 = vmatprep.mubr.f32.mxu0 %v780
        %1526 = vmatmul.mubr.f32.gmra.mrb[0].mxu0 %v348
        %v1527 = vpop.f32.mrb[0].mxu0
        %v1528 = vadd.f32 0.0, %v1527
        %v1529 = vpop.f32.mrb[0].mxu0
        %1530 = vmatprep.mubr.f32.mxu0 %v783
        %1531 = vmatmul.mubr.f32.gmra.mrb[0].mxu0 %v350
        %v1532 = vpop.f32.mrb[0].mxu0
        %v1533 = vadd.f32 0.0, %v1532
        %v1534 = vpop.f32.mrb[0].mxu0
        %1535 = vmatprep.mubr.f32.mxu0 %v786
        %1536 = vmatmul.mubr.f32.gmra.mrb[0].mxu0 %v352
        %v1537 = vpop.f32.mrb[0].mxu0
        %v1538 = vadd.f32 0.0, %v1537
        %v1539 = vpop.f32.mrb[0].mxu0
        %1540 = vmatprep.mubr.f32.mxu0 %v789
        %1541 = vmatmul.mubr.f32.gmra.mrb[0].mxu0 %v354
        %v1542 = vpop.f32.mrb[0].mxu0
        %v1543 = vadd.f32 0.0, %v1542
        %v1544 = vpop.f32.mrb[0].mxu0
        %1545 = vmatprep.mubr.f32.mxu0 %v792
        %1546 = vmatmul.mubr.f32.gmra.mrb[0].mxu0 %v356
        %v1547 = vpop.f32.mrb[0].mxu0
        %v1548 = vadd.f32 0.0, %v1547
        %v1549 = vpop.f32.mrb[0].mxu0
        %1550 = vmatprep.mubr.f32.mxu0 %v795
        %1551 = vmatmul.mubr.f32.gmra.mrb[0].mxu0 %v358
        %v1552 = vpop.f32.mrb[0].mxu0
        %v1553 = vadd.f32 0.0, %v1552
        %v1554 = vpop.f32.mrb[0].mxu0
        %1555 = vmatprep.mubr.f32.mxu0 %v798
        %1556 = vmatmul.mubr.f32.gmra.mrb[0].mxu0 %v360
        %v1557 = vpop.f32.mrb[0].mxu0
        %v1558 = vadd.f32 0.0, %v1557
        %v1559 = vpop.f32.mrb[0].mxu0
        %1560 = vmatprep.mubr.f32.mxu0 %v801
        %1561 = vmatmul.mubr.f32.gmra.mrb[0].mxu0 %v362
        %v1562 = vpop.f32.mrb[0].mxu0
        %v1563 = vadd.f32 0.0, %v1562
        %v1564 = vpop.f32.mrb[0].mxu0
        %1565 = vmatprep.mubr.f32.mxu0 %v804
        %1566 = vmatmul.mubr.f32.gmra.mrb[0].mxu0 %v364
        %v1567 = vpop.f32.mrb[0].mxu0
        %v1568 = vadd.f32 0.0, %v1567
        %v1569 = vpop.f32.mrb[0].mxu0
        %1570 = vmatprep.mubr.f32.mxu0 %v807
        %1571 = vmatmul.mubr.f32.gmra.mrb[0].mxu0 %v366
        %v1572 = vpop.f32.mrb[0].mxu0
        %v1573 = vadd.f32 0.0, %v1572
        %v1574 = vpop.f32.mrb[0].mxu0
        %1575 = vmatprep.mubr.f32.mxu0 %v810
        %1576 = vmatmul.mubr.f32.gmra.mrb[0].mxu0 %v368
        %v1577 = vpop.f32.mrb[0].mxu0
        %v1578 = vadd.f32 0.0, %v1577
        %v1579 = vpop.f32.mrb[0].mxu0
        %1580 = vmatprep.mubr.f32.mxu0 %v813
        %1581 = vmatmul.mubr.f32.gmra.mrb[0].mxu0 %v370
        %v1582 = vpop.f32.mrb[0].mxu0
        %v1583 = vadd.f32 0.0, %v1582
        %v1584 = vpop.f32.mrb[0].mxu0
        %1585 = vmatprep.mubr.f32.mxu0 %v816
        %1586 = vmatmul.mubr.f32.gmra.mrb[0].mxu0 %v372
        %v1587 = vpop.f32.mrb[0].mxu0
        %v1588 = vadd.f32 0.0, %v1587
        %v1589 = vpop.f32.mrb[0].mxu0
        %1590 = vmatprep.mubr.f32.mxu0 %v819
        %1591 = vmatmul.mubr.f32.gmra.mrb[0].mxu0 %v374
        %v1592 = vpop.f32.mrb[0].mxu0
        %v1593 = vadd.f32 0.0, %v1592
        %v1594 = vpop.f32.mrb[0].mxu0
        %1595 = vmatprep.mubr.f32.mxu0 %v822
        %1596 = vmatmul.mubr.f32.gmra.mrb[0].mxu0 %v376
        %v1597 = vpop.f32.mrb[0].mxu0
        %v1598 = vadd.f32 0.0, %v1597
        %v1599 = vpop.f32.mrb[0].mxu0
        %1600 = vmatprep.mubr.f32.mxu0 %v825
        %1601 = vmatmul.mubr.f32.gmra.mrb[0].mxu0 %v378
        %v1602 = vpop.f32.mrb[0].mxu0
        %v1603 = vadd.f32 0.0, %v1602
        %v1604 = vpop.f32.mrb[0].mxu0
        %1605 = vmatprep.mubr.f32.mxu0 %v828
        %1606 = vmatmul.mubr.f32.gmra.mrb[0].mxu0 %v380
        %v1607 = vpop.f32.mrb[0].mxu0
        %v1608 = vadd.f32 0.0, %v1607
        %v1609 = vpop.f32.mrb[0].mxu0
        %1610 = vmatprep.mubr.f32.mxu0 %v831
        %1611 = vmatmul.mubr.f32.gmra.mrb[0].mxu0 %v382
        %v1612 = vpop.f32.mrb[0].mxu0
        %v1613 = vadd.f32 0.0, %v1612
        %v1614 = vpop.f32.mrb[0].mxu0
        %1615 = vmatprep.mubr.f32.mxu0 %v834
        %1616 = vmatmul.mubr.f32.gmra.mrb[0].mxu0 %v384
        %v1617 = vpop.f32.mrb[0].mxu0
        %v1618 = vadd.f32 0.0, %v1617
        %v1619 = vpop.f32.mrb[0].mxu0
        %1620 = vmatprep.mubr.f32.mxu0 %v837
        %1621 = vmatmul.mubr.f32.gmra.mrb[0].mxu0 %v386
        %v1622 = vpop.f32.mrb[0].mxu0
        %v1623 = vadd.f32 0.0, %v1622
        %v1624 = vpop.f32.mrb[0].mxu0
        %1625 = vmatprep.mubr.f32.mxu0 %v840
        %1626 = vmatmul.mubr.f32.gmra.mrb[0].mxu0 %v388
        %v1627 = vpop.f32.mrb[0].mxu0
        %v1628 = vadd.f32 0.0, %v1627
        %v1629 = vpop.f32.mrb[0].mxu0
        %1630 = vmatprep.mubr.f32.mxu0 %v843
        %1631 = vmatmul.mubr.f32.gmra.mrb[0].mxu0 %v390
        %v1632 = vpop.f32.mrb[0].mxu0
        %v1633 = vadd.f32 0.0, %v1632
        %v1634 = vpop.f32.mrb[0].mxu0
        %1635 = vmatprep.mubr.f32.mxu0 %v846
        %1636 = vmatmul.mubr.f32.gmra.mrb[0].mxu0 %v392
        %v1637 = vpop.f32.mrb[0].mxu0
        %v1638 = vadd.f32 0.0, %v1637
        %v1639 = vpop.f32.mrb[0].mxu0
        %1640 = vmatprep.mubr.f32.mxu0 %v849
        %1641 = vmatmul.mubr.f32.gmra.mrb[0].mxu0 %v394
        %v1642 = vpop.f32.mrb[0].mxu0
        %v1643 = vadd.f32 0.0, %v1642
        %v1644 = vpop.f32.mrb[0].mxu0
        %1645 = vmatprep.mubr.f32.mxu0 %v852
        %1646 = vmatmul.mubr.f32.gmra.mrb[0].mxu0 %v396
        %v1647 = vpop.f32.mrb[0].mxu0
        %v1648 = vadd.f32 0.0, %v1647
        %v1649 = vpop.f32.mrb[0].mxu0
        %1650 = vmatprep.mubr.f32.mxu0 %v855
        %1651 = vmatmul.mubr.f32.gmra.mrb[0].mxu0 %v398
        %v1652 = vpop.f32.mrb[0].mxu0
        %v1653 = vadd.f32 0.0, %v1652
        %v1654 = vpop.f32.mrb[0].mxu0
        %1655 = vmatprep.mubr.f32.mxu0 %v858
        %1656 = vmatmul.mubr.f32.gmra.mrb[0].mxu0 %v400
        %v1657 = vpop.f32.mrb[0].mxu0
        %v1658 = vadd.f32 0.0, %v1657
        %v1659 = vpop.f32.mrb[0].mxu0
        %1660 = vmatprep.mubr.f32.mxu0 %v861
        %1661 = vmatmul.mubr.f32.gmra.mrb[0].mxu0 %v402
        %v1662 = vpop.f32.mrb[0].mxu0
        %v1663 = vadd.f32 0.0, %v1662
        %v1664 = vpop.f32.mrb[0].mxu0
        %1665 = vmatprep.mubr.f32.mxu0 %v864
        %1666 = vmatmul.mubr.f32.gmra.mrb[0].mxu0 %v404
        %v1667 = vpop.f32.mrb[0].mxu0
        %v1668 = vadd.f32 0.0, %v1667
        %v1669 = vpop.f32.mrb[0].mxu0
        %1670 = vmatprep.mubr.f32.mxu0 %v867
        %1671 = vmatmul.mubr.f32.gmra.mrb[0].mxu0 %v406
        %v1672 = vpop.f32.mrb[0].mxu0
        %v1673 = vadd.f32 0.0, %v1672
        %v1674 = vpop.f32.mrb[0].mxu0
        %1675 = vmatprep.mubr.f32.mxu0 %v870
        %1676 = vmatmul.mubr.f32.gmra.mrb[0].mxu0 %v408
        %v1677 = vpop.f32.mrb[0].mxu0
        %v1678 = vadd.f32 0.0, %v1677
        %v1679 = vpop.f32.mrb[0].mxu0
        %1680 = vmatprep.mubr.f32.mxu0 %v873
        %1681 = vmatmul.mubr.f32.gmra.mrb[0].mxu0 %v410
        %v1682 = vpop.f32.mrb[0].mxu0
        %v1683 = vadd.f32 0.0, %v1682
        %v1684 = vpop.f32.mrb[0].mxu0
        %1685 = vmatprep.mubr.f32.mxu0 %v876
        %1686 = vmatmul.mubr.f32.gmra.mrb[0].mxu0 %v412
        %v1687 = vpop.f32.mrb[0].mxu0
        %v1688 = vadd.f32 0.0, %v1687
        %v1689 = vpop.f32.mrb[0].mxu0
        %1690 = vmatprep.mubr.f32.mxu0 %v879
        %1691 = vmatmul.mubr.f32.gmra.mrb[0].mxu0 %v414
        %v1692 = vpop.f32.mrb[0].mxu0
        %v1693 = vadd.f32 0.0, %v1692
        %v1694 = vpop.f32.mrb[0].mxu0
        %1695 = vmatprep.mubr.f32.mxu0 %v882
        %1696 = vmatmul.mubr.f32.gmra.mrb[0].mxu0 %v416
        %v1697 = vpop.f32.mrb[0].mxu0
        %v1698 = vadd.f32 0.0, %v1697
        %v1699 = vpop.f32.mrb[0].mxu0
        %1700 = vmatprep.mubr.f32.mxu0 %v885
        %1701 = vmatmul.mubr.f32.gmra.mrb[0].mxu0 %v418
        %v1702 = vpop.f32.mrb[0].mxu0
        %v1703 = vadd.f32 0.0, %v1702
        %v1704 = vpop.f32.mrb[0].mxu0
        %1705 = vmatprep.mubr.f32.mxu0 %v888
        %1706 = vmatmul.mubr.f32.gmra.mrb[0].mxu0 %v420
        %v1707 = vpop.f32.mrb[0].mxu0
        %v1708 = vadd.f32 0.0, %v1707
        %v1709 = vpop.f32.mrb[0].mxu0
        %1710 = vmatprep.mubr.f32.mxu0 %v891
        %1711 = vmatmul.mubr.f32.gmra.mrb[0].mxu0 %v422
        %v1712 = vpop.f32.mrb[0].mxu0
        %v1713 = vadd.f32 0.0, %v1712
        %v1714 = vpop.f32.mrb[0].mxu0
        %1715 = vmatprep.mubr.f32.mxu0 %v894
        %1716 = vmatmul.mubr.f32.gmra.mrb[0].mxu0 %v424
        %v1717 = vpop.f32.mrb[0].mxu0
        %v1718 = vadd.f32 0.0, %v1717
        %v1719 = vpop.f32.mrb[0].mxu0
        %1720 = vmatprep.mubr.f32.mxu0 %v897
        %1721 = vmatmul.mubr.f32.gmra.mrb[0].mxu0 %v426
        %v1722 = vpop.f32.mrb[0].mxu0
        %v1723 = vadd.f32 0.0, %v1722
        %v1724 = vpop.f32.mrb[0].mxu0
        %1725 = vmatprep.mubr.f32.mxu0 %v900
        %1726 = vmatmul.mubr.f32.gmra.mrb[0].mxu0 %v428
        %v1727 = vpop.f32.mrb[0].mxu0
        %v1728 = vadd.f32 0.0, %v1727
        %v1729 = vpop.f32.mrb[0].mxu0
        %1730 = vmatprep.mubr.f32.mxu0 %v903
        %1731 = vmatmul.mubr.f32.gmra.mrb[0].mxu0 %v430
        %v1732 = vpop.f32.mrb[0].mxu0
        %v1733 = vadd.f32 0.0, %v1732
        %v1734 = vpop.f32.mrb[0].mxu0
        %1735 = vmatprep.mubr.f32.mxu0 %v906
        %1736 = vmatmul.mubr.f32.gmra.mrb[0].mxu0 %v432
        %v1737 = vpop.f32.mrb[0].mxu0
        %v1738 = vadd.f32 0.0, %v1737
        %v1739 = vpop.f32.mrb[0].mxu0
        %1740 = vmatprep.mubr.f32.mxu0 %v909
        %1741 = vmatmul.mubr.f32.gmra.mrb[0].mxu0 %v434
        %v1742 = vpop.f32.mrb[0].mxu0
        %v1743 = vadd.f32 0.0, %v1742
        %v1744 = vpop.f32.mrb[0].mxu0
        %1745 = vmatprep.mubr.f32.mxu0 %v912
        %1746 = vmatmul.mubr.f32.gmra.mrb[0].mxu0 %v436
        %v1747 = vpop.f32.mrb[0].mxu0
        %v1748 = vadd.f32 0.0, %v1747
        %v1749 = vpop.f32.mrb[0].mxu0
        %1750 = vmatprep.mubr.f32.mxu0 %v915
        %1751 = vmatmul.mubr.f32.gmra.mrb[0].mxu0 %v438
        %v1752 = vpop.f32.mrb[0].mxu0
        %v1753 = vadd.f32 0.0, %v1752
        %v1754 = vpop.f32.mrb[0].mxu0
        %1755 = vmatprep.mubr.f32.mxu0 %v918
        %1756 = vmatmul.mubr.f32.gmra.mrb[0].mxu0 %v440
        %v1757 = vpop.f32.mrb[0].mxu0
        %v1758 = vadd.f32 0.0, %v1757
        %v1759 = vpop.f32.mrb[0].mxu0
        %1760 = vmatprep.mubr.f32.mxu0 %v921
        %1761 = vmatmul.mubr.f32.gmra.mrb[0].mxu0 %v442
        %v1762 = vpop.f32.mrb[0].mxu0
        %v1763 = vadd.f32 0.0, %v1762
        %v1764 = vpop.f32.mrb[0].mxu0
        %1765 = vmatprep.mubr.f32.mxu0 %v924
        %1766 = vmatmul.mubr.f32.gmra.mrb[0].mxu0 %v444
        %v1767 = vpop.f32.mrb[0].mxu0
        %v1768 = vadd.f32 0.0, %v1767
        %v1769 = vpop.f32.mrb[0].mxu0
        %1770 = vmatprep.mubr.f32.mxu0 %v927
        %1771 = vmatmul.mubr.f32.gmra.mrb[0].mxu0 %v446
        %v1772 = vpop.f32.mrb[0].mxu0
        %v1773 = vadd.f32 0.0, %v1772
        %v1774 = vpop.f32.mrb[0].mxu0
        %1775 = vmatprep.mubr.f32.mxu0 %v930
        %1776 = vmatmul.mubr.f32.gmra.mrb[0].mxu0 %v448
        %v1777 = vpop.f32.mrb[0].mxu0
        %v1778 = vadd.f32 0.0, %v1777
        %v1779 = vpop.f32.mrb[0].mxu0
        %1780 = vmatprep.mubr.f32.mxu0 %v933
        %1781 = vmatmul.mubr.f32.gmra.mrb[0].mxu0 %v450
        %v1782 = vpop.f32.mrb[0].mxu0
        %v1783 = vadd.f32 0.0, %v1782
        %v1784 = vpop.f32.mrb[0].mxu0
        %1785 = vmatprep.mubr.f32.mxu0 %v936
        %1786 = vmatmul.mubr.f32.gmra.mrb[0].mxu0 %v452
        %v1787 = vpop.f32.mrb[0].mxu0
        %v1788 = vadd.f32 0.0, %v1787
        %v1789 = vpop.f32.mrb[0].mxu0
        %1790 = vmatprep.mubr.f32.mxu0 %v939
        %1791 = vmatmul.mubr.f32.gmra.mrb[0].mxu0 %v454
        %v1792 = vpop.f32.mrb[0].mxu0
        %v1793 = vadd.f32 0.0, %v1792
        %v1794 = vpop.f32.mrb[0].mxu0
        %1795 = vmatprep.mubr.f32.mxu0 %v942
        %1796 = vmatmul.mubr.f32.gmra.mrb[0].mxu0 %v456
        %v1797 = vpop.f32.mrb[0].mxu0
        %v1798 = vadd.f32 0.0, %v1797
        %v1799 = vpop.f32.mrb[0].mxu0
        %1800 = vmatprep.mubr.f32.mxu0 %v945
        %1801 = vmatmul.mubr.f32.gmra.mrb[0].mxu0 %v458
        %v1802 = vpop.f32.mrb[0].mxu0
        %v1803 = vadd.f32 0.0, %v1802
        %v1804 = vpop.f32.mrb[0].mxu0
        %1805 = vmatprep.mubr.f32.mxu0 %v948
        %1806 = vmatmul.mubr.f32.gmra.mrb[0].mxu0 %v460
        %v1807 = vpop.f32.mrb[0].mxu0
        %v1808 = vadd.f32 0.0, %v1807
        %v1809 = vpop.f32.mrb[0].mxu0
        %1810 = vmatprep.mubr.f32.mxu0 %v951
        %1811 = vmatmul.mubr.f32.gmra.mrb[0].mxu0 %v462
        %v1812 = vpop.f32.mrb[0].mxu0
        %v1813 = vadd.f32 0.0, %v1812
        %v1814 = vpop.f32.mrb[0].mxu0
        %1815 = vmatprep.mubr.f32.mxu0 %v954
        %1816 = vmatmul.mubr.f32.gmra.mrb[0].mxu0 %v464
        %v1817 = vpop.f32.mrb[0].mxu0
        %v1818 = vadd.f32 0.0, %v1817
        %v1819 = vpop.f32.mrb[0].mxu0
        %1820 = vmatprep.mubr.f32.mxu0 %v957
        %1821 = vmatmul.mubr.f32.gmra.mrb[0].mxu0 %v466
        %v1822 = vpop.f32.mrb[0].mxu0
        %v1823 = vadd.f32 0.0, %v1822
        %v1824 = vpop.f32.mrb[0].mxu0
        %1825 = vmatprep.mubr.f32.mxu0 %v960
        %1826 = vmatmul.mubr.f32.gmra.mrb[0].mxu0 %v468
        %v1827 = vpop.f32.mrb[0].mxu0
        %v1828 = vadd.f32 0.0, %v1827
        %v1829 = vpop.f32.mrb[0].mxu0
        %1830 = vmatprep.mubr.f32.mxu0 %v963
        %1831 = vmatmul.mubr.f32.gmra.mrb[0].mxu0 %v470
        %v1832 = vpop.f32.mrb[0].mxu0
        %v1833 = vadd.f32 0.0, %v1832
        %v1834 = vpop.f32.mrb[0].mxu0
        %1835 = vmatprep.mubr.f32.mxu0 %v966
        %1836 = vmatmul.mubr.f32.gmra.mrb[0].mxu0 %v472
        %v1837 = vpop.f32.mrb[0].mxu0
        %v1838 = vadd.f32 0.0, %v1837
        %v1839 = vpop.f32.mrb[0].mxu0
        %1840 = vmatprep.mubr.f32.mxu0 %v969
        %1841 = vmatmul.mubr.f32.gmra.mrb[0].mxu0 %v474
        %v1842 = vpop.f32.mrb[0].mxu0
        %v1843 = vadd.f32 0.0, %v1842
        %v1844 = vpop.f32.mrb[0].mxu0
        %1845 = vmatprep.mubr.f32.mxu0 %v972
        %1846 = vmatmul.mubr.f32.gmra.mrb[0].mxu0 %v476
        %v1847 = vpop.f32.mrb[0].mxu0
        %v1848 = vadd.f32 0.0, %v1847
        %v1849 = vpop.f32.mrb[0].mxu0
        %1850 = vmatprep.mubr.f32.mxu0 %v975
        %1851 = vmatmul.mubr.f32.gmra.mrb[0].mxu0 %v478
        %v1852 = vpop.f32.mrb[0].mxu0
        %v1853 = vadd.f32 0.0, %v1852
        %v1854 = vpop.f32.mrb[0].mxu0
        %1855 = vmatprep.mubr.f32.mxu0 %v978
        %1856 = vmatmul.mubr.f32.gmra.mrb[0].mxu0 %v480
        %v1857 = vpop.f32.mrb[0].mxu0
        %v1858 = vadd.f32 0.0, %v1857
        %v1859 = vpop.f32.mrb[0].mxu0
        %1860 = vmatprep.mubr.f32.mxu0 %v981
        %1861 = vmatmul.mubr.f32.gmra.mrb[0].mxu0 %v482
        %v1862 = vpop.f32.mrb[0].mxu0
        %v1863 = vadd.f32 0.0, %v1862
        %v1864 = vpop.f32.mrb[0].mxu0
        %1865 = vmatprep.mubr.f32.mxu0 %v984
        %1866 = vmatmul.mubr.f32.gmra.mrb[0].mxu0 %v484
        %v1867 = vpop.f32.mrb[0].mxu0
        %v1868 = vadd.f32 0.0, %v1867
        %v1869 = vpop.f32.mrb[0].mxu0
        %1870 = vmatprep.mubr.f32.mxu0 %v987
        %1871 = vmatmul.mubr.f32.gmra.mrb[0].mxu0 %v486
        %v1872 = vpop.f32.mrb[0].mxu0
        %v1873 = vadd.f32 0.0, %v1872
        %v1874 = vpop.f32.mrb[0].mxu0
        %1875 = vmatprep.mubr.f32.mxu0 %v990
        %1876 = vmatmul.mubr.f32.gmra.mrb[0].mxu0 %v488
        %v1877 = vpop.f32.mrb[0].mxu0
        %v1878 = vadd.f32 0.0, %v1877
        %v1879 = vpop.f32.mrb[0].mxu0
        %1880 = vmatprep.mubr.f32.mxu0 %v993
        %1881 = vmatmul.mubr.f32.gmra.mrb[0].mxu0 %v490
        %v1882 = vpop.f32.mrb[0].mxu0
        %v1883 = vadd.f32 0.0, %v1882
        %v1884 = vpop.f32.mrb[0].mxu0
        %1885 = vmatprep.mubr.f32.mxu0 %v996
        %1886 = vmatmul.mubr.f32.gmra.mrb[0].mxu0 %v492
        %v1887 = vpop.f32.mrb[0].mxu0
        %v1888 = vadd.f32 0.0, %v1887
        %v1889 = vpop.f32.mrb[0].mxu0
        %1890 = vmatprep.mubr.f32.mxu0 %v999
        %1891 = vmatmul.mubr.f32.gmra.mrb[0].mxu0 %v494
        %v1892 = vpop.f32.mrb[0].mxu0
        %v1893 = vadd.f32 0.0, %v1892
        %v1894 = vpop.f32.mrb[0].mxu0
        %1895 = vmatprep.mubr.f32.mxu0 %v1002
        %1896 = vmatmul.mubr.f32.gmra.mrb[0].mxu0 %v496
        %v1897 = vpop.f32.mrb[0].mxu0
        %v1898 = vadd.f32 0.0, %v1897
        %v1899 = vpop.f32.mrb[0].mxu0
        %1900 = vmatprep.mubr.f32.mxu0 %v1005
        %1901 = vmatmul.mubr.f32.gmra.mrb[0].mxu0 %v498
        %v1902 = vpop.f32.mrb[0].mxu0
        %v1903 = vadd.f32 0.0, %v1902
        %v1904 = vpop.f32.mrb[0].mxu0
        %1905 = vmatprep.mubr.f32.mxu0 %v1008
        %1906 = vmatmul.mubr.f32.gmra.mrb[0].mxu0 %v500
        %v1907 = vpop.f32.mrb[0].mxu0
        %v1908 = vadd.f32 0.0, %v1907
        %v1909 = vpop.f32.mrb[0].mxu0
        %1910 = vmatprep.mubr.f32.mxu0 %v1011
        %1911 = vmatmul.mubr.f32.gmra.mrb[0].mxu0 %v502
        %v1912 = vpop.f32.mrb[0].mxu0
        %v1913 = vadd.f32 0.0, %v1912
        %v1914 = vpop.f32.mrb[0].mxu0
        %1915 = vmatprep.mubr.f32.mxu0 %v1014
        %1916 = vmatmul.mubr.f32.gmra.mrb[0].mxu0 %v504
        %v1917 = vpop.f32.mrb[0].mxu0
        %v1918 = vadd.f32 0.0, %v1917
        %v1919 = vpop.f32.mrb[0].mxu0
        %1920 = vmatprep.mubr.f32.mxu0 %v1017
        %1921 = vmatmul.mubr.f32.gmra.mrb[0].mxu0 %v506
        %v1922 = vpop.f32.mrb[0].mxu0
        %v1923 = vadd.f32 0.0, %v1922
        %v1924 = vpop.f32.mrb[0].mxu0
        %1925 = vmatprep.mubr.f32.mxu0 %v1020
        %1926 = vmatmul.mubr.f32.gmra.mrb[0].mxu0 %v508
        %v1927 = vpop.f32.mrb[0].mxu0
        %v1928 = vadd.f32 0.0, %v1927
        %v1929 = vpop.f32.mrb[0].mxu0
        %1930 = vmatprep.mubr.f32.mxu0 %v1023
        %1931 = vmatmul.mubr.f32.gmra.mrb[0].mxu0 %v510
        %v1932 = vpop.f32.mrb[0].mxu0
        %v1933 = vadd.f32 0.0, %v1932
        %v1934 = vpop.f32.mrb[0].mxu0
        %1935 = vmatprep.mubr.f32.mxu0 %v1026
        %1936 = vmatmul.mubr.f32.gmra.mrb[0].mxu0 %v512
        %v1937 = vpop.f32.mrb[0].mxu0
        %v1938 = vadd.f32 0.0, %v1937
        %v1939 = vpop.f32.mrb[0].mxu0
        %1940 = vmatprep.mubr.f32.mxu0 %v1029
        %1941 = vmatmul.mubr.f32.gmra.mrb[0].mxu0 %v514
        %v1942 = vpop.f32.mrb[0].mxu0
        %v1943 = vadd.f32 0.0, %v1942
        %v1944 = vpop.f32.mrb[0].mxu0
        %1945 = vmatprep.mubr.f32.mxu0 %v1032
        %1946 = vmatmul.mubr.f32.gmra.mrb[0].mxu0 %v516
        %v1947 = vpop.f32.mrb[0].mxu0
        %v1948 = vadd.f32 0.0, %v1947
        %v1949 = vpop.f32.mrb[0].mxu0
        %1950 = vmatprep.mubr.f32.mxu0 %v1035
        %1951 = vmatmul.mubr.f32.gmra.mrb[0].mxu0 %v518
        %v1952 = vpop.f32.mrb[0].mxu0
        %v1953 = vadd.f32 0.0, %v1952
        %v1954 = vpop.f32.mrb[0].mxu0
        %1955 = vmatprep.mubr.f32.mxu0 %v1038
        %1956 = vmatmul.mubr.f32.gmra.mrb[0].mxu0 %v520
        %v1957 = vpop.f32.mrb[0].mxu0
        %v1958 = vadd.f32 0.0, %v1957
        %v1959 = vpop.f32.mrb[0].mxu0
        %1960 = vmatprep.mubr.f32.mxu0 %v1041
        %1961 = vmatmul.mubr.f32.gmra.mrb[0].mxu0 %v522
        %v1962 = vpop.f32.mrb[0].mxu0
        %v1963 = vadd.f32 0.0, %v1962
        %v1964 = vpop.f32.mrb[0].mxu0
        %1965 = vmatprep.mubr.f32.mxu0 %v1044
        %1966 = vmatmul.mubr.f32.gmra.mrb[0].mxu0 %v524
        %v1967 = vpop.f32.mrb[0].mxu0
        %v1968 = vadd.f32 0.0, %v1967
        %v1969 = vpop.f32.mrb[0].mxu0
        %1970 = vmatprep.mubr.f32.mxu0 %v1047
        %1971 = vmatmul.mubr.f32.gmra.mrb[0].mxu0 %v526
        %v1972 = vpop.f32.mrb[0].mxu0
        %v1973 = vadd.f32 0.0, %v1972
        %v1974 = vpop.f32.mrb[0].mxu0
        %1975 = vmatprep.mubr.f32.mxu0 %v1050
        %1976 = vmatmul.mubr.f32.gmra.mrb[0].mxu0 %v528
        %v1977 = vpop.f32.mrb[0].mxu0
        %v1978 = vadd.f32 0.0, %v1977
        %v1979 = vpop.f32.mrb[0].mxu0
        %1980 = vmatprep.mubr.f32.mxu0 %v1053
        %1981 = vmatmul.mubr.f32.gmra.mrb[0].mxu0 %v530
        %v1982 = vpop.f32.mrb[0].mxu0
        %v1983 = vadd.f32 0.0, %v1982
        %v1984 = vpop.f32.mrb[0].mxu0
        %1985 = vmatprep.mubr.f32.mxu0 %v1056
        %1986 = vmatmul.mubr.f32.gmra.mrb[0].mxu0 %v532
        %v1987 = vpop.f32.mrb[0].mxu0
        %v1988 = vadd.f32 0.0, %v1987
        %v1989 = vpop.f32.mrb[0].mxu0
        %1990 = vmatprep.mubr.f32.mxu0 %v1059
        %1991 = vmatmul.mubr.f32.gmra.mrb[0].mxu0 %v534
        %v1992 = vpop.f32.mrb[0].mxu0
        %v1993 = vadd.f32 0.0, %v1992
        %v1994 = vpop.f32.mrb[0].mxu0
        %1995 = vmatprep.mubr.f32.mxu0 %v1062
        %1996 = vmatmul.mubr.f32.gmra.mrb[0].mxu0 %v536
        %v1997 = vpop.f32.mrb[0].mxu0
        %v1998 = vadd.f32 0.0, %v1997
        %v1999 = vpop.f32.mrb[0].mxu0
        %2000 = vmatprep.mubr.f32.mxu0 %v1065
        %2001 = vmatmul.mubr.f32.gmra.mrb[0].mxu0 %v538
        %v2002 = vpop.f32.mrb[0].mxu0
        %v2003 = vadd.f32 0.0, %v2002
        %v2004 = vpop.f32.mrb[0].mxu0
        %2005 = vmatprep.mubr.f32.mxu0 %v1068
        %2006 = vmatmul.mubr.f32.gmra.mrb[0].mxu0 %v540
        %v2007 = vpop.f32.mrb[0].mxu0
        %v2008 = vadd.f32 0.0, %v2007
        %v2009 = vpop.f32.mrb[0].mxu0
        %2010 = vmatprep.mubr.f32.mxu0 %v1071
        %2011 = vmatmul.mubr.f32.gmra.mrb[0].mxu0 %v542
        %v2012 = vpop.f32.mrb[0].mxu0
        %v2013 = vadd.f32 0.0, %v2012
        %v2014 = vpop.f32.mrb[0].mxu0
        %2015 = vmatprep.mubr.f32.mxu0 %v1074
        %2016 = vmatmul.mubr.f32.gmra.mrb[0].mxu0 %v544
        %v2017 = vpop.f32.mrb[0].mxu0
        %v2018 = vadd.f32 0.0, %v2017
        %v2019 = vpop.f32.mrb[0].mxu0
        %2020 = vmatprep.mubr.f32.mxu0 %v1077
        %2021 = vmatmul.mubr.f32.gmra.mrb[0].mxu0 %v546
        %v2022 = vpop.f32.mrb[0].mxu0
        %v2023 = vadd.f32 0.0, %v2022
        %v2024 = vpop.f32.mrb[0].mxu0
        %2025 = vmatprep.mubr.f32.mxu0 %v1080
        %2026 = vmatmul.mubr.f32.gmra.mrb[0].mxu0 %v548
        %v2027 = vpop.f32.mrb[0].mxu0
        %v2028 = vadd.f32 0.0, %v2027
        %v2029 = vpop.f32.mrb[0].mxu0
        %2030 = vmatprep.mubr.f32.mxu0 %v1083
        %2031 = vmatmul.mubr.f32.gmra.mrb[0].mxu0 %v550
        %v2032 = vpop.f32.mrb[0].mxu0
        %v2033 = vadd.f32 0.0, %v2032
        %v2034 = vpop.f32.mrb[0].mxu0
        %2035 = vmatprep.mubr.f32.mxu0 %v1086
        %2036 = vmatmul.mubr.f32.gmra.mrb[0].mxu0 %v552
        %v2037 = vpop.f32.mrb[0].mxu0
        %v2038 = vadd.f32 0.0, %v2037
        %v2039 = vpop.f32.mrb[0].mxu0
        %2040 = vmatprep.mubr.f32.mxu0 %v1089
        %2041 = vmatmul.mubr.f32.gmra.mrb[0].mxu0 %v554
        %v2042 = vpop.f32.mrb[0].mxu0
        %v2043 = vadd.f32 0.0, %v2042
        %v2044 = vpop.f32.mrb[0].mxu0
        %2045 = vmatprep.mubr.f32.mxu0 %v1092
        %2046 = vmatmul.mubr.f32.gmra.mrb[0].mxu0 %v556
        %v2047 = vpop.f32.mrb[0].mxu0
        %v2048 = vadd.f32 0.0, %v2047
        %v2049 = vpop.f32.mrb[0].mxu0
        %2050 = vmatprep.mubr.f32.mxu0 %v1095
        %2051 = vmatmul.mubr.f32.gmra.mrb[0].mxu0 %v558
        %v2052 = vpop.f32.mrb[0].mxu0
        %v2053 = vadd.f32 0.0, %v2052
        %v2054 = vpop.f32.mrb[0].mxu0
        %2055 = vmatprep.mubr.f32.mxu0 %v1098
        %2056 = vmatmul.mubr.f32.gmra.mrb[0].mxu0 %v560
        %v2057 = vpop.f32.mrb[0].mxu0
        %v2058 = vadd.f32 0.0, %v2057
        %v2059 = vpop.f32.mrb[0].mxu0
        %2060 = vmatprep.mubr.f32.mxu0 %v1101
        %2061 = vmatmul.mubr.f32.gmra.mrb[0].mxu0 %v562
        %v2062 = vpop.f32.mrb[0].mxu0
        %v2063 = vadd.f32 0.0, %v2062
        %v2064 = vpop.f32.mrb[0].mxu0
        %2065 = vmatprep.mubr.f32.mxu0 %v1104
        %2066 = vmatmul.mubr.f32.gmra.mrb[0].mxu0 %v564
        %v2067 = vpop.f32.mrb[0].mxu0
        %v2068 = vadd.f32 0.0, %v2067
        %v2069 = vpop.f32.mrb[0].mxu0
        %2070 = vmatprep.mubr.f32.mxu0 %v1107
        %2071 = vmatmul.mubr.f32.gmra.mrb[0].mxu0 %v566
        %v2072 = vpop.f32.mrb[0].mxu0
        %v2073 = vadd.f32 0.0, %v2072
        %v2074 = vpop.f32.mrb[0].mxu0
        %2075 = vmatprep.mubr.f32.mxu0 %v1110
        %2076 = vmatmul.mubr.f32.gmra.mrb[0].mxu0 %v568
        %v2077 = vpop.f32.mrb[0].mxu0
        %v2078 = vadd.f32 0.0, %v2077
        %v2079 = vpop.f32.mrb[0].mxu0
        %2080 = vmatprep.mubr.f32.mxu0 %v1113
        %2081 = vmatmul.mubr.f32.gmra.mrb[0].mxu0 %v570
        %v2082 = vpop.f32.mrb[0].mxu0
        %v2083 = vadd.f32 0.0, %v2082
        %v2084 = vpop.f32.mrb[0].mxu0
        %2085 = vmatprep.mubr.f32.mxu0 %v1116
        %2086 = vmatmul.mubr.f32.gmra.mrb[0].mxu0 %v572
        %v2087 = vpop.f32.mrb[0].mxu0
        %v2088 = vadd.f32 0.0, %v2087
        %v2089 = vpop.f32.mrb[0].mxu0
        %2090 = vmatprep.mubr.f32.mxu0 %v1119
        %2091 = vmatmul.mubr.f32.gmra.mrb[0].mxu0 %v574
        %v2092 = vpop.f32.mrb[0].mxu0
        %v2093 = vadd.f32 0.0, %v2092
        %v2094 = vpop.f32.mrb[0].mxu0
        %2095 = vmatprep.mubr.f32.mxu0 %v1122
        %2096 = vmatmul.mubr.f32.gmra.mrb[0].mxu0 %v576
        %v2097 = vpop.f32.mrb[0].mxu0
        %v2098 = vadd.f32 0.0, %v2097
        %v2099 = vpop.f32.mrb[0].mxu0
        %2100 = vmatprep.mubr.f32.mxu0 %v1125
        %2101 = vmatmul.mubr.f32.gmra.mrb[0].mxu0 %v578
        %v2102 = vpop.f32.mrb[0].mxu0
        %v2103 = vadd.f32 0.0, %v2102
        %v2104 = vpop.f32.mrb[0].mxu0
        %2105 = vdwg.mxu0
        %v2106 = vmul.f32 %v1198, 0.0051020407
        %v2107 = vmul.f32 %v1203, 0.0051020407
        %v2108 = vmul.f32 %v1208, 0.0051020407
        %v2109 = vmul.f32 %v1213, 0.0051020407
        %v2110 = vmul.f32 %v1218, 0.0051020407
        %v2111 = vmul.f32 %v1223, 0.0051020407
        %v2112 = vmul.f32 %v1228, 0.0051020407
        %v2113 = vmul.f32 %v1233, 0.0051020407
        %v2114 = vmul.f32 %v1238, 0.0051020407
        %v2115 = vmul.f32 %v1243, 0.0051020407
        %v2116 = vmul.f32 %v1248, 0.0051020407
        %v2117 = vmul.f32 %v1253, 0.0051020407
        %v2118 = vmul.f32 %v1258, 0.0051020407
        %v2119 = vmul.f32 %v1263, 0.0051020407
        %v2120 = vmul.f32 %v1268, 0.0051020407
        %v2121 = vmul.f32 %v1273, 0.0051020407
        %v2122 = vmul.f32 %v1278, 0.0051020407
        %v2123 = vmul.f32 %v1283, 0.0051020407
        %v2124 = vmul.f32 %v1288, 0.0051020407
        %v2125 = vmul.f32 %v1293, 0.0051020407
        %v2126 = vmul.f32 %v1298, 0.0051020407
        %v2127 = vmul.f32 %v1303, 0.0051020407
        %v2128 = vmul.f32 %v1308, 0.0051020407
        %v2129 = vmul.f32 %v1313, 0.0051020407
        %v2130 = vmul.f32 %v1318, 0.0051020407
        %v2131 = vmul.f32 %v1323, 0.0051020407
        %v2132 = vmul.f32 %v1328, 0.0051020407
        %v2133 = vmul.f32 %v1333, 0.0051020407
        %v2134 = vmul.f32 %v1338, 0.0051020407
        %v2135 = vmul.f32 %v1343, 0.0051020407
        %v2136 = vmul.f32 %v1348, 0.0051020407
        %v2137 = vmul.f32 %v1353, 0.0051020407
        %v2138 = vmul.f32 %v1358, 0.0051020407
        %v2139 = vmul.f32 %v1363, 0.0051020407
        %v2140 = vmul.f32 %v1368, 0.0051020407
        %v2141 = vmul.f32 %v1373, 0.0051020407
        %v2142 = vmul.f32 %v1378, 0.0051020407
        %v2143 = vmul.f32 %v1383, 0.0051020407
        %v2144 = vmul.f32 %v1388, 0.0051020407
        %v2145 = vmul.f32 %v1393, 0.0051020407
        %v2146 = vmul.f32 %v1398, 0.0051020407
        %v2147 = vmul.f32 %v1403, 0.0051020407
        %v2148 = vmul.f32 %v1408, 0.0051020407
        %v2149 = vmul.f32 %v1413, 0.0051020407
        %v2150 = vmul.f32 %v1418, 0.0051020407
        %v2151 = vmul.f32 %v1423, 0.0051020407
        %v2152 = vmul.f32 %v1428, 0.0051020407
        %v2153 = vmul.f32 %v1433, 0.0051020407
        %v2154 = vmul.f32 %v1438, 0.0051020407
        %v2155 = vmul.f32 %v1443, 0.0051020407
        %v2156 = vmul.f32 %v1448, 0.0051020407
        %v2157 = vmul.f32 %v1453, 0.0051020407
        %v2158 = vmul.f32 %v1458, 0.0051020407
        %v2159 = vmul.f32 %v1463, 0.0051020407
        %v2160 = vmul.f32 %v1468, 0.0051020407
        %v2161 = vmul.f32 %v1473, 0.0051020407
        %v2162 = vmul.f32 %v1478, 0.0051020407
        %v2163 = vmul.f32 %v1483, 0.0051020407
        %v2164 = vmul.f32 %v1488, 0.0051020407
        %v2165 = vmul.f32 %v1493, 0.0051020407
        %v2166 = vmul.f32 %v1498, 0.0051020407
        %v2167 = vmul.f32 %v1503, 0.0051020407
        %v2168 = vmul.f32 %v1508, 0.0051020407
        %v2169 = vmul.f32 %v1513, 0.0051020407
        %v2170 = vmul.f32 %v1518, 0.0051020407
        %v2171 = vmul.f32 %v1523, 0.0051020407
        %v2172 = vmul.f32 %v1528, 0.0051020407
        %v2173 = vmul.f32 %v1533, 0.0051020407
        %v2174 = vmul.f32 %v1538, 0.0051020407
        %v2175 = vmul.f32 %v1543, 0.0051020407
        %v2176 = vmul.f32 %v1548, 0.0051020407
        %v2177 = vmul.f32 %v1553, 0.0051020407
        %v2178 = vmul.f32 %v1558, 0.0051020407
        %v2179 = vmul.f32 %v1563, 0.0051020407
        %v2180 = vmul.f32 %v1568, 0.0051020407
        %v2181 = vmul.f32 %v1573, 0.0051020407
        %v2182 = vmul.f32 %v1578, 0.0051020407
        %v2183 = vmul.f32 %v1583, 0.0051020407
        %v2184 = vmul.f32 %v1588, 0.0051020407
        %v2185 = vmul.f32 %v1593, 0.0051020407
        %v2186 = vmul.f32 %v1598, 0.0051020407
        %v2187 = vmul.f32 %v1603, 0.0051020407
        %v2188 = vmul.f32 %v1608, 0.0051020407
        %v2189 = vmul.f32 %v1613, 0.0051020407
        %v2190 = vmul.f32 %v1618, 0.0051020407
        %v2191 = vmul.f32 %v1623, 0.0051020407
        %v2192 = vmul.f32 %v1628, 0.0051020407
        %v2193 = vmul.f32 %v1633, 0.0051020407
        %v2194 = vmul.f32 %v1638, 0.0051020407
        %v2195 = vmul.f32 %v1643, 0.0051020407
        %v2196 = vmul.f32 %v1648, 0.0051020407
        %v2197 = vmul.f32 %v1653, 0.0051020407
        %v2198 = vmul.f32 %v1658, 0.0051020407
        %v2199 = vmul.f32 %v1663, 0.0051020407
        %v2200 = vmul.f32 %v1668, 0.0051020407
        %v2201 = vmul.f32 %v1673, 0.0051020407
        %v2202 = vmul.f32 %v1678, 0.0051020407
        %v2203 = vmul.f32 %v1683, 0.0051020407
        %v2204 = vmul.f32 %v1688, 0.0051020407
        %v2205 = vmul.f32 %v1693, 0.0051020407
        %v2206 = vmul.f32 %v1698, 0.0051020407
        %v2207 = vmul.f32 %v1703, 0.0051020407
        %v2208 = vmul.f32 %v1708, 0.0051020407
        %v2209 = vmul.f32 %v1713, 0.0051020407
        %v2210 = vmul.f32 %v1718, 0.0051020407
        %v2211 = vmul.f32 %v1723, 0.0051020407
        %v2212 = vmul.f32 %v1728, 0.0051020407
        %v2213 = vmul.f32 %v1733, 0.0051020407
        %v2214 = vmul.f32 %v1738, 0.0051020407
        %v2215 = vmul.f32 %v1743, 0.0051020407
        %v2216 = vmul.f32 %v1748, 0.0051020407
        %v2217 = vmul.f32 %v1753, 0.0051020407
        %v2218 = vmul.f32 %v1758, 0.0051020407
        %v2219 = vmul.f32 %v1763, 0.0051020407
        %v2220 = vmul.f32 %v1768, 0.0051020407
        %v2221 = vmul.f32 %v1773, 0.0051020407
        %v2222 = vmul.f32 %v1778, 0.0051020407
        %v2223 = vmul.f32 %v1783, 0.0051020407
        %v2224 = vmul.f32 %v1788, 0.0051020407
        %v2225 = vmul.f32 %v1793, 0.0051020407
        %v2226 = vmul.f32 %v1798, 0.0051020407
        %v2227 = vmul.f32 %v1803, 0.0051020407
        %v2228 = vmul.f32 %v1808, 0.0051020407
        %v2229 = vmul.f32 %v1813, 0.0051020407
        %v2230 = vmul.f32 %v1818, 0.0051020407
        %v2231 = vmul.f32 %v1823, 0.0051020407
        %v2232 = vmul.f32 %v1828, 0.0051020407
        %v2233 = vmul.f32 %v1833, 0.0051020407
        %v2234 = vmul.f32 %v1838, 0.0051020407
        %v2235 = vmul.f32 %v1843, 0.0051020407
        %v2236 = vmul.f32 %v1848, 0.0051020407
        %v2237 = vmul.f32 %v1853, 0.0051020407
        %v2238 = vmul.f32 %v1858, 0.0051020407
        %v2239 = vmul.f32 %v1863, 0.0051020407
        %v2240 = vmul.f32 %v1868, 0.0051020407
        %v2241 = vmul.f32 %v1873, 0.0051020407
        %v2242 = vmul.f32 %v1878, 0.0051020407
        %v2243 = vmul.f32 %v1883, 0.0051020407
        %v2244 = vmul.f32 %v1888, 0.0051020407
        %v2245 = vmul.f32 %v1893, 0.0051020407
        %v2246 = vmul.f32 %v1898, 0.0051020407
        %v2247 = vmul.f32 %v1903, 0.0051020407
        %v2248 = vmul.f32 %v1908, 0.0051020407
        %v2249 = vmul.f32 %v1913, 0.0051020407
        %v2250 = vmul.f32 %v1918, 0.0051020407
        %v2251 = vmul.f32 %v1923, 0.0051020407
        %v2252 = vmul.f32 %v1928, 0.0051020407
        %v2253 = vmul.f32 %v1933, 0.0051020407
        %v2254 = vmul.f32 %v1938, 0.0051020407
        %v2255 = vmul.f32 %v1943, 0.0051020407
        %v2256 = vmul.f32 %v1948, 0.0051020407
        %v2257 = vmul.f32 %v1953, 0.0051020407
        %v2258 = vmul.f32 %v1958, 0.0051020407
        %v2259 = vmul.f32 %v1963, 0.0051020407
        %v2260 = vmul.f32 %v1968, 0.0051020407
        %v2261 = vmul.f32 %v1973, 0.0051020407
        %v2262 = vmul.f32 %v1978, 0.0051020407
        %v2263 = vmul.f32 %v1983, 0.0051020407
        %v2264 = vmul.f32 %v1988, 0.0051020407
        %v2265 = vmul.f32 %v1993, 0.0051020407
        %v2266 = vmul.f32 %v1998, 0.0051020407
        %v2267 = vmul.f32 %v2003, 0.0051020407
        %v2268 = vmul.f32 %v2008, 0.0051020407
        %v2269 = vmul.f32 %v2013, 0.0051020407
        %v2270 = vmul.f32 %v2018, 0.0051020407
        %v2271 = vmul.f32 %v2023, 0.0051020407
        %v2272 = vmul.f32 %v2028, 0.0051020407
        %v2273 = vmul.f32 %v2033, 0.0051020407
        %v2274 = vmul.f32 %v2038, 0.0051020407
        %v2275 = vmul.f32 %v2043, 0.0051020407
        %v2276 = vmul.f32 %v2048, 0.0051020407
        %v2277 = vmul.f32 %v2053, 0.0051020407
        %v2278 = vmul.f32 %v2058, 0.0051020407
        %v2279 = vmul.f32 %v2063, 0.0051020407
        %v2280 = vmul.f32 %v2068, 0.0051020407
        %v2281 = vmul.f32 %v2073, 0.0051020407
        %v2282 = vmul.f32 %v2078, 0.0051020407
        %v2283 = vmul.f32 %v2083, 0.0051020407
        %v2284 = vmul.f32 %v2088, 0.0051020407
        %v2285 = vmul.f32 %v2093, 0.0051020407
        %v2286 = vmul.f32 %v2098, 0.0051020407
        %v2287 = vmul.f32 %v2103, 0.0051020407
        %2289 = vset.pattern.permute.xlu0 0
        %2290 = vperm.xlu0 %2289, %v2106
        %v2291 = vpop.permute.xlu0 %2290
        %2294 = vset.pattern.permute.xlu0 0
        %2295 = vperm.xlu0 %2294, %v2107
        %v2296 = vpop.permute.xlu0 %2295
        %2299 = vset.pattern.permute.xlu0 0
        %2300 = vperm.xlu0 %2299, %v2108
        %v2301 = vpop.permute.xlu0 %2300
        %2304 = vset.pattern.permute.xlu0 0
        %2305 = vperm.xlu0 %2304, %v2109
        %v2306 = vpop.permute.xlu0 %2305
        %2309 = vset.pattern.permute.xlu0 0
        %2310 = vperm.xlu0 %2309, %v2110
        %v2311 = vpop.permute.xlu0 %2310
        %2314 = vset.pattern.permute.xlu0 0
        %2315 = vperm.xlu0 %2314, %v2111
        %v2316 = vpop.permute.xlu0 %2315
        %2319 = vset.pattern.permute.xlu0 0
        %2320 = vperm.xlu0 %2319, %v2112
        %v2321 = vpop.permute.xlu0 %2320
        %2324 = vset.pattern.permute.xlu0 0
        %2325 = vperm.xlu0 %2324, %v2113
        %v2326 = vpop.permute.xlu0 %2325
        %2329 = vset.pattern.permute.xlu0 0
        %2330 = vperm.xlu0 %2329, %v2114
        %v2331 = vpop.permute.xlu0 %2330
        %2334 = vset.pattern.permute.xlu0 0
        %2335 = vperm.xlu0 %2334, %v2115
        %v2336 = vpop.permute.xlu0 %2335
        %2339 = vset.pattern.permute.xlu0 0
        %2340 = vperm.xlu0 %2339, %v2116
        %v2341 = vpop.permute.xlu0 %2340
        %2344 = vset.pattern.permute.xlu0 0
        %2345 = vperm.xlu0 %2344, %v2117
        %v2346 = vpop.permute.xlu0 %2345
        %2349 = vset.pattern.permute.xlu0 0
        %2350 = vperm.xlu0 %2349, %v2118
        %v2351 = vpop.permute.xlu0 %2350
        %2354 = vset.pattern.permute.xlu0 0
        %2355 = vperm.xlu0 %2354, %v2119
        %v2356 = vpop.permute.xlu0 %2355
        %2359 = vset.pattern.permute.xlu0 0
        %2360 = vperm.xlu0 %2359, %v2120
        %v2361 = vpop.permute.xlu0 %2360
        %2364 = vset.pattern.permute.xlu0 0
        %2365 = vperm.xlu0 %2364, %v2121
        %v2366 = vpop.permute.xlu0 %2365
        %2369 = vset.pattern.permute.xlu0 0
        %2370 = vperm.xlu0 %2369, %v2122
        %v2371 = vpop.permute.xlu0 %2370
        %2374 = vset.pattern.permute.xlu0 0
        %2375 = vperm.xlu0 %2374, %v2123
        %v2376 = vpop.permute.xlu0 %2375
        %2379 = vset.pattern.permute.xlu0 0
        %2380 = vperm.xlu0 %2379, %v2124
        %v2381 = vpop.permute.xlu0 %2380
        %2384 = vset.pattern.permute.xlu0 0
        %2385 = vperm.xlu0 %2384, %v2125
        %v2386 = vpop.permute.xlu0 %2385
        %2389 = vset.pattern.permute.xlu0 0
        %2390 = vperm.xlu0 %2389, %v2126
        %v2391 = vpop.permute.xlu0 %2390
        %2394 = vset.pattern.permute.xlu0 0
        %2395 = vperm.xlu0 %2394, %v2127
        %v2396 = vpop.permute.xlu0 %2395
        %2399 = vset.pattern.permute.xlu0 0
        %2400 = vperm.xlu0 %2399, %v2128
        %v2401 = vpop.permute.xlu0 %2400
        %2404 = vset.pattern.permute.xlu0 0
        %2405 = vperm.xlu0 %2404, %v2129
        %v2406 = vpop.permute.xlu0 %2405
        %2409 = vset.pattern.permute.xlu0 0
        %2410 = vperm.xlu0 %2409, %v2130
        %v2411 = vpop.permute.xlu0 %2410
        %2414 = vset.pattern.permute.xlu0 0
        %2415 = vperm.xlu0 %2414, %v2131
        %v2416 = vpop.permute.xlu0 %2415
        %2419 = vset.pattern.permute.xlu0 0
        %2420 = vperm.xlu0 %2419, %v2132
        %v2421 = vpop.permute.xlu0 %2420
        %2424 = vset.pattern.permute.xlu0 0
        %2425 = vperm.xlu0 %2424, %v2133
        %v2426 = vpop.permute.xlu0 %2425
        %2429 = vset.pattern.permute.xlu0 0
        %2430 = vperm.xlu0 %2429, %v2134
        %v2431 = vpop.permute.xlu0 %2430
        %2434 = vset.pattern.permute.xlu0 0
        %2435 = vperm.xlu0 %2434, %v2135
        %v2436 = vpop.permute.xlu0 %2435
        %2439 = vset.pattern.permute.xlu0 0
        %2440 = vperm.xlu0 %2439, %v2136
        %v2441 = vpop.permute.xlu0 %2440
        %2444 = vset.pattern.permute.xlu0 0
        %2445 = vperm.xlu0 %2444, %v2137
        %v2446 = vpop.permute.xlu0 %2445
        %2449 = vset.pattern.permute.xlu0 0
        %2450 = vperm.xlu0 %2449, %v2138
        %v2451 = vpop.permute.xlu0 %2450
        %2454 = vset.pattern.permute.xlu0 0
        %2455 = vperm.xlu0 %2454, %v2139
        %v2456 = vpop.permute.xlu0 %2455
        %2459 = vset.pattern.permute.xlu0 0
        %2460 = vperm.xlu0 %2459, %v2140
        %v2461 = vpop.permute.xlu0 %2460
        %2464 = vset.pattern.permute.xlu0 0
        %2465 = vperm.xlu0 %2464, %v2141
        %v2466 = vpop.permute.xlu0 %2465
        %2469 = vset.pattern.permute.xlu0 0
        %2470 = vperm.xlu0 %2469, %v2142
        %v2471 = vpop.permute.xlu0 %2470
        %2474 = vset.pattern.permute.xlu0 0
        %2475 = vperm.xlu0 %2474, %v2143
        %v2476 = vpop.permute.xlu0 %2475
        %2479 = vset.pattern.permute.xlu0 0
        %2480 = vperm.xlu0 %2479, %v2144
        %v2481 = vpop.permute.xlu0 %2480
        %2484 = vset.pattern.permute.xlu0 0
        %2485 = vperm.xlu0 %2484, %v2145
        %v2486 = vpop.permute.xlu0 %2485
        %2489 = vset.pattern.permute.xlu0 0
        %2490 = vperm.xlu0 %2489, %v2146
        %v2491 = vpop.permute.xlu0 %2490
        %2494 = vset.pattern.permute.xlu0 0
        %2495 = vperm.xlu0 %2494, %v2147
        %v2496 = vpop.permute.xlu0 %2495
        %2499 = vset.pattern.permute.xlu0 0
        %2500 = vperm.xlu0 %2499, %v2148
        %v2501 = vpop.permute.xlu0 %2500
        %2504 = vset.pattern.permute.xlu0 0
        %2505 = vperm.xlu0 %2504, %v2149
        %v2506 = vpop.permute.xlu0 %2505
        %2509 = vset.pattern.permute.xlu0 0
        %2510 = vperm.xlu0 %2509, %v2150
        %v2511 = vpop.permute.xlu0 %2510
        %2514 = vset.pattern.permute.xlu0 0
        %2515 = vperm.xlu0 %2514, %v2151
        %v2516 = vpop.permute.xlu0 %2515
        %2519 = vset.pattern.permute.xlu0 0
        %2520 = vperm.xlu0 %2519, %v2152
        %v2521 = vpop.permute.xlu0 %2520
        %2524 = vset.pattern.permute.xlu0 0
        %2525 = vperm.xlu0 %2524, %v2153
        %v2526 = vpop.permute.xlu0 %2525
        %2529 = vset.pattern.permute.xlu0 0
        %2530 = vperm.xlu0 %2529, %v2154
        %v2531 = vpop.permute.xlu0 %2530
        %2534 = vset.pattern.permute.xlu0 0
        %2535 = vperm.xlu0 %2534, %v2155
        %v2536 = vpop.permute.xlu0 %2535
        %2539 = vset.pattern.permute.xlu0 0
        %2540 = vperm.xlu0 %2539, %v2156
        %v2541 = vpop.permute.xlu0 %2540
        %2544 = vset.pattern.permute.xlu0 0
        %2545 = vperm.xlu0 %2544, %v2157
        %v2546 = vpop.permute.xlu0 %2545
        %2549 = vset.pattern.permute.xlu0 0
        %2550 = vperm.xlu0 %2549, %v2158
        %v2551 = vpop.permute.xlu0 %2550
        %2554 = vset.pattern.permute.xlu0 0
        %2555 = vperm.xlu0 %2554, %v2159
        %v2556 = vpop.permute.xlu0 %2555
        %2559 = vset.pattern.permute.xlu0 0
        %2560 = vperm.xlu0 %2559, %v2160
        %v2561 = vpop.permute.xlu0 %2560
        %2564 = vset.pattern.permute.xlu0 0
        %2565 = vperm.xlu0 %2564, %v2161
        %v2566 = vpop.permute.xlu0 %2565
        %2569 = vset.pattern.permute.xlu0 0
        %2570 = vperm.xlu0 %2569, %v2162
        %v2571 = vpop.permute.xlu0 %2570
        %2574 = vset.pattern.permute.xlu0 0
        %2575 = vperm.xlu0 %2574, %v2163
        %v2576 = vpop.permute.xlu0 %2575
        %2579 = vset.pattern.permute.xlu0 0
        %2580 = vperm.xlu0 %2579, %v2164
        %v2581 = vpop.permute.xlu0 %2580
        %2584 = vset.pattern.permute.xlu0 0
        %2585 = vperm.xlu0 %2584, %v2165
        %v2586 = vpop.permute.xlu0 %2585
        %2589 = vset.pattern.permute.xlu0 0
        %2590 = vperm.xlu0 %2589, %v2166
        %v2591 = vpop.permute.xlu0 %2590
        %2594 = vset.pattern.permute.xlu0 0
        %2595 = vperm.xlu0 %2594, %v2167
        %v2596 = vpop.permute.xlu0 %2595
        %2599 = vset.pattern.permute.xlu0 0
        %2600 = vperm.xlu0 %2599, %v2168
        %v2601 = vpop.permute.xlu0 %2600
        %2604 = vset.pattern.permute.xlu0 0
        %2605 = vperm.xlu0 %2604, %v2169
        %v2606 = vpop.permute.xlu0 %2605
        %2609 = vset.pattern.permute.xlu0 0
        %2610 = vperm.xlu0 %2609, %v2170
        %v2611 = vpop.permute.xlu0 %2610
        %2614 = vset.pattern.permute.xlu0 0
        %2615 = vperm.xlu0 %2614, %v2171
        %v2616 = vpop.permute.xlu0 %2615
        %2619 = vset.pattern.permute.xlu0 0
        %2620 = vperm.xlu0 %2619, %v2172
        %v2621 = vpop.permute.xlu0 %2620
        %2624 = vset.pattern.permute.xlu0 0
        %2625 = vperm.xlu0 %2624, %v2173
        %v2626 = vpop.permute.xlu0 %2625
        %2629 = vset.pattern.permute.xlu0 0
        %2630 = vperm.xlu0 %2629, %v2174
        %v2631 = vpop.permute.xlu0 %2630
        %2634 = vset.pattern.permute.xlu0 0
        %2635 = vperm.xlu0 %2634, %v2175
        %v2636 = vpop.permute.xlu0 %2635
        %2639 = vset.pattern.permute.xlu0 0
        %2640 = vperm.xlu0 %2639, %v2176
        %v2641 = vpop.permute.xlu0 %2640
        %2644 = vset.pattern.permute.xlu0 0
        %2645 = vperm.xlu0 %2644, %v2177
        %v2646 = vpop.permute.xlu0 %2645
        %2649 = vset.pattern.permute.xlu0 0
        %2650 = vperm.xlu0 %2649, %v2178
        %v2651 = vpop.permute.xlu0 %2650
        %2654 = vset.pattern.permute.xlu0 0
        %2655 = vperm.xlu0 %2654, %v2179
        %v2656 = vpop.permute.xlu0 %2655
        %2659 = vset.pattern.permute.xlu0 0
        %2660 = vperm.xlu0 %2659, %v2180
        %v2661 = vpop.permute.xlu0 %2660
        %2664 = vset.pattern.permute.xlu0 0
        %2665 = vperm.xlu0 %2664, %v2181
        %v2666 = vpop.permute.xlu0 %2665
        %2669 = vset.pattern.permute.xlu0 0
        %2670 = vperm.xlu0 %2669, %v2182
        %v2671 = vpop.permute.xlu0 %2670
        %2674 = vset.pattern.permute.xlu0 0
        %2675 = vperm.xlu0 %2674, %v2183
        %v2676 = vpop.permute.xlu0 %2675
        %2679 = vset.pattern.permute.xlu0 0
        %2680 = vperm.xlu0 %2679, %v2184
        %v2681 = vpop.permute.xlu0 %2680
        %2684 = vset.pattern.permute.xlu0 0
        %2685 = vperm.xlu0 %2684, %v2185
        %v2686 = vpop.permute.xlu0 %2685
        %2689 = vset.pattern.permute.xlu0 0
        %2690 = vperm.xlu0 %2689, %v2186
        %v2691 = vpop.permute.xlu0 %2690
        %2694 = vset.pattern.permute.xlu0 0
        %2695 = vperm.xlu0 %2694, %v2187
        %v2696 = vpop.permute.xlu0 %2695
        %2699 = vset.pattern.permute.xlu0 0
        %2700 = vperm.xlu0 %2699, %v2188
        %v2701 = vpop.permute.xlu0 %2700
        %2704 = vset.pattern.permute.xlu0 0
        %2705 = vperm.xlu0 %2704, %v2189
        %v2706 = vpop.permute.xlu0 %2705
        %2709 = vset.pattern.permute.xlu0 0
        %2710 = vperm.xlu0 %2709, %v2190
        %v2711 = vpop.permute.xlu0 %2710
        %2714 = vset.pattern.permute.xlu0 0
        %2715 = vperm.xlu0 %2714, %v2191
        %v2716 = vpop.permute.xlu0 %2715
        %2719 = vset.pattern.permute.xlu0 0
        %2720 = vperm.xlu0 %2719, %v2192
        %v2721 = vpop.permute.xlu0 %2720
        %2724 = vset.pattern.permute.xlu0 0
        %2725 = vperm.xlu0 %2724, %v2193
        %v2726 = vpop.permute.xlu0 %2725
        %2729 = vset.pattern.permute.xlu0 0
        %2730 = vperm.xlu0 %2729, %v2194
        %v2731 = vpop.permute.xlu0 %2730
        %2734 = vset.pattern.permute.xlu0 0
        %2735 = vperm.xlu0 %2734, %v2195
        %v2736 = vpop.permute.xlu0 %2735
        %2739 = vset.pattern.permute.xlu0 0
        %2740 = vperm.xlu0 %2739, %v2196
        %v2741 = vpop.permute.xlu0 %2740
        %2744 = vset.pattern.permute.xlu0 0
        %2745 = vperm.xlu0 %2744, %v2197
        %v2746 = vpop.permute.xlu0 %2745
        %2749 = vset.pattern.permute.xlu0 0
        %2750 = vperm.xlu0 %2749, %v2198
        %v2751 = vpop.permute.xlu0 %2750
        %2754 = vset.pattern.permute.xlu0 0
        %2755 = vperm.xlu0 %2754, %v2199
        %v2756 = vpop.permute.xlu0 %2755
        %2759 = vset.pattern.permute.xlu0 0
        %2760 = vperm.xlu0 %2759, %v2200
        %v2761 = vpop.permute.xlu0 %2760
        %2764 = vset.pattern.permute.xlu0 0
        %2765 = vperm.xlu0 %2764, %v2201
        %v2766 = vpop.permute.xlu0 %2765
        %2769 = vset.pattern.permute.xlu0 0
        %2770 = vperm.xlu0 %2769, %v2202
        %v2771 = vpop.permute.xlu0 %2770
        %2774 = vset.pattern.permute.xlu0 0
        %2775 = vperm.xlu0 %2774, %v2203
        %v2776 = vpop.permute.xlu0 %2775
        %2779 = vset.pattern.permute.xlu0 0
        %2780 = vperm.xlu0 %2779, %v2204
        %v2781 = vpop.permute.xlu0 %2780
        %2784 = vset.pattern.permute.xlu0 0
        %2785 = vperm.xlu0 %2784, %v2205
        %v2786 = vpop.permute.xlu0 %2785
        %2789 = vset.pattern.permute.xlu0 0
        %2790 = vperm.xlu0 %2789, %v2206
        %v2791 = vpop.permute.xlu0 %2790
        %2794 = vset.pattern.permute.xlu0 0
        %2795 = vperm.xlu0 %2794, %v2207
        %v2796 = vpop.permute.xlu0 %2795
        %2799 = vset.pattern.permute.xlu0 0
        %2800 = vperm.xlu0 %2799, %v2208
        %v2801 = vpop.permute.xlu0 %2800
        %2804 = vset.pattern.permute.xlu0 0
        %2805 = vperm.xlu0 %2804, %v2209
        %v2806 = vpop.permute.xlu0 %2805
        %2809 = vset.pattern.permute.xlu0 0
        %2810 = vperm.xlu0 %2809, %v2210
        %v2811 = vpop.permute.xlu0 %2810
        %2814 = vset.pattern.permute.xlu0 0
        %2815 = vperm.xlu0 %2814, %v2211
        %v2816 = vpop.permute.xlu0 %2815
        %2819 = vset.pattern.permute.xlu0 0
        %2820 = vperm.xlu0 %2819, %v2212
        %v2821 = vpop.permute.xlu0 %2820
        %2824 = vset.pattern.permute.xlu0 0
        %2825 = vperm.xlu0 %2824, %v2213
        %v2826 = vpop.permute.xlu0 %2825
        %2829 = vset.pattern.permute.xlu0 0
        %2830 = vperm.xlu0 %2829, %v2214
        %v2831 = vpop.permute.xlu0 %2830
        %2834 = vset.pattern.permute.xlu0 0
        %2835 = vperm.xlu0 %2834, %v2215
        %v2836 = vpop.permute.xlu0 %2835
        %2839 = vset.pattern.permute.xlu0 0
        %2840 = vperm.xlu0 %2839, %v2216
        %v2841 = vpop.permute.xlu0 %2840
        %2844 = vset.pattern.permute.xlu0 0
        %2845 = vperm.xlu0 %2844, %v2217
        %v2846 = vpop.permute.xlu0 %2845
        %2849 = vset.pattern.permute.xlu0 0
        %2850 = vperm.xlu0 %2849, %v2218
        %v2851 = vpop.permute.xlu0 %2850
        %2854 = vset.pattern.permute.xlu0 0
        %2855 = vperm.xlu0 %2854, %v2219
        %v2856 = vpop.permute.xlu0 %2855
        %2859 = vset.pattern.permute.xlu0 0
        %2860 = vperm.xlu0 %2859, %v2220
        %v2861 = vpop.permute.xlu0 %2860
        %2864 = vset.pattern.permute.xlu0 0
        %2865 = vperm.xlu0 %2864, %v2221
        %v2866 = vpop.permute.xlu0 %2865
        %2869 = vset.pattern.permute.xlu0 0
        %2870 = vperm.xlu0 %2869, %v2222
        %v2871 = vpop.permute.xlu0 %2870
        %2874 = vset.pattern.permute.xlu0 0
        %2875 = vperm.xlu0 %2874, %v2223
        %v2876 = vpop.permute.xlu0 %2875
        %2879 = vset.pattern.permute.xlu0 0
        %2880 = vperm.xlu0 %2879, %v2224
        %v2881 = vpop.permute.xlu0 %2880
        %2884 = vset.pattern.permute.xlu0 0
        %2885 = vperm.xlu0 %2884, %v2225
        %v2886 = vpop.permute.xlu0 %2885
        %2889 = vset.pattern.permute.xlu0 0
        %2890 = vperm.xlu0 %2889, %v2226
        %v2891 = vpop.permute.xlu0 %2890
        %2894 = vset.pattern.permute.xlu0 0
        %2895 = vperm.xlu0 %2894, %v2227
        %v2896 = vpop.permute.xlu0 %2895
        %2899 = vset.pattern.permute.xlu0 0
        %2900 = vperm.xlu0 %2899, %v2228
        %v2901 = vpop.permute.xlu0 %2900
        %2904 = vset.pattern.permute.xlu0 0
        %2905 = vperm.xlu0 %2904, %v2229
        %v2906 = vpop.permute.xlu0 %2905
        %2909 = vset.pattern.permute.xlu0 0
        %2910 = vperm.xlu0 %2909, %v2230
        %v2911 = vpop.permute.xlu0 %2910
        %2914 = vset.pattern.permute.xlu0 0
        %2915 = vperm.xlu0 %2914, %v2231
        %v2916 = vpop.permute.xlu0 %2915
        %2919 = vset.pattern.permute.xlu0 0
        %2920 = vperm.xlu0 %2919, %v2232
        %v2921 = vpop.permute.xlu0 %2920
        %2924 = vset.pattern.permute.xlu0 0
        %2925 = vperm.xlu0 %2924, %v2233
        %v2926 = vpop.permute.xlu0 %2925
        %2929 = vset.pattern.permute.xlu0 0
        %2930 = vperm.xlu0 %2929, %v2234
        %v2931 = vpop.permute.xlu0 %2930
        %2934 = vset.pattern.permute.xlu0 0
        %2935 = vperm.xlu0 %2934, %v2235
        %v2936 = vpop.permute.xlu0 %2935
        %2939 = vset.pattern.permute.xlu0 0
        %2940 = vperm.xlu0 %2939, %v2236
        %v2941 = vpop.permute.xlu0 %2940
        %2944 = vset.pattern.permute.xlu0 0
        %2945 = vperm.xlu0 %2944, %v2237
        %v2946 = vpop.permute.xlu0 %2945
        %2949 = vset.pattern.permute.xlu0 0
        %2950 = vperm.xlu0 %2949, %v2238
        %v2951 = vpop.permute.xlu0 %2950
        %2954 = vset.pattern.permute.xlu0 0
        %2955 = vperm.xlu0 %2954, %v2239
        %v2956 = vpop.permute.xlu0 %2955
        %2959 = vset.pattern.permute.xlu0 0
        %2960 = vperm.xlu0 %2959, %v2240
        %v2961 = vpop.permute.xlu0 %2960
        %2964 = vset.pattern.permute.xlu0 0
        %2965 = vperm.xlu0 %2964, %v2241
        %v2966 = vpop.permute.xlu0 %2965
        %2969 = vset.pattern.permute.xlu0 0
        %2970 = vperm.xlu0 %2969, %v2242
        %v2971 = vpop.permute.xlu0 %2970
        %2974 = vset.pattern.permute.xlu0 0
        %2975 = vperm.xlu0 %2974, %v2243
        %v2976 = vpop.permute.xlu0 %2975
        %2979 = vset.pattern.permute.xlu0 0
        %2980 = vperm.xlu0 %2979, %v2244
        %v2981 = vpop.permute.xlu0 %2980
        %2984 = vset.pattern.permute.xlu0 0
        %2985 = vperm.xlu0 %2984, %v2245
        %v2986 = vpop.permute.xlu0 %2985
        %2989 = vset.pattern.permute.xlu0 0
        %2990 = vperm.xlu0 %2989, %v2246
        %v2991 = vpop.permute.xlu0 %2990
        %2994 = vset.pattern.permute.xlu0 0
        %2995 = vperm.xlu0 %2994, %v2247
        %v2996 = vpop.permute.xlu0 %2995
        %2999 = vset.pattern.permute.xlu0 0
        %3000 = vperm.xlu0 %2999, %v2248
        %v3001 = vpop.permute.xlu0 %3000
        %3004 = vset.pattern.permute.xlu0 0
        %3005 = vperm.xlu0 %3004, %v2249
        %v3006 = vpop.permute.xlu0 %3005
        %3009 = vset.pattern.permute.xlu0 0
        %3010 = vperm.xlu0 %3009, %v2250
        %v3011 = vpop.permute.xlu0 %3010
        %3014 = vset.pattern.permute.xlu0 0
        %3015 = vperm.xlu0 %3014, %v2251
        %v3016 = vpop.permute.xlu0 %3015
        %3019 = vset.pattern.permute.xlu0 0
        %3020 = vperm.xlu0 %3019, %v2252
        %v3021 = vpop.permute.xlu0 %3020
        %3024 = vset.pattern.permute.xlu0 0
        %3025 = vperm.xlu0 %3024, %v2253
        %v3026 = vpop.permute.xlu0 %3025
        %3029 = vset.pattern.permute.xlu0 0
        %3030 = vperm.xlu0 %3029, %v2254
        %v3031 = vpop.permute.xlu0 %3030
        %3034 = vset.pattern.permute.xlu0 0
        %3035 = vperm.xlu0 %3034, %v2255
        %v3036 = vpop.permute.xlu0 %3035
        %3039 = vset.pattern.permute.xlu0 0
        %3040 = vperm.xlu0 %3039, %v2256
        %v3041 = vpop.permute.xlu0 %3040
        %3044 = vset.pattern.permute.xlu0 0
        %3045 = vperm.xlu0 %3044, %v2257
        %v3046 = vpop.permute.xlu0 %3045
        %3049 = vset.pattern.permute.xlu0 0
        %3050 = vperm.xlu0 %3049, %v2258
        %v3051 = vpop.permute.xlu0 %3050
        %3054 = vset.pattern.permute.xlu0 0
        %3055 = vperm.xlu0 %3054, %v2259
        %v3056 = vpop.permute.xlu0 %3055
        %3059 = vset.pattern.permute.xlu0 0
        %3060 = vperm.xlu0 %3059, %v2260
        %v3061 = vpop.permute.xlu0 %3060
        %3064 = vset.pattern.permute.xlu0 0
        %3065 = vperm.xlu0 %3064, %v2261
        %v3066 = vpop.permute.xlu0 %3065
        %3069 = vset.pattern.permute.xlu0 0
        %3070 = vperm.xlu0 %3069, %v2262
        %v3071 = vpop.permute.xlu0 %3070
        %3074 = vset.pattern.permute.xlu0 0
        %3075 = vperm.xlu0 %3074, %v2263
        %v3076 = vpop.permute.xlu0 %3075
        %3079 = vset.pattern.permute.xlu0 0
        %3080 = vperm.xlu0 %3079, %v2264
        %v3081 = vpop.permute.xlu0 %3080
        %3084 = vset.pattern.permute.xlu0 0
        %3085 = vperm.xlu0 %3084, %v2265
        %v3086 = vpop.permute.xlu0 %3085
        %3089 = vset.pattern.permute.xlu0 0
        %3090 = vperm.xlu0 %3089, %v2266
        %v3091 = vpop.permute.xlu0 %3090
        %3094 = vset.pattern.permute.xlu0 0
        %3095 = vperm.xlu0 %3094, %v2267
        %v3096 = vpop.permute.xlu0 %3095
        %3099 = vset.pattern.permute.xlu0 0
        %3100 = vperm.xlu0 %3099, %v2268
        %v3101 = vpop.permute.xlu0 %3100
        %3104 = vset.pattern.permute.xlu0 0
        %3105 = vperm.xlu0 %3104, %v2269
        %v3106 = vpop.permute.xlu0 %3105
        %3109 = vset.pattern.permute.xlu0 0
        %3110 = vperm.xlu0 %3109, %v2270
        %v3111 = vpop.permute.xlu0 %3110
        %3114 = vset.pattern.permute.xlu0 0
        %3115 = vperm.xlu0 %3114, %v2271
        %v3116 = vpop.permute.xlu0 %3115
        %3119 = vset.pattern.permute.xlu0 0
        %3120 = vperm.xlu0 %3119, %v2272
        %v3121 = vpop.permute.xlu0 %3120
        %3124 = vset.pattern.permute.xlu0 0
        %3125 = vperm.xlu0 %3124, %v2273
        %v3126 = vpop.permute.xlu0 %3125
        %3129 = vset.pattern.permute.xlu0 0
        %3130 = vperm.xlu0 %3129, %v2274
        %v3131 = vpop.permute.xlu0 %3130
        %3134 = vset.pattern.permute.xlu0 0
        %3135 = vperm.xlu0 %3134, %v2275
        %v3136 = vpop.permute.xlu0 %3135
        %3139 = vset.pattern.permute.xlu0 0
        %3140 = vperm.xlu0 %3139, %v2276
        %v3141 = vpop.permute.xlu0 %3140
        %3144 = vset.pattern.permute.xlu0 0
        %3145 = vperm.xlu0 %3144, %v2277
        %v3146 = vpop.permute.xlu0 %3145
        %3149 = vset.pattern.permute.xlu0 0
        %3150 = vperm.xlu0 %3149, %v2278
        %v3151 = vpop.permute.xlu0 %3150
        %3154 = vset.pattern.permute.xlu0 0
        %3155 = vperm.xlu0 %3154, %v2279
        %v3156 = vpop.permute.xlu0 %3155
        %3159 = vset.pattern.permute.xlu0 0
        %3160 = vperm.xlu0 %3159, %v2280
        %v3161 = vpop.permute.xlu0 %3160
        %3164 = vset.pattern.permute.xlu0 0
        %3165 = vperm.xlu0 %3164, %v2281
        %v3166 = vpop.permute.xlu0 %3165
        %3169 = vset.pattern.permute.xlu0 0
        %3170 = vperm.xlu0 %3169, %v2282
        %v3171 = vpop.permute.xlu0 %3170
        %3174 = vset.pattern.permute.xlu0 0
        %3175 = vperm.xlu0 %3174, %v2283
        %v3176 = vpop.permute.xlu0 %3175
        %3179 = vset.pattern.permute.xlu0 0
        %3180 = vperm.xlu0 %3179, %v2284
        %v3181 = vpop.permute.xlu0 %3180
        %3184 = vset.pattern.permute.xlu0 0
        %3185 = vperm.xlu0 %3184, %v2285
        %v3186 = vpop.permute.xlu0 %3185
        %3189 = vset.pattern.permute.xlu0 0
        %3190 = vperm.xlu0 %3189, %v2286
        %v3191 = vpop.permute.xlu0 %3190
        %3194 = vset.pattern.permute.xlu0 0
        %3195 = vperm.xlu0 %3194, %v2287
        %v3196 = vpop.permute.xlu0 %3195
        %v3198 = vsub.f32 %v216, %v2291
        %v3199 = vsub.f32 %v217, %v2291
        %v3200 = vsub.f32 %v218, %v2296
        %v3201 = vsub.f32 %v219, %v2296
        %v3202 = vsub.f32 %v220, %v2301
        %v3203 = vsub.f32 %v221, %v2301
        %v3204 = vsub.f32 %v222, %v2306
        %v3205 = vsub.f32 %v223, %v2306
        %v3206 = vsub.f32 %v224, %v2311
        %v3207 = vsub.f32 %v225, %v2311
        %v3208 = vsub.f32 %v226, %v2316
        %v3209 = vsub.f32 %v227, %v2316
        %v3210 = vsub.f32 %v228, %v2321
        %v3211 = vsub.f32 %v229, %v2321
        %v3212 = vsub.f32 %v230, %v2326
        %v3213 = vsub.f32 %v231, %v2326
        %v3214 = vsub.f32 %v232, %v2331
        %v3215 = vsub.f32 %v233, %v2331
        %v3216 = vsub.f32 %v234, %v2336
        %v3217 = vsub.f32 %v235, %v2336
        %v3218 = vsub.f32 %v236, %v2341
        %v3219 = vsub.f32 %v237, %v2341
        %v3220 = vsub.f32 %v238, %v2346
        %v3221 = vsub.f32 %v239, %v2346
        %v3222 = vsub.f32 %v240, %v2351
        %v3223 = vsub.f32 %v241, %v2351
        %v3224 = vsub.f32 %v242, %v2356
        %v3225 = vsub.f32 %v243, %v2356
        %v3226 = vsub.f32 %v244, %v2361
        %v3227 = vsub.f32 %v245, %v2361
        %v3228 = vsub.f32 %v246, %v2366
        %v3229 = vsub.f32 %v247, %v2366
        %v3230 = vsub.f32 %v248, %v2371
        %v3231 = vsub.f32 %v249, %v2371
        %v3232 = vsub.f32 %v250, %v2376
        %v3233 = vsub.f32 %v251, %v2376
        %v3234 = vsub.f32 %v252, %v2381
        %v3235 = vsub.f32 %v253, %v2381
        %v3236 = vsub.f32 %v254, %v2386
        %v3237 = vsub.f32 %v255, %v2386
        %v3238 = vsub.f32 %v256, %v2391
        %v3239 = vsub.f32 %v257, %v2391
        %v3240 = vsub.f32 %v258, %v2396
        %v3241 = vsub.f32 %v259, %v2396
        %v3242 = vsub.f32 %v260, %v2401
        %v3243 = vsub.f32 %v261, %v2401
        %v3244 = vsub.f32 %v262, %v2406
        %v3245 = vsub.f32 %v263, %v2406
        %v3246 = vsub.f32 %v264, %v2411
        %v3247 = vsub.f32 %v265, %v2411
        %v3248 = vsub.f32 %v266, %v2416
        %v3249 = vsub.f32 %v267, %v2416
        %v3250 = vsub.f32 %v268, %v2421
        %v3251 = vsub.f32 %v269, %v2421
        %v3252 = vsub.f32 %v270, %v2426
        %v3253 = vsub.f32 %v271, %v2426
        %v3254 = vsub.f32 %v272, %v2431
        %v3255 = vsub.f32 %v273, %v2431
        %v3256 = vsub.f32 %v274, %v2436
        %v3257 = vsub.f32 %v275, %v2436
        %v3258 = vsub.f32 %v276, %v2441
        %v3259 = vsub.f32 %v277, %v2441
        %v3260 = vsub.f32 %v278, %v2446
        %v3261 = vsub.f32 %v279, %v2446
        %v3262 = vsub.f32 %v280, %v2451
        %v3263 = vsub.f32 %v281, %v2451
        %v3264 = vsub.f32 %v282, %v2456
        %v3265 = vsub.f32 %v283, %v2456
        %v3266 = vsub.f32 %v284, %v2461
        %v3267 = vsub.f32 %v285, %v2461
        %v3268 = vsub.f32 %v286, %v2466
        %v3269 = vsub.f32 %v287, %v2466
        %v3270 = vsub.f32 %v288, %v2471
        %v3271 = vsub.f32 %v289, %v2471
        %v3272 = vsub.f32 %v290, %v2476
        %v3273 = vsub.f32 %v291, %v2476
        %v3274 = vsub.f32 %v292, %v2481
        %v3275 = vsub.f32 %v293, %v2481
        %v3276 = vsub.f32 %v294, %v2486
        %v3277 = vsub.f32 %v295, %v2486
        %v3278 = vsub.f32 %v296, %v2491
        %v3279 = vsub.f32 %v297, %v2491
        %v3280 = vsub.f32 %v298, %v2496
        %v3281 = vsub.f32 %v299, %v2496
        %v3282 = vsub.f32 %v300, %v2501
        %v3283 = vsub.f32 %v301, %v2501
        %v3284 = vsub.f32 %v302, %v2506
        %v3285 = vsub.f32 %v303, %v2506
        %v3286 = vsub.f32 %v304, %v2511
        %v3287 = vsub.f32 %v305, %v2511
        %v3288 = vsub.f32 %v306, %v2516
        %v3289 = vsub.f32 %v307, %v2516
        %v3290 = vsub.f32 %v308, %v2521
        %v3291 = vsub.f32 %v309, %v2521
        %v3292 = vsub.f32 %v310, %v2526
        %v3293 = vsub.f32 %v311, %v2526
        %v3294 = vsub.f32 %v312, %v2531
        %v3295 = vsub.f32 %v313, %v2531
        %v3296 = vsub.f32 %v314, %v2536
        %v3297 = vsub.f32 %v315, %v2536
        %v3298 = vsub.f32 %v316, %v2541
        %v3299 = vsub.f32 %v317, %v2541
        %v3300 = vsub.f32 %v318, %v2546
        %v3301 = vsub.f32 %v319, %v2546
        %v3302 = vsub.f32 %v320, %v2551
        %v3303 = vsub.f32 %v321, %v2551
        %v3304 = vsub.f32 %v322, %v2556
        %v3305 = vsub.f32 %v323, %v2556
        %v3306 = vsub.f32 %v324, %v2561
        %v3307 = vsub.f32 %v325, %v2561
        %v3308 = vsub.f32 %v326, %v2566
        %v3309 = vsub.f32 %v327, %v2566
        %v3310 = vsub.f32 %v328, %v2571
        %v3311 = vsub.f32 %v329, %v2571
        %v3312 = vsub.f32 %v330, %v2576
        %v3313 = vsub.f32 %v331, %v2576
        %v3314 = vsub.f32 %v332, %v2581
        %v3315 = vsub.f32 %v333, %v2581
        %v3316 = vsub.f32 %v334, %v2586
        %v3317 = vsub.f32 %v335, %v2586
        %v3318 = vsub.f32 %v336, %v2591
        %v3319 = vsub.f32 %v337, %v2591
        %v3320 = vsub.f32 %v338, %v2596
        %v3321 = vsub.f32 %v339, %v2596
        %v3322 = vsub.f32 %v340, %v2601
        %v3323 = vsub.f32 %v341, %v2601
        %v3324 = vsub.f32 %v342, %v2606
        %v3325 = vsub.f32 %v343, %v2606
        %v3326 = vsub.f32 %v344, %v2611
        %v3327 = vsub.f32 %v345, %v2611
        %v3328 = vsub.f32 %v346, %v2616
        %v3329 = vsub.f32 %v347, %v2616
        %v3330 = vsub.f32 %v348, %v2621
        %v3331 = vsub.f32 %v349, %v2621
        %v3332 = vsub.f32 %v350, %v2626
        %v3333 = vsub.f32 %v351, %v2626
        %v3334 = vsub.f32 %v352, %v2631
        %v3335 = vsub.f32 %v353, %v2631
        %v3336 = vsub.f32 %v354, %v2636
        %v3337 = vsub.f32 %v355, %v2636
        %v3338 = vsub.f32 %v356, %v2641
        %v3339 = vsub.f32 %v357, %v2641
        %v3340 = vsub.f32 %v358, %v2646
        %v3341 = vsub.f32 %v359, %v2646
        %v3342 = vsub.f32 %v360, %v2651
        %v3343 = vsub.f32 %v361, %v2651
        %v3344 = vsub.f32 %v362, %v2656
        %v3345 = vsub.f32 %v363, %v2656
        %v3346 = vsub.f32 %v364, %v2661
        %v3347 = vsub.f32 %v365, %v2661
        %v3348 = vsub.f32 %v366, %v2666
        %v3349 = vsub.f32 %v367, %v2666
        %v3350 = vsub.f32 %v368, %v2671
        %v3351 = vsub.f32 %v369, %v2671
        %v3352 = vsub.f32 %v370, %v2676
        %v3353 = vsub.f32 %v371, %v2676
        %v3354 = vsub.f32 %v372, %v2681
        %v3355 = vsub.f32 %v373, %v2681
        %v3356 = vsub.f32 %v374, %v2686
        %v3357 = vsub.f32 %v375, %v2686
        %v3358 = vsub.f32 %v376, %v2691
        %v3359 = vsub.f32 %v377, %v2691
        %v3360 = vsub.f32 %v378, %v2696
        %v3361 = vsub.f32 %v379, %v2696
        %v3362 = vsub.f32 %v380, %v2701
        %v3363 = vsub.f32 %v381, %v2701
        %v3364 = vsub.f32 %v382, %v2706
        %v3365 = vsub.f32 %v383, %v2706
        %v3366 = vsub.f32 %v384, %v2711
        %v3367 = vsub.f32 %v385, %v2711
        %v3368 = vsub.f32 %v386, %v2716
        %v3369 = vsub.f32 %v387, %v2716
        %v3370 = vsub.f32 %v388, %v2721
        %v3371 = vsub.f32 %v389, %v2721
        %v3372 = vsub.f32 %v390, %v2726
        %v3373 = vsub.f32 %v391, %v2726
        %v3374 = vsub.f32 %v392, %v2731
        %v3375 = vsub.f32 %v393, %v2731
        %v3376 = vsub.f32 %v394, %v2736
        %v3377 = vsub.f32 %v395, %v2736
        %v3378 = vsub.f32 %v396, %v2741
        %v3379 = vsub.f32 %v397, %v2741
        %v3380 = vsub.f32 %v398, %v2746
        %v3381 = vsub.f32 %v399, %v2746
        %v3382 = vsub.f32 %v400, %v2751
        %v3383 = vsub.f32 %v401, %v2751
        %v3384 = vsub.f32 %v402, %v2756
        %v3385 = vsub.f32 %v403, %v2756
        %v3386 = vsub.f32 %v404, %v2761
        %v3387 = vsub.f32 %v405, %v2761
        %v3388 = vsub.f32 %v406, %v2766
        %v3389 = vsub.f32 %v407, %v2766
        %v3390 = vsub.f32 %v408, %v2771
        %v3391 = vsub.f32 %v409, %v2771
        %v3392 = vsub.f32 %v410, %v2776
        %v3393 = vsub.f32 %v411, %v2776
        %v3394 = vsub.f32 %v412, %v2781
        %v3395 = vsub.f32 %v413, %v2781
        %v3396 = vsub.f32 %v414, %v2786
        %v3397 = vsub.f32 %v415, %v2786
        %v3398 = vsub.f32 %v416, %v2791
        %v3399 = vsub.f32 %v417, %v2791
        %v3400 = vsub.f32 %v418, %v2796
        %v3401 = vsub.f32 %v419, %v2796
        %v3402 = vsub.f32 %v420, %v2801
        %v3403 = vsub.f32 %v421, %v2801
        %v3404 = vsub.f32 %v422, %v2806
        %v3405 = vsub.f32 %v423, %v2806
        %v3406 = vsub.f32 %v424, %v2811
        %v3407 = vsub.f32 %v425, %v2811
        %v3408 = vsub.f32 %v426, %v2816
        %v3409 = vsub.f32 %v427, %v2816
        %v3410 = vsub.f32 %v428, %v2821
        %v3411 = vsub.f32 %v429, %v2821
        %v3412 = vsub.f32 %v430, %v2826
        %v3413 = vsub.f32 %v431, %v2826
        %v3414 = vsub.f32 %v432, %v2831
        %v3415 = vsub.f32 %v433, %v2831
        %v3416 = vsub.f32 %v434, %v2836
        %v3417 = vsub.f32 %v435, %v2836
        %v3418 = vsub.f32 %v436, %v2841
        %v3419 = vsub.f32 %v437, %v2841
        %v3420 = vsub.f32 %v438, %v2846
        %v3421 = vsub.f32 %v439, %v2846
        %v3422 = vsub.f32 %v440, %v2851
        %v3423 = vsub.f32 %v441, %v2851
        %v3424 = vsub.f32 %v442, %v2856
        %v3425 = vsub.f32 %v443, %v2856
        %v3426 = vsub.f32 %v444, %v2861
        %v3427 = vsub.f32 %v445, %v2861
        %v3428 = vsub.f32 %v446, %v2866
        %v3429 = vsub.f32 %v447, %v2866
        %v3430 = vsub.f32 %v448, %v2871
        %v3431 = vsub.f32 %v449, %v2871
        %v3432 = vsub.f32 %v450, %v2876
        %v3433 = vsub.f32 %v451, %v2876
        %v3434 = vsub.f32 %v452, %v2881
        %v3435 = vsub.f32 %v453, %v2881
        %v3436 = vsub.f32 %v454, %v2886
        %v3437 = vsub.f32 %v455, %v2886
        %v3438 = vsub.f32 %v456, %v2891
        %v3439 = vsub.f32 %v457, %v2891
        %v3440 = vsub.f32 %v458, %v2896
        %v3441 = vsub.f32 %v459, %v2896
        %v3442 = vsub.f32 %v460, %v2901
        %v3443 = vsub.f32 %v461, %v2901
        %v3444 = vsub.f32 %v462, %v2906
        %v3445 = vsub.f32 %v463, %v2906
        %v3446 = vsub.f32 %v464, %v2911
        %v3447 = vsub.f32 %v465, %v2911
        %v3448 = vsub.f32 %v466, %v2916
        %v3449 = vsub.f32 %v467, %v2916
        %v3450 = vsub.f32 %v468, %v2921
        %v3451 = vsub.f32 %v469, %v2921
        %v3452 = vsub.f32 %v470, %v2926
        %v3453 = vsub.f32 %v471, %v2926
        %v3454 = vsub.f32 %v472, %v2931
        %v3455 = vsub.f32 %v473, %v2931
        %v3456 = vsub.f32 %v474, %v2936
        %v3457 = vsub.f32 %v475, %v2936
        %v3458 = vsub.f32 %v476, %v2941
        %v3459 = vsub.f32 %v477, %v2941
        %v3460 = vsub.f32 %v478, %v2946
        %v3461 = vsub.f32 %v479, %v2946
        %v3462 = vsub.f32 %v480, %v2951
        %v3463 = vsub.f32 %v481, %v2951
        %v3464 = vsub.f32 %v482, %v2956
        %v3465 = vsub.f32 %v483, %v2956
        %v3466 = vsub.f32 %v484, %v2961
        %v3467 = vsub.f32 %v485, %v2961
        %v3468 = vsub.f32 %v486, %v2966
        %v3469 = vsub.f32 %v487, %v2966
        %v3470 = vsub.f32 %v488, %v2971
        %v3471 = vsub.f32 %v489, %v2971
        %v3472 = vsub.f32 %v490, %v2976
        %v3473 = vsub.f32 %v491, %v2976
        %v3474 = vsub.f32 %v492, %v2981
        %v3475 = vsub.f32 %v493, %v2981
        %v3476 = vsub.f32 %v494, %v2986
        %v3477 = vsub.f32 %v495, %v2986
        %v3478 = vsub.f32 %v496, %v2991
        %v3479 = vsub.f32 %v497, %v2991
        %v3480 = vsub.f32 %v498, %v2996
        %v3481 = vsub.f32 %v499, %v2996
        %v3482 = vsub.f32 %v500, %v3001
        %v3483 = vsub.f32 %v501, %v3001
        %v3484 = vsub.f32 %v502, %v3006
        %v3485 = vsub.f32 %v503, %v3006
        %v3486 = vsub.f32 %v504, %v3011
        %v3487 = vsub.f32 %v505, %v3011
        %v3488 = vsub.f32 %v506, %v3016
        %v3489 = vsub.f32 %v507, %v3016
        %v3490 = vsub.f32 %v508, %v3021
        %v3491 = vsub.f32 %v509, %v3021
        %v3492 = vsub.f32 %v510, %v3026
        %v3493 = vsub.f32 %v511, %v3026
        %v3494 = vsub.f32 %v512, %v3031
        %v3495 = vsub.f32 %v513, %v3031
        %v3496 = vsub.f32 %v514, %v3036
        %v3497 = vsub.f32 %v515, %v3036
        %v3498 = vsub.f32 %v516, %v3041
        %v3499 = vsub.f32 %v517, %v3041
        %v3500 = vsub.f32 %v518, %v3046
        %v3501 = vsub.f32 %v519, %v3046
        %v3502 = vsub.f32 %v520, %v3051
        %v3503 = vsub.f32 %v521, %v3051
        %v3504 = vsub.f32 %v522, %v3056
        %v3505 = vsub.f32 %v523, %v3056
        %v3506 = vsub.f32 %v524, %v3061
        %v3507 = vsub.f32 %v525, %v3061
        %v3508 = vsub.f32 %v526, %v3066
        %v3509 = vsub.f32 %v527, %v3066
        %v3510 = vsub.f32 %v528, %v3071
        %v3511 = vsub.f32 %v529, %v3071
        %v3512 = vsub.f32 %v530, %v3076
        %v3513 = vsub.f32 %v531, %v3076
        %v3514 = vsub.f32 %v532, %v3081
        %v3515 = vsub.f32 %v533, %v3081
        %v3516 = vsub.f32 %v534, %v3086
        %v3517 = vsub.f32 %v535, %v3086
        %v3518 = vsub.f32 %v536, %v3091
        %v3519 = vsub.f32 %v537, %v3091
        %v3520 = vsub.f32 %v538, %v3096
        %v3521 = vsub.f32 %v539, %v3096
        %v3522 = vsub.f32 %v540, %v3101
        %v3523 = vsub.f32 %v541, %v3101
        %v3524 = vsub.f32 %v542, %v3106
        %v3525 = vsub.f32 %v543, %v3106
        %v3526 = vsub.f32 %v544, %v3111
        %v3527 = vsub.f32 %v545, %v3111
        %v3528 = vsub.f32 %v546, %v3116
        %v3529 = vsub.f32 %v547, %v3116
        %v3530 = vsub.f32 %v548, %v3121
        %v3531 = vsub.f32 %v549, %v3121
        %v3532 = vsub.f32 %v550, %v3126
        %v3533 = vsub.f32 %v551, %v3126
        %v3534 = vsub.f32 %v552, %v3131
        %v3535 = vsub.f32 %v553, %v3131
        %v3536 = vsub.f32 %v554, %v3136
        %v3537 = vsub.f32 %v555, %v3136
        %v3538 = vsub.f32 %v556, %v3141
        %v3539 = vsub.f32 %v557, %v3141
        %v3540 = vsub.f32 %v558, %v3146
        %v3541 = vsub.f32 %v559, %v3146
        %v3542 = vsub.f32 %v560, %v3151
        %v3543 = vsub.f32 %v561, %v3151
        %v3544 = vsub.f32 %v562, %v3156
        %v3545 = vsub.f32 %v563, %v3156
        %v3546 = vsub.f32 %v564, %v3161
        %v3547 = vsub.f32 %v565, %v3161
        %v3548 = vsub.f32 %v566, %v3166
        %v3549 = vsub.f32 %v567, %v3166
        %v3550 = vsub.f32 %v568, %v3171
        %v3551 = vsub.f32 %v569, %v3171
        %v3552 = vsub.f32 %v570, %v3176
        %v3553 = vsub.f32 %v571, %v3176
        %v3554 = vsub.f32 %v572, %v3181
        %v3555 = vsub.f32 %v573, %v3181
        %v3556 = vsub.f32 %v574, %v3186
        %v3557 = vsub.f32 %v575, %v3186
        %v3558 = vsub.f32 %v576, %v3191
        %v3559 = vsub.f32 %v577, %v3191
        %v3560 = vsub.f32 %v578, %v3196
        %v3561 = vsub.f32 %v579, %v3196
        %v3562 = vmul.f32 %v3198, %v3198
        %v3563 = vmul.f32 %v3199, %v3199
        %v3564 = vmul.f32 %v3200, %v3200
        %v3565 = vmul.f32 %v3201, %v3201
        %v3566 = vmul.f32 %v3202, %v3202
        %v3567 = vmul.f32 %v3203, %v3203
        %v3568 = vmul.f32 %v3204, %v3204
        %v3569 = vmul.f32 %v3205, %v3205
        %v3570 = vmul.f32 %v3206, %v3206
        %v3571 = vmul.f32 %v3207, %v3207
        %v3572 = vmul.f32 %v3208, %v3208
        %v3573 = vmul.f32 %v3209, %v3209
        %v3574 = vmul.f32 %v3210, %v3210
        %v3575 = vmul.f32 %v3211, %v3211
        %v3576 = vmul.f32 %v3212, %v3212
        %v3577 = vmul.f32 %v3213, %v3213
        %v3578 = vmul.f32 %v3214, %v3214
        %v3579 = vmul.f32 %v3215, %v3215
        %v3580 = vmul.f32 %v3216, %v3216
        %v3581 = vmul.f32 %v3217, %v3217
        %v3582 = vmul.f32 %v3218, %v3218
        %v3583 = vmul.f32 %v3219, %v3219
        %v3584 = vmul.f32 %v3220, %v3220
        %v3585 = vmul.f32 %v3221, %v3221
        %v3586 = vmul.f32 %v3222, %v3222
        %v3587 = vmul.f32 %v3223, %v3223
        %v3588 = vmul.f32 %v3224, %v3224
        %v3589 = vmul.f32 %v3225, %v3225
        %v3590 = vmul.f32 %v3226, %v3226
        %v3591 = vmul.f32 %v3227, %v3227
        %v3592 = vmul.f32 %v3228, %v3228
        %v3593 = vmul.f32 %v3229, %v3229
        %v3594 = vmul.f32 %v3230, %v3230
        %v3595 = vmul.f32 %v3231, %v3231
        %v3596 = vmul.f32 %v3232, %v3232
        %v3597 = vmul.f32 %v3233, %v3233
        %v3598 = vmul.f32 %v3234, %v3234
        %v3599 = vmul.f32 %v3235, %v3235
        %v3600 = vmul.f32 %v3236, %v3236
        %v3601 = vmul.f32 %v3237, %v3237
        %v3602 = vmul.f32 %v3238, %v3238
        %v3603 = vmul.f32 %v3239, %v3239
        %v3604 = vmul.f32 %v3240, %v3240
        %v3605 = vmul.f32 %v3241, %v3241
        %v3606 = vmul.f32 %v3242, %v3242
        %v3607 = vmul.f32 %v3243, %v3243
        %v3608 = vmul.f32 %v3244, %v3244
        %v3609 = vmul.f32 %v3245, %v3245
        %v3610 = vmul.f32 %v3246, %v3246
        %v3611 = vmul.f32 %v3247, %v3247
        %v3612 = vmul.f32 %v3248, %v3248
        %v3613 = vmul.f32 %v3249, %v3249
        %v3614 = vmul.f32 %v3250, %v3250
        %v3615 = vmul.f32 %v3251, %v3251
        %v3616 = vmul.f32 %v3252, %v3252
        %v3617 = vmul.f32 %v3253, %v3253
        %v3618 = vmul.f32 %v3254, %v3254
        %v3619 = vmul.f32 %v3255, %v3255
        %v3620 = vmul.f32 %v3256, %v3256
        %v3621 = vmul.f32 %v3257, %v3257
        %v3622 = vmul.f32 %v3258, %v3258
        %v3623 = vmul.f32 %v3259, %v3259
        %v3624 = vmul.f32 %v3260, %v3260
        %v3625 = vmul.f32 %v3261, %v3261
        %v3626 = vmul.f32 %v3262, %v3262
        %v3627 = vmul.f32 %v3263, %v3263
        %v3628 = vmul.f32 %v3264, %v3264
        %v3629 = vmul.f32 %v3265, %v3265
        %v3630 = vmul.f32 %v3266, %v3266
        %v3631 = vmul.f32 %v3267, %v3267
        %v3632 = vmul.f32 %v3268, %v3268
        %v3633 = vmul.f32 %v3269, %v3269
        %v3634 = vmul.f32 %v3270, %v3270
        %v3635 = vmul.f32 %v3271, %v3271
        %v3636 = vmul.f32 %v3272, %v3272
        %v3637 = vmul.f32 %v3273, %v3273
        %v3638 = vmul.f32 %v3274, %v3274
        %v3639 = vmul.f32 %v3275, %v3275
        %v3640 = vmul.f32 %v3276, %v3276
        %v3641 = vmul.f32 %v3277, %v3277
        %v3642 = vmul.f32 %v3278, %v3278
        %v3643 = vmul.f32 %v3279, %v3279
        %v3644 = vmul.f32 %v3280, %v3280
        %v3645 = vmul.f32 %v3281, %v3281
        %v3646 = vmul.f32 %v3282, %v3282
        %v3647 = vmul.f32 %v3283, %v3283
        %v3648 = vmul.f32 %v3284, %v3284
        %v3649 = vmul.f32 %v3285, %v3285
        %v3650 = vmul.f32 %v3286, %v3286
        %v3651 = vmul.f32 %v3287, %v3287
        %v3652 = vmul.f32 %v3288, %v3288
        %v3653 = vmul.f32 %v3289, %v3289
        %v3654 = vmul.f32 %v3290, %v3290
        %v3655 = vmul.f32 %v3291, %v3291
        %v3656 = vmul.f32 %v3292, %v3292
        %v3657 = vmul.f32 %v3293, %v3293
        %v3658 = vmul.f32 %v3294, %v3294
        %v3659 = vmul.f32 %v3295, %v3295
        %v3660 = vmul.f32 %v3296, %v3296
        %v3661 = vmul.f32 %v3297, %v3297
        %v3662 = vmul.f32 %v3298, %v3298
        %v3663 = vmul.f32 %v3299, %v3299
        %v3664 = vmul.f32 %v3300, %v3300
        %v3665 = vmul.f32 %v3301, %v3301
        %v3666 = vmul.f32 %v3302, %v3302
        %v3667 = vmul.f32 %v3303, %v3303
        %v3668 = vmul.f32 %v3304, %v3304
        %v3669 = vmul.f32 %v3305, %v3305
        %v3670 = vmul.f32 %v3306, %v3306
        %v3671 = vmul.f32 %v3307, %v3307
        %v3672 = vmul.f32 %v3308, %v3308
        %v3673 = vmul.f32 %v3309, %v3309
        %v3674 = vmul.f32 %v3310, %v3310
        %v3675 = vmul.f32 %v3311, %v3311
        %v3676 = vmul.f32 %v3312, %v3312
        %v3677 = vmul.f32 %v3313, %v3313
        %v3678 = vmul.f32 %v3314, %v3314
        %v3679 = vmul.f32 %v3315, %v3315
        %v3680 = vmul.f32 %v3316, %v3316
        %v3681 = vmul.f32 %v3317, %v3317
        %v3682 = vmul.f32 %v3318, %v3318
        %v3683 = vmul.f32 %v3319, %v3319
        %v3684 = vmul.f32 %v3320, %v3320
        %v3685 = vmul.f32 %v3321, %v3321
        %v3686 = vmul.f32 %v3322, %v3322
        %v3687 = vmul.f32 %v3323, %v3323
        %v3688 = vmul.f32 %v3324, %v3324
        %v3689 = vmul.f32 %v3325, %v3325
        %v3690 = vmul.f32 %v3326, %v3326
        %v3691 = vmul.f32 %v3327, %v3327
        %v3692 = vmul.f32 %v3328, %v3328
        %v3693 = vmul.f32 %v3329, %v3329
        %v3694 = vmul.f32 %v3330, %v3330
        %v3695 = vmul.f32 %v3331, %v3331
        %v3696 = vmul.f32 %v3332, %v3332
        %v3697 = vmul.f32 %v3333, %v3333
        %v3698 = vmul.f32 %v3334, %v3334
        %v3699 = vmul.f32 %v3335, %v3335
        %v3700 = vmul.f32 %v3336, %v3336
        %v3701 = vmul.f32 %v3337, %v3337
        %v3702 = vmul.f32 %v3338, %v3338
        %v3703 = vmul.f32 %v3339, %v3339
        %v3704 = vmul.f32 %v3340, %v3340
        %v3705 = vmul.f32 %v3341, %v3341
        %v3706 = vmul.f32 %v3342, %v3342
        %v3707 = vmul.f32 %v3343, %v3343
        %v3708 = vmul.f32 %v3344, %v3344
        %v3709 = vmul.f32 %v3345, %v3345
        %v3710 = vmul.f32 %v3346, %v3346
        %v3711 = vmul.f32 %v3347, %v3347
        %v3712 = vmul.f32 %v3348, %v3348
        %v3713 = vmul.f32 %v3349, %v3349
        %v3714 = vmul.f32 %v3350, %v3350
        %v3715 = vmul.f32 %v3351, %v3351
        %v3716 = vmul.f32 %v3352, %v3352
        %v3717 = vmul.f32 %v3353, %v3353
        %v3718 = vmul.f32 %v3354, %v3354
        %v3719 = vmul.f32 %v3355, %v3355
        %v3720 = vmul.f32 %v3356, %v3356
        %v3721 = vmul.f32 %v3357, %v3357
        %v3722 = vmul.f32 %v3358, %v3358
        %v3723 = vmul.f32 %v3359, %v3359
        %v3724 = vmul.f32 %v3360, %v3360
        %v3725 = vmul.f32 %v3361, %v3361
        %v3726 = vmul.f32 %v3362, %v3362
        %v3727 = vmul.f32 %v3363, %v3363
        %v3728 = vmul.f32 %v3364, %v3364
        %v3729 = vmul.f32 %v3365, %v3365
        %v3730 = vmul.f32 %v3366, %v3366
        %v3731 = vmul.f32 %v3367, %v3367
        %v3732 = vmul.f32 %v3368, %v3368
        %v3733 = vmul.f32 %v3369, %v3369
        %v3734 = vmul.f32 %v3370, %v3370
        %v3735 = vmul.f32 %v3371, %v3371
        %v3736 = vmul.f32 %v3372, %v3372
        %v3737 = vmul.f32 %v3373, %v3373
        %v3738 = vmul.f32 %v3374, %v3374
        %v3739 = vmul.f32 %v3375, %v3375
        %v3740 = vmul.f32 %v3376, %v3376
        %v3741 = vmul.f32 %v3377, %v3377
        %v3742 = vmul.f32 %v3378, %v3378
        %v3743 = vmul.f32 %v3379, %v3379
        %v3744 = vmul.f32 %v3380, %v3380
        %v3745 = vmul.f32 %v3381, %v3381
        %v3746 = vmul.f32 %v3382, %v3382
        %v3747 = vmul.f32 %v3383, %v3383
        %v3748 = vmul.f32 %v3384, %v3384
        %v3749 = vmul.f32 %v3385, %v3385
        %v3750 = vmul.f32 %v3386, %v3386
        %v3751 = vmul.f32 %v3387, %v3387
        %v3752 = vmul.f32 %v3388, %v3388
        %v3753 = vmul.f32 %v3389, %v3389
        %v3754 = vmul.f32 %v3390, %v3390
        %v3755 = vmul.f32 %v3391, %v3391
        %v3756 = vmul.f32 %v3392, %v3392
        %v3757 = vmul.f32 %v3393, %v3393
        %v3758 = vmul.f32 %v3394, %v3394
        %v3759 = vmul.f32 %v3395, %v3395
        %v3760 = vmul.f32 %v3396, %v3396
        %v3761 = vmul.f32 %v3397, %v3397
        %v3762 = vmul.f32 %v3398, %v3398
        %v3763 = vmul.f32 %v3399, %v3399
        %v3764 = vmul.f32 %v3400, %v3400
        %v3765 = vmul.f32 %v3401, %v3401
        %v3766 = vmul.f32 %v3402, %v3402
        %v3767 = vmul.f32 %v3403, %v3403
        %v3768 = vmul.f32 %v3404, %v3404
        %v3769 = vmul.f32 %v3405, %v3405
        %v3770 = vmul.f32 %v3406, %v3406
        %v3771 = vmul.f32 %v3407, %v3407
        %v3772 = vmul.f32 %v3408, %v3408
        %v3773 = vmul.f32 %v3409, %v3409
        %v3774 = vmul.f32 %v3410, %v3410
        %v3775 = vmul.f32 %v3411, %v3411
        %v3776 = vmul.f32 %v3412, %v3412
        %v3777 = vmul.f32 %v3413, %v3413
        %v3778 = vmul.f32 %v3414, %v3414
        %v3779 = vmul.f32 %v3415, %v3415
        %v3780 = vmul.f32 %v3416, %v3416
        %v3781 = vmul.f32 %v3417, %v3417
        %v3782 = vmul.f32 %v3418, %v3418
        %v3783 = vmul.f32 %v3419, %v3419
        %v3784 = vmul.f32 %v3420, %v3420
        %v3785 = vmul.f32 %v3421, %v3421
        %v3786 = vmul.f32 %v3422, %v3422
        %v3787 = vmul.f32 %v3423, %v3423
        %v3788 = vmul.f32 %v3424, %v3424
        %v3789 = vmul.f32 %v3425, %v3425
        %v3790 = vmul.f32 %v3426, %v3426
        %v3791 = vmul.f32 %v3427, %v3427
        %v3792 = vmul.f32 %v3428, %v3428
        %v3793 = vmul.f32 %v3429, %v3429
        %v3794 = vmul.f32 %v3430, %v3430
        %v3795 = vmul.f32 %v3431, %v3431
        %v3796 = vmul.f32 %v3432, %v3432
        %v3797 = vmul.f32 %v3433, %v3433
        %v3798 = vmul.f32 %v3434, %v3434
        %v3799 = vmul.f32 %v3435, %v3435
        %v3800 = vmul.f32 %v3436, %v3436
        %v3801 = vmul.f32 %v3437, %v3437
        %v3802 = vmul.f32 %v3438, %v3438
        %v3803 = vmul.f32 %v3439, %v3439
        %v3804 = vmul.f32 %v3440, %v3440
        %v3805 = vmul.f32 %v3441, %v3441
        %v3806 = vmul.f32 %v3442, %v3442
        %v3807 = vmul.f32 %v3443, %v3443
        %v3808 = vmul.f32 %v3444, %v3444
        %v3809 = vmul.f32 %v3445, %v3445
        %v3810 = vmul.f32 %v3446, %v3446
        %v3811 = vmul.f32 %v3447, %v3447
        %v3812 = vmul.f32 %v3448, %v3448
        %v3813 = vmul.f32 %v3449, %v3449
        %v3814 = vmul.f32 %v3450, %v3450
        %v3815 = vmul.f32 %v3451, %v3451
        %v3816 = vmul.f32 %v3452, %v3452
        %v3817 = vmul.f32 %v3453, %v3453
        %v3818 = vmul.f32 %v3454, %v3454
        %v3819 = vmul.f32 %v3455, %v3455
        %v3820 = vmul.f32 %v3456, %v3456
        %v3821 = vmul.f32 %v3457, %v3457
        %v3822 = vmul.f32 %v3458, %v3458
        %v3823 = vmul.f32 %v3459, %v3459
        %v3824 = vmul.f32 %v3460, %v3460
        %v3825 = vmul.f32 %v3461, %v3461
        %v3826 = vmul.f32 %v3462, %v3462
        %v3827 = vmul.f32 %v3463, %v3463
        %v3828 = vmul.f32 %v3464, %v3464
        %v3829 = vmul.f32 %v3465, %v3465
        %v3830 = vmul.f32 %v3466, %v3466
        %v3831 = vmul.f32 %v3467, %v3467
        %v3832 = vmul.f32 %v3468, %v3468
        %v3833 = vmul.f32 %v3469, %v3469
        %v3834 = vmul.f32 %v3470, %v3470
        %v3835 = vmul.f32 %v3471, %v3471
        %v3836 = vmul.f32 %v3472, %v3472
        %v3837 = vmul.f32 %v3473, %v3473
        %v3838 = vmul.f32 %v3474, %v3474
        %v3839 = vmul.f32 %v3475, %v3475
        %v3840 = vmul.f32 %v3476, %v3476
        %v3841 = vmul.f32 %v3477, %v3477
        %v3842 = vmul.f32 %v3478, %v3478
        %v3843 = vmul.f32 %v3479, %v3479
        %v3844 = vmul.f32 %v3480, %v3480
        %v3845 = vmul.f32 %v3481, %v3481
        %v3846 = vmul.f32 %v3482, %v3482
        %v3847 = vmul.f32 %v3483, %v3483
        %v3848 = vmul.f32 %v3484, %v3484
        %v3849 = vmul.f32 %v3485, %v3485
        %v3850 = vmul.f32 %v3486, %v3486
        %v3851 = vmul.f32 %v3487, %v3487
        %v3852 = vmul.f32 %v3488, %v3488
        %v3853 = vmul.f32 %v3489, %v3489
        %v3854 = vmul.f32 %v3490, %v3490
        %v3855 = vmul.f32 %v3491, %v3491
        %v3856 = vmul.f32 %v3492, %v3492
        %v3857 = vmul.f32 %v3493, %v3493
        %v3858 = vmul.f32 %v3494, %v3494
        %v3859 = vmul.f32 %v3495, %v3495
        %v3860 = vmul.f32 %v3496, %v3496
        %v3861 = vmul.f32 %v3497, %v3497
        %v3862 = vmul.f32 %v3498, %v3498
        %v3863 = vmul.f32 %v3499, %v3499
        %v3864 = vmul.f32 %v3500, %v3500
        %v3865 = vmul.f32 %v3501, %v3501
        %v3866 = vmul.f32 %v3502, %v3502
        %v3867 = vmul.f32 %v3503, %v3503
        %v3868 = vmul.f32 %v3504, %v3504
        %v3869 = vmul.f32 %v3505, %v3505
        %v3870 = vmul.f32 %v3506, %v3506
        %v3871 = vmul.f32 %v3507, %v3507
        %v3872 = vmul.f32 %v3508, %v3508
        %v3873 = vmul.f32 %v3509, %v3509
        %v3874 = vmul.f32 %v3510, %v3510
        %v3875 = vmul.f32 %v3511, %v3511
        %v3876 = vmul.f32 %v3512, %v3512
        %v3877 = vmul.f32 %v3513, %v3513
        %v3878 = vmul.f32 %v3514, %v3514
        %v3879 = vmul.f32 %v3515, %v3515
        %v3880 = vmul.f32 %v3516, %v3516
        %v3881 = vmul.f32 %v3517, %v3517
        %v3882 = vmul.f32 %v3518, %v3518
        %v3883 = vmul.f32 %v3519, %v3519
        %v3884 = vmul.f32 %v3520, %v3520
        %v3885 = vmul.f32 %v3521, %v3521
        %v3886 = vmul.f32 %v3522, %v3522
        %v3887 = vmul.f32 %v3523, %v3523
        %v3888 = vmul.f32 %v3524, %v3524
        %v3889 = vmul.f32 %v3525, %v3525
        %v3890 = vmul.f32 %v3526, %v3526
        %v3891 = vmul.f32 %v3527, %v3527
        %v3892 = vmul.f32 %v3528, %v3528
        %v3893 = vmul.f32 %v3529, %v3529
        %v3894 = vmul.f32 %v3530, %v3530
        %v3895 = vmul.f32 %v3531, %v3531
        %v3896 = vmul.f32 %v3532, %v3532
        %v3897 = vmul.f32 %v3533, %v3533
        %v3898 = vmul.f32 %v3534, %v3534
        %v3899 = vmul.f32 %v3535, %v3535
        %v3900 = vmul.f32 %v3536, %v3536
        %v3901 = vmul.f32 %v3537, %v3537
        %v3902 = vmul.f32 %v3538, %v3538
        %v3903 = vmul.f32 %v3539, %v3539
        %v3904 = vmul.f32 %v3540, %v3540
        %v3905 = vmul.f32 %v3541, %v3541
        %v3906 = vmul.f32 %v3542, %v3542
        %v3907 = vmul.f32 %v3543, %v3543
        %v3908 = vmul.f32 %v3544, %v3544
        %v3909 = vmul.f32 %v3545, %v3545
        %v3910 = vmul.f32 %v3546, %v3546
        %v3911 = vmul.f32 %v3547, %v3547
        %v3912 = vmul.f32 %v3548, %v3548
        %v3913 = vmul.f32 %v3549, %v3549
        %v3914 = vmul.f32 %v3550, %v3550
        %v3915 = vmul.f32 %v3551, %v3551
        %v3916 = vmul.f32 %v3552, %v3552
        %v3917 = vmul.f32 %v3553, %v3553
        %v3918 = vmul.f32 %v3554, %v3554
        %v3919 = vmul.f32 %v3555, %v3555
        %v3920 = vmul.f32 %v3556, %v3556
        %v3921 = vmul.f32 %v3557, %v3557
        %v3922 = vmul.f32 %v3558, %v3558
        %v3923 = vmul.f32 %v3559, %v3559
        %v3924 = vmul.f32 %v3560, %v3560
        %v3925 = vmul.f32 %v3561, %v3561
        %v3927 = vsel %vm580, %v3563, 0
        %v3930 = vsel %vm580, %v3565, 0
        %v3933 = vsel %vm580, %v3567, 0
        %v3936 = vsel %vm580, %v3569, 0
        %v3939 = vsel %vm580, %v3571, 0
        %v3942 = vsel %vm580, %v3573, 0
        %v3945 = vsel %vm580, %v3575, 0
        %v3948 = vsel %vm580, %v3577, 0
        %v3951 = vsel %vm580, %v3579, 0
        %v3954 = vsel %vm580, %v3581, 0
        %v3957 = vsel %vm580, %v3583, 0
        %v3960 = vsel %vm580, %v3585, 0
        %v3963 = vsel %vm580, %v3587, 0
        %v3966 = vsel %vm580, %v3589, 0
        %v3969 = vsel %vm580, %v3591, 0
        %v3972 = vsel %vm580, %v3593, 0
        %v3975 = vsel %vm580, %v3595, 0
        %v3978 = vsel %vm580, %v3597, 0
        %v3981 = vsel %vm580, %v3599, 0
        %v3984 = vsel %vm580, %v3601, 0
        %v3987 = vsel %vm580, %v3603, 0
        %v3990 = vsel %vm580, %v3605, 0
        %v3993 = vsel %vm580, %v3607, 0
        %v3996 = vsel %vm580, %v3609, 0
        %v3999 = vsel %vm580, %v3611, 0
        %v4002 = vsel %vm580, %v3613, 0
        %v4005 = vsel %vm580, %v3615, 0
        %v4008 = vsel %vm580, %v3617, 0
        %v4011 = vsel %vm580, %v3619, 0
        %v4014 = vsel %vm580, %v3621, 0
        %v4017 = vsel %vm580, %v3623, 0
        %v4020 = vsel %vm580, %v3625, 0
        %v4023 = vsel %vm580, %v3627, 0
        %v4026 = vsel %vm580, %v3629, 0
        %v4029 = vsel %vm580, %v3631, 0
        %v4032 = vsel %vm580, %v3633, 0
        %v4035 = vsel %vm580, %v3635, 0
        %v4038 = vsel %vm580, %v3637, 0
        %v4041 = vsel %vm580, %v3639, 0
        %v4044 = vsel %vm580, %v3641, 0
        %v4047 = vsel %vm580, %v3643, 0
        %v4050 = vsel %vm580, %v3645, 0
        %v4053 = vsel %vm580, %v3647, 0
        %v4056 = vsel %vm580, %v3649, 0
        %v4059 = vsel %vm580, %v3651, 0
        %v4062 = vsel %vm580, %v3653, 0
        %v4065 = vsel %vm580, %v3655, 0
        %v4068 = vsel %vm580, %v3657, 0
        %v4071 = vsel %vm580, %v3659, 0
        %v4074 = vsel %vm580, %v3661, 0
        %v4077 = vsel %vm580, %v3663, 0
        %v4080 = vsel %vm580, %v3665, 0
        %v4083 = vsel %vm580, %v3667, 0
        %v4086 = vsel %vm580, %v3669, 0
        %v4089 = vsel %vm580, %v3671, 0
        %v4092 = vsel %vm580, %v3673, 0
        %v4095 = vsel %vm580, %v3675, 0
        %v4098 = vsel %vm580, %v3677, 0
        %v4101 = vsel %vm580, %v3679, 0
        %v4104 = vsel %vm580, %v3681, 0
        %v4107 = vsel %vm580, %v3683, 0
        %v4110 = vsel %vm580, %v3685, 0
        %v4113 = vsel %vm580, %v3687, 0
        %v4116 = vsel %vm580, %v3689, 0
        %v4119 = vsel %vm580, %v3691, 0
        %v4122 = vsel %vm580, %v3693, 0
        %v4125 = vsel %vm580, %v3695, 0
        %v4128 = vsel %vm580, %v3697, 0
        %v4131 = vsel %vm580, %v3699, 0
        %v4134 = vsel %vm580, %v3701, 0
        %v4137 = vsel %vm580, %v3703, 0
        %v4140 = vsel %vm580, %v3705, 0
        %v4143 = vsel %vm580, %v3707, 0
        %v4146 = vsel %vm580, %v3709, 0
        %v4149 = vsel %vm580, %v3711, 0
        %v4152 = vsel %vm580, %v3713, 0
        %v4155 = vsel %vm580, %v3715, 0
        %v4158 = vsel %vm580, %v3717, 0
        %v4161 = vsel %vm580, %v3719, 0
        %v4164 = vsel %vm580, %v3721, 0
        %v4167 = vsel %vm580, %v3723, 0
        %v4170 = vsel %vm580, %v3725, 0
        %v4173 = vsel %vm580, %v3727, 0
        %v4176 = vsel %vm580, %v3729, 0
        %v4179 = vsel %vm580, %v3731, 0
        %v4182 = vsel %vm580, %v3733, 0
        %v4185 = vsel %vm580, %v3735, 0
        %v4188 = vsel %vm580, %v3737, 0
        %v4191 = vsel %vm580, %v3739, 0
        %v4194 = vsel %vm580, %v3741, 0
        %v4197 = vsel %vm580, %v3743, 0
        %v4200 = vsel %vm580, %v3745, 0
        %v4203 = vsel %vm580, %v3747, 0
        %v4206 = vsel %vm580, %v3749, 0
        %v4209 = vsel %vm580, %v3751, 0
        %v4212 = vsel %vm580, %v3753, 0
        %v4215 = vsel %vm580, %v3755, 0
        %v4218 = vsel %vm580, %v3757, 0
        %v4221 = vsel %vm580, %v3759, 0
        %v4224 = vsel %vm580, %v3761, 0
        %v4227 = vsel %vm580, %v3763, 0
        %v4230 = vsel %vm580, %v3765, 0
        %v4233 = vsel %vm580, %v3767, 0
        %v4236 = vsel %vm580, %v3769, 0
        %v4239 = vsel %vm580, %v3771, 0
        %v4242 = vsel %vm580, %v3773, 0
        %v4245 = vsel %vm580, %v3775, 0
        %v4248 = vsel %vm580, %v3777, 0
        %v4251 = vsel %vm580, %v3779, 0
        %v4254 = vsel %vm580, %v3781, 0
        %v4257 = vsel %vm580, %v3783, 0
        %v4260 = vsel %vm580, %v3785, 0
        %v4263 = vsel %vm580, %v3787, 0
        %v4266 = vsel %vm580, %v3789, 0
        %v4269 = vsel %vm580, %v3791, 0
        %v4272 = vsel %vm580, %v3793, 0
        %v4275 = vsel %vm580, %v3795, 0
        %v4278 = vsel %vm580, %v3797, 0
        %v4281 = vsel %vm580, %v3799, 0
        %v4284 = vsel %vm580, %v3801, 0
        %v4287 = vsel %vm580, %v3803, 0
        %v4290 = vsel %vm580, %v3805, 0
        %v4293 = vsel %vm580, %v3807, 0
        %v4296 = vsel %vm580, %v3809, 0
        %v4299 = vsel %vm580, %v3811, 0
        %v4302 = vsel %vm580, %v3813, 0
        %v4305 = vsel %vm580, %v3815, 0
        %v4308 = vsel %vm580, %v3817, 0
        %v4311 = vsel %vm580, %v3819, 0
        %v4314 = vsel %vm580, %v3821, 0
        %v4317 = vsel %vm580, %v3823, 0
        %v4320 = vsel %vm580, %v3825, 0
        %v4323 = vsel %vm580, %v3827, 0
        %v4326 = vsel %vm580, %v3829, 0
        %v4329 = vsel %vm580, %v3831, 0
        %v4332 = vsel %vm580, %v3833, 0
        %v4335 = vsel %vm580, %v3835, 0
        %v4338 = vsel %vm580, %v3837, 0
        %v4341 = vsel %vm580, %v3839, 0
        %v4344 = vsel %vm580, %v3841, 0
        %v4347 = vsel %vm580, %v3843, 0
        %v4350 = vsel %vm580, %v3845, 0
        %v4353 = vsel %vm580, %v3847, 0
        %v4356 = vsel %vm580, %v3849, 0
        %v4359 = vsel %vm580, %v3851, 0
        %v4362 = vsel %vm580, %v3853, 0
        %v4365 = vsel %vm580, %v3855, 0
        %v4368 = vsel %vm580, %v3857, 0
        %v4371 = vsel %vm580, %v3859, 0
        %v4374 = vsel %vm580, %v3861, 0
        %v4377 = vsel %vm580, %v3863, 0
        %v4380 = vsel %vm580, %v3865, 0
        %v4383 = vsel %vm580, %v3867, 0
        %v4386 = vsel %vm580, %v3869, 0
        %v4389 = vsel %vm580, %v3871, 0
        %v4392 = vsel %vm580, %v3873, 0
        %v4395 = vsel %vm580, %v3875, 0
        %v4398 = vsel %vm580, %v3877, 0
        %v4401 = vsel %vm580, %v3879, 0
        %v4404 = vsel %vm580, %v3881, 0
        %v4407 = vsel %vm580, %v3883, 0
        %v4410 = vsel %vm580, %v3885, 0
        %v4413 = vsel %vm580, %v3887, 0
        %v4416 = vsel %vm580, %v3889, 0
        %v4419 = vsel %vm580, %v3891, 0
        %v4422 = vsel %vm580, %v3893, 0
        %v4425 = vsel %vm580, %v3895, 0
        %v4428 = vsel %vm580, %v3897, 0
        %v4431 = vsel %vm580, %v3899, 0
        %v4434 = vsel %vm580, %v3901, 0
        %v4437 = vsel %vm580, %v3903, 0
        %v4440 = vsel %vm580, %v3905, 0
        %v4443 = vsel %vm580, %v3907, 0
        %v4446 = vsel %vm580, %v3909, 0
        %v4449 = vsel %vm580, %v3911, 0
        %v4452 = vsel %vm580, %v3913, 0
        %v4455 = vsel %vm580, %v3915, 0
        %v4458 = vsel %vm580, %v3917, 0
        %v4461 = vsel %vm580, %v3919, 0
        %v4464 = vsel %vm580, %v3921, 0
        %v4467 = vsel %vm580, %v3923, 0
        %v4470 = vsel %vm580, %v3925, 0
        %4472 = vmatprep.subr.mxu0 0.0
        %4473 = vmatpush1.msra.mxu0 1.0
        %4474 = vmatprep.subr.mxu0 0.0
        %4475 = vmatpush1.msra.mxu0 1.0
        %4476 = vmatprep.subr.mxu0 0.0
        %4477 = vmatpush1.msra.mxu0 1.0
        %4478 = vmatprep.subr.mxu0 0.0
        %4479 = vmatpush1.msra.mxu0 1.0
        %4480 = vmatprep.subr.mxu0 0.0
        %4481 = vmatpush1.msra.mxu0 1.0
        %4482 = vmatprep.subr.mxu0 0.0
        %4483 = vmatpush1.msra.mxu0 1.0
        %4484 = vmatprep.subr.mxu0 0.0
        %4485 = vmatpush1.msra.mxu0 1.0
        %4486 = vmatprep.subr.mxu0 0.0
        %4487 = vmatpush1.msra.mxu0 1.0
        %4488 = vmatprep.subr.mxu0 0.0
        %4489 = vmatpush1.msra.mxu0 1.0
        %4490 = vmatprep.subr.mxu0 0.0
        %4491 = vmatpush1.msra.mxu0 1.0
        %4492 = vmatprep.subr.mxu0 0.0
        %4493 = vmatpush1.msra.mxu0 1.0
        %4494 = vmatprep.subr.mxu0 0.0
        %4495 = vmatpush1.msra.mxu0 1.0
        %4496 = vmatprep.subr.mxu0 0.0
        %4497 = vmatpush1.msra.mxu0 1.0
        %4498 = vmatprep.subr.mxu0 0.0
        %4499 = vmatpush1.msra.mxu0 1.0
        %4500 = vmatprep.subr.mxu0 0.0
        %4501 = vmatpush1.msra.mxu0 1.0
        %4502 = vmatprep.subr.mxu0 0.0
        %4503 = vmatpush1.msra.mxu0 1.0
        %4504 = vmatprep.subr.mxu0 0.0
        %4505 = vmatpush1.msra.mxu0 1.0
        %4506 = vmatprep.subr.mxu0 0.0
        %4507 = vmatpush1.msra.mxu0 1.0
        %4508 = vmatprep.subr.mxu0 0.0
        %4509 = vmatpush1.msra.mxu0 1.0
        %4510 = vmatprep.subr.mxu0 0.0
        %4511 = vmatpush1.msra.mxu0 1.0
        %4512 = vmatprep.subr.mxu0 0.0
        %4513 = vmatpush1.msra.mxu0 1.0
        %4514 = vmatprep.subr.mxu0 0.0
        %4515 = vmatpush1.msra.mxu0 1.0
        %4516 = vmatprep.subr.mxu0 0.0
        %4517 = vmatpush1.msra.mxu0 1.0
        %4518 = vmatprep.subr.mxu0 0.0
        %4519 = vmatpush1.msra.mxu0 1.0
        %4520 = vmatprep.subr.mxu0 0.0
        %4521 = vmatpush1.msra.mxu0 %v1129
        %4522 = vmatprep.subr.mxu0 0.0
        %4523 = vmatpush1.msra.mxu0 0.0
        %4524 = vmatprep.subr.mxu0 0.0
        %4525 = vmatpush1.msra.mxu0 0.0
        %4526 = vmatprep.subr.mxu0 0.0
        %4527 = vmatpush1.msra.mxu0 0.0
        %4528 = vmatprep.subr.mxu0 0.0
        %4529 = vmatpush1.msra.mxu0 0.0
        %4530 = vmatprep.subr.mxu0 0.0
        %4531 = vmatpush1.msra.mxu0 0.0
        %4532 = vmatprep.subr.mxu0 0.0
        %4533 = vmatpush1.msra.mxu0 0.0
        %4534 = vmatprep.subr.mxu0 0.0
        %4535 = vmatpush1.msra.mxu0 0.0
        %4536 = vmatprep.mubr.f32.mxu0 %v3927
        %4537 = vmatmul.mubr.f32.gmra.mrb[0].mxu0 %v3562
        %v4538 = vpop.f32.mrb[0].mxu0
        %v4539 = vadd.f32 0.0, %v4538
        %v4540 = vpop.f32.mrb[0].mxu0
        %4541 = vmatprep.mubr.f32.mxu0 %v3930
        %4542 = vmatmul.mubr.f32.gmra.mrb[0].mxu0 %v3564
        %v4543 = vpop.f32.mrb[0].mxu0
        %v4544 = vadd.f32 0.0, %v4543
        %v4545 = vpop.f32.mrb[0].mxu0
        %4546 = vmatprep.mubr.f32.mxu0 %v3933
        %4547 = vmatmul.mubr.f32.gmra.mrb[0].mxu0 %v3566
        %v4548 = vpop.f32.mrb[0].mxu0
        %v4549 = vadd.f32 0.0, %v4548
        %v4550 = vpop.f32.mrb[0].mxu0
        %4551 = vmatprep.mubr.f32.mxu0 %v3936
        %4552 = vmatmul.mubr.f32.gmra.mrb[0].mxu0 %v3568
        %v4553 = vpop.f32.mrb[0].mxu0
        %v4554 = vadd.f32 0.0, %v4553
        %v4555 = vpop.f32.mrb[0].mxu0
        %4556 = vmatprep.mubr.f32.mxu0 %v3939
        %4557 = vmatmul.mubr.f32.gmra.mrb[0].mxu0 %v3570
        %v4558 = vpop.f32.mrb[0].mxu0
        %v4559 = vadd.f32 0.0, %v4558
        %v4560 = vpop.f32.mrb[0].mxu0
        %4561 = vmatprep.mubr.f32.mxu0 %v3942
        %4562 = vmatmul.mubr.f32.gmra.mrb[0].mxu0 %v3572
        %v4563 = vpop.f32.mrb[0].mxu0
        %v4564 = vadd.f32 0.0, %v4563
        %v4565 = vpop.f32.mrb[0].mxu0
        %4566 = vmatprep.mubr.f32.mxu0 %v3945
        %4567 = vmatmul.mubr.f32.gmra.mrb[0].mxu0 %v3574
        %v4568 = vpop.f32.mrb[0].mxu0
        %v4569 = vadd.f32 0.0, %v4568
        %v4570 = vpop.f32.mrb[0].mxu0
        %4571 = vmatprep.mubr.f32.mxu0 %v3948
        %4572 = vmatmul.mubr.f32.gmra.mrb[0].mxu0 %v3576
        %v4573 = vpop.f32.mrb[0].mxu0
        %v4574 = vadd.f32 0.0, %v4573
        %v4575 = vpop.f32.mrb[0].mxu0
        %4576 = vmatprep.mubr.f32.mxu0 %v3951
        %4577 = vmatmul.mubr.f32.gmra.mrb[0].mxu0 %v3578
        %v4578 = vpop.f32.mrb[0].mxu0
        %v4579 = vadd.f32 0.0, %v4578
        %v4580 = vpop.f32.mrb[0].mxu0
        %4581 = vmatprep.mubr.f32.mxu0 %v3954
        %4582 = vmatmul.mubr.f32.gmra.mrb[0].mxu0 %v3580
        %v4583 = vpop.f32.mrb[0].mxu0
        %v4584 = vadd.f32 0.0, %v4583
        %v4585 = vpop.f32.mrb[0].mxu0
        %4586 = vmatprep.mubr.f32.mxu0 %v3957
        %4587 = vmatmul.mubr.f32.gmra.mrb[0].mxu0 %v3582
        %v4588 = vpop.f32.mrb[0].mxu0
        %v4589 = vadd.f32 0.0, %v4588
        %v4590 = vpop.f32.mrb[0].mxu0
        %4591 = vmatprep.mubr.f32.mxu0 %v3960
        %4592 = vmatmul.mubr.f32.gmra.mrb[0].mxu0 %v3584
        %v4593 = vpop.f32.mrb[0].mxu0
        %v4594 = vadd.f32 0.0, %v4593
        %v4595 = vpop.f32.mrb[0].mxu0
        %4596 = vmatprep.mubr.f32.mxu0 %v3963
        %4597 = vmatmul.mubr.f32.gmra.mrb[0].mxu0 %v3586
        %v4598 = vpop.f32.mrb[0].mxu0
        %v4599 = vadd.f32 0.0, %v4598
        %v4600 = vpop.f32.mrb[0].mxu0
        %4601 = vmatprep.mubr.f32.mxu0 %v3966
        %4602 = vmatmul.mubr.f32.gmra.mrb[0].mxu0 %v3588
        %v4603 = vpop.f32.mrb[0].mxu0
        %v4604 = vadd.f32 0.0, %v4603
        %v4605 = vpop.f32.mrb[0].mxu0
        %4606 = vmatprep.mubr.f32.mxu0 %v3969
        %4607 = vmatmul.mubr.f32.gmra.mrb[0].mxu0 %v3590
        %v4608 = vpop.f32.mrb[0].mxu0
        %v4609 = vadd.f32 0.0, %v4608
        %v4610 = vpop.f32.mrb[0].mxu0
        %4611 = vmatprep.mubr.f32.mxu0 %v3972
        %4612 = vmatmul.mubr.f32.gmra.mrb[0].mxu0 %v3592
        %v4613 = vpop.f32.mrb[0].mxu0
        %v4614 = vadd.f32 0.0, %v4613
        %v4615 = vpop.f32.mrb[0].mxu0
        %4616 = vmatprep.mubr.f32.mxu0 %v3975
        %4617 = vmatmul.mubr.f32.gmra.mrb[0].mxu0 %v3594
        %v4618 = vpop.f32.mrb[0].mxu0
        %v4619 = vadd.f32 0.0, %v4618
        %v4620 = vpop.f32.mrb[0].mxu0
        %4621 = vmatprep.mubr.f32.mxu0 %v3978
        %4622 = vmatmul.mubr.f32.gmra.mrb[0].mxu0 %v3596
        %v4623 = vpop.f32.mrb[0].mxu0
        %v4624 = vadd.f32 0.0, %v4623
        %v4625 = vpop.f32.mrb[0].mxu0
        %4626 = vmatprep.mubr.f32.mxu0 %v3981
        %4627 = vmatmul.mubr.f32.gmra.mrb[0].mxu0 %v3598
        %v4628 = vpop.f32.mrb[0].mxu0
        %v4629 = vadd.f32 0.0, %v4628
        %v4630 = vpop.f32.mrb[0].mxu0
        %4631 = vmatprep.mubr.f32.mxu0 %v3984
        %4632 = vmatmul.mubr.f32.gmra.mrb[0].mxu0 %v3600
        %v4633 = vpop.f32.mrb[0].mxu0
        %v4634 = vadd.f32 0.0, %v4633
        %v4635 = vpop.f32.mrb[0].mxu0
        %4636 = vmatprep.mubr.f32.mxu0 %v3987
        %4637 = vmatmul.mubr.f32.gmra.mrb[0].mxu0 %v3602
        %v4638 = vpop.f32.mrb[0].mxu0
        %v4639 = vadd.f32 0.0, %v4638
        %v4640 = vpop.f32.mrb[0].mxu0
        %4641 = vmatprep.mubr.f32.mxu0 %v3990
        %4642 = vmatmul.mubr.f32.gmra.mrb[0].mxu0 %v3604
        %v4643 = vpop.f32.mrb[0].mxu0
        %v4644 = vadd.f32 0.0, %v4643
        %v4645 = vpop.f32.mrb[0].mxu0
        %4646 = vmatprep.mubr.f32.mxu0 %v3993
        %4647 = vmatmul.mubr.f32.gmra.mrb[0].mxu0 %v3606
        %v4648 = vpop.f32.mrb[0].mxu0
        %v4649 = vadd.f32 0.0, %v4648
        %v4650 = vpop.f32.mrb[0].mxu0
        %4651 = vmatprep.mubr.f32.mxu0 %v3996
        %4652 = vmatmul.mubr.f32.gmra.mrb[0].mxu0 %v3608
        %v4653 = vpop.f32.mrb[0].mxu0
        %v4654 = vadd.f32 0.0, %v4653
        %v4655 = vpop.f32.mrb[0].mxu0
        %4656 = vmatprep.mubr.f32.mxu0 %v3999
        %4657 = vmatmul.mubr.f32.gmra.mrb[0].mxu0 %v3610
        %v4658 = vpop.f32.mrb[0].mxu0
        %v4659 = vadd.f32 0.0, %v4658
        %v4660 = vpop.f32.mrb[0].mxu0
        %4661 = vmatprep.mubr.f32.mxu0 %v4002
        %4662 = vmatmul.mubr.f32.gmra.mrb[0].mxu0 %v3612
        %v4663 = vpop.f32.mrb[0].mxu0
        %v4664 = vadd.f32 0.0, %v4663
        %v4665 = vpop.f32.mrb[0].mxu0
        %4666 = vmatprep.mubr.f32.mxu0 %v4005
        %4667 = vmatmul.mubr.f32.gmra.mrb[0].mxu0 %v3614
        %v4668 = vpop.f32.mrb[0].mxu0
        %v4669 = vadd.f32 0.0, %v4668
        %v4670 = vpop.f32.mrb[0].mxu0
        %4671 = vmatprep.mubr.f32.mxu0 %v4008
        %4672 = vmatmul.mubr.f32.gmra.mrb[0].mxu0 %v3616
        %v4673 = vpop.f32.mrb[0].mxu0
        %v4674 = vadd.f32 0.0, %v4673
        %v4675 = vpop.f32.mrb[0].mxu0
        %4676 = vmatprep.mubr.f32.mxu0 %v4011
        %4677 = vmatmul.mubr.f32.gmra.mrb[0].mxu0 %v3618
        %v4678 = vpop.f32.mrb[0].mxu0
        %v4679 = vadd.f32 0.0, %v4678
        %v4680 = vpop.f32.mrb[0].mxu0
        %4681 = vmatprep.mubr.f32.mxu0 %v4014
        %4682 = vmatmul.mubr.f32.gmra.mrb[0].mxu0 %v3620
        %v4683 = vpop.f32.mrb[0].mxu0
        %v4684 = vadd.f32 0.0, %v4683
        %v4685 = vpop.f32.mrb[0].mxu0
        %4686 = vmatprep.mubr.f32.mxu0 %v4017
        %4687 = vmatmul.mubr.f32.gmra.mrb[0].mxu0 %v3622
        %v4688 = vpop.f32.mrb[0].mxu0
        %v4689 = vadd.f32 0.0, %v4688
        %v4690 = vpop.f32.mrb[0].mxu0
        %4691 = vmatprep.mubr.f32.mxu0 %v4020
        %4692 = vmatmul.mubr.f32.gmra.mrb[0].mxu0 %v3624
        %v4693 = vpop.f32.mrb[0].mxu0
        %v4694 = vadd.f32 0.0, %v4693
        %v4695 = vpop.f32.mrb[0].mxu0
        %4696 = vmatprep.mubr.f32.mxu0 %v4023
        %4697 = vmatmul.mubr.f32.gmra.mrb[0].mxu0 %v3626
        %v4698 = vpop.f32.mrb[0].mxu0
        %v4699 = vadd.f32 0.0, %v4698
        %v4700 = vpop.f32.mrb[0].mxu0
        %4701 = vmatprep.mubr.f32.mxu0 %v4026
        %4702 = vmatmul.mubr.f32.gmra.mrb[0].mxu0 %v3628
        %v4703 = vpop.f32.mrb[0].mxu0
        %v4704 = vadd.f32 0.0, %v4703
        %v4705 = vpop.f32.mrb[0].mxu0
        %4706 = vmatprep.mubr.f32.mxu0 %v4029
        %4707 = vmatmul.mubr.f32.gmra.mrb[0].mxu0 %v3630
        %v4708 = vpop.f32.mrb[0].mxu0
        %v4709 = vadd.f32 0.0, %v4708
        %v4710 = vpop.f32.mrb[0].mxu0
        %4711 = vmatprep.mubr.f32.mxu0 %v4032
        %4712 = vmatmul.mubr.f32.gmra.mrb[0].mxu0 %v3632
        %v4713 = vpop.f32.mrb[0].mxu0
        %v4714 = vadd.f32 0.0, %v4713
        %v4715 = vpop.f32.mrb[0].mxu0
        %4716 = vmatprep.mubr.f32.mxu0 %v4035
        %4717 = vmatmul.mubr.f32.gmra.mrb[0].mxu0 %v3634
        %v4718 = vpop.f32.mrb[0].mxu0
        %v4719 = vadd.f32 0.0, %v4718
        %v4720 = vpop.f32.mrb[0].mxu0
        %4721 = vmatprep.mubr.f32.mxu0 %v4038
        %4722 = vmatmul.mubr.f32.gmra.mrb[0].mxu0 %v3636
        %v4723 = vpop.f32.mrb[0].mxu0
        %v4724 = vadd.f32 0.0, %v4723
        %v4725 = vpop.f32.mrb[0].mxu0
        %4726 = vmatprep.mubr.f32.mxu0 %v4041
        %4727 = vmatmul.mubr.f32.gmra.mrb[0].mxu0 %v3638
        %v4728 = vpop.f32.mrb[0].mxu0
        %v4729 = vadd.f32 0.0, %v4728
        %v4730 = vpop.f32.mrb[0].mxu0
        %4731 = vmatprep.mubr.f32.mxu0 %v4044
        %4732 = vmatmul.mubr.f32.gmra.mrb[0].mxu0 %v3640
        %v4733 = vpop.f32.mrb[0].mxu0
        %v4734 = vadd.f32 0.0, %v4733
        %v4735 = vpop.f32.mrb[0].mxu0
        %4736 = vmatprep.mubr.f32.mxu0 %v4047
        %4737 = vmatmul.mubr.f32.gmra.mrb[0].mxu0 %v3642
        %v4738 = vpop.f32.mrb[0].mxu0
        %v4739 = vadd.f32 0.0, %v4738
        %v4740 = vpop.f32.mrb[0].mxu0
        %4741 = vmatprep.mubr.f32.mxu0 %v4050
        %4742 = vmatmul.mubr.f32.gmra.mrb[0].mxu0 %v3644
        %v4743 = vpop.f32.mrb[0].mxu0
        %v4744 = vadd.f32 0.0, %v4743
        %v4745 = vpop.f32.mrb[0].mxu0
        %4746 = vmatprep.mubr.f32.mxu0 %v4053
        %4747 = vmatmul.mubr.f32.gmra.mrb[0].mxu0 %v3646
        %v4748 = vpop.f32.mrb[0].mxu0
        %v4749 = vadd.f32 0.0, %v4748
        %v4750 = vpop.f32.mrb[0].mxu0
        %4751 = vmatprep.mubr.f32.mxu0 %v4056
        %4752 = vmatmul.mubr.f32.gmra.mrb[0].mxu0 %v3648
        %v4753 = vpop.f32.mrb[0].mxu0
        %v4754 = vadd.f32 0.0, %v4753
        %v4755 = vpop.f32.mrb[0].mxu0
        %4756 = vmatprep.mubr.f32.mxu0 %v4059
        %4757 = vmatmul.mubr.f32.gmra.mrb[0].mxu0 %v3650
        %v4758 = vpop.f32.mrb[0].mxu0
        %v4759 = vadd.f32 0.0, %v4758
        %v4760 = vpop.f32.mrb[0].mxu0
        %4761 = vmatprep.mubr.f32.mxu0 %v4062
        %4762 = vmatmul.mubr.f32.gmra.mrb[0].mxu0 %v3652
        %v4763 = vpop.f32.mrb[0].mxu0
        %v4764 = vadd.f32 0.0, %v4763
        %v4765 = vpop.f32.mrb[0].mxu0
        %4766 = vmatprep.mubr.f32.mxu0 %v4065
        %4767 = vmatmul.mubr.f32.gmra.mrb[0].mxu0 %v3654
        %v4768 = vpop.f32.mrb[0].mxu0
        %v4769 = vadd.f32 0.0, %v4768
        %v4770 = vpop.f32.mrb[0].mxu0
        %4771 = vmatprep.mubr.f32.mxu0 %v4068
        %4772 = vmatmul.mubr.f32.gmra.mrb[0].mxu0 %v3656
        %v4773 = vpop.f32.mrb[0].mxu0
        %v4774 = vadd.f32 0.0, %v4773
        %v4775 = vpop.f32.mrb[0].mxu0
        %4776 = vmatprep.mubr.f32.mxu0 %v4071
        %4777 = vmatmul.mubr.f32.gmra.mrb[0].mxu0 %v3658
        %v4778 = vpop.f32.mrb[0].mxu0
        %v4779 = vadd.f32 0.0, %v4778
        %v4780 = vpop.f32.mrb[0].mxu0
        %4781 = vmatprep.mubr.f32.mxu0 %v4074
        %4782 = vmatmul.mubr.f32.gmra.mrb[0].mxu0 %v3660
        %v4783 = vpop.f32.mrb[0].mxu0
        %v4784 = vadd.f32 0.0, %v4783
        %v4785 = vpop.f32.mrb[0].mxu0
        %4786 = vmatprep.mubr.f32.mxu0 %v4077
        %4787 = vmatmul.mubr.f32.gmra.mrb[0].mxu0 %v3662
        %v4788 = vpop.f32.mrb[0].mxu0
        %v4789 = vadd.f32 0.0, %v4788
        %v4790 = vpop.f32.mrb[0].mxu0
        %4791 = vmatprep.mubr.f32.mxu0 %v4080
        %4792 = vmatmul.mubr.f32.gmra.mrb[0].mxu0 %v3664
        %v4793 = vpop.f32.mrb[0].mxu0
        %v4794 = vadd.f32 0.0, %v4793
        %v4795 = vpop.f32.mrb[0].mxu0
        %4796 = vmatprep.mubr.f32.mxu0 %v4083
        %4797 = vmatmul.mubr.f32.gmra.mrb[0].mxu0 %v3666
        %v4798 = vpop.f32.mrb[0].mxu0
        %v4799 = vadd.f32 0.0, %v4798
        %v4800 = vpop.f32.mrb[0].mxu0
        %4801 = vmatprep.mubr.f32.mxu0 %v4086
        %4802 = vmatmul.mubr.f32.gmra.mrb[0].mxu0 %v3668
        %v4803 = vpop.f32.mrb[0].mxu0
        %v4804 = vadd.f32 0.0, %v4803
        %v4805 = vpop.f32.mrb[0].mxu0
        %4806 = vmatprep.mubr.f32.mxu0 %v4089
        %4807 = vmatmul.mubr.f32.gmra.mrb[0].mxu0 %v3670
        %v4808 = vpop.f32.mrb[0].mxu0
        %v4809 = vadd.f32 0.0, %v4808
        %v4810 = vpop.f32.mrb[0].mxu0
        %4811 = vmatprep.mubr.f32.mxu0 %v4092
        %4812 = vmatmul.mubr.f32.gmra.mrb[0].mxu0 %v3672
        %v4813 = vpop.f32.mrb[0].mxu0
        %v4814 = vadd.f32 0.0, %v4813
        %v4815 = vpop.f32.mrb[0].mxu0
        %4816 = vmatprep.mubr.f32.mxu0 %v4095
        %4817 = vmatmul.mubr.f32.gmra.mrb[0].mxu0 %v3674
        %v4818 = vpop.f32.mrb[0].mxu0
        %v4819 = vadd.f32 0.0, %v4818
        %v4820 = vpop.f32.mrb[0].mxu0
        %4821 = vmatprep.mubr.f32.mxu0 %v4098
        %4822 = vmatmul.mubr.f32.gmra.mrb[0].mxu0 %v3676
        %v4823 = vpop.f32.mrb[0].mxu0
        %v4824 = vadd.f32 0.0, %v4823
        %v4825 = vpop.f32.mrb[0].mxu0
        %4826 = vmatprep.mubr.f32.mxu0 %v4101
        %4827 = vmatmul.mubr.f32.gmra.mrb[0].mxu0 %v3678
        %v4828 = vpop.f32.mrb[0].mxu0
        %v4829 = vadd.f32 0.0, %v4828
        %v4830 = vpop.f32.mrb[0].mxu0
        %4831 = vmatprep.mubr.f32.mxu0 %v4104
        %4832 = vmatmul.mubr.f32.gmra.mrb[0].mxu0 %v3680
        %v4833 = vpop.f32.mrb[0].mxu0
        %v4834 = vadd.f32 0.0, %v4833
        %v4835 = vpop.f32.mrb[0].mxu0
        %4836 = vmatprep.mubr.f32.mxu0 %v4107
        %4837 = vmatmul.mubr.f32.gmra.mrb[0].mxu0 %v3682
        %v4838 = vpop.f32.mrb[0].mxu0
        %v4839 = vadd.f32 0.0, %v4838
        %v4840 = vpop.f32.mrb[0].mxu0
        %4841 = vmatprep.mubr.f32.mxu0 %v4110
        %4842 = vmatmul.mubr.f32.gmra.mrb[0].mxu0 %v3684
        %v4843 = vpop.f32.mrb[0].mxu0
        %v4844 = vadd.f32 0.0, %v4843
        %v4845 = vpop.f32.mrb[0].mxu0
        %4846 = vmatprep.mubr.f32.mxu0 %v4113
        %4847 = vmatmul.mubr.f32.gmra.mrb[0].mxu0 %v3686
        %v4848 = vpop.f32.mrb[0].mxu0
        %v4849 = vadd.f32 0.0, %v4848
        %v4850 = vpop.f32.mrb[0].mxu0
        %4851 = vmatprep.mubr.f32.mxu0 %v4116
        %4852 = vmatmul.mubr.f32.gmra.mrb[0].mxu0 %v3688
        %v4853 = vpop.f32.mrb[0].mxu0
        %v4854 = vadd.f32 0.0, %v4853
        %v4855 = vpop.f32.mrb[0].mxu0
        %4856 = vmatprep.mubr.f32.mxu0 %v4119
        %4857 = vmatmul.mubr.f32.gmra.mrb[0].mxu0 %v3690
        %v4858 = vpop.f32.mrb[0].mxu0
        %v4859 = vadd.f32 0.0, %v4858
        %v4860 = vpop.f32.mrb[0].mxu0
        %4861 = vmatprep.mubr.f32.mxu0 %v4122
        %4862 = vmatmul.mubr.f32.gmra.mrb[0].mxu0 %v3692
        %v4863 = vpop.f32.mrb[0].mxu0
        %v4864 = vadd.f32 0.0, %v4863
        %v4865 = vpop.f32.mrb[0].mxu0
        %4866 = vmatprep.mubr.f32.mxu0 %v4125
        %4867 = vmatmul.mubr.f32.gmra.mrb[0].mxu0 %v3694
        %v4868 = vpop.f32.mrb[0].mxu0
        %v4869 = vadd.f32 0.0, %v4868
        %v4870 = vpop.f32.mrb[0].mxu0
        %4871 = vmatprep.mubr.f32.mxu0 %v4128
        %4872 = vmatmul.mubr.f32.gmra.mrb[0].mxu0 %v3696
        %v4873 = vpop.f32.mrb[0].mxu0
        %v4874 = vadd.f32 0.0, %v4873
        %v4875 = vpop.f32.mrb[0].mxu0
        %4876 = vmatprep.mubr.f32.mxu0 %v4131
        %4877 = vmatmul.mubr.f32.gmra.mrb[0].mxu0 %v3698
        %v4878 = vpop.f32.mrb[0].mxu0
        %v4879 = vadd.f32 0.0, %v4878
        %v4880 = vpop.f32.mrb[0].mxu0
        %4881 = vmatprep.mubr.f32.mxu0 %v4134
        %4882 = vmatmul.mubr.f32.gmra.mrb[0].mxu0 %v3700
        %v4883 = vpop.f32.mrb[0].mxu0
        %v4884 = vadd.f32 0.0, %v4883
        %v4885 = vpop.f32.mrb[0].mxu0
        %4886 = vmatprep.mubr.f32.mxu0 %v4137
        %4887 = vmatmul.mubr.f32.gmra.mrb[0].mxu0 %v3702
        %v4888 = vpop.f32.mrb[0].mxu0
        %v4889 = vadd.f32 0.0, %v4888
        %v4890 = vpop.f32.mrb[0].mxu0
        %4891 = vmatprep.mubr.f32.mxu0 %v4140
        %4892 = vmatmul.mubr.f32.gmra.mrb[0].mxu0 %v3704
        %v4893 = vpop.f32.mrb[0].mxu0
        %v4894 = vadd.f32 0.0, %v4893
        %v4895 = vpop.f32.mrb[0].mxu0
        %4896 = vmatprep.mubr.f32.mxu0 %v4143
        %4897 = vmatmul.mubr.f32.gmra.mrb[0].mxu0 %v3706
        %v4898 = vpop.f32.mrb[0].mxu0
        %v4899 = vadd.f32 0.0, %v4898
        %v4900 = vpop.f32.mrb[0].mxu0
        %4901 = vmatprep.mubr.f32.mxu0 %v4146
        %4902 = vmatmul.mubr.f32.gmra.mrb[0].mxu0 %v3708
        %v4903 = vpop.f32.mrb[0].mxu0
        %v4904 = vadd.f32 0.0, %v4903
        %v4905 = vpop.f32.mrb[0].mxu0
        %4906 = vmatprep.mubr.f32.mxu0 %v4149
        %4907 = vmatmul.mubr.f32.gmra.mrb[0].mxu0 %v3710
        %v4908 = vpop.f32.mrb[0].mxu0
        %v4909 = vadd.f32 0.0, %v4908
        %v4910 = vpop.f32.mrb[0].mxu0
        %4911 = vmatprep.mubr.f32.mxu0 %v4152
        %4912 = vmatmul.mubr.f32.gmra.mrb[0].mxu0 %v3712
        %v4913 = vpop.f32.mrb[0].mxu0
        %v4914 = vadd.f32 0.0, %v4913
        %v4915 = vpop.f32.mrb[0].mxu0
        %4916 = vmatprep.mubr.f32.mxu0 %v4155
        %4917 = vmatmul.mubr.f32.gmra.mrb[0].mxu0 %v3714
        %v4918 = vpop.f32.mrb[0].mxu0
        %v4919 = vadd.f32 0.0, %v4918
        %v4920 = vpop.f32.mrb[0].mxu0
        %4921 = vmatprep.mubr.f32.mxu0 %v4158
        %4922 = vmatmul.mubr.f32.gmra.mrb[0].mxu0 %v3716
        %v4923 = vpop.f32.mrb[0].mxu0
        %v4924 = vadd.f32 0.0, %v4923
        %v4925 = vpop.f32.mrb[0].mxu0
        %4926 = vmatprep.mubr.f32.mxu0 %v4161
        %4927 = vmatmul.mubr.f32.gmra.mrb[0].mxu0 %v3718
        %v4928 = vpop.f32.mrb[0].mxu0
        %v4929 = vadd.f32 0.0, %v4928
        %v4930 = vpop.f32.mrb[0].mxu0
        %4931 = vmatprep.mubr.f32.mxu0 %v4164
        %4932 = vmatmul.mubr.f32.gmra.mrb[0].mxu0 %v3720
        %v4933 = vpop.f32.mrb[0].mxu0
        %v4934 = vadd.f32 0.0, %v4933
        %v4935 = vpop.f32.mrb[0].mxu0
        %4936 = vmatprep.mubr.f32.mxu0 %v4167
        %4937 = vmatmul.mubr.f32.gmra.mrb[0].mxu0 %v3722
        %v4938 = vpop.f32.mrb[0].mxu0
        %v4939 = vadd.f32 0.0, %v4938
        %v4940 = vpop.f32.mrb[0].mxu0
        %4941 = vmatprep.mubr.f32.mxu0 %v4170
        %4942 = vmatmul.mubr.f32.gmra.mrb[0].mxu0 %v3724
        %v4943 = vpop.f32.mrb[0].mxu0
        %v4944 = vadd.f32 0.0, %v4943
        %v4945 = vpop.f32.mrb[0].mxu0
        %4946 = vmatprep.mubr.f32.mxu0 %v4173
        %4947 = vmatmul.mubr.f32.gmra.mrb[0].mxu0 %v3726
        %v4948 = vpop.f32.mrb[0].mxu0
        %v4949 = vadd.f32 0.0, %v4948
        %v4950 = vpop.f32.mrb[0].mxu0
        %4951 = vmatprep.mubr.f32.mxu0 %v4176
        %4952 = vmatmul.mubr.f32.gmra.mrb[0].mxu0 %v3728
        %v4953 = vpop.f32.mrb[0].mxu0
        %v4954 = vadd.f32 0.0, %v4953
        %v4955 = vpop.f32.mrb[0].mxu0
        %4956 = vmatprep.mubr.f32.mxu0 %v4179
        %4957 = vmatmul.mubr.f32.gmra.mrb[0].mxu0 %v3730
        %v4958 = vpop.f32.mrb[0].mxu0
        %v4959 = vadd.f32 0.0, %v4958
        %v4960 = vpop.f32.mrb[0].mxu0
        %4961 = vmatprep.mubr.f32.mxu0 %v4182
        %4962 = vmatmul.mubr.f32.gmra.mrb[0].mxu0 %v3732
        %v4963 = vpop.f32.mrb[0].mxu0
        %v4964 = vadd.f32 0.0, %v4963
        %v4965 = vpop.f32.mrb[0].mxu0
        %4966 = vmatprep.mubr.f32.mxu0 %v4185
        %4967 = vmatmul.mubr.f32.gmra.mrb[0].mxu0 %v3734
        %v4968 = vpop.f32.mrb[0].mxu0
        %v4969 = vadd.f32 0.0, %v4968
        %v4970 = vpop.f32.mrb[0].mxu0
        %4971 = vmatprep.mubr.f32.mxu0 %v4188
        %4972 = vmatmul.mubr.f32.gmra.mrb[0].mxu0 %v3736
        %v4973 = vpop.f32.mrb[0].mxu0
        %v4974 = vadd.f32 0.0, %v4973
        %v4975 = vpop.f32.mrb[0].mxu0
        %4976 = vmatprep.mubr.f32.mxu0 %v4191
        %4977 = vmatmul.mubr.f32.gmra.mrb[0].mxu0 %v3738
        %v4978 = vpop.f32.mrb[0].mxu0
        %v4979 = vadd.f32 0.0, %v4978
        %v4980 = vpop.f32.mrb[0].mxu0
        %4981 = vmatprep.mubr.f32.mxu0 %v4194
        %4982 = vmatmul.mubr.f32.gmra.mrb[0].mxu0 %v3740
        %v4983 = vpop.f32.mrb[0].mxu0
        %v4984 = vadd.f32 0.0, %v4983
        %v4985 = vpop.f32.mrb[0].mxu0
        %4986 = vmatprep.mubr.f32.mxu0 %v4197
        %4987 = vmatmul.mubr.f32.gmra.mrb[0].mxu0 %v3742
        %v4988 = vpop.f32.mrb[0].mxu0
        %v4989 = vadd.f32 0.0, %v4988
        %v4990 = vpop.f32.mrb[0].mxu0
        %4991 = vmatprep.mubr.f32.mxu0 %v4200
        %4992 = vmatmul.mubr.f32.gmra.mrb[0].mxu0 %v3744
        %v4993 = vpop.f32.mrb[0].mxu0
        %v4994 = vadd.f32 0.0, %v4993
        %v4995 = vpop.f32.mrb[0].mxu0
        %4996 = vmatprep.mubr.f32.mxu0 %v4203
        %4997 = vmatmul.mubr.f32.gmra.mrb[0].mxu0 %v3746
        %v4998 = vpop.f32.mrb[0].mxu0
        %v4999 = vadd.f32 0.0, %v4998
        %v5000 = vpop.f32.mrb[0].mxu0
        %5001 = vmatprep.mubr.f32.mxu0 %v4206
        %5002 = vmatmul.mubr.f32.gmra.mrb[0].mxu0 %v3748
        %v5003 = vpop.f32.mrb[0].mxu0
        %v5004 = vadd.f32 0.0, %v5003
        %v5005 = vpop.f32.mrb[0].mxu0
        %5006 = vmatprep.mubr.f32.mxu0 %v4209
        %5007 = vmatmul.mubr.f32.gmra.mrb[0].mxu0 %v3750
        %v5008 = vpop.f32.mrb[0].mxu0
        %v5009 = vadd.f32 0.0, %v5008
        %v5010 = vpop.f32.mrb[0].mxu0
        %5011 = vmatprep.mubr.f32.mxu0 %v4212
        %5012 = vmatmul.mubr.f32.gmra.mrb[0].mxu0 %v3752
        %v5013 = vpop.f32.mrb[0].mxu0
        %v5014 = vadd.f32 0.0, %v5013
        %v5015 = vpop.f32.mrb[0].mxu0
        %5016 = vmatprep.mubr.f32.mxu0 %v4215
        %5017 = vmatmul.mubr.f32.gmra.mrb[0].mxu0 %v3754
        %v5018 = vpop.f32.mrb[0].mxu0
        %v5019 = vadd.f32 0.0, %v5018
        %v5020 = vpop.f32.mrb[0].mxu0
        %5021 = vmatprep.mubr.f32.mxu0 %v4218
        %5022 = vmatmul.mubr.f32.gmra.mrb[0].mxu0 %v3756
        %v5023 = vpop.f32.mrb[0].mxu0
        %v5024 = vadd.f32 0.0, %v5023
        %v5025 = vpop.f32.mrb[0].mxu0
        %5026 = vmatprep.mubr.f32.mxu0 %v4221
        %5027 = vmatmul.mubr.f32.gmra.mrb[0].mxu0 %v3758
        %v5028 = vpop.f32.mrb[0].mxu0
        %v5029 = vadd.f32 0.0, %v5028
        %v5030 = vpop.f32.mrb[0].mxu0
        %5031 = vmatprep.mubr.f32.mxu0 %v4224
        %5032 = vmatmul.mubr.f32.gmra.mrb[0].mxu0 %v3760
        %v5033 = vpop.f32.mrb[0].mxu0
        %v5034 = vadd.f32 0.0, %v5033
        %v5035 = vpop.f32.mrb[0].mxu0
        %5036 = vmatprep.mubr.f32.mxu0 %v4227
        %5037 = vmatmul.mubr.f32.gmra.mrb[0].mxu0 %v3762
        %v5038 = vpop.f32.mrb[0].mxu0
        %v5039 = vadd.f32 0.0, %v5038
        %v5040 = vpop.f32.mrb[0].mxu0
        %5041 = vmatprep.mubr.f32.mxu0 %v4230
        %5042 = vmatmul.mubr.f32.gmra.mrb[0].mxu0 %v3764
        %v5043 = vpop.f32.mrb[0].mxu0
        %v5044 = vadd.f32 0.0, %v5043
        %v5045 = vpop.f32.mrb[0].mxu0
        %5046 = vmatprep.mubr.f32.mxu0 %v4233
        %5047 = vmatmul.mubr.f32.gmra.mrb[0].mxu0 %v3766
        %v5048 = vpop.f32.mrb[0].mxu0
        %v5049 = vadd.f32 0.0, %v5048
        %v5050 = vpop.f32.mrb[0].mxu0
        %5051 = vmatprep.mubr.f32.mxu0 %v4236
        %5052 = vmatmul.mubr.f32.gmra.mrb[0].mxu0 %v3768
        %v5053 = vpop.f32.mrb[0].mxu0
        %v5054 = vadd.f32 0.0, %v5053
        %v5055 = vpop.f32.mrb[0].mxu0
        %5056 = vmatprep.mubr.f32.mxu0 %v4239
        %5057 = vmatmul.mubr.f32.gmra.mrb[0].mxu0 %v3770
        %v5058 = vpop.f32.mrb[0].mxu0
        %v5059 = vadd.f32 0.0, %v5058
        %v5060 = vpop.f32.mrb[0].mxu0
        %5061 = vmatprep.mubr.f32.mxu0 %v4242
        %5062 = vmatmul.mubr.f32.gmra.mrb[0].mxu0 %v3772
        %v5063 = vpop.f32.mrb[0].mxu0
        %v5064 = vadd.f32 0.0, %v5063
        %v5065 = vpop.f32.mrb[0].mxu0
        %5066 = vmatprep.mubr.f32.mxu0 %v4245
        %5067 = vmatmul.mubr.f32.gmra.mrb[0].mxu0 %v3774
        %v5068 = vpop.f32.mrb[0].mxu0
        %v5069 = vadd.f32 0.0, %v5068
        %v5070 = vpop.f32.mrb[0].mxu0
        %5071 = vmatprep.mubr.f32.mxu0 %v4248
        %5072 = vmatmul.mubr.f32.gmra.mrb[0].mxu0 %v3776
        %v5073 = vpop.f32.mrb[0].mxu0
        %v5074 = vadd.f32 0.0, %v5073
        %v5075 = vpop.f32.mrb[0].mxu0
        %5076 = vmatprep.mubr.f32.mxu0 %v4251
        %5077 = vmatmul.mubr.f32.gmra.mrb[0].mxu0 %v3778
        %v5078 = vpop.f32.mrb[0].mxu0
        %v5079 = vadd.f32 0.0, %v5078
        %v5080 = vpop.f32.mrb[0].mxu0
        %5081 = vmatprep.mubr.f32.mxu0 %v4254
        %5082 = vmatmul.mubr.f32.gmra.mrb[0].mxu0 %v3780
        %v5083 = vpop.f32.mrb[0].mxu0
        %v5084 = vadd.f32 0.0, %v5083
        %v5085 = vpop.f32.mrb[0].mxu0
        %5086 = vmatprep.mubr.f32.mxu0 %v4257
        %5087 = vmatmul.mubr.f32.gmra.mrb[0].mxu0 %v3782
        %v5088 = vpop.f32.mrb[0].mxu0
        %v5089 = vadd.f32 0.0, %v5088
        %v5090 = vpop.f32.mrb[0].mxu0
        %5091 = vmatprep.mubr.f32.mxu0 %v4260
        %5092 = vmatmul.mubr.f32.gmra.mrb[0].mxu0 %v3784
        %v5093 = vpop.f32.mrb[0].mxu0
        %v5094 = vadd.f32 0.0, %v5093
        %v5095 = vpop.f32.mrb[0].mxu0
        %5096 = vmatprep.mubr.f32.mxu0 %v4263
        %5097 = vmatmul.mubr.f32.gmra.mrb[0].mxu0 %v3786
        %v5098 = vpop.f32.mrb[0].mxu0
        %v5099 = vadd.f32 0.0, %v5098
        %v5100 = vpop.f32.mrb[0].mxu0
        %5101 = vmatprep.mubr.f32.mxu0 %v4266
        %5102 = vmatmul.mubr.f32.gmra.mrb[0].mxu0 %v3788
        %v5103 = vpop.f32.mrb[0].mxu0
        %v5104 = vadd.f32 0.0, %v5103
        %v5105 = vpop.f32.mrb[0].mxu0
        %5106 = vmatprep.mubr.f32.mxu0 %v4269
        %5107 = vmatmul.mubr.f32.gmra.mrb[0].mxu0 %v3790
        %v5108 = vpop.f32.mrb[0].mxu0
        %v5109 = vadd.f32 0.0, %v5108
        %v5110 = vpop.f32.mrb[0].mxu0
        %5111 = vmatprep.mubr.f32.mxu0 %v4272
        %5112 = vmatmul.mubr.f32.gmra.mrb[0].mxu0 %v3792
        %v5113 = vpop.f32.mrb[0].mxu0
        %v5114 = vadd.f32 0.0, %v5113
        %v5115 = vpop.f32.mrb[0].mxu0
        %5116 = vmatprep.mubr.f32.mxu0 %v4275
        %5117 = vmatmul.mubr.f32.gmra.mrb[0].mxu0 %v3794
        %v5118 = vpop.f32.mrb[0].mxu0
        %v5119 = vadd.f32 0.0, %v5118
        %v5120 = vpop.f32.mrb[0].mxu0
        %5121 = vmatprep.mubr.f32.mxu0 %v4278
        %5122 = vmatmul.mubr.f32.gmra.mrb[0].mxu0 %v3796
        %v5123 = vpop.f32.mrb[0].mxu0
        %v5124 = vadd.f32 0.0, %v5123
        %v5125 = vpop.f32.mrb[0].mxu0
        %5126 = vmatprep.mubr.f32.mxu0 %v4281
        %5127 = vmatmul.mubr.f32.gmra.mrb[0].mxu0 %v3798
        %v5128 = vpop.f32.mrb[0].mxu0
        %v5129 = vadd.f32 0.0, %v5128
        %v5130 = vpop.f32.mrb[0].mxu0
        %5131 = vmatprep.mubr.f32.mxu0 %v4284
        %5132 = vmatmul.mubr.f32.gmra.mrb[0].mxu0 %v3800
        %v5133 = vpop.f32.mrb[0].mxu0
        %v5134 = vadd.f32 0.0, %v5133
        %v5135 = vpop.f32.mrb[0].mxu0
        %5136 = vmatprep.mubr.f32.mxu0 %v4287
        %5137 = vmatmul.mubr.f32.gmra.mrb[0].mxu0 %v3802
        %v5138 = vpop.f32.mrb[0].mxu0
        %v5139 = vadd.f32 0.0, %v5138
        %v5140 = vpop.f32.mrb[0].mxu0
        %5141 = vmatprep.mubr.f32.mxu0 %v4290
        %5142 = vmatmul.mubr.f32.gmra.mrb[0].mxu0 %v3804
        %v5143 = vpop.f32.mrb[0].mxu0
        %v5144 = vadd.f32 0.0, %v5143
        %v5145 = vpop.f32.mrb[0].mxu0
        %5146 = vmatprep.mubr.f32.mxu0 %v4293
        %5147 = vmatmul.mubr.f32.gmra.mrb[0].mxu0 %v3806
        %v5148 = vpop.f32.mrb[0].mxu0
        %v5149 = vadd.f32 0.0, %v5148
        %v5150 = vpop.f32.mrb[0].mxu0
        %5151 = vmatprep.mubr.f32.mxu0 %v4296
        %5152 = vmatmul.mubr.f32.gmra.mrb[0].mxu0 %v3808
        %v5153 = vpop.f32.mrb[0].mxu0
        %v5154 = vadd.f32 0.0, %v5153
        %v5155 = vpop.f32.mrb[0].mxu0
        %5156 = vmatprep.mubr.f32.mxu0 %v4299
        %5157 = vmatmul.mubr.f32.gmra.mrb[0].mxu0 %v3810
        %v5158 = vpop.f32.mrb[0].mxu0
        %v5159 = vadd.f32 0.0, %v5158
        %v5160 = vpop.f32.mrb[0].mxu0
        %5161 = vmatprep.mubr.f32.mxu0 %v4302
        %5162 = vmatmul.mubr.f32.gmra.mrb[0].mxu0 %v3812
        %v5163 = vpop.f32.mrb[0].mxu0
        %v5164 = vadd.f32 0.0, %v5163
        %v5165 = vpop.f32.mrb[0].mxu0
        %5166 = vmatprep.mubr.f32.mxu0 %v4305
        %5167 = vmatmul.mubr.f32.gmra.mrb[0].mxu0 %v3814
        %v5168 = vpop.f32.mrb[0].mxu0
        %v5169 = vadd.f32 0.0, %v5168
        %v5170 = vpop.f32.mrb[0].mxu0
        %5171 = vmatprep.mubr.f32.mxu0 %v4308
        %5172 = vmatmul.mubr.f32.gmra.mrb[0].mxu0 %v3816
        %v5173 = vpop.f32.mrb[0].mxu0
        %v5174 = vadd.f32 0.0, %v5173
        %v5175 = vpop.f32.mrb[0].mxu0
        %5176 = vmatprep.mubr.f32.mxu0 %v4311
        %5177 = vmatmul.mubr.f32.gmra.mrb[0].mxu0 %v3818
        %v5178 = vpop.f32.mrb[0].mxu0
        %v5179 = vadd.f32 0.0, %v5178
        %v5180 = vpop.f32.mrb[0].mxu0
        %5181 = vmatprep.mubr.f32.mxu0 %v4314
        %5182 = vmatmul.mubr.f32.gmra.mrb[0].mxu0 %v3820
        %v5183 = vpop.f32.mrb[0].mxu0
        %v5184 = vadd.f32 0.0, %v5183
        %v5185 = vpop.f32.mrb[0].mxu0
        %5186 = vmatprep.mubr.f32.mxu0 %v4317
        %5187 = vmatmul.mubr.f32.gmra.mrb[0].mxu0 %v3822
        %v5188 = vpop.f32.mrb[0].mxu0
        %v5189 = vadd.f32 0.0, %v5188
        %v5190 = vpop.f32.mrb[0].mxu0
        %5191 = vmatprep.mubr.f32.mxu0 %v4320
        %5192 = vmatmul.mubr.f32.gmra.mrb[0].mxu0 %v3824
        %v5193 = vpop.f32.mrb[0].mxu0
        %v5194 = vadd.f32 0.0, %v5193
        %v5195 = vpop.f32.mrb[0].mxu0
        %5196 = vmatprep.mubr.f32.mxu0 %v4323
        %5197 = vmatmul.mubr.f32.gmra.mrb[0].mxu0 %v3826
        %v5198 = vpop.f32.mrb[0].mxu0
        %v5199 = vadd.f32 0.0, %v5198
        %v5200 = vpop.f32.mrb[0].mxu0
        %5201 = vmatprep.mubr.f32.mxu0 %v4326
        %5202 = vmatmul.mubr.f32.gmra.mrb[0].mxu0 %v3828
        %v5203 = vpop.f32.mrb[0].mxu0
        %v5204 = vadd.f32 0.0, %v5203
        %v5205 = vpop.f32.mrb[0].mxu0
        %5206 = vmatprep.mubr.f32.mxu0 %v4329
        %5207 = vmatmul.mubr.f32.gmra.mrb[0].mxu0 %v3830
        %v5208 = vpop.f32.mrb[0].mxu0
        %v5209 = vadd.f32 0.0, %v5208
        %v5210 = vpop.f32.mrb[0].mxu0
        %5211 = vmatprep.mubr.f32.mxu0 %v4332
        %5212 = vmatmul.mubr.f32.gmra.mrb[0].mxu0 %v3832
        %v5213 = vpop.f32.mrb[0].mxu0
        %v5214 = vadd.f32 0.0, %v5213
        %v5215 = vpop.f32.mrb[0].mxu0
        %5216 = vmatprep.mubr.f32.mxu0 %v4335
        %5217 = vmatmul.mubr.f32.gmra.mrb[0].mxu0 %v3834
        %v5218 = vpop.f32.mrb[0].mxu0
        %v5219 = vadd.f32 0.0, %v5218
        %v5220 = vpop.f32.mrb[0].mxu0
        %5221 = vmatprep.mubr.f32.mxu0 %v4338
        %5222 = vmatmul.mubr.f32.gmra.mrb[0].mxu0 %v3836
        %v5223 = vpop.f32.mrb[0].mxu0
        %v5224 = vadd.f32 0.0, %v5223
        %v5225 = vpop.f32.mrb[0].mxu0
        %5226 = vmatprep.mubr.f32.mxu0 %v4341
        %5227 = vmatmul.mubr.f32.gmra.mrb[0].mxu0 %v3838
        %v5228 = vpop.f32.mrb[0].mxu0
        %v5229 = vadd.f32 0.0, %v5228
        %v5230 = vpop.f32.mrb[0].mxu0
        %5231 = vmatprep.mubr.f32.mxu0 %v4344
        %5232 = vmatmul.mubr.f32.gmra.mrb[0].mxu0 %v3840
        %v5233 = vpop.f32.mrb[0].mxu0
        %v5234 = vadd.f32 0.0, %v5233
        %v5235 = vpop.f32.mrb[0].mxu0
        %5236 = vmatprep.mubr.f32.mxu0 %v4347
        %5237 = vmatmul.mubr.f32.gmra.mrb[0].mxu0 %v3842
        %v5238 = vpop.f32.mrb[0].mxu0
        %v5239 = vadd.f32 0.0, %v5238
        %v5240 = vpop.f32.mrb[0].mxu0
        %5241 = vmatprep.mubr.f32.mxu0 %v4350
        %5242 = vmatmul.mubr.f32.gmra.mrb[0].mxu0 %v3844
        %v5243 = vpop.f32.mrb[0].mxu0
        %v5244 = vadd.f32 0.0, %v5243
        %v5245 = vpop.f32.mrb[0].mxu0
        %5246 = vmatprep.mubr.f32.mxu0 %v4353
        %5247 = vmatmul.mubr.f32.gmra.mrb[0].mxu0 %v3846
        %v5248 = vpop.f32.mrb[0].mxu0
        %v5249 = vadd.f32 0.0, %v5248
        %v5250 = vpop.f32.mrb[0].mxu0
        %5251 = vmatprep.mubr.f32.mxu0 %v4356
        %5252 = vmatmul.mubr.f32.gmra.mrb[0].mxu0 %v3848
        %v5253 = vpop.f32.mrb[0].mxu0
        %v5254 = vadd.f32 0.0, %v5253
        %v5255 = vpop.f32.mrb[0].mxu0
        %5256 = vmatprep.mubr.f32.mxu0 %v4359
        %5257 = vmatmul.mubr.f32.gmra.mrb[0].mxu0 %v3850
        %v5258 = vpop.f32.mrb[0].mxu0
        %v5259 = vadd.f32 0.0, %v5258
        %v5260 = vpop.f32.mrb[0].mxu0
        %5261 = vmatprep.mubr.f32.mxu0 %v4362
        %5262 = vmatmul.mubr.f32.gmra.mrb[0].mxu0 %v3852
        %v5263 = vpop.f32.mrb[0].mxu0
        %v5264 = vadd.f32 0.0, %v5263
        %v5265 = vpop.f32.mrb[0].mxu0
        %5266 = vmatprep.mubr.f32.mxu0 %v4365
        %5267 = vmatmul.mubr.f32.gmra.mrb[0].mxu0 %v3854
        %v5268 = vpop.f32.mrb[0].mxu0
        %v5269 = vadd.f32 0.0, %v5268
        %v5270 = vpop.f32.mrb[0].mxu0
        %5271 = vmatprep.mubr.f32.mxu0 %v4368
        %5272 = vmatmul.mubr.f32.gmra.mrb[0].mxu0 %v3856
        %v5273 = vpop.f32.mrb[0].mxu0
        %v5274 = vadd.f32 0.0, %v5273
        %v5275 = vpop.f32.mrb[0].mxu0
        %5276 = vmatprep.mubr.f32.mxu0 %v4371
        %5277 = vmatmul.mubr.f32.gmra.mrb[0].mxu0 %v3858
        %v5278 = vpop.f32.mrb[0].mxu0
        %v5279 = vadd.f32 0.0, %v5278
        %v5280 = vpop.f32.mrb[0].mxu0
        %5281 = vmatprep.mubr.f32.mxu0 %v4374
        %5282 = vmatmul.mubr.f32.gmra.mrb[0].mxu0 %v3860
        %v5283 = vpop.f32.mrb[0].mxu0
        %v5284 = vadd.f32 0.0, %v5283
        %v5285 = vpop.f32.mrb[0].mxu0
        %5286 = vmatprep.mubr.f32.mxu0 %v4377
        %5287 = vmatmul.mubr.f32.gmra.mrb[0].mxu0 %v3862
        %v5288 = vpop.f32.mrb[0].mxu0
        %v5289 = vadd.f32 0.0, %v5288
        %v5290 = vpop.f32.mrb[0].mxu0
        %5291 = vmatprep.mubr.f32.mxu0 %v4380
        %5292 = vmatmul.mubr.f32.gmra.mrb[0].mxu0 %v3864
        %v5293 = vpop.f32.mrb[0].mxu0
        %v5294 = vadd.f32 0.0, %v5293
        %v5295 = vpop.f32.mrb[0].mxu0
        %5296 = vmatprep.mubr.f32.mxu0 %v4383
        %5297 = vmatmul.mubr.f32.gmra.mrb[0].mxu0 %v3866
        %v5298 = vpop.f32.mrb[0].mxu0
        %v5299 = vadd.f32 0.0, %v5298
        %v5300 = vpop.f32.mrb[0].mxu0
        %5301 = vmatprep.mubr.f32.mxu0 %v4386
        %5302 = vmatmul.mubr.f32.gmra.mrb[0].mxu0 %v3868
        %v5303 = vpop.f32.mrb[0].mxu0
        %v5304 = vadd.f32 0.0, %v5303
        %v5305 = vpop.f32.mrb[0].mxu0
        %5306 = vmatprep.mubr.f32.mxu0 %v4389
        %5307 = vmatmul.mubr.f32.gmra.mrb[0].mxu0 %v3870
        %v5308 = vpop.f32.mrb[0].mxu0
        %v5309 = vadd.f32 0.0, %v5308
        %v5310 = vpop.f32.mrb[0].mxu0
        %5311 = vmatprep.mubr.f32.mxu0 %v4392
        %5312 = vmatmul.mubr.f32.gmra.mrb[0].mxu0 %v3872
        %v5313 = vpop.f32.mrb[0].mxu0
        %v5314 = vadd.f32 0.0, %v5313
        %v5315 = vpop.f32.mrb[0].mxu0
        %5316 = vmatprep.mubr.f32.mxu0 %v4395
        %5317 = vmatmul.mubr.f32.gmra.mrb[0].mxu0 %v3874
        %v5318 = vpop.f32.mrb[0].mxu0
        %v5319 = vadd.f32 0.0, %v5318
        %v5320 = vpop.f32.mrb[0].mxu0
        %5321 = vmatprep.mubr.f32.mxu0 %v4398
        %5322 = vmatmul.mubr.f32.gmra.mrb[0].mxu0 %v3876
        %v5323 = vpop.f32.mrb[0].mxu0
        %v5324 = vadd.f32 0.0, %v5323
        %v5325 = vpop.f32.mrb[0].mxu0
        %5326 = vmatprep.mubr.f32.mxu0 %v4401
        %5327 = vmatmul.mubr.f32.gmra.mrb[0].mxu0 %v3878
        %v5328 = vpop.f32.mrb[0].mxu0
        %v5329 = vadd.f32 0.0, %v5328
        %v5330 = vpop.f32.mrb[0].mxu0
        %5331 = vmatprep.mubr.f32.mxu0 %v4404
        %5332 = vmatmul.mubr.f32.gmra.mrb[0].mxu0 %v3880
        %v5333 = vpop.f32.mrb[0].mxu0
        %v5334 = vadd.f32 0.0, %v5333
        %v5335 = vpop.f32.mrb[0].mxu0
        %5336 = vmatprep.mubr.f32.mxu0 %v4407
        %5337 = vmatmul.mubr.f32.gmra.mrb[0].mxu0 %v3882
        %v5338 = vpop.f32.mrb[0].mxu0
        %v5339 = vadd.f32 0.0, %v5338
        %v5340 = vpop.f32.mrb[0].mxu0
        %5341 = vmatprep.mubr.f32.mxu0 %v4410
        %5342 = vmatmul.mubr.f32.gmra.mrb[0].mxu0 %v3884
        %v5343 = vpop.f32.mrb[0].mxu0
        %v5344 = vadd.f32 0.0, %v5343
        %v5345 = vpop.f32.mrb[0].mxu0
        %5346 = vmatprep.mubr.f32.mxu0 %v4413
        %5347 = vmatmul.mubr.f32.gmra.mrb[0].mxu0 %v3886
        %v5348 = vpop.f32.mrb[0].mxu0
        %v5349 = vadd.f32 0.0, %v5348
        %v5350 = vpop.f32.mrb[0].mxu0
        %5351 = vmatprep.mubr.f32.mxu0 %v4416
        %5352 = vmatmul.mubr.f32.gmra.mrb[0].mxu0 %v3888
        %v5353 = vpop.f32.mrb[0].mxu0
        %v5354 = vadd.f32 0.0, %v5353
        %v5355 = vpop.f32.mrb[0].mxu0
        %5356 = vmatprep.mubr.f32.mxu0 %v4419
        %5357 = vmatmul.mubr.f32.gmra.mrb[0].mxu0 %v3890
        %v5358 = vpop.f32.mrb[0].mxu0
        %v5359 = vadd.f32 0.0, %v5358
        %v5360 = vpop.f32.mrb[0].mxu0
        %5361 = vmatprep.mubr.f32.mxu0 %v4422
        %5362 = vmatmul.mubr.f32.gmra.mrb[0].mxu0 %v3892
        %v5363 = vpop.f32.mrb[0].mxu0
        %v5364 = vadd.f32 0.0, %v5363
        %v5365 = vpop.f32.mrb[0].mxu0
        %5366 = vmatprep.mubr.f32.mxu0 %v4425
        %5367 = vmatmul.mubr.f32.gmra.mrb[0].mxu0 %v3894
        %v5368 = vpop.f32.mrb[0].mxu0
        %v5369 = vadd.f32 0.0, %v5368
        %v5370 = vpop.f32.mrb[0].mxu0
        %5371 = vmatprep.mubr.f32.mxu0 %v4428
        %5372 = vmatmul.mubr.f32.gmra.mrb[0].mxu0 %v3896
        %v5373 = vpop.f32.mrb[0].mxu0
        %v5374 = vadd.f32 0.0, %v5373
        %v5375 = vpop.f32.mrb[0].mxu0
        %5376 = vmatprep.mubr.f32.mxu0 %v4431
        %5377 = vmatmul.mubr.f32.gmra.mrb[0].mxu0 %v3898
        %v5378 = vpop.f32.mrb[0].mxu0
        %v5379 = vadd.f32 0.0, %v5378
        %v5380 = vpop.f32.mrb[0].mxu0
        %5381 = vmatprep.mubr.f32.mxu0 %v4434
        %5382 = vmatmul.mubr.f32.gmra.mrb[0].mxu0 %v3900
        %v5383 = vpop.f32.mrb[0].mxu0
        %v5384 = vadd.f32 0.0, %v5383
        %v5385 = vpop.f32.mrb[0].mxu0
        %5386 = vmatprep.mubr.f32.mxu0 %v4437
        %5387 = vmatmul.mubr.f32.gmra.mrb[0].mxu0 %v3902
        %v5388 = vpop.f32.mrb[0].mxu0
        %v5389 = vadd.f32 0.0, %v5388
        %v5390 = vpop.f32.mrb[0].mxu0
        %5391 = vmatprep.mubr.f32.mxu0 %v4440
        %5392 = vmatmul.mubr.f32.gmra.mrb[0].mxu0 %v3904
        %v5393 = vpop.f32.mrb[0].mxu0
        %v5394 = vadd.f32 0.0, %v5393
        %v5395 = vpop.f32.mrb[0].mxu0
        %5396 = vmatprep.mubr.f32.mxu0 %v4443
        %5397 = vmatmul.mubr.f32.gmra.mrb[0].mxu0 %v3906
        %v5398 = vpop.f32.mrb[0].mxu0
        %v5399 = vadd.f32 0.0, %v5398
        %v5400 = vpop.f32.mrb[0].mxu0
        %5401 = vmatprep.mubr.f32.mxu0 %v4446
        %5402 = vmatmul.mubr.f32.gmra.mrb[0].mxu0 %v3908
        %v5403 = vpop.f32.mrb[0].mxu0
        %v5404 = vadd.f32 0.0, %v5403
        %v5405 = vpop.f32.mrb[0].mxu0
        %5406 = vmatprep.mubr.f32.mxu0 %v4449
        %5407 = vmatmul.mubr.f32.gmra.mrb[0].mxu0 %v3910
        %v5408 = vpop.f32.mrb[0].mxu0
        %v5409 = vadd.f32 0.0, %v5408
        %v5410 = vpop.f32.mrb[0].mxu0
        %5411 = vmatprep.mubr.f32.mxu0 %v4452
        %5412 = vmatmul.mubr.f32.gmra.mrb[0].mxu0 %v3912
        %v5413 = vpop.f32.mrb[0].mxu0
        %v5414 = vadd.f32 0.0, %v5413
        %v5415 = vpop.f32.mrb[0].mxu0
        %5416 = vmatprep.mubr.f32.mxu0 %v4455
        %5417 = vmatmul.mubr.f32.gmra.mrb[0].mxu0 %v3914
        %v5418 = vpop.f32.mrb[0].mxu0
        %v5419 = vadd.f32 0.0, %v5418
        %v5420 = vpop.f32.mrb[0].mxu0
        %5421 = vmatprep.mubr.f32.mxu0 %v4458
        %5422 = vmatmul.mubr.f32.gmra.mrb[0].mxu0 %v3916
        %v5423 = vpop.f32.mrb[0].mxu0
        %v5424 = vadd.f32 0.0, %v5423
        %v5425 = vpop.f32.mrb[0].mxu0
        %5426 = vmatprep.mubr.f32.mxu0 %v4461
        %5427 = vmatmul.mubr.f32.gmra.mrb[0].mxu0 %v3918
        %v5428 = vpop.f32.mrb[0].mxu0
        %v5429 = vadd.f32 0.0, %v5428
        %v5430 = vpop.f32.mrb[0].mxu0
        %5431 = vmatprep.mubr.f32.mxu0 %v4464
        %5432 = vmatmul.mubr.f32.gmra.mrb[0].mxu0 %v3920
        %v5433 = vpop.f32.mrb[0].mxu0
        %v5434 = vadd.f32 0.0, %v5433
        %v5435 = vpop.f32.mrb[0].mxu0
        %5436 = vmatprep.mubr.f32.mxu0 %v4467
        %5437 = vmatmul.mubr.f32.gmra.mrb[0].mxu0 %v3922
        %v5438 = vpop.f32.mrb[0].mxu0
        %v5439 = vadd.f32 0.0, %v5438
        %v5440 = vpop.f32.mrb[0].mxu0
        %5441 = vmatprep.mubr.f32.mxu0 %v4470
        %5442 = vmatmul.mubr.f32.gmra.mrb[0].mxu0 %v3924
        %v5443 = vpop.f32.mrb[0].mxu0
        %v5444 = vadd.f32 0.0, %v5443
        %v5445 = vpop.f32.mrb[0].mxu0
        %5446 = vdwg.mxu0
        %v5447 = vmul.f32 %v4539, 0.0051020407
        %v5448 = vmul.f32 %v4544, 0.0051020407
        %v5449 = vmul.f32 %v4549, 0.0051020407
        %v5450 = vmul.f32 %v4554, 0.0051020407
        %v5451 = vmul.f32 %v4559, 0.0051020407
        %v5452 = vmul.f32 %v4564, 0.0051020407
        %v5453 = vmul.f32 %v4569, 0.0051020407
        %v5454 = vmul.f32 %v4574, 0.0051020407
        %v5455 = vmul.f32 %v4579, 0.0051020407
        %v5456 = vmul.f32 %v4584, 0.0051020407
        %v5457 = vmul.f32 %v4589, 0.0051020407
        %v5458 = vmul.f32 %v4594, 0.0051020407
        %v5459 = vmul.f32 %v4599, 0.0051020407
        %v5460 = vmul.f32 %v4604, 0.0051020407
        %v5461 = vmul.f32 %v4609, 0.0051020407
        %v5462 = vmul.f32 %v4614, 0.0051020407
        %v5463 = vmul.f32 %v4619, 0.0051020407
        %v5464 = vmul.f32 %v4624, 0.0051020407
        %v5465 = vmul.f32 %v4629, 0.0051020407
        %v5466 = vmul.f32 %v4634, 0.0051020407
        %v5467 = vmul.f32 %v4639, 0.0051020407
        %v5468 = vmul.f32 %v4644, 0.0051020407
        %v5469 = vmul.f32 %v4649, 0.0051020407
        %v5470 = vmul.f32 %v4654, 0.0051020407
        %v5471 = vmul.f32 %v4659, 0.0051020407
        %v5472 = vmul.f32 %v4664, 0.0051020407
        %v5473 = vmul.f32 %v4669, 0.0051020407
        %v5474 = vmul.f32 %v4674, 0.0051020407
        %v5475 = vmul.f32 %v4679, 0.0051020407
        %v5476 = vmul.f32 %v4684, 0.0051020407
        %v5477 = vmul.f32 %v4689, 0.0051020407
        %v5478 = vmul.f32 %v4694, 0.0051020407
        %v5479 = vmul.f32 %v4699, 0.0051020407
        %v5480 = vmul.f32 %v4704, 0.0051020407
        %v5481 = vmul.f32 %v4709, 0.0051020407
        %v5482 = vmul.f32 %v4714, 0.0051020407
        %v5483 = vmul.f32 %v4719, 0.0051020407
        %v5484 = vmul.f32 %v4724, 0.0051020407
        %v5485 = vmul.f32 %v4729, 0.0051020407
        %v5486 = vmul.f32 %v4734, 0.0051020407
        %v5487 = vmul.f32 %v4739, 0.0051020407
        %v5488 = vmul.f32 %v4744, 0.0051020407
        %v5489 = vmul.f32 %v4749, 0.0051020407
        %v5490 = vmul.f32 %v4754, 0.0051020407
        %v5491 = vmul.f32 %v4759, 0.0051020407
        %v5492 = vmul.f32 %v4764, 0.0051020407
        %v5493 = vmul.f32 %v4769, 0.0051020407
        %v5494 = vmul.f32 %v4774, 0.0051020407
        %v5495 = vmul.f32 %v4779, 0.0051020407
        %v5496 = vmul.f32 %v4784, 0.0051020407
        %v5497 = vmul.f32 %v4789, 0.0051020407
        %v5498 = vmul.f32 %v4794, 0.0051020407
        %v5499 = vmul.f32 %v4799, 0.0051020407
        %v5500 = vmul.f32 %v4804, 0.0051020407
        %v5501 = vmul.f32 %v4809, 0.0051020407
        %v5502 = vmul.f32 %v4814, 0.0051020407
        %v5503 = vmul.f32 %v4819, 0.0051020407
        %v5504 = vmul.f32 %v4824, 0.0051020407
        %v5505 = vmul.f32 %v4829, 0.0051020407
        %v5506 = vmul.f32 %v4834, 0.0051020407
        %v5507 = vmul.f32 %v4839, 0.0051020407
        %v5508 = vmul.f32 %v4844, 0.0051020407
        %v5509 = vmul.f32 %v4849, 0.0051020407
        %v5510 = vmul.f32 %v4854, 0.0051020407
        %v5511 = vmul.f32 %v4859, 0.0051020407
        %v5512 = vmul.f32 %v4864, 0.0051020407
        %v5513 = vmul.f32 %v4869, 0.0051020407
        %v5514 = vmul.f32 %v4874, 0.0051020407
        %v5515 = vmul.f32 %v4879, 0.0051020407
        %v5516 = vmul.f32 %v4884, 0.0051020407
        %v5517 = vmul.f32 %v4889, 0.0051020407
        %v5518 = vmul.f32 %v4894, 0.0051020407
        %v5519 = vmul.f32 %v4899, 0.0051020407
        %v5520 = vmul.f32 %v4904, 0.0051020407
        %v5521 = vmul.f32 %v4909, 0.0051020407
        %v5522 = vmul.f32 %v4914, 0.0051020407
        %v5523 = vmul.f32 %v4919, 0.0051020407
        %v5524 = vmul.f32 %v4924, 0.0051020407
        %v5525 = vmul.f32 %v4929, 0.0051020407
        %v5526 = vmul.f32 %v4934, 0.0051020407
        %v5527 = vmul.f32 %v4939, 0.0051020407
        %v5528 = vmul.f32 %v4944, 0.0051020407
        %v5529 = vmul.f32 %v4949, 0.0051020407
        %v5530 = vmul.f32 %v4954, 0.0051020407
        %v5531 = vmul.f32 %v4959, 0.0051020407
        %v5532 = vmul.f32 %v4964, 0.0051020407
        %v5533 = vmul.f32 %v4969, 0.0051020407
        %v5534 = vmul.f32 %v4974, 0.0051020407
        %v5535 = vmul.f32 %v4979, 0.0051020407
        %v5536 = vmul.f32 %v4984, 0.0051020407
        %v5537 = vmul.f32 %v4989, 0.0051020407
        %v5538 = vmul.f32 %v4994, 0.0051020407
        %v5539 = vmul.f32 %v4999, 0.0051020407
        %v5540 = vmul.f32 %v5004, 0.0051020407
        %v5541 = vmul.f32 %v5009, 0.0051020407
        %v5542 = vmul.f32 %v5014, 0.0051020407
        %v5543 = vmul.f32 %v5019, 0.0051020407
        %v5544 = vmul.f32 %v5024, 0.0051020407
        %v5545 = vmul.f32 %v5029, 0.0051020407
        %v5546 = vmul.f32 %v5034, 0.0051020407
        %v5547 = vmul.f32 %v5039, 0.0051020407
        %v5548 = vmul.f32 %v5044, 0.0051020407
        %v5549 = vmul.f32 %v5049, 0.0051020407
        %v5550 = vmul.f32 %v5054, 0.0051020407
        %v5551 = vmul.f32 %v5059, 0.0051020407
        %v5552 = vmul.f32 %v5064, 0.0051020407
        %v5553 = vmul.f32 %v5069, 0.0051020407
        %v5554 = vmul.f32 %v5074, 0.0051020407
        %v5555 = vmul.f32 %v5079, 0.0051020407
        %v5556 = vmul.f32 %v5084, 0.0051020407
        %v5557 = vmul.f32 %v5089, 0.0051020407
        %v5558 = vmul.f32 %v5094, 0.0051020407
        %v5559 = vmul.f32 %v5099, 0.0051020407
        %v5560 = vmul.f32 %v5104, 0.0051020407
        %v5561 = vmul.f32 %v5109, 0.0051020407
        %v5562 = vmul.f32 %v5114, 0.0051020407
        %v5563 = vmul.f32 %v5119, 0.0051020407
        %v5564 = vmul.f32 %v5124, 0.0051020407
        %v5565 = vmul.f32 %v5129, 0.0051020407
        %v5566 = vmul.f32 %v5134, 0.0051020407
        %v5567 = vmul.f32 %v5139, 0.0051020407
        %v5568 = vmul.f32 %v5144, 0.0051020407
        %v5569 = vmul.f32 %v5149, 0.0051020407
        %v5570 = vmul.f32 %v5154, 0.0051020407
        %v5571 = vmul.f32 %v5159, 0.0051020407
        %v5572 = vmul.f32 %v5164, 0.0051020407
        %v5573 = vmul.f32 %v5169, 0.0051020407
        %v5574 = vmul.f32 %v5174, 0.0051020407
        %v5575 = vmul.f32 %v5179, 0.0051020407
        %v5576 = vmul.f32 %v5184, 0.0051020407
        %v5577 = vmul.f32 %v5189, 0.0051020407
        %v5578 = vmul.f32 %v5194, 0.0051020407
        %v5579 = vmul.f32 %v5199, 0.0051020407
        %v5580 = vmul.f32 %v5204, 0.0051020407
        %v5581 = vmul.f32 %v5209, 0.0051020407
        %v5582 = vmul.f32 %v5214, 0.0051020407
        %v5583 = vmul.f32 %v5219, 0.0051020407
        %v5584 = vmul.f32 %v5224, 0.0051020407
        %v5585 = vmul.f32 %v5229, 0.0051020407
        %v5586 = vmul.f32 %v5234, 0.0051020407
        %v5587 = vmul.f32 %v5239, 0.0051020407
        %v5588 = vmul.f32 %v5244, 0.0051020407
        %v5589 = vmul.f32 %v5249, 0.0051020407
        %v5590 = vmul.f32 %v5254, 0.0051020407
        %v5591 = vmul.f32 %v5259, 0.0051020407
        %v5592 = vmul.f32 %v5264, 0.0051020407
        %v5593 = vmul.f32 %v5269, 0.0051020407
        %v5594 = vmul.f32 %v5274, 0.0051020407
        %v5595 = vmul.f32 %v5279, 0.0051020407
        %v5596 = vmul.f32 %v5284, 0.0051020407
        %v5597 = vmul.f32 %v5289, 0.0051020407
        %v5598 = vmul.f32 %v5294, 0.0051020407
        %v5599 = vmul.f32 %v5299, 0.0051020407
        %v5600 = vmul.f32 %v5304, 0.0051020407
        %v5601 = vmul.f32 %v5309, 0.0051020407
        %v5602 = vmul.f32 %v5314, 0.0051020407
        %v5603 = vmul.f32 %v5319, 0.0051020407
        %v5604 = vmul.f32 %v5324, 0.0051020407
        %v5605 = vmul.f32 %v5329, 0.0051020407
        %v5606 = vmul.f32 %v5334, 0.0051020407
        %v5607 = vmul.f32 %v5339, 0.0051020407
        %v5608 = vmul.f32 %v5344, 0.0051020407
        %v5609 = vmul.f32 %v5349, 0.0051020407
        %v5610 = vmul.f32 %v5354, 0.0051020407
        %v5611 = vmul.f32 %v5359, 0.0051020407
        %v5612 = vmul.f32 %v5364, 0.0051020407
        %v5613 = vmul.f32 %v5369, 0.0051020407
        %v5614 = vmul.f32 %v5374, 0.0051020407
        %v5615 = vmul.f32 %v5379, 0.0051020407
        %v5616 = vmul.f32 %v5384, 0.0051020407
        %v5617 = vmul.f32 %v5389, 0.0051020407
        %v5618 = vmul.f32 %v5394, 0.0051020407
        %v5619 = vmul.f32 %v5399, 0.0051020407
        %v5620 = vmul.f32 %v5404, 0.0051020407
        %v5621 = vmul.f32 %v5409, 0.0051020407
        %v5622 = vmul.f32 %v5414, 0.0051020407
        %v5623 = vmul.f32 %v5419, 0.0051020407
        %v5624 = vmul.f32 %v5424, 0.0051020407
        %v5625 = vmul.f32 %v5429, 0.0051020407
        %v5626 = vmul.f32 %v5434, 0.0051020407
        %v5627 = vmul.f32 %v5439, 0.0051020407
        %v5628 = vmul.f32 %v5444, 0.0051020407
        %v5629 = vld [vmem:[%s204] sm:$0xff]
        %v5630 = vld [vmem:[%s204 + $0x8] sm:$0xff]
        %v5631 = vld [vmem:[%s204 + $0x10] sm:$0xff]
        %v5632 = vld [vmem:[%s204 + $0x18] sm:$0xff]
        %v5633 = vld [vmem:[%s204 + $0x20] sm:$0xff]
        %v5634 = vld [vmem:[%s204 + $0x28] sm:$0xff]
        %v5635 = vld [vmem:[%s204 + $0x30] sm:$0xff]
        %v5636 = vld [vmem:[%s204 + $0x38] sm:$0xff]
        %v5637 = vld [vmem:[%s204 + $0x40] sm:$0xff]
        %v5638 = vld [vmem:[%s204 + $0x48] sm:$0xff]
        %v5639 = vld [vmem:[%s204 + $0x50] sm:$0xff]
        %v5640 = vld [vmem:[%s204 + $0x58] sm:$0xff]
        %v5641 = vld [vmem:[%s204 + $0x60] sm:$0xff]
        %v5642 = vld [vmem:[%s204 + $0x68] sm:$0xff]
        %v5643 = vld [vmem:[%s204 + $0x70] sm:$0xff]
        %v5644 = vld [vmem:[%s204 + $0x78] sm:$0xff]
        %v5645 = vld [vmem:[%s204 + $0x80] sm:$0xff]
        %v5646 = vld [vmem:[%s204 + $0x88] sm:$0xff]
        %v5647 = vld [vmem:[%s204 + $0x90] sm:$0xff]
        %v5648 = vld [vmem:[%s204 + $0x98] sm:$0xff]
        %v5649 = vld [vmem:[%s204 + $0xa0] sm:$0xff]
        %v5650 = vld [vmem:[%s204 + $0xa8] sm:$0xff]
        %v5651 = vld [vmem:[%s204 + $0xb0] sm:$0xff]
        %v5652 = vld [vmem:[%s204 + $0xb8] sm:$0xff]
        %v5653 = vld [vmem:[%s204 + $0xc0] sm:$0xff]
        %v5654 = vld [vmem:[%s204 + $0xc8] sm:$0xff]
        %v5655 = vld [vmem:[%s204 + $0xd0] sm:$0xff]
        %v5656 = vld [vmem:[%s204 + $0xd8] sm:$0xff]
        %v5657 = vld [vmem:[%s204 + $0xe0] sm:$0xff]
        %v5658 = vld [vmem:[%s204 + $0xe8] sm:$0xff]
        %v5659 = vld [vmem:[%s204 + $0xf0] sm:$0xff]
        %v5660 = vld [vmem:[%s204 + $0xf8] sm:$0xff]
        %v5661 = vld [vmem:[%s204 + $0x100] sm:$0xff]
        %v5662 = vld [vmem:[%s204 + $0x108] sm:$0xff]
        %v5663 = vld [vmem:[%s204 + $0x110] sm:$0xff]
        %v5664 = vld [vmem:[%s204 + $0x118] sm:$0xff]
        %v5665 = vld [vmem:[%s204 + $0x120] sm:$0xff]
        %v5666 = vld [vmem:[%s204 + $0x128] sm:$0xff]
        %v5667 = vld [vmem:[%s204 + $0x130] sm:$0xff]
        %v5668 = vld [vmem:[%s204 + $0x138] sm:$0xff]
        %v5669 = vld [vmem:[%s204 + $0x140] sm:$0xff]
        %v5670 = vld [vmem:[%s204 + $0x148] sm:$0xff]
        %v5671 = vld [vmem:[%s204 + $0x150] sm:$0xff]
        %v5672 = vld [vmem:[%s204 + $0x158] sm:$0xff]
        %v5673 = vld [vmem:[%s204 + $0x160] sm:$0xff]
        %v5674 = vld [vmem:[%s204 + $0x168] sm:$0xff]
        %v5675 = vld [vmem:[%s204 + $0x170] sm:$0xff]
        %v5676 = vld [vmem:[%s204 + $0x178] sm:$0xff]
        %v5677 = vld [vmem:[%s204 + $0x180] sm:$0xff]
        %v5678 = vld [vmem:[%s204 + $0x188] sm:$0xff]
        %v5679 = vld [vmem:[%s204 + $0x190] sm:$0xff]
        %v5680 = vld [vmem:[%s204 + $0x198] sm:$0xff]
        %v5681 = vld [vmem:[%s204 + $0x1a0] sm:$0xff]
        %v5682 = vld [vmem:[%s204 + $0x1a8] sm:$0xff]
        %v5683 = vld [vmem:[%s204 + $0x1b0] sm:$0xff]
        %v5684 = vld [vmem:[%s204 + $0x1b8] sm:$0xff]
        %v5685 = vld [vmem:[%s204 + $0x1c0] sm:$0xff]
        %v5686 = vld [vmem:[%s204 + $0x1c8] sm:$0xff]
        %v5687 = vld [vmem:[%s204 + $0x1d0] sm:$0xff]
        %v5688 = vld [vmem:[%s204 + $0x1d8] sm:$0xff]
        %v5689 = vld [vmem:[%s204 + $0x1e0] sm:$0xff]
        %v5690 = vld [vmem:[%s204 + $0x1e8] sm:$0xff]
        %v5691 = vld [vmem:[%s204 + $0x1f0] sm:$0xff]
        %v5692 = vld [vmem:[%s204 + $0x1f8] sm:$0xff]
        %v5693 = vld [vmem:[%s204 + $0x200] sm:$0xff]
        %v5694 = vld [vmem:[%s204 + $0x208] sm:$0xff]
        %v5695 = vld [vmem:[%s204 + $0x210] sm:$0xff]
        %v5696 = vld [vmem:[%s204 + $0x218] sm:$0xff]
        %v5697 = vld [vmem:[%s204 + $0x220] sm:$0xff]
        %v5698 = vld [vmem:[%s204 + $0x228] sm:$0xff]
        %v5699 = vld [vmem:[%s204 + $0x230] sm:$0xff]
        %v5700 = vld [vmem:[%s204 + $0x238] sm:$0xff]
        %v5701 = vld [vmem:[%s204 + $0x240] sm:$0xff]
        %v5702 = vld [vmem:[%s204 + $0x248] sm:$0xff]
        %v5703 = vld [vmem:[%s204 + $0x250] sm:$0xff]
        %v5704 = vld [vmem:[%s204 + $0x258] sm:$0xff]
        %v5705 = vld [vmem:[%s204 + $0x260] sm:$0xff]
        %v5706 = vld [vmem:[%s204 + $0x268] sm:$0xff]
        %v5707 = vld [vmem:[%s204 + $0x270] sm:$0xff]
        %v5708 = vld [vmem:[%s204 + $0x278] sm:$0xff]
        %v5709 = vld [vmem:[%s204 + $0x280] sm:$0xff]
        %v5710 = vld [vmem:[%s204 + $0x288] sm:$0xff]
        %v5711 = vld [vmem:[%s204 + $0x290] sm:$0xff]
        %v5712 = vld [vmem:[%s204 + $0x298] sm:$0xff]
        %v5713 = vld [vmem:[%s204 + $0x2a0] sm:$0xff]
        %v5714 = vld [vmem:[%s204 + $0x2a8] sm:$0xff]
        %v5715 = vld [vmem:[%s204 + $0x2b0] sm:$0xff]
        %v5716 = vld [vmem:[%s204 + $0x2b8] sm:$0xff]
        %v5717 = vld [vmem:[%s204 + $0x2c0] sm:$0xff]
        %v5718 = vld [vmem:[%s204 + $0x2c8] sm:$0xff]
        %v5719 = vld [vmem:[%s204 + $0x2d0] sm:$0xff]
        %v5720 = vld [vmem:[%s204 + $0x2d8] sm:$0xff]
        %v5721 = vld [vmem:[%s204 + $0x2e0] sm:$0xff]
        %v5722 = vld [vmem:[%s204 + $0x2e8] sm:$0xff]
        %v5723 = vld [vmem:[%s204 + $0x2f0] sm:$0xff]
        %v5724 = vld [vmem:[%s204 + $0x2f8] sm:$0xff]
        %v5725 = vld [vmem:[%s204 + $0x300] sm:$0xff]
        %v5726 = vld [vmem:[%s204 + $0x308] sm:$0xff]
        %v5727 = vld [vmem:[%s204 + $0x310] sm:$0xff]
        %v5728 = vld [vmem:[%s204 + $0x318] sm:$0xff]
        %v5729 = vld [vmem:[%s204 + $0x320] sm:$0xff]
        %v5730 = vld [vmem:[%s204 + $0x328] sm:$0xff]
        %v5731 = vld [vmem:[%s204 + $0x330] sm:$0xff]
        %v5732 = vld [vmem:[%s204 + $0x338] sm:$0xff]
        %v5733 = vld [vmem:[%s204 + $0x340] sm:$0xff]
        %v5734 = vld [vmem:[%s204 + $0x348] sm:$0xff]
        %v5735 = vld [vmem:[%s204 + $0x350] sm:$0xff]
        %v5736 = vld [vmem:[%s204 + $0x358] sm:$0xff]
        %v5737 = vld [vmem:[%s204 + $0x360] sm:$0xff]
        %v5738 = vld [vmem:[%s204 + $0x368] sm:$0xff]
        %v5739 = vld [vmem:[%s204 + $0x370] sm:$0xff]
        %v5740 = vld [vmem:[%s204 + $0x378] sm:$0xff]
        %v5741 = vld [vmem:[%s204 + $0x380] sm:$0xff]
        %v5742 = vld [vmem:[%s204 + $0x388] sm:$0xff]
        %v5743 = vld [vmem:[%s204 + $0x390] sm:$0xff]
        %v5744 = vld [vmem:[%s204 + $0x398] sm:$0xff]
        %v5745 = vld [vmem:[%s204 + $0x3a0] sm:$0xff]
        %v5746 = vld [vmem:[%s204 + $0x3a8] sm:$0xff]
        %v5747 = vld [vmem:[%s204 + $0x3b0] sm:$0xff]
        %v5748 = vld [vmem:[%s204 + $0x3b8] sm:$0xff]
        %v5749 = vld [vmem:[%s204 + $0x3c0] sm:$0xff]
        %v5750 = vld [vmem:[%s204 + $0x3c8] sm:$0xff]
        %v5751 = vld [vmem:[%s204 + $0x3d0] sm:$0xff]
        %v5752 = vld [vmem:[%s204 + $0x3d8] sm:$0xff]
        %v5753 = vld [vmem:[%s204 + $0x3e0] sm:$0xff]
        %v5754 = vld [vmem:[%s204 + $0x3e8] sm:$0xff]
        %v5755 = vld [vmem:[%s204 + $0x3f0] sm:$0xff]
        %v5756 = vld [vmem:[%s204 + $0x3f8] sm:$0xff]
        %v5757 = vld [vmem:[%s204 + $0x400] sm:$0xff]
        %v5758 = vld [vmem:[%s204 + $0x408] sm:$0xff]
        %v5759 = vld [vmem:[%s204 + $0x410] sm:$0xff]
        %v5760 = vld [vmem:[%s204 + $0x418] sm:$0xff]
        %v5761 = vld [vmem:[%s204 + $0x420] sm:$0xff]
        %v5762 = vld [vmem:[%s204 + $0x428] sm:$0xff]
        %v5763 = vld [vmem:[%s204 + $0x430] sm:$0xff]
        %v5764 = vld [vmem:[%s204 + $0x438] sm:$0xff]
        %v5765 = vld [vmem:[%s204 + $0x440] sm:$0xff]
        %v5766 = vld [vmem:[%s204 + $0x448] sm:$0xff]
        %v5767 = vld [vmem:[%s204 + $0x450] sm:$0xff]
        %v5768 = vld [vmem:[%s204 + $0x458] sm:$0xff]
        %v5769 = vld [vmem:[%s204 + $0x460] sm:$0xff]
        %v5770 = vld [vmem:[%s204 + $0x468] sm:$0xff]
        %v5771 = vld [vmem:[%s204 + $0x470] sm:$0xff]
        %v5772 = vld [vmem:[%s204 + $0x478] sm:$0xff]
        %v5773 = vld [vmem:[%s204 + $0x480] sm:$0xff]
        %v5774 = vld [vmem:[%s204 + $0x488] sm:$0xff]
        %v5775 = vld [vmem:[%s204 + $0x490] sm:$0xff]
        %v5776 = vld [vmem:[%s204 + $0x498] sm:$0xff]
        %v5777 = vld [vmem:[%s204 + $0x4a0] sm:$0xff]
        %v5778 = vld [vmem:[%s204 + $0x4a8] sm:$0xff]
        %v5779 = vld [vmem:[%s204 + $0x4b0] sm:$0xff]
        %v5780 = vld [vmem:[%s204 + $0x4b8] sm:$0xff]
        %v5781 = vld [vmem:[%s204 + $0x4c0] sm:$0xff]
        %v5782 = vld [vmem:[%s204 + $0x4c8] sm:$0xff]
        %v5783 = vld [vmem:[%s204 + $0x4d0] sm:$0xff]
        %v5784 = vld [vmem:[%s204 + $0x4d8] sm:$0xff]
        %v5785 = vld [vmem:[%s204 + $0x4e0] sm:$0xff]
        %v5786 = vld [vmem:[%s204 + $0x4e8] sm:$0xff]
        %v5787 = vld [vmem:[%s204 + $0x4f0] sm:$0xff]
        %v5788 = vld [vmem:[%s204 + $0x4f8] sm:$0xff]
        %v5789 = vld [vmem:[%s204 + $0x500] sm:$0xff]
        %v5790 = vld [vmem:[%s204 + $0x508] sm:$0xff]
        %v5791 = vld [vmem:[%s204 + $0x510] sm:$0xff]
        %v5792 = vld [vmem:[%s204 + $0x518] sm:$0xff]
        %v5793 = vld [vmem:[%s204 + $0x520] sm:$0xff]
        %v5794 = vld [vmem:[%s204 + $0x528] sm:$0xff]
        %v5795 = vld [vmem:[%s204 + $0x530] sm:$0xff]
        %v5796 = vld [vmem:[%s204 + $0x538] sm:$0xff]
        %v5797 = vld [vmem:[%s204 + $0x540] sm:$0xff]
        %v5798 = vld [vmem:[%s204 + $0x548] sm:$0xff]
        %v5799 = vld [vmem:[%s204 + $0x550] sm:$0xff]
        %v5800 = vld [vmem:[%s204 + $0x558] sm:$0xff]
        %v5801 = vld [vmem:[%s204 + $0x560] sm:$0xff]
        %v5802 = vld [vmem:[%s204 + $0x568] sm:$0xff]
        %v5803 = vld [vmem:[%s204 + $0x570] sm:$0xff]
        %v5804 = vld [vmem:[%s204 + $0x578] sm:$0xff]
        %v5805 = vld [vmem:[%s204 + $0x580] sm:$0xff]
        %v5806 = vld [vmem:[%s204 + $0x588] sm:$0xff]
        %v5807 = vld [vmem:[%s204 + $0x590] sm:$0xff]
        %v5808 = vld [vmem:[%s204 + $0x598] sm:$0xff]
        %v5809 = vld [vmem:[%s204 + $0x5a0] sm:$0xff]
        %v5810 = vld [vmem:[%s204 + $0x5a8] sm:$0xff]
        %v5811 = vadd.f32 %v5447, 1e-05
        %v5812 = vadd.f32 %v5448, 1e-05
        %v5813 = vadd.f32 %v5449, 1e-05
        %v5814 = vadd.f32 %v5450, 1e-05
        %v5815 = vadd.f32 %v5451, 1e-05
        %v5816 = vadd.f32 %v5452, 1e-05
        %v5817 = vadd.f32 %v5453, 1e-05
        %v5818 = vadd.f32 %v5454, 1e-05
        %v5819 = vadd.f32 %v5455, 1e-05
        %v5820 = vadd.f32 %v5456, 1e-05
        %v5821 = vadd.f32 %v5457, 1e-05
        %v5822 = vadd.f32 %v5458, 1e-05
        %v5823 = vadd.f32 %v5459, 1e-05
        %v5824 = vadd.f32 %v5460, 1e-05
        %v5825 = vadd.f32 %v5461, 1e-05
        %v5826 = vadd.f32 %v5462, 1e-05
        %v5827 = vadd.f32 %v5463, 1e-05
        %v5828 = vadd.f32 %v5464, 1e-05
        %v5829 = vadd.f32 %v5465, 1e-05
        %v5830 = vadd.f32 %v5466, 1e-05
        %v5831 = vadd.f32 %v5467, 1e-05
        %v5832 = vadd.f32 %v5468, 1e-05
        %v5833 = vadd.f32 %v5469, 1e-05
        %v5834 = vadd.f32 %v5470, 1e-05
        %v5835 = vadd.f32 %v5471, 1e-05
        %v5836 = vadd.f32 %v5472, 1e-05
        %v5837 = vadd.f32 %v5473, 1e-05
        %v5838 = vadd.f32 %v5474, 1e-05
        %v5839 = vadd.f32 %v5475, 1e-05
        %v5840 = vadd.f32 %v5476, 1e-05
        %v5841 = vadd.f32 %v5477, 1e-05
        %v5842 = vadd.f32 %v5478, 1e-05
        %v5843 = vadd.f32 %v5479, 1e-05
        %v5844 = vadd.f32 %v5480, 1e-05
        %v5845 = vadd.f32 %v5481, 1e-05
        %v5846 = vadd.f32 %v5482, 1e-05
        %v5847 = vadd.f32 %v5483, 1e-05
        %v5848 = vadd.f32 %v5484, 1e-05
        %v5849 = vadd.f32 %v5485, 1e-05
        %v5850 = vadd.f32 %v5486, 1e-05
        %v5851 = vadd.f32 %v5487, 1e-05
        %v5852 = vadd.f32 %v5488, 1e-05
        %v5853 = vadd.f32 %v5489, 1e-05
        %v5854 = vadd.f32 %v5490, 1e-05
        %v5855 = vadd.f32 %v5491, 1e-05
        %v5856 = vadd.f32 %v5492, 1e-05
        %v5857 = vadd.f32 %v5493, 1e-05
        %v5858 = vadd.f32 %v5494, 1e-05
        %v5859 = vadd.f32 %v5495, 1e-05
        %v5860 = vadd.f32 %v5496, 1e-05
        %v5861 = vadd.f32 %v5497, 1e-05
        %v5862 = vadd.f32 %v5498, 1e-05
        %v5863 = vadd.f32 %v5499, 1e-05
        %v5864 = vadd.f32 %v5500, 1e-05
        %v5865 = vadd.f32 %v5501, 1e-05
        %v5866 = vadd.f32 %v5502, 1e-05
        %v5867 = vadd.f32 %v5503, 1e-05
        %v5868 = vadd.f32 %v5504, 1e-05
        %v5869 = vadd.f32 %v5505, 1e-05
        %v5870 = vadd.f32 %v5506, 1e-05
        %v5871 = vadd.f32 %v5507, 1e-05
        %v5872 = vadd.f32 %v5508, 1e-05
        %v5873 = vadd.f32 %v5509, 1e-05
        %v5874 = vadd.f32 %v5510, 1e-05
        %v5875 = vadd.f32 %v5511, 1e-05
        %v5876 = vadd.f32 %v5512, 1e-05
        %v5877 = vadd.f32 %v5513, 1e-05
        %v5878 = vadd.f32 %v5514, 1e-05
        %v5879 = vadd.f32 %v5515, 1e-05
        %v5880 = vadd.f32 %v5516, 1e-05
        %v5881 = vadd.f32 %v5517, 1e-05
        %v5882 = vadd.f32 %v5518, 1e-05
        %v5883 = vadd.f32 %v5519, 1e-05
        %v5884 = vadd.f32 %v5520, 1e-05
        %v5885 = vadd.f32 %v5521, 1e-05
        %v5886 = vadd.f32 %v5522, 1e-05
        %v5887 = vadd.f32 %v5523, 1e-05
        %v5888 = vadd.f32 %v5524, 1e-05
        %v5889 = vadd.f32 %v5525, 1e-05
        %v5890 = vadd.f32 %v5526, 1e-05
        %v5891 = vadd.f32 %v5527, 1e-05
        %v5892 = vadd.f32 %v5528, 1e-05
        %v5893 = vadd.f32 %v5529, 1e-05
        %v5894 = vadd.f32 %v5530, 1e-05
        %v5895 = vadd.f32 %v5531, 1e-05
        %v5896 = vadd.f32 %v5532, 1e-05
        %v5897 = vadd.f32 %v5533, 1e-05
        %v5898 = vadd.f32 %v5534, 1e-05
        %v5899 = vadd.f32 %v5535, 1e-05
        %v5900 = vadd.f32 %v5536, 1e-05
        %v5901 = vadd.f32 %v5537, 1e-05
        %v5902 = vadd.f32 %v5538, 1e-05
        %v5903 = vadd.f32 %v5539, 1e-05
        %v5904 = vadd.f32 %v5540, 1e-05
        %v5905 = vadd.f32 %v5541, 1e-05
        %v5906 = vadd.f32 %v5542, 1e-05
        %v5907 = vadd.f32 %v5543, 1e-05
        %v5908 = vadd.f32 %v5544, 1e-05
        %v5909 = vadd.f32 %v5545, 1e-05
        %v5910 = vadd.f32 %v5546, 1e-05
        %v5911 = vadd.f32 %v5547, 1e-05
        %v5912 = vadd.f32 %v5548, 1e-05
        %v5913 = vadd.f32 %v5549, 1e-05
        %v5914 = vadd.f32 %v5550, 1e-05
        %v5915 = vadd.f32 %v5551, 1e-05
        %v5916 = vadd.f32 %v5552, 1e-05
        %v5917 = vadd.f32 %v5553, 1e-05
        %v5918 = vadd.f32 %v5554, 1e-05
        %v5919 = vadd.f32 %v5555, 1e-05
        %v5920 = vadd.f32 %v5556, 1e-05
        %v5921 = vadd.f32 %v5557, 1e-05
        %v5922 = vadd.f32 %v5558, 1e-05
        %v5923 = vadd.f32 %v5559, 1e-05
        %v5924 = vadd.f32 %v5560, 1e-05
        %v5925 = vadd.f32 %v5561, 1e-05
        %v5926 = vadd.f32 %v5562, 1e-05
        %v5927 = vadd.f32 %v5563, 1e-05
        %v5928 = vadd.f32 %v5564, 1e-05
        %v5929 = vadd.f32 %v5565, 1e-05
        %v5930 = vadd.f32 %v5566, 1e-05
        %v5931 = vadd.f32 %v5567, 1e-05
        %v5932 = vadd.f32 %v5568, 1e-05
        %v5933 = vadd.f32 %v5569, 1e-05
        %v5934 = vadd.f32 %v5570, 1e-05
        %v5935 = vadd.f32 %v5571, 1e-05
        %v5936 = vadd.f32 %v5572, 1e-05
        %v5937 = vadd.f32 %v5573, 1e-05
        %v5938 = vadd.f32 %v5574, 1e-05
        %v5939 = vadd.f32 %v5575, 1e-05
        %v5940 = vadd.f32 %v5576, 1e-05
        %v5941 = vadd.f32 %v5577, 1e-05
        %v5942 = vadd.f32 %v5578, 1e-05
        %v5943 = vadd.f32 %v5579, 1e-05
        %v5944 = vadd.f32 %v5580, 1e-05
        %v5945 = vadd.f32 %v5581, 1e-05
        %v5946 = vadd.f32 %v5582, 1e-05
        %v5947 = vadd.f32 %v5583, 1e-05
        %v5948 = vadd.f32 %v5584, 1e-05
        %v5949 = vadd.f32 %v5585, 1e-05
        %v5950 = vadd.f32 %v5586, 1e-05
        %v5951 = vadd.f32 %v5587, 1e-05
        %v5952 = vadd.f32 %v5588, 1e-05
        %v5953 = vadd.f32 %v5589, 1e-05
        %v5954 = vadd.f32 %v5590, 1e-05
        %v5955 = vadd.f32 %v5591, 1e-05
        %v5956 = vadd.f32 %v5592, 1e-05
        %v5957 = vadd.f32 %v5593, 1e-05
        %v5958 = vadd.f32 %v5594, 1e-05
        %v5959 = vadd.f32 %v5595, 1e-05
        %v5960 = vadd.f32 %v5596, 1e-05
        %v5961 = vadd.f32 %v5597, 1e-05
        %v5962 = vadd.f32 %v5598, 1e-05
        %v5963 = vadd.f32 %v5599, 1e-05
        %v5964 = vadd.f32 %v5600, 1e-05
        %v5965 = vadd.f32 %v5601, 1e-05
        %v5966 = vadd.f32 %v5602, 1e-05
        %v5967 = vadd.f32 %v5603, 1e-05
        %v5968 = vadd.f32 %v5604, 1e-05
        %v5969 = vadd.f32 %v5605, 1e-05
        %v5970 = vadd.f32 %v5606, 1e-05
        %v5971 = vadd.f32 %v5607, 1e-05
        %v5972 = vadd.f32 %v5608, 1e-05
        %v5973 = vadd.f32 %v5609, 1e-05
        %v5974 = vadd.f32 %v5610, 1e-05
        %v5975 = vadd.f32 %v5611, 1e-05
        %v5976 = vadd.f32 %v5612, 1e-05
        %v5977 = vadd.f32 %v5613, 1e-05
        %v5978 = vadd.f32 %v5614, 1e-05
        %v5979 = vadd.f32 %v5615, 1e-05
        %v5980 = vadd.f32 %v5616, 1e-05
        %v5981 = vadd.f32 %v5617, 1e-05
        %v5982 = vadd.f32 %v5618, 1e-05
        %v5983 = vadd.f32 %v5619, 1e-05
        %v5984 = vadd.f32 %v5620, 1e-05
        %v5985 = vadd.f32 %v5621, 1e-05
        %v5986 = vadd.f32 %v5622, 1e-05
        %v5987 = vadd.f32 %v5623, 1e-05
        %v5988 = vadd.f32 %v5624, 1e-05
        %v5989 = vadd.f32 %v5625, 1e-05
        %v5990 = vadd.f32 %v5626, 1e-05
        %v5991 = vadd.f32 %v5627, 1e-05
        %v5992 = vadd.f32 %v5628, 1e-05
        %v5993 = vrsqrt.pop %v5811
        %v5994 = vrsqrt.pop %v5812
        %v5995 = vrsqrt.pop %v5813
        %v5996 = vrsqrt.pop %v5814
        %v5997 = vrsqrt.pop %v5815
        %v5998 = vrsqrt.pop %v5816
        %v5999 = vrsqrt.pop %v5817
        %v6000 = vrsqrt.pop %v5818
        %v6001 = vrsqrt.pop %v5819
        %v6002 = vrsqrt.pop %v5820
        %v6003 = vrsqrt.pop %v5821
        %v6004 = vrsqrt.pop %v5822
        %v6005 = vrsqrt.pop %v5823
        %v6006 = vrsqrt.pop %v5824
        %v6007 = vrsqrt.pop %v5825
        %v6008 = vrsqrt.pop %v5826
        %v6009 = vrsqrt.pop %v5827
        %v6010 = vrsqrt.pop %v5828
        %v6011 = vrsqrt.pop %v5829
        %v6012 = vrsqrt.pop %v5830
        %v6013 = vrsqrt.pop %v5831
        %v6014 = vrsqrt.pop %v5832
        %v6015 = vrsqrt.pop %v5833
        %v6016 = vrsqrt.pop %v5834
        %v6017 = vrsqrt.pop %v5835
        %v6018 = vrsqrt.pop %v5836
        %v6019 = vrsqrt.pop %v5837
        %v6020 = vrsqrt.pop %v5838
        %v6021 = vrsqrt.pop %v5839
        %v6022 = vrsqrt.pop %v5840
        %v6023 = vrsqrt.pop %v5841
        %v6024 = vrsqrt.pop %v5842
        %v6025 = vrsqrt.pop %v5843
        %v6026 = vrsqrt.pop %v5844
        %v6027 = vrsqrt.pop %v5845
        %v6028 = vrsqrt.pop %v5846
        %v6029 = vrsqrt.pop %v5847
        %v6030 = vrsqrt.pop %v5848
        %v6031 = vrsqrt.pop %v5849
        %v6032 = vrsqrt.pop %v5850
        %v6033 = vrsqrt.pop %v5851
        %v6034 = vrsqrt.pop %v5852
        %v6035 = vrsqrt.pop %v5853
        %v6036 = vrsqrt.pop %v5854
        %v6037 = vrsqrt.pop %v5855
        %v6038 = vrsqrt.pop %v5856
        %v6039 = vrsqrt.pop %v5857
        %v6040 = vrsqrt.pop %v5858
        %v6041 = vrsqrt.pop %v5859
        %v6042 = vrsqrt.pop %v5860
        %v6043 = vrsqrt.pop %v5861
        %v6044 = vrsqrt.pop %v5862
        %v6045 = vrsqrt.pop %v5863
        %v6046 = vrsqrt.pop %v5864
        %v6047 = vrsqrt.pop %v5865
        %v6048 = vrsqrt.pop %v5866
        %v6049 = vrsqrt.pop %v5867
        %v6050 = vrsqrt.pop %v5868
        %v6051 = vrsqrt.pop %v5869
        %v6052 = vrsqrt.pop %v5870
        %v6053 = vrsqrt.pop %v5871
        %v6054 = vrsqrt.pop %v5872
        %v6055 = vrsqrt.pop %v5873
        %v6056 = vrsqrt.pop %v5874
        %v6057 = vrsqrt.pop %v5875
        %v6058 = vrsqrt.pop %v5876
        %v6059 = vrsqrt.pop %v5877
        %v6060 = vrsqrt.pop %v5878
        %v6061 = vrsqrt.pop %v5879
        %v6062 = vrsqrt.pop %v5880
        %v6063 = vrsqrt.pop %v5881
        %v6064 = vrsqrt.pop %v5882
        %v6065 = vrsqrt.pop %v5883
        %v6066 = vrsqrt.pop %v5884
        %v6067 = vrsqrt.pop %v5885
        %v6068 = vrsqrt.pop %v5886
        %v6069 = vrsqrt.pop %v5887
        %v6070 = vrsqrt.pop %v5888
        %v6071 = vrsqrt.pop %v5889
        %v6072 = vrsqrt.pop %v5890
        %v6073 = vrsqrt.pop %v5891
        %v6074 = vrsqrt.pop %v5892
        %v6075 = vrsqrt.pop %v5893
        %v6076 = vrsqrt.pop %v5894
        %v6077 = vrsqrt.pop %v5895
        %v6078 = vrsqrt.pop %v5896
        %v6079 = vrsqrt.pop %v5897
        %v6080 = vrsqrt.pop %v5898
        %v6081 = vrsqrt.pop %v5899
        %v6082 = vrsqrt.pop %v5900
        %v6083 = vrsqrt.pop %v5901
        %v6084 = vrsqrt.pop %v5902
        %v6085 = vrsqrt.pop %v5903
        %v6086 = vrsqrt.pop %v5904
        %v6087 = vrsqrt.pop %v5905
        %v6088 = vrsqrt.pop %v5906
        %v6089 = vrsqrt.pop %v5907
        %v6090 = vrsqrt.pop %v5908
        %v6091 = vrsqrt.pop %v5909
        %v6092 = vrsqrt.pop %v5910
        %v6093 = vrsqrt.pop %v5911
        %v6094 = vrsqrt.pop %v5912
        %v6095 = vrsqrt.pop %v5913
        %v6096 = vrsqrt.pop %v5914
        %v6097 = vrsqrt.pop %v5915
        %v6098 = vrsqrt.pop %v5916
        %v6099 = vrsqrt.pop %v5917
        %v6100 = vrsqrt.pop %v5918
        %v6101 = vrsqrt.pop %v5919
        %v6102 = vrsqrt.pop %v5920
        %v6103 = vrsqrt.pop %v5921
        %v6104 = vrsqrt.pop %v5922
        %v6105 = vrsqrt.pop %v5923
        %v6106 = vrsqrt.pop %v5924
        %v6107 = vrsqrt.pop %v5925
        %v6108 = vrsqrt.pop %v5926
        %v6109 = vrsqrt.pop %v5927
        %v6110 = vrsqrt.pop %v5928
        %v6111 = vrsqrt.pop %v5929
        %v6112 = vrsqrt.pop %v5930
        %v6113 = vrsqrt.pop %v5931
        %v6114 = vrsqrt.pop %v5932
        %v6115 = vrsqrt.pop %v5933
        %v6116 = vrsqrt.pop %v5934
        %v6117 = vrsqrt.pop %v5935
        %v6118 = vrsqrt.pop %v5936
        %v6119 = vrsqrt.pop %v5937
        %v6120 = vrsqrt.pop %v5938
        %v6121 = vrsqrt.pop %v5939
        %v6122 = vrsqrt.pop %v5940
        %v6123 = vrsqrt.pop %v5941
        %v6124 = vrsqrt.pop %v5942
        %v6125 = vrsqrt.pop %v5943
        %v6126 = vrsqrt.pop %v5944
        %v6127 = vrsqrt.pop %v5945
        %v6128 = vrsqrt.pop %v5946
        %v6129 = vrsqrt.pop %v5947
        %v6130 = vrsqrt.pop %v5948
        %v6131 = vrsqrt.pop %v5949
        %v6132 = vrsqrt.pop %v5950
        %v6133 = vrsqrt.pop %v5951
        %v6134 = vrsqrt.pop %v5952
        %v6135 = vrsqrt.pop %v5953
        %v6136 = vrsqrt.pop %v5954
        %v6137 = vrsqrt.pop %v5955
        %v6138 = vrsqrt.pop %v5956
        %v6139 = vrsqrt.pop %v5957
        %v6140 = vrsqrt.pop %v5958
        %v6141 = vrsqrt.pop %v5959
        %v6142 = vrsqrt.pop %v5960
        %v6143 = vrsqrt.pop %v5961
        %v6144 = vrsqrt.pop %v5962
        %v6145 = vrsqrt.pop %v5963
        %v6146 = vrsqrt.pop %v5964
        %v6147 = vrsqrt.pop %v5965
        %v6148 = vrsqrt.pop %v5966
        %v6149 = vrsqrt.pop %v5967
        %v6150 = vrsqrt.pop %v5968
        %v6151 = vrsqrt.pop %v5969
        %v6152 = vrsqrt.pop %v5970
        %v6153 = vrsqrt.pop %v5971
        %v6154 = vrsqrt.pop %v5972
        %v6155 = vrsqrt.pop %v5973
        %v6156 = vrsqrt.pop %v5974
        %v6157 = vrsqrt.pop %v5975
        %v6158 = vrsqrt.pop %v5976
        %v6159 = vrsqrt.pop %v5977
        %v6160 = vrsqrt.pop %v5978
        %v6161 = vrsqrt.pop %v5979
        %v6162 = vrsqrt.pop %v5980
        %v6163 = vrsqrt.pop %v5981
        %v6164 = vrsqrt.pop %v5982
        %v6165 = vrsqrt.pop %v5983
        %v6166 = vrsqrt.pop %v5984
        %v6167 = vrsqrt.pop %v5985
        %v6168 = vrsqrt.pop %v5986
        %v6169 = vrsqrt.pop %v5987
        %v6170 = vrsqrt.pop %v5988
        %v6171 = vrsqrt.pop %v5989
        %v6172 = vrsqrt.pop %v5990
        %v6173 = vrsqrt.pop %v5991
        %v6174 = vrsqrt.pop %v5992
        %v6175 = vmul.f32 %v5629, %v5993
        %v6176 = vmul.f32 %v5630, %v5994
        %v6177 = vmul.f32 %v5631, %v5995
        %v6178 = vmul.f32 %v5632, %v5996
        %v6179 = vmul.f32 %v5633, %v5997
        %v6180 = vmul.f32 %v5634, %v5998
        %v6181 = vmul.f32 %v5635, %v5999
        %v6182 = vmul.f32 %v5636, %v6000
        %v6183 = vmul.f32 %v5637, %v6001
        %v6184 = vmul.f32 %v5638, %v6002
        %v6185 = vmul.f32 %v5639, %v6003
        %v6186 = vmul.f32 %v5640, %v6004
        %v6187 = vmul.f32 %v5641, %v6005
        %v6188 = vmul.f32 %v5642, %v6006
        %v6189 = vmul.f32 %v5643, %v6007
        %v6190 = vmul.f32 %v5644, %v6008
        %v6191 = vmul.f32 %v5645, %v6009
        %v6192 = vmul.f32 %v5646, %v6010
        %v6193 = vmul.f32 %v5647, %v6011
        %v6194 = vmul.f32 %v5648, %v6012
        %v6195 = vmul.f32 %v5649, %v6013
        %v6196 = vmul.f32 %v5650, %v6014
        %v6197 = vmul.f32 %v5651, %v6015
        %v6198 = vmul.f32 %v5652, %v6016
        %v6199 = vmul.f32 %v5653, %v6017
        %v6200 = vmul.f32 %v5654, %v6018
        %v6201 = vmul.f32 %v5655, %v6019
        %v6202 = vmul.f32 %v5656, %v6020
        %v6203 = vmul.f32 %v5657, %v6021
        %v6204 = vmul.f32 %v5658, %v6022
        %v6205 = vmul.f32 %v5659, %v6023
        %v6206 = vmul.f32 %v5660, %v6024
        %v6207 = vmul.f32 %v5661, %v6025
        %v6208 = vmul.f32 %v5662, %v6026
        %v6209 = vmul.f32 %v5663, %v6027
        %v6210 = vmul.f32 %v5664, %v6028
        %v6211 = vmul.f32 %v5665, %v6029
        %v6212 = vmul.f32 %v5666, %v6030
        %v6213 = vmul.f32 %v5667, %v6031
        %v6214 = vmul.f32 %v5668, %v6032
        %v6215 = vmul.f32 %v5669, %v6033
        %v6216 = vmul.f32 %v5670, %v6034
        %v6217 = vmul.f32 %v5671, %v6035
        %v6218 = vmul.f32 %v5672, %v6036
        %v6219 = vmul.f32 %v5673, %v6037
        %v6220 = vmul.f32 %v5674, %v6038
        %v6221 = vmul.f32 %v5675, %v6039
        %v6222 = vmul.f32 %v5676, %v6040
        %v6223 = vmul.f32 %v5677, %v6041
        %v6224 = vmul.f32 %v5678, %v6042
        %v6225 = vmul.f32 %v5679, %v6043
        %v6226 = vmul.f32 %v5680, %v6044
        %v6227 = vmul.f32 %v5681, %v6045
        %v6228 = vmul.f32 %v5682, %v6046
        %v6229 = vmul.f32 %v5683, %v6047
        %v6230 = vmul.f32 %v5684, %v6048
        %v6231 = vmul.f32 %v5685, %v6049
        %v6232 = vmul.f32 %v5686, %v6050
        %v6233 = vmul.f32 %v5687, %v6051
        %v6234 = vmul.f32 %v5688, %v6052
        %v6235 = vmul.f32 %v5689, %v6053
        %v6236 = vmul.f32 %v5690, %v6054
        %v6237 = vmul.f32 %v5691, %v6055
        %v6238 = vmul.f32 %v5692, %v6056
        %v6239 = vmul.f32 %v5693, %v6057
        %v6240 = vmul.f32 %v5694, %v6058
        %v6241 = vmul.f32 %v5695, %v6059
        %v6242 = vmul.f32 %v5696, %v6060
        %v6243 = vmul.f32 %v5697, %v6061
        %v6244 = vmul.f32 %v5698, %v6062
        %v6245 = vmul.f32 %v5699, %v6063
        %v6246 = vmul.f32 %v5700, %v6064
        %v6247 = vmul.f32 %v5701, %v6065
        %v6248 = vmul.f32 %v5702, %v6066
        %v6249 = vmul.f32 %v5703, %v6067
        %v6250 = vmul.f32 %v5704, %v6068
        %v6251 = vmul.f32 %v5705, %v6069
        %v6252 = vmul.f32 %v5706, %v6070
        %v6253 = vmul.f32 %v5707, %v6071
        %v6254 = vmul.f32 %v5708, %v6072
        %v6255 = vmul.f32 %v5709, %v6073
        %v6256 = vmul.f32 %v5710, %v6074
        %v6257 = vmul.f32 %v5711, %v6075
        %v6258 = vmul.f32 %v5712, %v6076
        %v6259 = vmul.f32 %v5713, %v6077
        %v6260 = vmul.f32 %v5714, %v6078
        %v6261 = vmul.f32 %v5715, %v6079
        %v6262 = vmul.f32 %v5716, %v6080
        %v6263 = vmul.f32 %v5717, %v6081
        %v6264 = vmul.f32 %v5718, %v6082
        %v6265 = vmul.f32 %v5719, %v6083
        %v6266 = vmul.f32 %v5720, %v6084
        %v6267 = vmul.f32 %v5721, %v6085
        %v6268 = vmul.f32 %v5722, %v6086
        %v6269 = vmul.f32 %v5723, %v6087
        %v6270 = vmul.f32 %v5724, %v6088
        %v6271 = vmul.f32 %v5725, %v6089
        %v6272 = vmul.f32 %v5726, %v6090
        %v6273 = vmul.f32 %v5727, %v6091
        %v6274 = vmul.f32 %v5728, %v6092
        %v6275 = vmul.f32 %v5729, %v6093
        %v6276 = vmul.f32 %v5730, %v6094
        %v6277 = vmul.f32 %v5731, %v6095
        %v6278 = vmul.f32 %v5732, %v6096
        %v6279 = vmul.f32 %v5733, %v6097
        %v6280 = vmul.f32 %v5734, %v6098
        %v6281 = vmul.f32 %v5735, %v6099
        %v6282 = vmul.f32 %v5736, %v6100
        %v6283 = vmul.f32 %v5737, %v6101
        %v6284 = vmul.f32 %v5738, %v6102
        %v6285 = vmul.f32 %v5739, %v6103
        %v6286 = vmul.f32 %v5740, %v6104
        %v6287 = vmul.f32 %v5741, %v6105
        %v6288 = vmul.f32 %v5742, %v6106
        %v6289 = vmul.f32 %v5743, %v6107
        %v6290 = vmul.f32 %v5744, %v6108
        %v6291 = vmul.f32 %v5745, %v6109
        %v6292 = vmul.f32 %v5746, %v6110
        %v6293 = vmul.f32 %v5747, %v6111
        %v6294 = vmul.f32 %v5748, %v6112
        %v6295 = vmul.f32 %v5749, %v6113
        %v6296 = vmul.f32 %v5750, %v6114
        %v6297 = vmul.f32 %v5751, %v6115
        %v6298 = vmul.f32 %v5752, %v6116
        %v6299 = vmul.f32 %v5753, %v6117
        %v6300 = vmul.f32 %v5754, %v6118
        %v6301 = vmul.f32 %v5755, %v6119
        %v6302 = vmul.f32 %v5756, %v6120
        %v6303 = vmul.f32 %v5757, %v6121
        %v6304 = vmul.f32 %v5758, %v6122
        %v6305 = vmul.f32 %v5759, %v6123
        %v6306 = vmul.f32 %v5760, %v6124
        %v6307 = vmul.f32 %v5761, %v6125
        %v6308 = vmul.f32 %v5762, %v6126
        %v6309 = vmul.f32 %v5763, %v6127
        %v6310 = vmul.f32 %v5764, %v6128
        %v6311 = vmul.f32 %v5765, %v6129
        %v6312 = vmul.f32 %v5766, %v6130
        %v6313 = vmul.f32 %v5767, %v6131
        %v6314 = vmul.f32 %v5768, %v6132
        %v6315 = vmul.f32 %v5769, %v6133
        %v6316 = vmul.f32 %v5770, %v6134
        %v6317 = vmul.f32 %v5771, %v6135
        %v6318 = vmul.f32 %v5772, %v6136
        %v6319 = vmul.f32 %v5773, %v6137
        %v6320 = vmul.f32 %v5774, %v6138
        %v6321 = vmul.f32 %v5775, %v6139
        %v6322 = vmul.f32 %v5776, %v6140
        %v6323 = vmul.f32 %v5777, %v6141
        %v6324 = vmul.f32 %v5778, %v6142
        %v6325 = vmul.f32 %v5779, %v6143
        %v6326 = vmul.f32 %v5780, %v6144
        %v6327 = vmul.f32 %v5781, %v6145
        %v6328 = vmul.f32 %v5782, %v6146
        %v6329 = vmul.f32 %v5783, %v6147
        %v6330 = vmul.f32 %v5784, %v6148
        %v6331 = vmul.f32 %v5785, %v6149
        %v6332 = vmul.f32 %v5786, %v6150
        %v6333 = vmul.f32 %v5787, %v6151
        %v6334 = vmul.f32 %v5788, %v6152
        %v6335 = vmul.f32 %v5789, %v6153
        %v6336 = vmul.f32 %v5790, %v6154
        %v6337 = vmul.f32 %v5791, %v6155
        %v6338 = vmul.f32 %v5792, %v6156
        %v6339 = vmul.f32 %v5793, %v6157
        %v6340 = vmul.f32 %v5794, %v6158
        %v6341 = vmul.f32 %v5795, %v6159
        %v6342 = vmul.f32 %v5796, %v6160
        %v6343 = vmul.f32 %v5797, %v6161
        %v6344 = vmul.f32 %v5798, %v6162
        %v6345 = vmul.f32 %v5799, %v6163
        %v6346 = vmul.f32 %v5800, %v6164
        %v6347 = vmul.f32 %v5801, %v6165
        %v6348 = vmul.f32 %v5802, %v6166
        %v6349 = vmul.f32 %v5803, %v6167
        %v6350 = vmul.f32 %v5804, %v6168
        %v6351 = vmul.f32 %v5805, %v6169
        %v6352 = vmul.f32 %v5806, %v6170
        %v6353 = vmul.f32 %v5807, %v6171
        %v6354 = vmul.f32 %v5808, %v6172
        %v6355 = vmul.f32 %v5809, %v6173
        %v6356 = vmul.f32 %v5810, %v6174
        %6358 = vset.pattern.permute.xlu0 0
        %6359 = vperm.xlu0 %6358, %v6175
        %v6360 = vpop.permute.xlu0 %6359
        %6363 = vset.pattern.permute.xlu0 0
        %6364 = vperm.xlu0 %6363, %v6176
        %v6365 = vpop.permute.xlu0 %6364
        %6368 = vset.pattern.permute.xlu0 0
        %6369 = vperm.xlu0 %6368, %v6177
        %v6370 = vpop.permute.xlu0 %6369
        %6373 = vset.pattern.permute.xlu0 0
        %6374 = vperm.xlu0 %6373, %v6178
        %v6375 = vpop.permute.xlu0 %6374
        %6378 = vset.pattern.permute.xlu0 0
        %6379 = vperm.xlu0 %6378, %v6179
        %v6380 = vpop.permute.xlu0 %6379
        %6383 = vset.pattern.permute.xlu0 0
        %6384 = vperm.xlu0 %6383, %v6180
        %v6385 = vpop.permute.xlu0 %6384
        %6388 = vset.pattern.permute.xlu0 0
        %6389 = vperm.xlu0 %6388, %v6181
        %v6390 = vpop.permute.xlu0 %6389
        %6393 = vset.pattern.permute.xlu0 0
        %6394 = vperm.xlu0 %6393, %v6182
        %v6395 = vpop.permute.xlu0 %6394
        %6398 = vset.pattern.permute.xlu0 0
        %6399 = vperm.xlu0 %6398, %v6183
        %v6400 = vpop.permute.xlu0 %6399
        %6403 = vset.pattern.permute.xlu0 0
        %6404 = vperm.xlu0 %6403, %v6184
        %v6405 = vpop.permute.xlu0 %6404
        %6408 = vset.pattern.permute.xlu0 0
        %6409 = vperm.xlu0 %6408, %v6185
        %v6410 = vpop.permute.xlu0 %6409
        %6413 = vset.pattern.permute.xlu0 0
        %6414 = vperm.xlu0 %6413, %v6186
        %v6415 = vpop.permute.xlu0 %6414
        %6418 = vset.pattern.permute.xlu0 0
        %6419 = vperm.xlu0 %6418, %v6187
        %v6420 = vpop.permute.xlu0 %6419
        %6423 = vset.pattern.permute.xlu0 0
        %6424 = vperm.xlu0 %6423, %v6188
        %v6425 = vpop.permute.xlu0 %6424
        %6428 = vset.pattern.permute.xlu0 0
        %6429 = vperm.xlu0 %6428, %v6189
        %v6430 = vpop.permute.xlu0 %6429
        %6433 = vset.pattern.permute.xlu0 0
        %6434 = vperm.xlu0 %6433, %v6190
        %v6435 = vpop.permute.xlu0 %6434
        %6438 = vset.pattern.permute.xlu0 0
        %6439 = vperm.xlu0 %6438, %v6191
        %v6440 = vpop.permute.xlu0 %6439
        %6443 = vset.pattern.permute.xlu0 0
        %6444 = vperm.xlu0 %6443, %v6192
        %v6445 = vpop.permute.xlu0 %6444
        %6448 = vset.pattern.permute.xlu0 0
        %6449 = vperm.xlu0 %6448, %v6193
        %v6450 = vpop.permute.xlu0 %6449
        %6453 = vset.pattern.permute.xlu0 0
        %6454 = vperm.xlu0 %6453, %v6194
        %v6455 = vpop.permute.xlu0 %6454
        %6458 = vset.pattern.permute.xlu0 0
        %6459 = vperm.xlu0 %6458, %v6195
        %v6460 = vpop.permute.xlu0 %6459
        %6463 = vset.pattern.permute.xlu0 0
        %6464 = vperm.xlu0 %6463, %v6196
        %v6465 = vpop.permute.xlu0 %6464
        %6468 = vset.pattern.permute.xlu0 0
        %6469 = vperm.xlu0 %6468, %v6197
        %v6470 = vpop.permute.xlu0 %6469
        %6473 = vset.pattern.permute.xlu0 0
        %6474 = vperm.xlu0 %6473, %v6198
        %v6475 = vpop.permute.xlu0 %6474
        %6478 = vset.pattern.permute.xlu0 0
        %6479 = vperm.xlu0 %6478, %v6199
        %v6480 = vpop.permute.xlu0 %6479
        %6483 = vset.pattern.permute.xlu0 0
        %6484 = vperm.xlu0 %6483, %v6200
        %v6485 = vpop.permute.xlu0 %6484
        %6488 = vset.pattern.permute.xlu0 0
        %6489 = vperm.xlu0 %6488, %v6201
        %v6490 = vpop.permute.xlu0 %6489
        %6493 = vset.pattern.permute.xlu0 0
        %6494 = vperm.xlu0 %6493, %v6202
        %v6495 = vpop.permute.xlu0 %6494
        %6498 = vset.pattern.permute.xlu0 0
        %6499 = vperm.xlu0 %6498, %v6203
        %v6500 = vpop.permute.xlu0 %6499
        %6503 = vset.pattern.permute.xlu0 0
        %6504 = vperm.xlu0 %6503, %v6204
        %v6505 = vpop.permute.xlu0 %6504
        %6508 = vset.pattern.permute.xlu0 0
        %6509 = vperm.xlu0 %6508, %v6205
        %v6510 = vpop.permute.xlu0 %6509
        %6513 = vset.pattern.permute.xlu0 0
        %6514 = vperm.xlu0 %6513, %v6206
        %v6515 = vpop.permute.xlu0 %6514
        %6518 = vset.pattern.permute.xlu0 0
        %6519 = vperm.xlu0 %6518, %v6207
        %v6520 = vpop.permute.xlu0 %6519
        %6523 = vset.pattern.permute.xlu0 0
        %6524 = vperm.xlu0 %6523, %v6208
        %v6525 = vpop.permute.xlu0 %6524
        %6528 = vset.pattern.permute.xlu0 0
        %6529 = vperm.xlu0 %6528, %v6209
        %v6530 = vpop.permute.xlu0 %6529
        %6533 = vset.pattern.permute.xlu0 0
        %6534 = vperm.xlu0 %6533, %v6210
        %v6535 = vpop.permute.xlu0 %6534
        %6538 = vset.pattern.permute.xlu0 0
        %6539 = vperm.xlu0 %6538, %v6211
        %v6540 = vpop.permute.xlu0 %6539
        %6543 = vset.pattern.permute.xlu0 0
        %6544 = vperm.xlu0 %6543, %v6212
        %v6545 = vpop.permute.xlu0 %6544
        %6548 = vset.pattern.permute.xlu0 0
        %6549 = vperm.xlu0 %6548, %v6213
        %v6550 = vpop.permute.xlu0 %6549
        %6553 = vset.pattern.permute.xlu0 0
        %6554 = vperm.xlu0 %6553, %v6214
        %v6555 = vpop.permute.xlu0 %6554
        %6558 = vset.pattern.permute.xlu0 0
        %6559 = vperm.xlu0 %6558, %v6215
        %v6560 = vpop.permute.xlu0 %6559
        %6563 = vset.pattern.permute.xlu0 0
        %6564 = vperm.xlu0 %6563, %v6216
        %v6565 = vpop.permute.xlu0 %6564
        %6568 = vset.pattern.permute.xlu0 0
        %6569 = vperm.xlu0 %6568, %v6217
        %v6570 = vpop.permute.xlu0 %6569
        %6573 = vset.pattern.permute.xlu0 0
        %6574 = vperm.xlu0 %6573, %v6218
        %v6575 = vpop.permute.xlu0 %6574
        %6578 = vset.pattern.permute.xlu0 0
        %6579 = vperm.xlu0 %6578, %v6219
        %v6580 = vpop.permute.xlu0 %6579
        %6583 = vset.pattern.permute.xlu0 0
        %6584 = vperm.xlu0 %6583, %v6220
        %v6585 = vpop.permute.xlu0 %6584
        %6588 = vset.pattern.permute.xlu0 0
        %6589 = vperm.xlu0 %6588, %v6221
        %v6590 = vpop.permute.xlu0 %6589
        %6593 = vset.pattern.permute.xlu0 0
        %6594 = vperm.xlu0 %6593, %v6222
        %v6595 = vpop.permute.xlu0 %6594
        %6598 = vset.pattern.permute.xlu0 0
        %6599 = vperm.xlu0 %6598, %v6223
        %v6600 = vpop.permute.xlu0 %6599
        %6603 = vset.pattern.permute.xlu0 0
        %6604 = vperm.xlu0 %6603, %v6224
        %v6605 = vpop.permute.xlu0 %6604
        %6608 = vset.pattern.permute.xlu0 0
        %6609 = vperm.xlu0 %6608, %v6225
        %v6610 = vpop.permute.xlu0 %6609
        %6613 = vset.pattern.permute.xlu0 0
        %6614 = vperm.xlu0 %6613, %v6226
        %v6615 = vpop.permute.xlu0 %6614
        %6618 = vset.pattern.permute.xlu0 0
        %6619 = vperm.xlu0 %6618, %v6227
        %v6620 = vpop.permute.xlu0 %6619
        %6623 = vset.pattern.permute.xlu0 0
        %6624 = vperm.xlu0 %6623, %v6228
        %v6625 = vpop.permute.xlu0 %6624
        %6628 = vset.pattern.permute.xlu0 0
        %6629 = vperm.xlu0 %6628, %v6229
        %v6630 = vpop.permute.xlu0 %6629
        %6633 = vset.pattern.permute.xlu0 0
        %6634 = vperm.xlu0 %6633, %v6230
        %v6635 = vpop.permute.xlu0 %6634
        %6638 = vset.pattern.permute.xlu0 0
        %6639 = vperm.xlu0 %6638, %v6231
        %v6640 = vpop.permute.xlu0 %6639
        %6643 = vset.pattern.permute.xlu0 0
        %6644 = vperm.xlu0 %6643, %v6232
        %v6645 = vpop.permute.xlu0 %6644
        %6648 = vset.pattern.permute.xlu0 0
        %6649 = vperm.xlu0 %6648, %v6233
        %v6650 = vpop.permute.xlu0 %6649
        %6653 = vset.pattern.permute.xlu0 0
        %6654 = vperm.xlu0 %6653, %v6234
        %v6655 = vpop.permute.xlu0 %6654
        %6658 = vset.pattern.permute.xlu0 0
        %6659 = vperm.xlu0 %6658, %v6235
        %v6660 = vpop.permute.xlu0 %6659
        %6663 = vset.pattern.permute.xlu0 0
        %6664 = vperm.xlu0 %6663, %v6236
        %v6665 = vpop.permute.xlu0 %6664
        %6668 = vset.pattern.permute.xlu0 0
        %6669 = vperm.xlu0 %6668, %v6237
        %v6670 = vpop.permute.xlu0 %6669
        %6673 = vset.pattern.permute.xlu0 0
        %6674 = vperm.xlu0 %6673, %v6238
        %v6675 = vpop.permute.xlu0 %6674
        %6678 = vset.pattern.permute.xlu0 0
        %6679 = vperm.xlu0 %6678, %v6239
        %v6680 = vpop.permute.xlu0 %6679
        %6683 = vset.pattern.permute.xlu0 0
        %6684 = vperm.xlu0 %6683, %v6240
        %v6685 = vpop.permute.xlu0 %6684
        %6688 = vset.pattern.permute.xlu0 0
        %6689 = vperm.xlu0 %6688, %v6241
        %v6690 = vpop.permute.xlu0 %6689
        %6693 = vset.pattern.permute.xlu0 0
        %6694 = vperm.xlu0 %6693, %v6242
        %v6695 = vpop.permute.xlu0 %6694
        %6698 = vset.pattern.permute.xlu0 0
        %6699 = vperm.xlu0 %6698, %v6243
        %v6700 = vpop.permute.xlu0 %6699
        %6703 = vset.pattern.permute.xlu0 0
        %6704 = vperm.xlu0 %6703, %v6244
        %v6705 = vpop.permute.xlu0 %6704
        %6708 = vset.pattern.permute.xlu0 0
        %6709 = vperm.xlu0 %6708, %v6245
        %v6710 = vpop.permute.xlu0 %6709
        %6713 = vset.pattern.permute.xlu0 0
        %6714 = vperm.xlu0 %6713, %v6246
        %v6715 = vpop.permute.xlu0 %6714
        %6718 = vset.pattern.permute.xlu0 0
        %6719 = vperm.xlu0 %6718, %v6247
        %v6720 = vpop.permute.xlu0 %6719
        %6723 = vset.pattern.permute.xlu0 0
        %6724 = vperm.xlu0 %6723, %v6248
        %v6725 = vpop.permute.xlu0 %6724
        %6728 = vset.pattern.permute.xlu0 0
        %6729 = vperm.xlu0 %6728, %v6249
        %v6730 = vpop.permute.xlu0 %6729
        %6733 = vset.pattern.permute.xlu0 0
        %6734 = vperm.xlu0 %6733, %v6250
        %v6735 = vpop.permute.xlu0 %6734
        %6738 = vset.pattern.permute.xlu0 0
        %6739 = vperm.xlu0 %6738, %v6251
        %v6740 = vpop.permute.xlu0 %6739
        %6743 = vset.pattern.permute.xlu0 0
        %6744 = vperm.xlu0 %6743, %v6252
        %v6745 = vpop.permute.xlu0 %6744
        %6748 = vset.pattern.permute.xlu0 0
        %6749 = vperm.xlu0 %6748, %v6253
        %v6750 = vpop.permute.xlu0 %6749
        %6753 = vset.pattern.permute.xlu0 0
        %6754 = vperm.xlu0 %6753, %v6254
        %v6755 = vpop.permute.xlu0 %6754
        %6758 = vset.pattern.permute.xlu0 0
        %6759 = vperm.xlu0 %6758, %v6255
        %v6760 = vpop.permute.xlu0 %6759
        %6763 = vset.pattern.permute.xlu0 0
        %6764 = vperm.xlu0 %6763, %v6256
        %v6765 = vpop.permute.xlu0 %6764
        %6768 = vset.pattern.permute.xlu0 0
        %6769 = vperm.xlu0 %6768, %v6257
        %v6770 = vpop.permute.xlu0 %6769
        %6773 = vset.pattern.permute.xlu0 0
        %6774 = vperm.xlu0 %6773, %v6258
        %v6775 = vpop.permute.xlu0 %6774
        %6778 = vset.pattern.permute.xlu0 0
        %6779 = vperm.xlu0 %6778, %v6259
        %v6780 = vpop.permute.xlu0 %6779
        %6783 = vset.pattern.permute.xlu0 0
        %6784 = vperm.xlu0 %6783, %v6260
        %v6785 = vpop.permute.xlu0 %6784
        %6788 = vset.pattern.permute.xlu0 0
        %6789 = vperm.xlu0 %6788, %v6261
        %v6790 = vpop.permute.xlu0 %6789
        %6793 = vset.pattern.permute.xlu0 0
        %6794 = vperm.xlu0 %6793, %v6262
        %v6795 = vpop.permute.xlu0 %6794
        %6798 = vset.pattern.permute.xlu0 0
        %6799 = vperm.xlu0 %6798, %v6263
        %v6800 = vpop.permute.xlu0 %6799
        %6803 = vset.pattern.permute.xlu0 0
        %6804 = vperm.xlu0 %6803, %v6264
        %v6805 = vpop.permute.xlu0 %6804
        %6808 = vset.pattern.permute.xlu0 0
        %6809 = vperm.xlu0 %6808, %v6265
        %v6810 = vpop.permute.xlu0 %6809
        %6813 = vset.pattern.permute.xlu0 0
        %6814 = vperm.xlu0 %6813, %v6266
        %v6815 = vpop.permute.xlu0 %6814
        %6818 = vset.pattern.permute.xlu0 0
        %6819 = vperm.xlu0 %6818, %v6267
        %v6820 = vpop.permute.xlu0 %6819
        %6823 = vset.pattern.permute.xlu0 0
        %6824 = vperm.xlu0 %6823, %v6268
        %v6825 = vpop.permute.xlu0 %6824
        %6828 = vset.pattern.permute.xlu0 0
        %6829 = vperm.xlu0 %6828, %v6269
        %v6830 = vpop.permute.xlu0 %6829
        %6833 = vset.pattern.permute.xlu0 0
        %6834 = vperm.xlu0 %6833, %v6270
        %v6835 = vpop.permute.xlu0 %6834
        %6838 = vset.pattern.permute.xlu0 0
        %6839 = vperm.xlu0 %6838, %v6271
        %v6840 = vpop.permute.xlu0 %6839
        %6843 = vset.pattern.permute.xlu0 0
        %6844 = vperm.xlu0 %6843, %v6272
        %v6845 = vpop.permute.xlu0 %6844
        %6848 = vset.pattern.permute.xlu0 0
        %6849 = vperm.xlu0 %6848, %v6273
        %v6850 = vpop.permute.xlu0 %6849
        %6853 = vset.pattern.permute.xlu0 0
        %6854 = vperm.xlu0 %6853, %v6274
        %v6855 = vpop.permute.xlu0 %6854
        %6858 = vset.pattern.permute.xlu0 0
        %6859 = vperm.xlu0 %6858, %v6275
        %v6860 = vpop.permute.xlu0 %6859
        %6863 = vset.pattern.permute.xlu0 0
        %6864 = vperm.xlu0 %6863, %v6276
        %v6865 = vpop.permute.xlu0 %6864
        %6868 = vset.pattern.permute.xlu0 0
        %6869 = vperm.xlu0 %6868, %v6277
        %v6870 = vpop.permute.xlu0 %6869
        %6873 = vset.pattern.permute.xlu0 0
        %6874 = vperm.xlu0 %6873, %v6278
        %v6875 = vpop.permute.xlu0 %6874
        %6878 = vset.pattern.permute.xlu0 0
        %6879 = vperm.xlu0 %6878, %v6279
        %v6880 = vpop.permute.xlu0 %6879
        %6883 = vset.pattern.permute.xlu0 0
        %6884 = vperm.xlu0 %6883, %v6280
        %v6885 = vpop.permute.xlu0 %6884
        %6888 = vset.pattern.permute.xlu0 0
        %6889 = vperm.xlu0 %6888, %v6281
        %v6890 = vpop.permute.xlu0 %6889
        %6893 = vset.pattern.permute.xlu0 0
        %6894 = vperm.xlu0 %6893, %v6282
        %v6895 = vpop.permute.xlu0 %6894
        %6898 = vset.pattern.permute.xlu0 0
        %6899 = vperm.xlu0 %6898, %v6283
        %v6900 = vpop.permute.xlu0 %6899
        %6903 = vset.pattern.permute.xlu0 0
        %6904 = vperm.xlu0 %6903, %v6284
        %v6905 = vpop.permute.xlu0 %6904
        %6908 = vset.pattern.permute.xlu0 0
        %6909 = vperm.xlu0 %6908, %v6285
        %v6910 = vpop.permute.xlu0 %6909
        %6913 = vset.pattern.permute.xlu0 0
        %6914 = vperm.xlu0 %6913, %v6286
        %v6915 = vpop.permute.xlu0 %6914
        %6918 = vset.pattern.permute.xlu0 0
        %6919 = vperm.xlu0 %6918, %v6287
        %v6920 = vpop.permute.xlu0 %6919
        %6923 = vset.pattern.permute.xlu0 0
        %6924 = vperm.xlu0 %6923, %v6288
        %v6925 = vpop.permute.xlu0 %6924
        %6928 = vset.pattern.permute.xlu0 0
        %6929 = vperm.xlu0 %6928, %v6289
        %v6930 = vpop.permute.xlu0 %6929
        %6933 = vset.pattern.permute.xlu0 0
        %6934 = vperm.xlu0 %6933, %v6290
        %v6935 = vpop.permute.xlu0 %6934
        %6938 = vset.pattern.permute.xlu0 0
        %6939 = vperm.xlu0 %6938, %v6291
        %v6940 = vpop.permute.xlu0 %6939
        %6943 = vset.pattern.permute.xlu0 0
        %6944 = vperm.xlu0 %6943, %v6292
        %v6945 = vpop.permute.xlu0 %6944
        %6948 = vset.pattern.permute.xlu0 0
        %6949 = vperm.xlu0 %6948, %v6293
        %v6950 = vpop.permute.xlu0 %6949
        %6953 = vset.pattern.permute.xlu0 0
        %6954 = vperm.xlu0 %6953, %v6294
        %v6955 = vpop.permute.xlu0 %6954
        %6958 = vset.pattern.permute.xlu0 0
        %6959 = vperm.xlu0 %6958, %v6295
        %v6960 = vpop.permute.xlu0 %6959
        %6963 = vset.pattern.permute.xlu0 0
        %6964 = vperm.xlu0 %6963, %v6296
        %v6965 = vpop.permute.xlu0 %6964
        %6968 = vset.pattern.permute.xlu0 0
        %6969 = vperm.xlu0 %6968, %v6297
        %v6970 = vpop.permute.xlu0 %6969
        %6973 = vset.pattern.permute.xlu0 0
        %6974 = vperm.xlu0 %6973, %v6298
        %v6975 = vpop.permute.xlu0 %6974
        %6978 = vset.pattern.permute.xlu0 0
        %6979 = vperm.xlu0 %6978, %v6299
        %v6980 = vpop.permute.xlu0 %6979
        %6983 = vset.pattern.permute.xlu0 0
        %6984 = vperm.xlu0 %6983, %v6300
        %v6985 = vpop.permute.xlu0 %6984
        %6988 = vset.pattern.permute.xlu0 0
        %6989 = vperm.xlu0 %6988, %v6301
        %v6990 = vpop.permute.xlu0 %6989
        %6993 = vset.pattern.permute.xlu0 0
        %6994 = vperm.xlu0 %6993, %v6302
        %v6995 = vpop.permute.xlu0 %6994
        %6998 = vset.pattern.permute.xlu0 0
        %6999 = vperm.xlu0 %6998, %v6303
        %v7000 = vpop.permute.xlu0 %6999
        %7003 = vset.pattern.permute.xlu0 0
        %7004 = vperm.xlu0 %7003, %v6304
        %v7005 = vpop.permute.xlu0 %7004
        %7008 = vset.pattern.permute.xlu0 0
        %7009 = vperm.xlu0 %7008, %v6305
        %v7010 = vpop.permute.xlu0 %7009
        %7013 = vset.pattern.permute.xlu0 0
        %7014 = vperm.xlu0 %7013, %v6306
        %v7015 = vpop.permute.xlu0 %7014
        %7018 = vset.pattern.permute.xlu0 0
        %7019 = vperm.xlu0 %7018, %v6307
        %v7020 = vpop.permute.xlu0 %7019
        %7023 = vset.pattern.permute.xlu0 0
        %7024 = vperm.xlu0 %7023, %v6308
        %v7025 = vpop.permute.xlu0 %7024
        %7028 = vset.pattern.permute.xlu0 0
        %7029 = vperm.xlu0 %7028, %v6309
        %v7030 = vpop.permute.xlu0 %7029
        %7033 = vset.pattern.permute.xlu0 0
        %7034 = vperm.xlu0 %7033, %v6310
        %v7035 = vpop.permute.xlu0 %7034
        %7038 = vset.pattern.permute.xlu0 0
        %7039 = vperm.xlu0 %7038, %v6311
        %v7040 = vpop.permute.xlu0 %7039
        %7043 = vset.pattern.permute.xlu0 0
        %7044 = vperm.xlu0 %7043, %v6312
        %v7045 = vpop.permute.xlu0 %7044
        %7048 = vset.pattern.permute.xlu0 0
        %7049 = vperm.xlu0 %7048, %v6313
        %v7050 = vpop.permute.xlu0 %7049
        %7053 = vset.pattern.permute.xlu0 0
        %7054 = vperm.xlu0 %7053, %v6314
        %v7055 = vpop.permute.xlu0 %7054
        %7058 = vset.pattern.permute.xlu0 0
        %7059 = vperm.xlu0 %7058, %v6315
        %v7060 = vpop.permute.xlu0 %7059
        %7063 = vset.pattern.permute.xlu0 0
        %7064 = vperm.xlu0 %7063, %v6316
        %v7065 = vpop.permute.xlu0 %7064
        %7068 = vset.pattern.permute.xlu0 0
        %7069 = vperm.xlu0 %7068, %v6317
        %v7070 = vpop.permute.xlu0 %7069
        %7073 = vset.pattern.permute.xlu0 0
        %7074 = vperm.xlu0 %7073, %v6318
        %v7075 = vpop.permute.xlu0 %7074
        %7078 = vset.pattern.permute.xlu0 0
        %7079 = vperm.xlu0 %7078, %v6319
        %v7080 = vpop.permute.xlu0 %7079
        %7083 = vset.pattern.permute.xlu0 0
        %7084 = vperm.xlu0 %7083, %v6320
        %v7085 = vpop.permute.xlu0 %7084
        %7088 = vset.pattern.permute.xlu0 0
        %7089 = vperm.xlu0 %7088, %v6321
        %v7090 = vpop.permute.xlu0 %7089
        %7093 = vset.pattern.permute.xlu0 0
        %7094 = vperm.xlu0 %7093, %v6322
        %v7095 = vpop.permute.xlu0 %7094
        %7098 = vset.pattern.permute.xlu0 0
        %7099 = vperm.xlu0 %7098, %v6323
        %v7100 = vpop.permute.xlu0 %7099
        %7103 = vset.pattern.permute.xlu0 0
        %7104 = vperm.xlu0 %7103, %v6324
        %v7105 = vpop.permute.xlu0 %7104
        %7108 = vset.pattern.permute.xlu0 0
        %7109 = vperm.xlu0 %7108, %v6325
        %v7110 = vpop.permute.xlu0 %7109
        %7113 = vset.pattern.permute.xlu0 0
        %7114 = vperm.xlu0 %7113, %v6326
        %v7115 = vpop.permute.xlu0 %7114
        %7118 = vset.pattern.permute.xlu0 0
        %7119 = vperm.xlu0 %7118, %v6327
        %v7120 = vpop.permute.xlu0 %7119
        %7123 = vset.pattern.permute.xlu0 0
        %7124 = vperm.xlu0 %7123, %v6328
        %v7125 = vpop.permute.xlu0 %7124
        %7128 = vset.pattern.permute.xlu0 0
        %7129 = vperm.xlu0 %7128, %v6329
        %v7130 = vpop.permute.xlu0 %7129
        %7133 = vset.pattern.permute.xlu0 0
        %7134 = vperm.xlu0 %7133, %v6330
        %v7135 = vpop.permute.xlu0 %7134
        %7138 = vset.pattern.permute.xlu0 0
        %7139 = vperm.xlu0 %7138, %v6331
        %v7140 = vpop.permute.xlu0 %7139
        %7143 = vset.pattern.permute.xlu0 0
        %7144 = vperm.xlu0 %7143, %v6332
        %v7145 = vpop.permute.xlu0 %7144
        %7148 = vset.pattern.permute.xlu0 0
        %7149 = vperm.xlu0 %7148, %v6333
        %v7150 = vpop.permute.xlu0 %7149
        %7153 = vset.pattern.permute.xlu0 0
        %7154 = vperm.xlu0 %7153, %v6334
        %v7155 = vpop.permute.xlu0 %7154
        %7158 = vset.pattern.permute.xlu0 0
        %7159 = vperm.xlu0 %7158, %v6335
        %v7160 = vpop.permute.xlu0 %7159
        %7163 = vset.pattern.permute.xlu0 0
        %7164 = vperm.xlu0 %7163, %v6336
        %v7165 = vpop.permute.xlu0 %7164
        %7168 = vset.pattern.permute.xlu0 0
        %7169 = vperm.xlu0 %7168, %v6337
        %v7170 = vpop.permute.xlu0 %7169
        %7173 = vset.pattern.permute.xlu0 0
        %7174 = vperm.xlu0 %7173, %v6338
        %v7175 = vpop.permute.xlu0 %7174
        %7178 = vset.pattern.permute.xlu0 0
        %7179 = vperm.xlu0 %7178, %v6339
        %v7180 = vpop.permute.xlu0 %7179
        %7183 = vset.pattern.permute.xlu0 0
        %7184 = vperm.xlu0 %7183, %v6340
        %v7185 = vpop.permute.xlu0 %7184
        %7188 = vset.pattern.permute.xlu0 0
        %7189 = vperm.xlu0 %7188, %v6341
        %v7190 = vpop.permute.xlu0 %7189
        %7193 = vset.pattern.permute.xlu0 0
        %7194 = vperm.xlu0 %7193, %v6342
        %v7195 = vpop.permute.xlu0 %7194
        %7198 = vset.pattern.permute.xlu0 0
        %7199 = vperm.xlu0 %7198, %v6343
        %v7200 = vpop.permute.xlu0 %7199
        %7203 = vset.pattern.permute.xlu0 0
        %7204 = vperm.xlu0 %7203, %v6344
        %v7205 = vpop.permute.xlu0 %7204
        %7208 = vset.pattern.permute.xlu0 0
        %7209 = vperm.xlu0 %7208, %v6345
        %v7210 = vpop.permute.xlu0 %7209
        %7213 = vset.pattern.permute.xlu0 0
        %7214 = vperm.xlu0 %7213, %v6346
        %v7215 = vpop.permute.xlu0 %7214
        %7218 = vset.pattern.permute.xlu0 0
        %7219 = vperm.xlu0 %7218, %v6347
        %v7220 = vpop.permute.xlu0 %7219
        %7223 = vset.pattern.permute.xlu0 0
        %7224 = vperm.xlu0 %7223, %v6348
        %v7225 = vpop.permute.xlu0 %7224
        %7228 = vset.pattern.permute.xlu0 0
        %7229 = vperm.xlu0 %7228, %v6349
        %v7230 = vpop.permute.xlu0 %7229
        %7233 = vset.pattern.permute.xlu0 0
        %7234 = vperm.xlu0 %7233, %v6350
        %v7235 = vpop.permute.xlu0 %7234
        %7238 = vset.pattern.permute.xlu0 0
        %7239 = vperm.xlu0 %7238, %v6351
        %v7240 = vpop.permute.xlu0 %7239
        %7243 = vset.pattern.permute.xlu0 0
        %7244 = vperm.xlu0 %7243, %v6352
        %v7245 = vpop.permute.xlu0 %7244
        %7248 = vset.pattern.permute.xlu0 0
        %7249 = vperm.xlu0 %7248, %v6353
        %v7250 = vpop.permute.xlu0 %7249
        %7253 = vset.pattern.permute.xlu0 0
        %7254 = vperm.xlu0 %7253, %v6354
        %v7255 = vpop.permute.xlu0 %7254
        %7258 = vset.pattern.permute.xlu0 0
        %7259 = vperm.xlu0 %7258, %v6355
        %v7260 = vpop.permute.xlu0 %7259
        %7263 = vset.pattern.permute.xlu0 0
        %7264 = vperm.xlu0 %7263, %v6356
        %v7265 = vpop.permute.xlu0 %7264
        %v7267 = vmul.f32 %v3198, %v6360
        %v7268 = vmul.f32 %v3199, %v6360
        %v7269 = vmul.f32 %v3200, %v6365
        %v7270 = vmul.f32 %v3201, %v6365
        %v7271 = vmul.f32 %v3202, %v6370
        %v7272 = vmul.f32 %v3203, %v6370
        %v7273 = vmul.f32 %v3204, %v6375
        %v7274 = vmul.f32 %v3205, %v6375
        %v7275 = vmul.f32 %v3206, %v6380
        %v7276 = vmul.f32 %v3207, %v6380
        %v7277 = vmul.f32 %v3208, %v6385
        %v7278 = vmul.f32 %v3209, %v6385
        %v7279 = vmul.f32 %v3210, %v6390
        %v7280 = vmul.f32 %v3211, %v6390
        %v7281 = vmul.f32 %v3212, %v6395
        %v7282 = vmul.f32 %v3213, %v6395
        %v7283 = vmul.f32 %v3214, %v6400
        %v7284 = vmul.f32 %v3215, %v6400
        %v7285 = vmul.f32 %v3216, %v6405
        %v7286 = vmul.f32 %v3217, %v6405
        %v7287 = vmul.f32 %v3218, %v6410
        %v7288 = vmul.f32 %v3219, %v6410
        %v7289 = vmul.f32 %v3220, %v6415
        %v7290 = vmul.f32 %v3221, %v6415
        %v7291 = vmul.f32 %v3222, %v6420
        %v7292 = vmul.f32 %v3223, %v6420
        %v7293 = vmul.f32 %v3224, %v6425
        %v7294 = vmul.f32 %v3225, %v6425
        %v7295 = vmul.f32 %v3226, %v6430
        %v7296 = vmul.f32 %v3227, %v6430
        %v7297 = vmul.f32 %v3228, %v6435
        %v7298 = vmul.f32 %v3229, %v6435
        %v7299 = vmul.f32 %v3230, %v6440
        %v7300 = vmul.f32 %v3231, %v6440
        %v7301 = vmul.f32 %v3232, %v6445
        %v7302 = vmul.f32 %v3233, %v6445
        %v7303 = vmul.f32 %v3234, %v6450
        %v7304 = vmul.f32 %v3235, %v6450
        %v7305 = vmul.f32 %v3236, %v6455
        %v7306 = vmul.f32 %v3237, %v6455
        %v7307 = vmul.f32 %v3238, %v6460
        %v7308 = vmul.f32 %v3239, %v6460
        %v7309 = vmul.f32 %v3240, %v6465
        %v7310 = vmul.f32 %v3241, %v6465
        %v7311 = vmul.f32 %v3242, %v6470
        %v7312 = vmul.f32 %v3243, %v6470
        %v7313 = vmul.f32 %v3244, %v6475
        %v7314 = vmul.f32 %v3245, %v6475
        %v7315 = vmul.f32 %v3246, %v6480
        %v7316 = vmul.f32 %v3247, %v6480
        %v7317 = vmul.f32 %v3248, %v6485
        %v7318 = vmul.f32 %v3249, %v6485
        %v7319 = vmul.f32 %v3250, %v6490
        %v7320 = vmul.f32 %v3251, %v6490
        %v7321 = vmul.f32 %v3252, %v6495
        %v7322 = vmul.f32 %v3253, %v6495
        %v7323 = vmul.f32 %v3254, %v6500
        %v7324 = vmul.f32 %v3255, %v6500
        %v7325 = vmul.f32 %v3256, %v6505
        %v7326 = vmul.f32 %v3257, %v6505
        %v7327 = vmul.f32 %v3258, %v6510
        %v7328 = vmul.f32 %v3259, %v6510
        %v7329 = vmul.f32 %v3260, %v6515
        %v7330 = vmul.f32 %v3261, %v6515
        %v7331 = vmul.f32 %v3262, %v6520
        %v7332 = vmul.f32 %v3263, %v6520
        %v7333 = vmul.f32 %v3264, %v6525
        %v7334 = vmul.f32 %v3265, %v6525
        %v7335 = vmul.f32 %v3266, %v6530
        %v7336 = vmul.f32 %v3267, %v6530
        %v7337 = vmul.f32 %v3268, %v6535
        %v7338 = vmul.f32 %v3269, %v6535
        %v7339 = vmul.f32 %v3270, %v6540
        %v7340 = vmul.f32 %v3271, %v6540
        %v7341 = vmul.f32 %v3272, %v6545
        %v7342 = vmul.f32 %v3273, %v6545
        %v7343 = vmul.f32 %v3274, %v6550
        %v7344 = vmul.f32 %v3275, %v6550
        %v7345 = vmul.f32 %v3276, %v6555
        %v7346 = vmul.f32 %v3277, %v6555
        %v7347 = vmul.f32 %v3278, %v6560
        %v7348 = vmul.f32 %v3279, %v6560
        %v7349 = vmul.f32 %v3280, %v6565
        %v7350 = vmul.f32 %v3281, %v6565
        %v7351 = vmul.f32 %v3282, %v6570
        %v7352 = vmul.f32 %v3283, %v6570
        %v7353 = vmul.f32 %v3284, %v6575
        %v7354 = vmul.f32 %v3285, %v6575
        %v7355 = vmul.f32 %v3286, %v6580
        %v7356 = vmul.f32 %v3287, %v6580
        %v7357 = vmul.f32 %v3288, %v6585
        %v7358 = vmul.f32 %v3289, %v6585
        %v7359 = vmul.f32 %v3290, %v6590
        %v7360 = vmul.f32 %v3291, %v6590
        %v7361 = vmul.f32 %v3292, %v6595
        %v7362 = vmul.f32 %v3293, %v6595
        %v7363 = vmul.f32 %v3294, %v6600
        %v7364 = vmul.f32 %v3295, %v6600
        %v7365 = vmul.f32 %v3296, %v6605
        %v7366 = vmul.f32 %v3297, %v6605
        %v7367 = vmul.f32 %v3298, %v6610
        %v7368 = vmul.f32 %v3299, %v6610
        %v7369 = vmul.f32 %v3300, %v6615
        %v7370 = vmul.f32 %v3301, %v6615
        %v7371 = vmul.f32 %v3302, %v6620
        %v7372 = vmul.f32 %v3303, %v6620
        %v7373 = vmul.f32 %v3304, %v6625
        %v7374 = vmul.f32 %v3305, %v6625
        %v7375 = vmul.f32 %v3306, %v6630
        %v7376 = vmul.f32 %v3307, %v6630
        %v7377 = vmul.f32 %v3308, %v6635
        %v7378 = vmul.f32 %v3309, %v6635
        %v7379 = vmul.f32 %v3310, %v6640
        %v7380 = vmul.f32 %v3311, %v6640
        %v7381 = vmul.f32 %v3312, %v6645
        %v7382 = vmul.f32 %v3313, %v6645
        %v7383 = vmul.f32 %v3314, %v6650
        %v7384 = vmul.f32 %v3315, %v6650
        %v7385 = vmul.f32 %v3316, %v6655
        %v7386 = vmul.f32 %v3317, %v6655
        %v7387 = vmul.f32 %v3318, %v6660
        %v7388 = vmul.f32 %v3319, %v6660
        %v7389 = vmul.f32 %v3320, %v6665
        %v7390 = vmul.f32 %v3321, %v6665
        %v7391 = vmul.f32 %v3322, %v6670
        %v7392 = vmul.f32 %v3323, %v6670
        %v7393 = vmul.f32 %v3324, %v6675
        %v7394 = vmul.f32 %v3325, %v6675
        %v7395 = vmul.f32 %v3326, %v6680
        %v7396 = vmul.f32 %v3327, %v6680
        %v7397 = vmul.f32 %v3328, %v6685
        %v7398 = vmul.f32 %v3329, %v6685
        %v7399 = vmul.f32 %v3330, %v6690
        %v7400 = vmul.f32 %v3331, %v6690
        %v7401 = vmul.f32 %v3332, %v6695
        %v7402 = vmul.f32 %v3333, %v6695
        %v7403 = vmul.f32 %v3334, %v6700
        %v7404 = vmul.f32 %v3335, %v6700
        %v7405 = vmul.f32 %v3336, %v6705
        %v7406 = vmul.f32 %v3337, %v6705
        %v7407 = vmul.f32 %v3338, %v6710
        %v7408 = vmul.f32 %v3339, %v6710
        %v7409 = vmul.f32 %v3340, %v6715
        %v7410 = vmul.f32 %v3341, %v6715
        %v7411 = vmul.f32 %v3342, %v6720
        %v7412 = vmul.f32 %v3343, %v6720
        %v7413 = vmul.f32 %v3344, %v6725
        %v7414 = vmul.f32 %v3345, %v6725
        %v7415 = vmul.f32 %v3346, %v6730
        %v7416 = vmul.f32 %v3347, %v6730
        %v7417 = vmul.f32 %v3348, %v6735
        %v7418 = vmul.f32 %v3349, %v6735
        %v7419 = vmul.f32 %v3350, %v6740
        %v7420 = vmul.f32 %v3351, %v6740
        %v7421 = vmul.f32 %v3352, %v6745
        %v7422 = vmul.f32 %v3353, %v6745
        %v7423 = vmul.f32 %v3354, %v6750
        %v7424 = vmul.f32 %v3355, %v6750
        %v7425 = vmul.f32 %v3356, %v6755
        %v7426 = vmul.f32 %v3357, %v6755
        %v7427 = vmul.f32 %v3358, %v6760
        %v7428 = vmul.f32 %v3359, %v6760
        %v7429 = vmul.f32 %v3360, %v6765
        %v7430 = vmul.f32 %v3361, %v6765
        %v7431 = vmul.f32 %v3362, %v6770
        %v7432 = vmul.f32 %v3363, %v6770
        %v7433 = vmul.f32 %v3364, %v6775
        %v7434 = vmul.f32 %v3365, %v6775
        %v7435 = vmul.f32 %v3366, %v6780
        %v7436 = vmul.f32 %v3367, %v6780
        %v7437 = vmul.f32 %v3368, %v6785
        %v7438 = vmul.f32 %v3369, %v6785
        %v7439 = vmul.f32 %v3370, %v6790
        %v7440 = vmul.f32 %v3371, %v6790
        %v7441 = vmul.f32 %v3372, %v6795
        %v7442 = vmul.f32 %v3373, %v6795
        %v7443 = vmul.f32 %v3374, %v6800
        %v7444 = vmul.f32 %v3375, %v6800
        %v7445 = vmul.f32 %v3376, %v6805
        %v7446 = vmul.f32 %v3377, %v6805
        %v7447 = vmul.f32 %v3378, %v6810
        %v7448 = vmul.f32 %v3379, %v6810
        %v7449 = vmul.f32 %v3380, %v6815
        %v7450 = vmul.f32 %v3381, %v6815
        %v7451 = vmul.f32 %v3382, %v6820
        %v7452 = vmul.f32 %v3383, %v6820
        %v7453 = vmul.f32 %v3384, %v6825
        %v7454 = vmul.f32 %v3385, %v6825
        %v7455 = vmul.f32 %v3386, %v6830
        %v7456 = vmul.f32 %v3387, %v6830
        %v7457 = vmul.f32 %v3388, %v6835
        %v7458 = vmul.f32 %v3389, %v6835
        %v7459 = vmul.f32 %v3390, %v6840
        %v7460 = vmul.f32 %v3391, %v6840
        %v7461 = vmul.f32 %v3392, %v6845
        %v7462 = vmul.f32 %v3393, %v6845
        %v7463 = vmul.f32 %v3394, %v6850
        %v7464 = vmul.f32 %v3395, %v6850
        %v7465 = vmul.f32 %v3396, %v6855
        %v7466 = vmul.f32 %v3397, %v6855
        %v7467 = vmul.f32 %v3398, %v6860
        %v7468 = vmul.f32 %v3399, %v6860
        %v7469 = vmul.f32 %v3400, %v6865
        %v7470 = vmul.f32 %v3401, %v6865
        %v7471 = vmul.f32 %v3402, %v6870
        %v7472 = vmul.f32 %v3403, %v6870
        %v7473 = vmul.f32 %v3404, %v6875
        %v7474 = vmul.f32 %v3405, %v6875
        %v7475 = vmul.f32 %v3406, %v6880
        %v7476 = vmul.f32 %v3407, %v6880
        %v7477 = vmul.f32 %v3408, %v6885
        %v7478 = vmul.f32 %v3409, %v6885
        %v7479 = vmul.f32 %v3410, %v6890
        %v7480 = vmul.f32 %v3411, %v6890
        %v7481 = vmul.f32 %v3412, %v6895
        %v7482 = vmul.f32 %v3413, %v6895
        %v7483 = vmul.f32 %v3414, %v6900
        %v7484 = vmul.f32 %v3415, %v6900
        %v7485 = vmul.f32 %v3416, %v6905
        %v7486 = vmul.f32 %v3417, %v6905
        %v7487 = vmul.f32 %v3418, %v6910
        %v7488 = vmul.f32 %v3419, %v6910
        %v7489 = vmul.f32 %v3420, %v6915
        %v7490 = vmul.f32 %v3421, %v6915
        %v7491 = vmul.f32 %v3422, %v6920
        %v7492 = vmul.f32 %v3423, %v6920
        %v7493 = vmul.f32 %v3424, %v6925
        %v7494 = vmul.f32 %v3425, %v6925
        %v7495 = vmul.f32 %v3426, %v6930
        %v7496 = vmul.f32 %v3427, %v6930
        %v7497 = vmul.f32 %v3428, %v6935
        %v7498 = vmul.f32 %v3429, %v6935
        %v7499 = vmul.f32 %v3430, %v6940
        %v7500 = vmul.f32 %v3431, %v6940
        %v7501 = vmul.f32 %v3432, %v6945
        %v7502 = vmul.f32 %v3433, %v6945
        %v7503 = vmul.f32 %v3434, %v6950
        %v7504 = vmul.f32 %v3435, %v6950
        %v7505 = vmul.f32 %v3436, %v6955
        %v7506 = vmul.f32 %v3437, %v6955
        %v7507 = vmul.f32 %v3438, %v6960
        %v7508 = vmul.f32 %v3439, %v6960
        %v7509 = vmul.f32 %v3440, %v6965
        %v7510 = vmul.f32 %v3441, %v6965
        %v7511 = vmul.f32 %v3442, %v6970
        %v7512 = vmul.f32 %v3443, %v6970
        %v7513 = vmul.f32 %v3444, %v6975
        %v7514 = vmul.f32 %v3445, %v6975
        %v7515 = vmul.f32 %v3446, %v6980
        %v7516 = vmul.f32 %v3447, %v6980
        %v7517 = vmul.f32 %v3448, %v6985
        %v7518 = vmul.f32 %v3449, %v6985
        %v7519 = vmul.f32 %v3450, %v6990
        %v7520 = vmul.f32 %v3451, %v6990
        %v7521 = vmul.f32 %v3452, %v6995
        %v7522 = vmul.f32 %v3453, %v6995
        %v7523 = vmul.f32 %v3454, %v7000
        %v7524 = vmul.f32 %v3455, %v7000
        %v7525 = vmul.f32 %v3456, %v7005
        %v7526 = vmul.f32 %v3457, %v7005
        %v7527 = vmul.f32 %v3458, %v7010
        %v7528 = vmul.f32 %v3459, %v7010
        %v7529 = vmul.f32 %v3460, %v7015
        %v7530 = vmul.f32 %v3461, %v7015
        %v7531 = vmul.f32 %v3462, %v7020
        %v7532 = vmul.f32 %v3463, %v7020
        %v7533 = vmul.f32 %v3464, %v7025
        %v7534 = vmul.f32 %v3465, %v7025
        %v7535 = vmul.f32 %v3466, %v7030
        %v7536 = vmul.f32 %v3467, %v7030
        %v7537 = vmul.f32 %v3468, %v7035
        %v7538 = vmul.f32 %v3469, %v7035
        %v7539 = vmul.f32 %v3470, %v7040
        %v7540 = vmul.f32 %v3471, %v7040
        %v7541 = vmul.f32 %v3472, %v7045
        %v7542 = vmul.f32 %v3473, %v7045
        %v7543 = vmul.f32 %v3474, %v7050
        %v7544 = vmul.f32 %v3475, %v7050
        %v7545 = vmul.f32 %v3476, %v7055
        %v7546 = vmul.f32 %v3477, %v7055
        %v7547 = vmul.f32 %v3478, %v7060
        %v7548 = vmul.f32 %v3479, %v7060
        %v7549 = vmul.f32 %v3480, %v7065
        %v7550 = vmul.f32 %v3481, %v7065
        %v7551 = vmul.f32 %v3482, %v7070
        %v7552 = vmul.f32 %v3483, %v7070
        %v7553 = vmul.f32 %v3484, %v7075
        %v7554 = vmul.f32 %v3485, %v7075
        %v7555 = vmul.f32 %v3486, %v7080
        %v7556 = vmul.f32 %v3487, %v7080
        %v7557 = vmul.f32 %v3488, %v7085
        %v7558 = vmul.f32 %v3489, %v7085
        %v7559 = vmul.f32 %v3490, %v7090
        %v7560 = vmul.f32 %v3491, %v7090
        %v7561 = vmul.f32 %v3492, %v7095
        %v7562 = vmul.f32 %v3493, %v7095
        %v7563 = vmul.f32 %v3494, %v7100
        %v7564 = vmul.f32 %v3495, %v7100
        %v7565 = vmul.f32 %v3496, %v7105
        %v7566 = vmul.f32 %v3497, %v7105
        %v7567 = vmul.f32 %v3498, %v7110
        %v7568 = vmul.f32 %v3499, %v7110
        %v7569 = vmul.f32 %v3500, %v7115
        %v7570 = vmul.f32 %v3501, %v7115
        %v7571 = vmul.f32 %v3502, %v7120
        %v7572 = vmul.f32 %v3503, %v7120
        %v7573 = vmul.f32 %v3504, %v7125
        %v7574 = vmul.f32 %v3505, %v7125
        %v7575 = vmul.f32 %v3506, %v7130
        %v7576 = vmul.f32 %v3507, %v7130
        %v7577 = vmul.f32 %v3508, %v7135
        %v7578 = vmul.f32 %v3509, %v7135
        %v7579 = vmul.f32 %v3510, %v7140
        %v7580 = vmul.f32 %v3511, %v7140
        %v7581 = vmul.f32 %v3512, %v7145
        %v7582 = vmul.f32 %v3513, %v7145
        %v7583 = vmul.f32 %v3514, %v7150
        %v7584 = vmul.f32 %v3515, %v7150
        %v7585 = vmul.f32 %v3516, %v7155
        %v7586 = vmul.f32 %v3517, %v7155
        %v7587 = vmul.f32 %v3518, %v7160
        %v7588 = vmul.f32 %v3519, %v7160
        %v7589 = vmul.f32 %v3520, %v7165
        %v7590 = vmul.f32 %v3521, %v7165
        %v7591 = vmul.f32 %v3522, %v7170
        %v7592 = vmul.f32 %v3523, %v7170
        %v7593 = vmul.f32 %v3524, %v7175
        %v7594 = vmul.f32 %v3525, %v7175
        %v7595 = vmul.f32 %v3526, %v7180
        %v7596 = vmul.f32 %v3527, %v7180
        %v7597 = vmul.f32 %v3528, %v7185
        %v7598 = vmul.f32 %v3529, %v7185
        %v7599 = vmul.f32 %v3530, %v7190
        %v7600 = vmul.f32 %v3531, %v7190
        %v7601 = vmul.f32 %v3532, %v7195
        %v7602 = vmul.f32 %v3533, %v7195
        %v7603 = vmul.f32 %v3534, %v7200
        %v7604 = vmul.f32 %v3535, %v7200
        %v7605 = vmul.f32 %v3536, %v7205
        %v7606 = vmul.f32 %v3537, %v7205
        %v7607 = vmul.f32 %v3538, %v7210
        %v7608 = vmul.f32 %v3539, %v7210
        %v7609 = vmul.f32 %v3540, %v7215
        %v7610 = vmul.f32 %v3541, %v7215
        %v7611 = vmul.f32 %v3542, %v7220
        %v7612 = vmul.f32 %v3543, %v7220
        %v7613 = vmul.f32 %v3544, %v7225
        %v7614 = vmul.f32 %v3545, %v7225
        %v7615 = vmul.f32 %v3546, %v7230
        %v7616 = vmul.f32 %v3547, %v7230
        %v7617 = vmul.f32 %v3548, %v7235
        %v7618 = vmul.f32 %v3549, %v7235
        %v7619 = vmul.f32 %v3550, %v7240
        %v7620 = vmul.f32 %v3551, %v7240
        %v7621 = vmul.f32 %v3552, %v7245
        %v7622 = vmul.f32 %v3553, %v7245
        %v7623 = vmul.f32 %v3554, %v7250
        %v7624 = vmul.f32 %v3555, %v7250
        %v7625 = vmul.f32 %v3556, %v7255
        %v7626 = vmul.f32 %v3557, %v7255
        %v7627 = vmul.f32 %v3558, %v7260
        %v7628 = vmul.f32 %v3559, %v7260
        %v7629 = vmul.f32 %v3560, %v7265
        %v7630 = vmul.f32 %v3561, %v7265
        %7632 = vset.pattern.permute.xlu0 1
        %7633 = vperm.xlu0 %7632, %v5629
        %v7634 = vpop.permute.xlu0 %7633
        %7637 = vset.pattern.permute.xlu0 1
        %7638 = vperm.xlu0 %7637, %v5630
        %v7639 = vpop.permute.xlu0 %7638
        %7642 = vset.pattern.permute.xlu0 1
        %7643 = vperm.xlu0 %7642, %v5631
        %v7644 = vpop.permute.xlu0 %7643
        %7647 = vset.pattern.permute.xlu0 1
        %7648 = vperm.xlu0 %7647, %v5632
        %v7649 = vpop.permute.xlu0 %7648
        %7652 = vset.pattern.permute.xlu0 1
        %7653 = vperm.xlu0 %7652, %v5633
        %v7654 = vpop.permute.xlu0 %7653
        %7657 = vset.pattern.permute.xlu0 1
        %7658 = vperm.xlu0 %7657, %v5634
        %v7659 = vpop.permute.xlu0 %7658
        %7662 = vset.pattern.permute.xlu0 1
        %7663 = vperm.xlu0 %7662, %v5635
        %v7664 = vpop.permute.xlu0 %7663
        %7667 = vset.pattern.permute.xlu0 1
        %7668 = vperm.xlu0 %7667, %v5636
        %v7669 = vpop.permute.xlu0 %7668
        %7672 = vset.pattern.permute.xlu0 1
        %7673 = vperm.xlu0 %7672, %v5637
        %v7674 = vpop.permute.xlu0 %7673
        %7677 = vset.pattern.permute.xlu0 1
        %7678 = vperm.xlu0 %7677, %v5638
        %v7679 = vpop.permute.xlu0 %7678
        %7682 = vset.pattern.permute.xlu0 1
        %7683 = vperm.xlu0 %7682, %v5639
        %v7684 = vpop.permute.xlu0 %7683
        %7687 = vset.pattern.permute.xlu0 1
        %7688 = vperm.xlu0 %7687, %v5640
        %v7689 = vpop.permute.xlu0 %7688
        %7692 = vset.pattern.permute.xlu0 1
        %7693 = vperm.xlu0 %7692, %v5641
        %v7694 = vpop.permute.xlu0 %7693
        %7697 = vset.pattern.permute.xlu0 1
        %7698 = vperm.xlu0 %7697, %v5642
        %v7699 = vpop.permute.xlu0 %7698
        %7702 = vset.pattern.permute.xlu0 1
        %7703 = vperm.xlu0 %7702, %v5643
        %v7704 = vpop.permute.xlu0 %7703
        %7707 = vset.pattern.permute.xlu0 1
        %7708 = vperm.xlu0 %7707, %v5644
        %v7709 = vpop.permute.xlu0 %7708
        %7712 = vset.pattern.permute.xlu0 1
        %7713 = vperm.xlu0 %7712, %v5645
        %v7714 = vpop.permute.xlu0 %7713
        %7717 = vset.pattern.permute.xlu0 1
        %7718 = vperm.xlu0 %7717, %v5646
        %v7719 = vpop.permute.xlu0 %7718
        %7722 = vset.pattern.permute.xlu0 1
        %7723 = vperm.xlu0 %7722, %v5647
        %v7724 = vpop.permute.xlu0 %7723
        %7727 = vset.pattern.permute.xlu0 1
        %7728 = vperm.xlu0 %7727, %v5648
        %v7729 = vpop.permute.xlu0 %7728
        %7732 = vset.pattern.permute.xlu0 1
        %7733 = vperm.xlu0 %7732, %v5649
        %v7734 = vpop.permute.xlu0 %7733
        %7737 = vset.pattern.permute.xlu0 1
        %7738 = vperm.xlu0 %7737, %v5650
        %v7739 = vpop.permute.xlu0 %7738
        %7742 = vset.pattern.permute.xlu0 1
        %7743 = vperm.xlu0 %7742, %v5651
        %v7744 = vpop.permute.xlu0 %7743
        %7747 = vset.pattern.permute.xlu0 1
        %7748 = vperm.xlu0 %7747, %v5652
        %v7749 = vpop.permute.xlu0 %7748
        %7752 = vset.pattern.permute.xlu0 1
        %7753 = vperm.xlu0 %7752, %v5653
        %v7754 = vpop.permute.xlu0 %7753
        %7757 = vset.pattern.permute.xlu0 1
        %7758 = vperm.xlu0 %7757, %v5654
        %v7759 = vpop.permute.xlu0 %7758
        %7762 = vset.pattern.permute.xlu0 1
        %7763 = vperm.xlu0 %7762, %v5655
        %v7764 = vpop.permute.xlu0 %7763
        %7767 = vset.pattern.permute.xlu0 1
        %7768 = vperm.xlu0 %7767, %v5656
        %v7769 = vpop.permute.xlu0 %7768
        %7772 = vset.pattern.permute.xlu0 1
        %7773 = vperm.xlu0 %7772, %v5657
        %v7774 = vpop.permute.xlu0 %7773
        %7777 = vset.pattern.permute.xlu0 1
        %7778 = vperm.xlu0 %7777, %v5658
        %v7779 = vpop.permute.xlu0 %7778
        %7782 = vset.pattern.permute.xlu0 1
        %7783 = vperm.xlu0 %7782, %v5659
        %v7784 = vpop.permute.xlu0 %7783
        %7787 = vset.pattern.permute.xlu0 1
        %7788 = vperm.xlu0 %7787, %v5660
        %v7789 = vpop.permute.xlu0 %7788
        %7792 = vset.pattern.permute.xlu0 1
        %7793 = vperm.xlu0 %7792, %v5661
        %v7794 = vpop.permute.xlu0 %7793
        %7797 = vset.pattern.permute.xlu0 1
        %7798 = vperm.xlu0 %7797, %v5662
        %v7799 = vpop.permute.xlu0 %7798
        %7802 = vset.pattern.permute.xlu0 1
        %7803 = vperm.xlu0 %7802, %v5663
        %v7804 = vpop.permute.xlu0 %7803
        %7807 = vset.pattern.permute.xlu0 1
        %7808 = vperm.xlu0 %7807, %v5664
        %v7809 = vpop.permute.xlu0 %7808
        %7812 = vset.pattern.permute.xlu0 1
        %7813 = vperm.xlu0 %7812, %v5665
        %v7814 = vpop.permute.xlu0 %7813
        %7817 = vset.pattern.permute.xlu0 1
        %7818 = vperm.xlu0 %7817, %v5666
        %v7819 = vpop.permute.xlu0 %7818
        %7822 = vset.pattern.permute.xlu0 1
        %7823 = vperm.xlu0 %7822, %v5667
        %v7824 = vpop.permute.xlu0 %7823
        %7827 = vset.pattern.permute.xlu0 1
        %7828 = vperm.xlu0 %7827, %v5668
        %v7829 = vpop.permute.xlu0 %7828
        %7832 = vset.pattern.permute.xlu0 1
        %7833 = vperm.xlu0 %7832, %v5669
        %v7834 = vpop.permute.xlu0 %7833
        %7837 = vset.pattern.permute.xlu0 1
        %7838 = vperm.xlu0 %7837, %v5670
        %v7839 = vpop.permute.xlu0 %7838
        %7842 = vset.pattern.permute.xlu0 1
        %7843 = vperm.xlu0 %7842, %v5671
        %v7844 = vpop.permute.xlu0 %7843
        %7847 = vset.pattern.permute.xlu0 1
        %7848 = vperm.xlu0 %7847, %v5672
        %v7849 = vpop.permute.xlu0 %7848
        %7852 = vset.pattern.permute.xlu0 1
        %7853 = vperm.xlu0 %7852, %v5673
        %v7854 = vpop.permute.xlu0 %7853
        %7857 = vset.pattern.permute.xlu0 1
        %7858 = vperm.xlu0 %7857, %v5674
        %v7859 = vpop.permute.xlu0 %7858
        %7862 = vset.pattern.permute.xlu0 1
        %7863 = vperm.xlu0 %7862, %v5675
        %v7864 = vpop.permute.xlu0 %7863
        %7867 = vset.pattern.permute.xlu0 1
        %7868 = vperm.xlu0 %7867, %v5676
        %v7869 = vpop.permute.xlu0 %7868
        %7872 = vset.pattern.permute.xlu0 1
        %7873 = vperm.xlu0 %7872, %v5677
        %v7874 = vpop.permute.xlu0 %7873
        %7877 = vset.pattern.permute.xlu0 1
        %7878 = vperm.xlu0 %7877, %v5678
        %v7879 = vpop.permute.xlu0 %7878
        %7882 = vset.pattern.permute.xlu0 1
        %7883 = vperm.xlu0 %7882, %v5679
        %v7884 = vpop.permute.xlu0 %7883
        %7887 = vset.pattern.permute.xlu0 1
        %7888 = vperm.xlu0 %7887, %v5680
        %v7889 = vpop.permute.xlu0 %7888
        %7892 = vset.pattern.permute.xlu0 1
        %7893 = vperm.xlu0 %7892, %v5681
        %v7894 = vpop.permute.xlu0 %7893
        %7897 = vset.pattern.permute.xlu0 1
        %7898 = vperm.xlu0 %7897, %v5682
        %v7899 = vpop.permute.xlu0 %7898
        %7902 = vset.pattern.permute.xlu0 1
        %7903 = vperm.xlu0 %7902, %v5683
        %v7904 = vpop.permute.xlu0 %7903
        %7907 = vset.pattern.permute.xlu0 1
        %7908 = vperm.xlu0 %7907, %v5684
        %v7909 = vpop.permute.xlu0 %7908
        %7912 = vset.pattern.permute.xlu0 1
        %7913 = vperm.xlu0 %7912, %v5685
        %v7914 = vpop.permute.xlu0 %7913
        %7917 = vset.pattern.permute.xlu0 1
        %7918 = vperm.xlu0 %7917, %v5686
        %v7919 = vpop.permute.xlu0 %7918
        %7922 = vset.pattern.permute.xlu0 1
        %7923 = vperm.xlu0 %7922, %v5687
        %v7924 = vpop.permute.xlu0 %7923
        %7927 = vset.pattern.permute.xlu0 1
        %7928 = vperm.xlu0 %7927, %v5688
        %v7929 = vpop.permute.xlu0 %7928
        %7932 = vset.pattern.permute.xlu0 1
        %7933 = vperm.xlu0 %7932, %v5689
        %v7934 = vpop.permute.xlu0 %7933
        %7937 = vset.pattern.permute.xlu0 1
        %7938 = vperm.xlu0 %7937, %v5690
        %v7939 = vpop.permute.xlu0 %7938
        %7942 = vset.pattern.permute.xlu0 1
        %7943 = vperm.xlu0 %7942, %v5691
        %v7944 = vpop.permute.xlu0 %7943
        %7947 = vset.pattern.permute.xlu0 1
        %7948 = vperm.xlu0 %7947, %v5692
        %v7949 = vpop.permute.xlu0 %7948
        %7952 = vset.pattern.permute.xlu0 1
        %7953 = vperm.xlu0 %7952, %v5693
        %v7954 = vpop.permute.xlu0 %7953
        %7957 = vset.pattern.permute.xlu0 1
        %7958 = vperm.xlu0 %7957, %v5694
        %v7959 = vpop.permute.xlu0 %7958
        %7962 = vset.pattern.permute.xlu0 1
        %7963 = vperm.xlu0 %7962, %v5695
        %v7964 = vpop.permute.xlu0 %7963
        %7967 = vset.pattern.permute.xlu0 1
        %7968 = vperm.xlu0 %7967, %v5696
        %v7969 = vpop.permute.xlu0 %7968
        %7972 = vset.pattern.permute.xlu0 1
        %7973 = vperm.xlu0 %7972, %v5697
        %v7974 = vpop.permute.xlu0 %7973
        %7977 = vset.pattern.permute.xlu0 1
        %7978 = vperm.xlu0 %7977, %v5698
        %v7979 = vpop.permute.xlu0 %7978
        %7982 = vset.pattern.permute.xlu0 1
        %7983 = vperm.xlu0 %7982, %v5699
        %v7984 = vpop.permute.xlu0 %7983
        %7987 = vset.pattern.permute.xlu0 1
        %7988 = vperm.xlu0 %7987, %v5700
        %v7989 = vpop.permute.xlu0 %7988
        %7992 = vset.pattern.permute.xlu0 1
        %7993 = vperm.xlu0 %7992, %v5701
        %v7994 = vpop.permute.xlu0 %7993
        %7997 = vset.pattern.permute.xlu0 1
        %7998 = vperm.xlu0 %7997, %v5702
        %v7999 = vpop.permute.xlu0 %7998
        %8002 = vset.pattern.permute.xlu0 1
        %8003 = vperm.xlu0 %8002, %v5703
        %v8004 = vpop.permute.xlu0 %8003
        %8007 = vset.pattern.permute.xlu0 1
        %8008 = vperm.xlu0 %8007, %v5704
        %v8009 = vpop.permute.xlu0 %8008
        %8012 = vset.pattern.permute.xlu0 1
        %8013 = vperm.xlu0 %8012, %v5705
        %v8014 = vpop.permute.xlu0 %8013
        %8017 = vset.pattern.permute.xlu0 1
        %8018 = vperm.xlu0 %8017, %v5706
        %v8019 = vpop.permute.xlu0 %8018
        %8022 = vset.pattern.permute.xlu0 1
        %8023 = vperm.xlu0 %8022, %v5707
        %v8024 = vpop.permute.xlu0 %8023
        %8027 = vset.pattern.permute.xlu0 1
        %8028 = vperm.xlu0 %8027, %v5708
        %v8029 = vpop.permute.xlu0 %8028
        %8032 = vset.pattern.permute.xlu0 1
        %8033 = vperm.xlu0 %8032, %v5709
        %v8034 = vpop.permute.xlu0 %8033
        %8037 = vset.pattern.permute.xlu0 1
        %8038 = vperm.xlu0 %8037, %v5710
        %v8039 = vpop.permute.xlu0 %8038
        %8042 = vset.pattern.permute.xlu0 1
        %8043 = vperm.xlu0 %8042, %v5711
        %v8044 = vpop.permute.xlu0 %8043
        %8047 = vset.pattern.permute.xlu0 1
        %8048 = vperm.xlu0 %8047, %v5712
        %v8049 = vpop.permute.xlu0 %8048
        %8052 = vset.pattern.permute.xlu0 1
        %8053 = vperm.xlu0 %8052, %v5713
        %v8054 = vpop.permute.xlu0 %8053
        %8057 = vset.pattern.permute.xlu0 1
        %8058 = vperm.xlu0 %8057, %v5714
        %v8059 = vpop.permute.xlu0 %8058
        %8062 = vset.pattern.permute.xlu0 1
        %8063 = vperm.xlu0 %8062, %v5715
        %v8064 = vpop.permute.xlu0 %8063
        %8067 = vset.pattern.permute.xlu0 1
        %8068 = vperm.xlu0 %8067, %v5716
        %v8069 = vpop.permute.xlu0 %8068
        %8072 = vset.pattern.permute.xlu0 1
        %8073 = vperm.xlu0 %8072, %v5717
        %v8074 = vpop.permute.xlu0 %8073
        %8077 = vset.pattern.permute.xlu0 1
        %8078 = vperm.xlu0 %8077, %v5718
        %v8079 = vpop.permute.xlu0 %8078
        %8082 = vset.pattern.permute.xlu0 1
        %8083 = vperm.xlu0 %8082, %v5719
        %v8084 = vpop.permute.xlu0 %8083
        %8087 = vset.pattern.permute.xlu0 1
        %8088 = vperm.xlu0 %8087, %v5720
        %v8089 = vpop.permute.xlu0 %8088
        %8092 = vset.pattern.permute.xlu0 1
        %8093 = vperm.xlu0 %8092, %v5721
        %v8094 = vpop.permute.xlu0 %8093
        %8097 = vset.pattern.permute.xlu0 1
        %8098 = vperm.xlu0 %8097, %v5722
        %v8099 = vpop.permute.xlu0 %8098
        %8102 = vset.pattern.permute.xlu0 1
        %8103 = vperm.xlu0 %8102, %v5723
        %v8104 = vpop.permute.xlu0 %8103
        %8107 = vset.pattern.permute.xlu0 1
        %8108 = vperm.xlu0 %8107, %v5724
        %v8109 = vpop.permute.xlu0 %8108
        %8112 = vset.pattern.permute.xlu0 1
        %8113 = vperm.xlu0 %8112, %v5725
        %v8114 = vpop.permute.xlu0 %8113
        %8117 = vset.pattern.permute.xlu0 1
        %8118 = vperm.xlu0 %8117, %v5726
        %v8119 = vpop.permute.xlu0 %8118
        %8122 = vset.pattern.permute.xlu0 1
        %8123 = vperm.xlu0 %8122, %v5727
        %v8124 = vpop.permute.xlu0 %8123
        %8127 = vset.pattern.permute.xlu0 1
        %8128 = vperm.xlu0 %8127, %v5728
        %v8129 = vpop.permute.xlu0 %8128
        %8132 = vset.pattern.permute.xlu0 1
        %8133 = vperm.xlu0 %8132, %v5729
        %v8134 = vpop.permute.xlu0 %8133
        %8137 = vset.pattern.permute.xlu0 1
        %8138 = vperm.xlu0 %8137, %v5730
        %v8139 = vpop.permute.xlu0 %8138
        %8142 = vset.pattern.permute.xlu0 1
        %8143 = vperm.xlu0 %8142, %v5731
        %v8144 = vpop.permute.xlu0 %8143
        %8147 = vset.pattern.permute.xlu0 1
        %8148 = vperm.xlu0 %8147, %v5732
        %v8149 = vpop.permute.xlu0 %8148
        %8152 = vset.pattern.permute.xlu0 1
        %8153 = vperm.xlu0 %8152, %v5733
        %v8154 = vpop.permute.xlu0 %8153
        %8157 = vset.pattern.permute.xlu0 1
        %8158 = vperm.xlu0 %8157, %v5734
        %v8159 = vpop.permute.xlu0 %8158
        %8162 = vset.pattern.permute.xlu0 1
        %8163 = vperm.xlu0 %8162, %v5735
        %v8164 = vpop.permute.xlu0 %8163
        %8167 = vset.pattern.permute.xlu0 1
        %8168 = vperm.xlu0 %8167, %v5736
        %v8169 = vpop.permute.xlu0 %8168
        %8172 = vset.pattern.permute.xlu0 1
        %8173 = vperm.xlu0 %8172, %v5737
        %v8174 = vpop.permute.xlu0 %8173
        %8177 = vset.pattern.permute.xlu0 1
        %8178 = vperm.xlu0 %8177, %v5738
        %v8179 = vpop.permute.xlu0 %8178
        %8182 = vset.pattern.permute.xlu0 1
        %8183 = vperm.xlu0 %8182, %v5739
        %v8184 = vpop.permute.xlu0 %8183
        %8187 = vset.pattern.permute.xlu0 1
        %8188 = vperm.xlu0 %8187, %v5740
        %v8189 = vpop.permute.xlu0 %8188
        %8192 = vset.pattern.permute.xlu0 1
        %8193 = vperm.xlu0 %8192, %v5741
        %v8194 = vpop.permute.xlu0 %8193
        %8197 = vset.pattern.permute.xlu0 1
        %8198 = vperm.xlu0 %8197, %v5742
        %v8199 = vpop.permute.xlu0 %8198
        %8202 = vset.pattern.permute.xlu0 1
        %8203 = vperm.xlu0 %8202, %v5743
        %v8204 = vpop.permute.xlu0 %8203
        %8207 = vset.pattern.permute.xlu0 1
        %8208 = vperm.xlu0 %8207, %v5744
        %v8209 = vpop.permute.xlu0 %8208
        %8212 = vset.pattern.permute.xlu0 1
        %8213 = vperm.xlu0 %8212, %v5745
        %v8214 = vpop.permute.xlu0 %8213
        %8217 = vset.pattern.permute.xlu0 1
        %8218 = vperm.xlu0 %8217, %v5746
        %v8219 = vpop.permute.xlu0 %8218
        %8222 = vset.pattern.permute.xlu0 1
        %8223 = vperm.xlu0 %8222, %v5747
        %v8224 = vpop.permute.xlu0 %8223
        %8227 = vset.pattern.permute.xlu0 1
        %8228 = vperm.xlu0 %8227, %v5748
        %v8229 = vpop.permute.xlu0 %8228
        %8232 = vset.pattern.permute.xlu0 1
        %8233 = vperm.xlu0 %8232, %v5749
        %v8234 = vpop.permute.xlu0 %8233
        %8237 = vset.pattern.permute.xlu0 1
        %8238 = vperm.xlu0 %8237, %v5750
        %v8239 = vpop.permute.xlu0 %8238
        %8242 = vset.pattern.permute.xlu0 1
        %8243 = vperm.xlu0 %8242, %v5751
        %v8244 = vpop.permute.xlu0 %8243
        %8247 = vset.pattern.permute.xlu0 1
        %8248 = vperm.xlu0 %8247, %v5752
        %v8249 = vpop.permute.xlu0 %8248
        %8252 = vset.pattern.permute.xlu0 1
        %8253 = vperm.xlu0 %8252, %v5753
        %v8254 = vpop.permute.xlu0 %8253
        %8257 = vset.pattern.permute.xlu0 1
        %8258 = vperm.xlu0 %8257, %v5754
        %v8259 = vpop.permute.xlu0 %8258
        %8262 = vset.pattern.permute.xlu0 1
        %8263 = vperm.xlu0 %8262, %v5755
        %v8264 = vpop.permute.xlu0 %8263
        %8267 = vset.pattern.permute.xlu0 1
        %8268 = vperm.xlu0 %8267, %v5756
        %v8269 = vpop.permute.xlu0 %8268
        %8272 = vset.pattern.permute.xlu0 1
        %8273 = vperm.xlu0 %8272, %v5757
        %v8274 = vpop.permute.xlu0 %8273
        %8277 = vset.pattern.permute.xlu0 1
        %8278 = vperm.xlu0 %8277, %v5758
        %v8279 = vpop.permute.xlu0 %8278
        %8282 = vset.pattern.permute.xlu0 1
        %8283 = vperm.xlu0 %8282, %v5759
        %v8284 = vpop.permute.xlu0 %8283
        %8287 = vset.pattern.permute.xlu0 1
        %8288 = vperm.xlu0 %8287, %v5760
        %v8289 = vpop.permute.xlu0 %8288
        %8292 = vset.pattern.permute.xlu0 1
        %8293 = vperm.xlu0 %8292, %v5761
        %v8294 = vpop.permute.xlu0 %8293
        %8297 = vset.pattern.permute.xlu0 1
        %8298 = vperm.xlu0 %8297, %v5762
        %v8299 = vpop.permute.xlu0 %8298
        %8302 = vset.pattern.permute.xlu0 1
        %8303 = vperm.xlu0 %8302, %v5763
        %v8304 = vpop.permute.xlu0 %8303
        %8307 = vset.pattern.permute.xlu0 1
        %8308 = vperm.xlu0 %8307, %v5764
        %v8309 = vpop.permute.xlu0 %8308
        %8312 = vset.pattern.permute.xlu0 1
        %8313 = vperm.xlu0 %8312, %v5765
        %v8314 = vpop.permute.xlu0 %8313
        %8317 = vset.pattern.permute.xlu0 1
        %8318 = vperm.xlu0 %8317, %v5766
        %v8319 = vpop.permute.xlu0 %8318
        %8322 = vset.pattern.permute.xlu0 1
        %8323 = vperm.xlu0 %8322, %v5767
        %v8324 = vpop.permute.xlu0 %8323
        %8327 = vset.pattern.permute.xlu0 1
        %8328 = vperm.xlu0 %8327, %v5768
        %v8329 = vpop.permute.xlu0 %8328
        %8332 = vset.pattern.permute.xlu0 1
        %8333 = vperm.xlu0 %8332, %v5769
        %v8334 = vpop.permute.xlu0 %8333
        %8337 = vset.pattern.permute.xlu0 1
        %8338 = vperm.xlu0 %8337, %v5770
        %v8339 = vpop.permute.xlu0 %8338
        %8342 = vset.pattern.permute.xlu0 1
        %8343 = vperm.xlu0 %8342, %v5771
        %v8344 = vpop.permute.xlu0 %8343
        %8347 = vset.pattern.permute.xlu0 1
        %8348 = vperm.xlu0 %8347, %v5772
        %v8349 = vpop.permute.xlu0 %8348
        %8352 = vset.pattern.permute.xlu0 1
        %8353 = vperm.xlu0 %8352, %v5773
        %v8354 = vpop.permute.xlu0 %8353
        %8357 = vset.pattern.permute.xlu0 1
        %8358 = vperm.xlu0 %8357, %v5774
        %v8359 = vpop.permute.xlu0 %8358
        %8362 = vset.pattern.permute.xlu0 1
        %8363 = vperm.xlu0 %8362, %v5775
        %v8364 = vpop.permute.xlu0 %8363
        %8367 = vset.pattern.permute.xlu0 1
        %8368 = vperm.xlu0 %8367, %v5776
        %v8369 = vpop.permute.xlu0 %8368
        %8372 = vset.pattern.permute.xlu0 1
        %8373 = vperm.xlu0 %8372, %v5777
        %v8374 = vpop.permute.xlu0 %8373
        %8377 = vset.pattern.permute.xlu0 1
        %8378 = vperm.xlu0 %8377, %v5778
        %v8379 = vpop.permute.xlu0 %8378
        %8382 = vset.pattern.permute.xlu0 1
        %8383 = vperm.xlu0 %8382, %v5779
        %v8384 = vpop.permute.xlu0 %8383
        %8387 = vset.pattern.permute.xlu0 1
        %8388 = vperm.xlu0 %8387, %v5780
        %v8389 = vpop.permute.xlu0 %8388
        %8392 = vset.pattern.permute.xlu0 1
        %8393 = vperm.xlu0 %8392, %v5781
        %v8394 = vpop.permute.xlu0 %8393
        %8397 = vset.pattern.permute.xlu0 1
        %8398 = vperm.xlu0 %8397, %v5782
        %v8399 = vpop.permute.xlu0 %8398
        %8402 = vset.pattern.permute.xlu0 1
        %8403 = vperm.xlu0 %8402, %v5783
        %v8404 = vpop.permute.xlu0 %8403
        %8407 = vset.pattern.permute.xlu0 1
        %8408 = vperm.xlu0 %8407, %v5784
        %v8409 = vpop.permute.xlu0 %8408
        %8412 = vset.pattern.permute.xlu0 1
        %8413 = vperm.xlu0 %8412, %v5785
        %v8414 = vpop.permute.xlu0 %8413
        %8417 = vset.pattern.permute.xlu0 1
        %8418 = vperm.xlu0 %8417, %v5786
        %v8419 = vpop.permute.xlu0 %8418
        %8422 = vset.pattern.permute.xlu0 1
        %8423 = vperm.xlu0 %8422, %v5787
        %v8424 = vpop.permute.xlu0 %8423
        %8427 = vset.pattern.permute.xlu0 1
        %8428 = vperm.xlu0 %8427, %v5788
        %v8429 = vpop.permute.xlu0 %8428
        %8432 = vset.pattern.permute.xlu0 1
        %8433 = vperm.xlu0 %8432, %v5789
        %v8434 = vpop.permute.xlu0 %8433
        %8437 = vset.pattern.permute.xlu0 1
        %8438 = vperm.xlu0 %8437, %v5790
        %v8439 = vpop.permute.xlu0 %8438
        %8442 = vset.pattern.permute.xlu0 1
        %8443 = vperm.xlu0 %8442, %v5791
        %v8444 = vpop.permute.xlu0 %8443
        %8447 = vset.pattern.permute.xlu0 1
        %8448 = vperm.xlu0 %8447, %v5792
        %v8449 = vpop.permute.xlu0 %8448
        %8452 = vset.pattern.permute.xlu0 1
        %8453 = vperm.xlu0 %8452, %v5793
        %v8454 = vpop.permute.xlu0 %8453
        %8457 = vset.pattern.permute.xlu0 1
        %8458 = vperm.xlu0 %8457, %v5794
        %v8459 = vpop.permute.xlu0 %8458
        %8462 = vset.pattern.permute.xlu0 1
        %8463 = vperm.xlu0 %8462, %v5795
        %v8464 = vpop.permute.xlu0 %8463
        %8467 = vset.pattern.permute.xlu0 1
        %8468 = vperm.xlu0 %8467, %v5796
        %v8469 = vpop.permute.xlu0 %8468
        %8472 = vset.pattern.permute.xlu0 1
        %8473 = vperm.xlu0 %8472, %v5797
        %v8474 = vpop.permute.xlu0 %8473
        %8477 = vset.pattern.permute.xlu0 1
        %8478 = vperm.xlu0 %8477, %v5798
        %v8479 = vpop.permute.xlu0 %8478
        %8482 = vset.pattern.permute.xlu0 1
        %8483 = vperm.xlu0 %8482, %v5799
        %v8484 = vpop.permute.xlu0 %8483
        %8487 = vset.pattern.permute.xlu0 1
        %8488 = vperm.xlu0 %8487, %v5800
        %v8489 = vpop.permute.xlu0 %8488
        %8492 = vset.pattern.permute.xlu0 1
        %8493 = vperm.xlu0 %8492, %v5801
        %v8494 = vpop.permute.xlu0 %8493
        %8497 = vset.pattern.permute.xlu0 1
        %8498 = vperm.xlu0 %8497, %v5802
        %v8499 = vpop.permute.xlu0 %8498
        %8502 = vset.pattern.permute.xlu0 1
        %8503 = vperm.xlu0 %8502, %v5803
        %v8504 = vpop.permute.xlu0 %8503
        %8507 = vset.pattern.permute.xlu0 1
        %8508 = vperm.xlu0 %8507, %v5804
        %v8509 = vpop.permute.xlu0 %8508
        %8512 = vset.pattern.permute.xlu0 1
        %8513 = vperm.xlu0 %8512, %v5805
        %v8514 = vpop.permute.xlu0 %8513
        %8517 = vset.pattern.permute.xlu0 1
        %8518 = vperm.xlu0 %8517, %v5806
        %v8519 = vpop.permute.xlu0 %8518
        %8522 = vset.pattern.permute.xlu0 1
        %8523 = vperm.xlu0 %8522, %v5807
        %v8524 = vpop.permute.xlu0 %8523
        %8527 = vset.pattern.permute.xlu0 1
        %8528 = vperm.xlu0 %8527, %v5808
        %v8529 = vpop.permute.xlu0 %8528
        %8532 = vset.pattern.permute.xlu0 1
        %8533 = vperm.xlu0 %8532, %v5809
        %v8534 = vpop.permute.xlu0 %8533
        %8537 = vset.pattern.permute.xlu0 1
        %8538 = vperm.xlu0 %8537, %v5810
        %v8539 = vpop.permute.xlu0 %8538
        %v8541 = vadd.f32 %v7267, %v7634
        %v8542 = vadd.f32 %v7268, %v7634
        %v8543 = vadd.f32 %v7269, %v7639
        %v8544 = vadd.f32 %v7270, %v7639
        %v8545 = vadd.f32 %v7271, %v7644
        %v8546 = vadd.f32 %v7272, %v7644
        %v8547 = vadd.f32 %v7273, %v7649
        %v8548 = vadd.f32 %v7274, %v7649
        %v8549 = vadd.f32 %v7275, %v7654
        %v8550 = vadd.f32 %v7276, %v7654
        %v8551 = vadd.f32 %v7277, %v7659
        %v8552 = vadd.f32 %v7278, %v7659
        %v8553 = vadd.f32 %v7279, %v7664
        %v8554 = vadd.f32 %v7280, %v7664
        %v8555 = vadd.f32 %v7281, %v7669
        %v8556 = vadd.f32 %v7282, %v7669
        %v8557 = vadd.f32 %v7283, %v7674
        %v8558 = vadd.f32 %v7284, %v7674
        %v8559 = vadd.f32 %v7285, %v7679
        %v8560 = vadd.f32 %v7286, %v7679
        %v8561 = vadd.f32 %v7287, %v7684
        %v8562 = vadd.f32 %v7288, %v7684
        %v8563 = vadd.f32 %v7289, %v7689
        %v8564 = vadd.f32 %v7290, %v7689
        %v8565 = vadd.f32 %v7291, %v7694
        %v8566 = vadd.f32 %v7292, %v7694
        %v8567 = vadd.f32 %v7293, %v7699
        %v8568 = vadd.f32 %v7294, %v7699
        %v8569 = vadd.f32 %v7295, %v7704
        %v8570 = vadd.f32 %v7296, %v7704
        %v8571 = vadd.f32 %v7297, %v7709
        %v8572 = vadd.f32 %v7298, %v7709
        %v8573 = vadd.f32 %v7299, %v7714
        %v8574 = vadd.f32 %v7300, %v7714
        %v8575 = vadd.f32 %v7301, %v7719
        %v8576 = vadd.f32 %v7302, %v7719
        %v8577 = vadd.f32 %v7303, %v7724
        %v8578 = vadd.f32 %v7304, %v7724
        %v8579 = vadd.f32 %v7305, %v7729
        %v8580 = vadd.f32 %v7306, %v7729
        %v8581 = vadd.f32 %v7307, %v7734
        %v8582 = vadd.f32 %v7308, %v7734
        %v8583 = vadd.f32 %v7309, %v7739
        %v8584 = vadd.f32 %v7310, %v7739
        %v8585 = vadd.f32 %v7311, %v7744
        %v8586 = vadd.f32 %v7312, %v7744
        %v8587 = vadd.f32 %v7313, %v7749
        %v8588 = vadd.f32 %v7314, %v7749
        %v8589 = vadd.f32 %v7315, %v7754
        %v8590 = vadd.f32 %v7316, %v7754
        %v8591 = vadd.f32 %v7317, %v7759
        %v8592 = vadd.f32 %v7318, %v7759
        %v8593 = vadd.f32 %v7319, %v7764
        %v8594 = vadd.f32 %v7320, %v7764
        %v8595 = vadd.f32 %v7321, %v7769
        %v8596 = vadd.f32 %v7322, %v7769
        %v8597 = vadd.f32 %v7323, %v7774
        %v8598 = vadd.f32 %v7324, %v7774
        %v8599 = vadd.f32 %v7325, %v7779
        %v8600 = vadd.f32 %v7326, %v7779
        %v8601 = vadd.f32 %v7327, %v7784
        %v8602 = vadd.f32 %v7328, %v7784
        %v8603 = vadd.f32 %v7329, %v7789
        %v8604 = vadd.f32 %v7330, %v7789
        %v8605 = vadd.f32 %v7331, %v7794
        %v8606 = vadd.f32 %v7332, %v7794
        %v8607 = vadd.f32 %v7333, %v7799
        %v8608 = vadd.f32 %v7334, %v7799
        %v8609 = vadd.f32 %v7335, %v7804
        %v8610 = vadd.f32 %v7336, %v7804
        %v8611 = vadd.f32 %v7337, %v7809
        %v8612 = vadd.f32 %v7338, %v7809
        %v8613 = vadd.f32 %v7339, %v7814
        %v8614 = vadd.f32 %v7340, %v7814
        %v8615 = vadd.f32 %v7341, %v7819
        %v8616 = vadd.f32 %v7342, %v7819
        %v8617 = vadd.f32 %v7343, %v7824
        %v8618 = vadd.f32 %v7344, %v7824
        %v8619 = vadd.f32 %v7345, %v7829
        %v8620 = vadd.f32 %v7346, %v7829
        %v8621 = vadd.f32 %v7347, %v7834
        %v8622 = vadd.f32 %v7348, %v7834
        %v8623 = vadd.f32 %v7349, %v7839
        %v8624 = vadd.f32 %v7350, %v7839
        %v8625 = vadd.f32 %v7351, %v7844
        %v8626 = vadd.f32 %v7352, %v7844
        %v8627 = vadd.f32 %v7353, %v7849
        %v8628 = vadd.f32 %v7354, %v7849
        %v8629 = vadd.f32 %v7355, %v7854
        %v8630 = vadd.f32 %v7356, %v7854
        %v8631 = vadd.f32 %v7357, %v7859
        %v8632 = vadd.f32 %v7358, %v7859
        %v8633 = vadd.f32 %v7359, %v7864
        %v8634 = vadd.f32 %v7360, %v7864
        %v8635 = vadd.f32 %v7361, %v7869
        %v8636 = vadd.f32 %v7362, %v7869
        %v8637 = vadd.f32 %v7363, %v7874
        %v8638 = vadd.f32 %v7364, %v7874
        %v8639 = vadd.f32 %v7365, %v7879
        %v8640 = vadd.f32 %v7366, %v7879
        %v8641 = vadd.f32 %v7367, %v7884
        %v8642 = vadd.f32 %v7368, %v7884
        %v8643 = vadd.f32 %v7369, %v7889
        %v8644 = vadd.f32 %v7370, %v7889
        %v8645 = vadd.f32 %v7371, %v7894
        %v8646 = vadd.f32 %v7372, %v7894
        %v8647 = vadd.f32 %v7373, %v7899
        %v8648 = vadd.f32 %v7374, %v7899
        %v8649 = vadd.f32 %v7375, %v7904
        %v8650 = vadd.f32 %v7376, %v7904
        %v8651 = vadd.f32 %v7377, %v7909
        %v8652 = vadd.f32 %v7378, %v7909
        %v8653 = vadd.f32 %v7379, %v7914
        %v8654 = vadd.f32 %v7380, %v7914
        %v8655 = vadd.f32 %v7381, %v7919
        %v8656 = vadd.f32 %v7382, %v7919
        %v8657 = vadd.f32 %v7383, %v7924
        %v8658 = vadd.f32 %v7384, %v7924
        %v8659 = vadd.f32 %v7385, %v7929
        %v8660 = vadd.f32 %v7386, %v7929
        %v8661 = vadd.f32 %v7387, %v7934
        %v8662 = vadd.f32 %v7388, %v7934
        %v8663 = vadd.f32 %v7389, %v7939
        %v8664 = vadd.f32 %v7390, %v7939
        %v8665 = vadd.f32 %v7391, %v7944
        %v8666 = vadd.f32 %v7392, %v7944
        %v8667 = vadd.f32 %v7393, %v7949
        %v8668 = vadd.f32 %v7394, %v7949
        %v8669 = vadd.f32 %v7395, %v7954
        %v8670 = vadd.f32 %v7396, %v7954
        %v8671 = vadd.f32 %v7397, %v7959
        %v8672 = vadd.f32 %v7398, %v7959
        %v8673 = vadd.f32 %v7399, %v7964
        %v8674 = vadd.f32 %v7400, %v7964
        %v8675 = vadd.f32 %v7401, %v7969
        %v8676 = vadd.f32 %v7402, %v7969
        %v8677 = vadd.f32 %v7403, %v7974
        %v8678 = vadd.f32 %v7404, %v7974
        %v8679 = vadd.f32 %v7405, %v7979
        %v8680 = vadd.f32 %v7406, %v7979
        %v8681 = vadd.f32 %v7407, %v7984
        %v8682 = vadd.f32 %v7408, %v7984
        %v8683 = vadd.f32 %v7409, %v7989
        %v8684 = vadd.f32 %v7410, %v7989
        %v8685 = vadd.f32 %v7411, %v7994
        %v8686 = vadd.f32 %v7412, %v7994
        %v8687 = vadd.f32 %v7413, %v7999
        %v8688 = vadd.f32 %v7414, %v7999
        %v8689 = vadd.f32 %v7415, %v8004
        %v8690 = vadd.f32 %v7416, %v8004
        %v8691 = vadd.f32 %v7417, %v8009
        %v8692 = vadd.f32 %v7418, %v8009
        %v8693 = vadd.f32 %v7419, %v8014
        %v8694 = vadd.f32 %v7420, %v8014
        %v8695 = vadd.f32 %v7421, %v8019
        %v8696 = vadd.f32 %v7422, %v8019
        %v8697 = vadd.f32 %v7423, %v8024
        %v8698 = vadd.f32 %v7424, %v8024
        %v8699 = vadd.f32 %v7425, %v8029
        %v8700 = vadd.f32 %v7426, %v8029
        %v8701 = vadd.f32 %v7427, %v8034
        %v8702 = vadd.f32 %v7428, %v8034
        %v8703 = vadd.f32 %v7429, %v8039
        %v8704 = vadd.f32 %v7430, %v8039
        %v8705 = vadd.f32 %v7431, %v8044
        %v8706 = vadd.f32 %v7432, %v8044
        %v8707 = vadd.f32 %v7433, %v8049
        %v8708 = vadd.f32 %v7434, %v8049
        %v8709 = vadd.f32 %v7435, %v8054
        %v8710 = vadd.f32 %v7436, %v8054
        %v8711 = vadd.f32 %v7437, %v8059
        %v8712 = vadd.f32 %v7438, %v8059
        %v8713 = vadd.f32 %v7439, %v8064
        %v8714 = vadd.f32 %v7440, %v8064
        %v8715 = vadd.f32 %v7441, %v8069
        %v8716 = vadd.f32 %v7442, %v8069
        %v8717 = vadd.f32 %v7443, %v8074
        %v8718 = vadd.f32 %v7444, %v8074
        %v8719 = vadd.f32 %v7445, %v8079
        %v8720 = vadd.f32 %v7446, %v8079
        %v8721 = vadd.f32 %v7447, %v8084
        %v8722 = vadd.f32 %v7448, %v8084
        %v8723 = vadd.f32 %v7449, %v8089
        %v8724 = vadd.f32 %v7450, %v8089
        %v8725 = vadd.f32 %v7451, %v8094
        %v8726 = vadd.f32 %v7452, %v8094
        %v8727 = vadd.f32 %v7453, %v8099
        %v8728 = vadd.f32 %v7454, %v8099
        %v8729 = vadd.f32 %v7455, %v8104
        %v8730 = vadd.f32 %v7456, %v8104
        %v8731 = vadd.f32 %v7457, %v8109
        %v8732 = vadd.f32 %v7458, %v8109
        %v8733 = vadd.f32 %v7459, %v8114
        %v8734 = vadd.f32 %v7460, %v8114
        %v8735 = vadd.f32 %v7461, %v8119
        %v8736 = vadd.f32 %v7462, %v8119
        %v8737 = vadd.f32 %v7463, %v8124
        %v8738 = vadd.f32 %v7464, %v8124
        %v8739 = vadd.f32 %v7465, %v8129
        %v8740 = vadd.f32 %v7466, %v8129
        %v8741 = vadd.f32 %v7467, %v8134
        %v8742 = vadd.f32 %v7468, %v8134
        %v8743 = vadd.f32 %v7469, %v8139
        %v8744 = vadd.f32 %v7470, %v8139
        %v8745 = vadd.f32 %v7471, %v8144
        %v8746 = vadd.f32 %v7472, %v8144
        %v8747 = vadd.f32 %v7473, %v8149
        %v8748 = vadd.f32 %v7474, %v8149
        %v8749 = vadd.f32 %v7475, %v8154
        %v8750 = vadd.f32 %v7476, %v8154
        %v8751 = vadd.f32 %v7477, %v8159
        %v8752 = vadd.f32 %v7478, %v8159
        %v8753 = vadd.f32 %v7479, %v8164
        %v8754 = vadd.f32 %v7480, %v8164
        %v8755 = vadd.f32 %v7481, %v8169
        %v8756 = vadd.f32 %v7482, %v8169
        %v8757 = vadd.f32 %v7483, %v8174
        %v8758 = vadd.f32 %v7484, %v8174
        %v8759 = vadd.f32 %v7485, %v8179
        %v8760 = vadd.f32 %v7486, %v8179
        %v8761 = vadd.f32 %v7487, %v8184
        %v8762 = vadd.f32 %v7488, %v8184
        %v8763 = vadd.f32 %v7489, %v8189
        %v8764 = vadd.f32 %v7490, %v8189
        %v8765 = vadd.f32 %v7491, %v8194
        %v8766 = vadd.f32 %v7492, %v8194
        %v8767 = vadd.f32 %v7493, %v8199
        %v8768 = vadd.f32 %v7494, %v8199
        %v8769 = vadd.f32 %v7495, %v8204
        %v8770 = vadd.f32 %v7496, %v8204
        %v8771 = vadd.f32 %v7497, %v8209
        %v8772 = vadd.f32 %v7498, %v8209
        %v8773 = vadd.f32 %v7499, %v8214
        %v8774 = vadd.f32 %v7500, %v8214
        %v8775 = vadd.f32 %v7501, %v8219
        %v8776 = vadd.f32 %v7502, %v8219
        %v8777 = vadd.f32 %v7503, %v8224
        %v8778 = vadd.f32 %v7504, %v8224
        %v8779 = vadd.f32 %v7505, %v8229
        %v8780 = vadd.f32 %v7506, %v8229
        %v8781 = vadd.f32 %v7507, %v8234
        %v8782 = vadd.f32 %v7508, %v8234
        %v8783 = vadd.f32 %v7509, %v8239
        %v8784 = vadd.f32 %v7510, %v8239
        %v8785 = vadd.f32 %v7511, %v8244
        %v8786 = vadd.f32 %v7512, %v8244
        %v8787 = vadd.f32 %v7513, %v8249
        %v8788 = vadd.f32 %v7514, %v8249
        %v8789 = vadd.f32 %v7515, %v8254
        %v8790 = vadd.f32 %v7516, %v8254
        %v8791 = vadd.f32 %v7517, %v8259
        %v8792 = vadd.f32 %v7518, %v8259
        %v8793 = vadd.f32 %v7519, %v8264
        %v8794 = vadd.f32 %v7520, %v8264
        %v8795 = vadd.f32 %v7521, %v8269
        %v8796 = vadd.f32 %v7522, %v8269
        %v8797 = vadd.f32 %v7523, %v8274
        %v8798 = vadd.f32 %v7524, %v8274
        %v8799 = vadd.f32 %v7525, %v8279
        %v8800 = vadd.f32 %v7526, %v8279
        %v8801 = vadd.f32 %v7527, %v8284
        %v8802 = vadd.f32 %v7528, %v8284
        %v8803 = vadd.f32 %v7529, %v8289
        %v8804 = vadd.f32 %v7530, %v8289
        %v8805 = vadd.f32 %v7531, %v8294
        %v8806 = vadd.f32 %v7532, %v8294
        %v8807 = vadd.f32 %v7533, %v8299
        %v8808 = vadd.f32 %v7534, %v8299
        %v8809 = vadd.f32 %v7535, %v8304
        %v8810 = vadd.f32 %v7536, %v8304
        %v8811 = vadd.f32 %v7537, %v8309
        %v8812 = vadd.f32 %v7538, %v8309
        %v8813 = vadd.f32 %v7539, %v8314
        %v8814 = vadd.f32 %v7540, %v8314
        %v8815 = vadd.f32 %v7541, %v8319
        %v8816 = vadd.f32 %v7542, %v8319
        %v8817 = vadd.f32 %v7543, %v8324
        %v8818 = vadd.f32 %v7544, %v8324
        %v8819 = vadd.f32 %v7545, %v8329
        %v8820 = vadd.f32 %v7546, %v8329
        %v8821 = vadd.f32 %v7547, %v8334
        %v8822 = vadd.f32 %v7548, %v8334
        %v8823 = vadd.f32 %v7549, %v8339
        %v8824 = vadd.f32 %v7550, %v8339
        %v8825 = vadd.f32 %v7551, %v8344
        %v8826 = vadd.f32 %v7552, %v8344
        %v8827 = vadd.f32 %v7553, %v8349
        %v8828 = vadd.f32 %v7554, %v8349
        %v8829 = vadd.f32 %v7555, %v8354
        %v8830 = vadd.f32 %v7556, %v8354
        %v8831 = vadd.f32 %v7557, %v8359
        %v8832 = vadd.f32 %v7558, %v8359
        %v8833 = vadd.f32 %v7559, %v8364
        %v8834 = vadd.f32 %v7560, %v8364
        %v8835 = vadd.f32 %v7561, %v8369
        %v8836 = vadd.f32 %v7562, %v8369
        %v8837 = vadd.f32 %v7563, %v8374
        %v8838 = vadd.f32 %v7564, %v8374
        %v8839 = vadd.f32 %v7565, %v8379
        %v8840 = vadd.f32 %v7566, %v8379
        %v8841 = vadd.f32 %v7567, %v8384
        %v8842 = vadd.f32 %v7568, %v8384
        %v8843 = vadd.f32 %v7569, %v8389
        %v8844 = vadd.f32 %v7570, %v8389
        %v8845 = vadd.f32 %v7571, %v8394
        %v8846 = vadd.f32 %v7572, %v8394
        %v8847 = vadd.f32 %v7573, %v8399
        %v8848 = vadd.f32 %v7574, %v8399
        %v8849 = vadd.f32 %v7575, %v8404
        %v8850 = vadd.f32 %v7576, %v8404
        %v8851 = vadd.f32 %v7577, %v8409
        %v8852 = vadd.f32 %v7578, %v8409
        %v8853 = vadd.f32 %v7579, %v8414
        %v8854 = vadd.f32 %v7580, %v8414
        %v8855 = vadd.f32 %v7581, %v8419
        %v8856 = vadd.f32 %v7582, %v8419
        %v8857 = vadd.f32 %v7583, %v8424
        %v8858 = vadd.f32 %v7584, %v8424
        %v8859 = vadd.f32 %v7585, %v8429
        %v8860 = vadd.f32 %v7586, %v8429
        %v8861 = vadd.f32 %v7587, %v8434
        %v8862 = vadd.f32 %v7588, %v8434
        %v8863 = vadd.f32 %v7589, %v8439
        %v8864 = vadd.f32 %v7590, %v8439
        %v8865 = vadd.f32 %v7591, %v8444
        %v8866 = vadd.f32 %v7592, %v8444
        %v8867 = vadd.f32 %v7593, %v8449
        %v8868 = vadd.f32 %v7594, %v8449
        %v8869 = vadd.f32 %v7595, %v8454
        %v8870 = vadd.f32 %v7596, %v8454
        %v8871 = vadd.f32 %v7597, %v8459
        %v8872 = vadd.f32 %v7598, %v8459
        %v8873 = vadd.f32 %v7599, %v8464
        %v8874 = vadd.f32 %v7600, %v8464
        %v8875 = vadd.f32 %v7601, %v8469
        %v8876 = vadd.f32 %v7602, %v8469
        %v8877 = vadd.f32 %v7603, %v8474
        %v8878 = vadd.f32 %v7604, %v8474
        %v8879 = vadd.f32 %v7605, %v8479
        %v8880 = vadd.f32 %v7606, %v8479
        %v8881 = vadd.f32 %v7607, %v8484
        %v8882 = vadd.f32 %v7608, %v8484
        %v8883 = vadd.f32 %v7609, %v8489
        %v8884 = vadd.f32 %v7610, %v8489
        %v8885 = vadd.f32 %v7611, %v8494
        %v8886 = vadd.f32 %v7612, %v8494
        %v8887 = vadd.f32 %v7613, %v8499
        %v8888 = vadd.f32 %v7614, %v8499
        %v8889 = vadd.f32 %v7615, %v8504
        %v8890 = vadd.f32 %v7616, %v8504
        %v8891 = vadd.f32 %v7617, %v8509
        %v8892 = vadd.f32 %v7618, %v8509
        %v8893 = vadd.f32 %v7619, %v8514
        %v8894 = vadd.f32 %v7620, %v8514
        %v8895 = vadd.f32 %v7621, %v8519
        %v8896 = vadd.f32 %v7622, %v8519
        %v8897 = vadd.f32 %v7623, %v8524
        %v8898 = vadd.f32 %v7624, %v8524
        %v8899 = vadd.f32 %v7625, %v8529
        %v8900 = vadd.f32 %v7626, %v8529
        %v8901 = vadd.f32 %v7627, %v8534
        %v8902 = vadd.f32 %v7628, %v8534
        %v8903 = vadd.f32 %v7629, %v8539
        %v8904 = vadd.f32 %v7630, %v8539
        %8905 = vst [vmem:[%s178] sm:$0xff] %v8541
        %8906 = vst.msk [vmem:[%s178 + $0x8] sm:$0xff] %vm580, %v8542
        %8907 = vst [vmem:[%s178 + $0x10] sm:$0xff] %v8543
        %8908 = vst.msk [vmem:[%s178 + $0x18] sm:$0xff] %vm580, %v8544
        %8909 = vst [vmem:[%s178 + $0x20] sm:$0xff] %v8545
        %8910 = vst.msk [vmem:[%s178 + $0x28] sm:$0xff] %vm580, %v8546
        %8911 = vst [vmem:[%s178 + $0x30] sm:$0xff] %v8547
        %8912 = vst.msk [vmem:[%s178 + $0x38] sm:$0xff] %vm580, %v8548
        %8913 = vst [vmem:[%s178 + $0x40] sm:$0xff] %v8549
        %8914 = vst.msk [vmem:[%s178 + $0x48] sm:$0xff] %vm580, %v8550
        %8915 = vst [vmem:[%s178 + $0x50] sm:$0xff] %v8551
        %8916 = vst.msk [vmem:[%s178 + $0x58] sm:$0xff] %vm580, %v8552
        %8917 = vst [vmem:[%s178 + $0x60] sm:$0xff] %v8553
        %8918 = vst.msk [vmem:[%s178 + $0x68] sm:$0xff] %vm580, %v8554
        %8919 = vst [vmem:[%s178 + $0x70] sm:$0xff] %v8555
        %8920 = vst.msk [vmem:[%s178 + $0x78] sm:$0xff] %vm580, %v8556
        %8921 = vst [vmem:[%s178 + $0x80] sm:$0xff] %v8557
        %8922 = vst.msk [vmem:[%s178 + $0x88] sm:$0xff] %vm580, %v8558
        %8923 = vst [vmem:[%s178 + $0x90] sm:$0xff] %v8559
        %8924 = vst.msk [vmem:[%s178 + $0x98] sm:$0xff] %vm580, %v8560
        %8925 = vst [vmem:[%s178 + $0xa0] sm:$0xff] %v8561
        %8926 = vst.msk [vmem:[%s178 + $0xa8] sm:$0xff] %vm580, %v8562
        %8927 = vst [vmem:[%s178 + $0xb0] sm:$0xff] %v8563
        %8928 = vst.msk [vmem:[%s178 + $0xb8] sm:$0xff] %vm580, %v8564
        %8929 = vst [vmem:[%s178 + $0xc0] sm:$0xff] %v8565
        %8930 = vst.msk [vmem:[%s178 + $0xc8] sm:$0xff] %vm580, %v8566
        %8931 = vst [vmem:[%s178 + $0xd0] sm:$0xff] %v8567
        %8932 = vst.msk [vmem:[%s178 + $0xd8] sm:$0xff] %vm580, %v8568
        %8933 = vst [vmem:[%s178 + $0xe0] sm:$0xff] %v8569
        %8934 = vst.msk [vmem:[%s178 + $0xe8] sm:$0xff] %vm580, %v8570
        %8935 = vst [vmem:[%s178 + $0xf0] sm:$0xff] %v8571
        %8936 = vst.msk [vmem:[%s178 + $0xf8] sm:$0xff] %vm580, %v8572
        %8937 = vst [vmem:[%s178 + $0x100] sm:$0xff] %v8573
        %8938 = vst.msk [vmem:[%s178 + $0x108] sm:$0xff] %vm580, %v8574
        %8939 = vst [vmem:[%s178 + $0x110] sm:$0xff] %v8575
        %8940 = vst.msk [vmem:[%s178 + $0x118] sm:$0xff] %vm580, %v8576
        %8941 = vst [vmem:[%s178 + $0x120] sm:$0xff] %v8577
        %8942 = vst.msk [vmem:[%s178 + $0x128] sm:$0xff] %vm580, %v8578
        %8943 = vst [vmem:[%s178 + $0x130] sm:$0xff] %v8579
        %8944 = vst.msk [vmem:[%s178 + $0x138] sm:$0xff] %vm580, %v8580
        %8945 = vst [vmem:[%s178 + $0x140] sm:$0xff] %v8581
        %8946 = vst.msk [vmem:[%s178 + $0x148] sm:$0xff] %vm580, %v8582
        %8947 = vst [vmem:[%s178 + $0x150] sm:$0xff] %v8583
        %8948 = vst.msk [vmem:[%s178 + $0x158] sm:$0xff] %vm580, %v8584
        %8949 = vst [vmem:[%s178 + $0x160] sm:$0xff] %v8585
        %8950 = vst.msk [vmem:[%s178 + $0x168] sm:$0xff] %vm580, %v8586
        %8951 = vst [vmem:[%s178 + $0x170] sm:$0xff] %v8587
        %8952 = vst.msk [vmem:[%s178 + $0x178] sm:$0xff] %vm580, %v8588
        %8953 = vst [vmem:[%s178 + $0x180] sm:$0xff] %v8589
        %8954 = vst.msk [vmem:[%s178 + $0x188] sm:$0xff] %vm580, %v8590
        %8955 = vst [vmem:[%s178 + $0x190] sm:$0xff] %v8591
        %8956 = vst.msk [vmem:[%s178 + $0x198] sm:$0xff] %vm580, %v8592
        %8957 = vst [vmem:[%s178 + $0x1a0] sm:$0xff] %v8593
        %8958 = vst.msk [vmem:[%s178 + $0x1a8] sm:$0xff] %vm580, %v8594
        %8959 = vst [vmem:[%s178 + $0x1b0] sm:$0xff] %v8595
        %8960 = vst.msk [vmem:[%s178 + $0x1b8] sm:$0xff] %vm580, %v8596
        %8961 = vst [vmem:[%s178 + $0x1c0] sm:$0xff] %v8597
        %8962 = vst.msk [vmem:[%s178 + $0x1c8] sm:$0xff] %vm580, %v8598
        %8963 = vst [vmem:[%s178 + $0x1d0] sm:$0xff] %v8599
        %8964 = vst.msk [vmem:[%s178 + $0x1d8] sm:$0xff] %vm580, %v8600
        %8965 = vst [vmem:[%s178 + $0x1e0] sm:$0xff] %v8601
        %8966 = vst.msk [vmem:[%s178 + $0x1e8] sm:$0xff] %vm580, %v8602
        %8967 = vst [vmem:[%s178 + $0x1f0] sm:$0xff] %v8603
        %8968 = vst.msk [vmem:[%s178 + $0x1f8] sm:$0xff] %vm580, %v8604
        %8969 = vst [vmem:[%s178 + $0x200] sm:$0xff] %v8605
        %8970 = vst.msk [vmem:[%s178 + $0x208] sm:$0xff] %vm580, %v8606
        %8971 = vst [vmem:[%s178 + $0x210] sm:$0xff] %v8607
        %8972 = vst.msk [vmem:[%s178 + $0x218] sm:$0xff] %vm580, %v8608
        %8973 = vst [vmem:[%s178 + $0x220] sm:$0xff] %v8609
        %8974 = vst.msk [vmem:[%s178 + $0x228] sm:$0xff] %vm580, %v8610
        %8975 = vst [vmem:[%s178 + $0x230] sm:$0xff] %v8611
        %8976 = vst.msk [vmem:[%s178 + $0x238] sm:$0xff] %vm580, %v8612
        %8977 = vst [vmem:[%s178 + $0x240] sm:$0xff] %v8613
        %8978 = vst.msk [vmem:[%s178 + $0x248] sm:$0xff] %vm580, %v8614
        %8979 = vst [vmem:[%s178 + $0x250] sm:$0xff] %v8615
        %8980 = vst.msk [vmem:[%s178 + $0x258] sm:$0xff] %vm580, %v8616
        %8981 = vst [vmem:[%s178 + $0x260] sm:$0xff] %v8617
        %8982 = vst.msk [vmem:[%s178 + $0x268] sm:$0xff] %vm580, %v8618
        %8983 = vst [vmem:[%s178 + $0x270] sm:$0xff] %v8619
        %8984 = vst.msk [vmem:[%s178 + $0x278] sm:$0xff] %vm580, %v8620
        %8985 = vst [vmem:[%s178 + $0x280] sm:$0xff] %v8621
        %8986 = vst.msk [vmem:[%s178 + $0x288] sm:$0xff] %vm580, %v8622
        %8987 = vst [vmem:[%s178 + $0x290] sm:$0xff] %v8623
        %8988 = vst.msk [vmem:[%s178 + $0x298] sm:$0xff] %vm580, %v8624
        %8989 = vst [vmem:[%s178 + $0x2a0] sm:$0xff] %v8625
        %8990 = vst.msk [vmem:[%s178 + $0x2a8] sm:$0xff] %vm580, %v8626
        %8991 = vst [vmem:[%s178 + $0x2b0] sm:$0xff] %v8627
        %8992 = vst.msk [vmem:[%s178 + $0x2b8] sm:$0xff] %vm580, %v8628
        %8993 = vst [vmem:[%s178 + $0x2c0] sm:$0xff] %v8629
        %8994 = vst.msk [vmem:[%s178 + $0x2c8] sm:$0xff] %vm580, %v8630
        %8995 = vst [vmem:[%s178 + $0x2d0] sm:$0xff] %v8631
        %8996 = vst.msk [vmem:[%s178 + $0x2d8] sm:$0xff] %vm580, %v8632
        %8997 = vst [vmem:[%s178 + $0x2e0] sm:$0xff] %v8633
        %8998 = vst.msk [vmem:[%s178 + $0x2e8] sm:$0xff] %vm580, %v8634
        %8999 = vst [vmem:[%s178 + $0x2f0] sm:$0xff] %v8635
        %9000 = vst.msk [vmem:[%s178 + $0x2f8] sm:$0xff] %vm580, %v8636
        %9001 = vst [vmem:[%s178 + $0x300] sm:$0xff] %v8637
        %9002 = vst.msk [vmem:[%s178 + $0x308] sm:$0xff] %vm580, %v8638
        %9003 = vst [vmem:[%s178 + $0x310] sm:$0xff] %v8639
        %9004 = vst.msk [vmem:[%s178 + $0x318] sm:$0xff] %vm580, %v8640
        %9005 = vst [vmem:[%s178 + $0x320] sm:$0xff] %v8641
        %9006 = vst.msk [vmem:[%s178 + $0x328] sm:$0xff] %vm580, %v8642
        %9007 = vst [vmem:[%s178 + $0x330] sm:$0xff] %v8643
        %9008 = vst.msk [vmem:[%s178 + $0x338] sm:$0xff] %vm580, %v8644
        %9009 = vst [vmem:[%s178 + $0x340] sm:$0xff] %v8645
        %9010 = vst.msk [vmem:[%s178 + $0x348] sm:$0xff] %vm580, %v8646
        %9011 = vst [vmem:[%s178 + $0x350] sm:$0xff] %v8647
        %9012 = vst.msk [vmem:[%s178 + $0x358] sm:$0xff] %vm580, %v8648
        %9013 = vst [vmem:[%s178 + $0x360] sm:$0xff] %v8649
        %9014 = vst.msk [vmem:[%s178 + $0x368] sm:$0xff] %vm580, %v8650
        %9015 = vst [vmem:[%s178 + $0x370] sm:$0xff] %v8651
        %9016 = vst.msk [vmem:[%s178 + $0x378] sm:$0xff] %vm580, %v8652
        %9017 = vst [vmem:[%s178 + $0x380] sm:$0xff] %v8653
        %9018 = vst.msk [vmem:[%s178 + $0x388] sm:$0xff] %vm580, %v8654
        %9019 = vst [vmem:[%s178 + $0x390] sm:$0xff] %v8655
        %9020 = vst.msk [vmem:[%s178 + $0x398] sm:$0xff] %vm580, %v8656
        %9021 = vst [vmem:[%s178 + $0x3a0] sm:$0xff] %v8657
        %9022 = vst.msk [vmem:[%s178 + $0x3a8] sm:$0xff] %vm580, %v8658
        %9023 = vst [vmem:[%s178 + $0x3b0] sm:$0xff] %v8659
        %9024 = vst.msk [vmem:[%s178 + $0x3b8] sm:$0xff] %vm580, %v8660
        %9025 = vst [vmem:[%s178 + $0x3c0] sm:$0xff] %v8661
        %9026 = vst.msk [vmem:[%s178 + $0x3c8] sm:$0xff] %vm580, %v8662
        %9027 = vst [vmem:[%s178 + $0x3d0] sm:$0xff] %v8663
        %9028 = vst.msk [vmem:[%s178 + $0x3d8] sm:$0xff] %vm580, %v8664
        %9029 = vst [vmem:[%s178 + $0x3e0] sm:$0xff] %v8665
        %9030 = vst.msk [vmem:[%s178 + $0x3e8] sm:$0xff] %vm580, %v8666
        %9031 = vst [vmem:[%s178 + $0x3f0] sm:$0xff] %v8667
        %9032 = vst.msk [vmem:[%s178 + $0x3f8] sm:$0xff] %vm580, %v8668
        %9033 = vst [vmem:[%s178 + $0x400] sm:$0xff] %v8669
        %9034 = vst.msk [vmem:[%s178 + $0x408] sm:$0xff] %vm580, %v8670
        %9035 = vst [vmem:[%s178 + $0x410] sm:$0xff] %v8671
        %9036 = vst.msk [vmem:[%s178 + $0x418] sm:$0xff] %vm580, %v8672
        %9037 = vst [vmem:[%s178 + $0x420] sm:$0xff] %v8673
        %9038 = vst.msk [vmem:[%s178 + $0x428] sm:$0xff] %vm580, %v8674
        %9039 = vst [vmem:[%s178 + $0x430] sm:$0xff] %v8675
        %9040 = vst.msk [vmem:[%s178 + $0x438] sm:$0xff] %vm580, %v8676
        %9041 = vst [vmem:[%s178 + $0x440] sm:$0xff] %v8677
        %9042 = vst.msk [vmem:[%s178 + $0x448] sm:$0xff] %vm580, %v8678
        %9043 = vst [vmem:[%s178 + $0x450] sm:$0xff] %v8679
        %9044 = vst.msk [vmem:[%s178 + $0x458] sm:$0xff] %vm580, %v8680
        %9045 = vst [vmem:[%s178 + $0x460] sm:$0xff] %v8681
        %9046 = vst.msk [vmem:[%s178 + $0x468] sm:$0xff] %vm580, %v8682
        %9047 = vst [vmem:[%s178 + $0x470] sm:$0xff] %v8683
        %9048 = vst.msk [vmem:[%s178 + $0x478] sm:$0xff] %vm580, %v8684
        %9049 = vst [vmem:[%s178 + $0x480] sm:$0xff] %v8685
        %9050 = vst.msk [vmem:[%s178 + $0x488] sm:$0xff] %vm580, %v8686
        %9051 = vst [vmem:[%s178 + $0x490] sm:$0xff] %v8687
        %9052 = vst.msk [vmem:[%s178 + $0x498] sm:$0xff] %vm580, %v8688
        %9053 = vst [vmem:[%s178 + $0x4a0] sm:$0xff] %v8689
        %9054 = vst.msk [vmem:[%s178 + $0x4a8] sm:$0xff] %vm580, %v8690
        %9055 = vst [vmem:[%s178 + $0x4b0] sm:$0xff] %v8691
        %9056 = vst.msk [vmem:[%s178 + $0x4b8] sm:$0xff] %vm580, %v8692
        %9057 = vst [vmem:[%s178 + $0x4c0] sm:$0xff] %v8693
        %9058 = vst.msk [vmem:[%s178 + $0x4c8] sm:$0xff] %vm580, %v8694
        %9059 = vst [vmem:[%s178 + $0x4d0] sm:$0xff] %v8695
        %9060 = vst.msk [vmem:[%s178 + $0x4d8] sm:$0xff] %vm580, %v8696
        %9061 = vst [vmem:[%s178 + $0x4e0] sm:$0xff] %v8697
        %9062 = vst.msk [vmem:[%s178 + $0x4e8] sm:$0xff] %vm580, %v8698
        %9063 = vst [vmem:[%s178 + $0x4f0] sm:$0xff] %v8699
        %9064 = vst.msk [vmem:[%s178 + $0x4f8] sm:$0xff] %vm580, %v8700
        %9065 = vst [vmem:[%s178 + $0x500] sm:$0xff] %v8701
        %9066 = vst.msk [vmem:[%s178 + $0x508] sm:$0xff] %vm580, %v8702
        %9067 = vst [vmem:[%s178 + $0x510] sm:$0xff] %v8703
        %9068 = vst.msk [vmem:[%s178 + $0x518] sm:$0xff] %vm580, %v8704
        %9069 = vst [vmem:[%s178 + $0x520] sm:$0xff] %v8705
        %9070 = vst.msk [vmem:[%s178 + $0x528] sm:$0xff] %vm580, %v8706
        %9071 = vst [vmem:[%s178 + $0x530] sm:$0xff] %v8707
        %9072 = vst.msk [vmem:[%s178 + $0x538] sm:$0xff] %vm580, %v8708
        %9073 = vst [vmem:[%s178 + $0x540] sm:$0xff] %v8709
        %9074 = vst.msk [vmem:[%s178 + $0x548] sm:$0xff] %vm580, %v8710
        %9075 = vst [vmem:[%s178 + $0x550] sm:$0xff] %v8711
        %9076 = vst.msk [vmem:[%s178 + $0x558] sm:$0xff] %vm580, %v8712
        %9077 = vst [vmem:[%s178 + $0x560] sm:$0xff] %v8713
        %9078 = vst.msk [vmem:[%s178 + $0x568] sm:$0xff] %vm580, %v8714
        %9079 = vst [vmem:[%s178 + $0x570] sm:$0xff] %v8715
        %9080 = vst.msk [vmem:[%s178 + $0x578] sm:$0xff] %vm580, %v8716
        %9081 = vst [vmem:[%s178 + $0x580] sm:$0xff] %v8717
        %9082 = vst.msk [vmem:[%s178 + $0x588] sm:$0xff] %vm580, %v8718
        %9083 = vst [vmem:[%s178 + $0x590] sm:$0xff] %v8719
        %9084 = vst.msk [vmem:[%s178 + $0x598] sm:$0xff] %vm580, %v8720
        %9085 = vst [vmem:[%s178 + $0x5a0] sm:$0xff] %v8721
        %9086 = vst.msk [vmem:[%s178 + $0x5a8] sm:$0xff] %vm580, %v8722
        %9087 = vst [vmem:[%s178 + $0x5b0] sm:$0xff] %v8723
        %9088 = vst.msk [vmem:[%s178 + $0x5b8] sm:$0xff] %vm580, %v8724
        %9089 = vst [vmem:[%s178 + $0x5c0] sm:$0xff] %v8725
        %9090 = vst.msk [vmem:[%s178 + $0x5c8] sm:$0xff] %vm580, %v8726
        %9091 = vst [vmem:[%s178 + $0x5d0] sm:$0xff] %v8727
        %9092 = vst.msk [vmem:[%s178 + $0x5d8] sm:$0xff] %vm580, %v8728
        %9093 = vst [vmem:[%s178 + $0x5e0] sm:$0xff] %v8729
        %9094 = vst.msk [vmem:[%s178 + $0x5e8] sm:$0xff] %vm580, %v8730
        %9095 = vst [vmem:[%s178 + $0x5f0] sm:$0xff] %v8731
        %9096 = vst.msk [vmem:[%s178 + $0x5f8] sm:$0xff] %vm580, %v8732
        %9097 = vst [vmem:[%s178 + $0x600] sm:$0xff] %v8733
        %9098 = vst.msk [vmem:[%s178 + $0x608] sm:$0xff] %vm580, %v8734
        %9099 = vst [vmem:[%s178 + $0x610] sm:$0xff] %v8735
        %9100 = vst.msk [vmem:[%s178 + $0x618] sm:$0xff] %vm580, %v8736
        %9101 = vst [vmem:[%s178 + $0x620] sm:$0xff] %v8737
        %9102 = vst.msk [vmem:[%s178 + $0x628] sm:$0xff] %vm580, %v8738
        %9103 = vst [vmem:[%s178 + $0x630] sm:$0xff] %v8739
        %9104 = vst.msk [vmem:[%s178 + $0x638] sm:$0xff] %vm580, %v8740
        %9105 = vst [vmem:[%s178 + $0x640] sm:$0xff] %v8741
        %9106 = vst.msk [vmem:[%s178 + $0x648] sm:$0xff] %vm580, %v8742
        %9107 = vst [vmem:[%s178 + $0x650] sm:$0xff] %v8743
        %9108 = vst.msk [vmem:[%s178 + $0x658] sm:$0xff] %vm580, %v8744
        %9109 = vst [vmem:[%s178 + $0x660] sm:$0xff] %v8745
        %9110 = vst.msk [vmem:[%s178 + $0x668] sm:$0xff] %vm580, %v8746
        %9111 = vst [vmem:[%s178 + $0x670] sm:$0xff] %v8747
        %9112 = vst.msk [vmem:[%s178 + $0x678] sm:$0xff] %vm580, %v8748
        %9113 = vst [vmem:[%s178 + $0x680] sm:$0xff] %v8749
        %9114 = vst.msk [vmem:[%s178 + $0x688] sm:$0xff] %vm580, %v8750
        %9115 = vst [vmem:[%s178 + $0x690] sm:$0xff] %v8751
        %9116 = vst.msk [vmem:[%s178 + $0x698] sm:$0xff] %vm580, %v8752
        %9117 = vst [vmem:[%s178 + $0x6a0] sm:$0xff] %v8753
        %9118 = vst.msk [vmem:[%s178 + $0x6a8] sm:$0xff] %vm580, %v8754
        %9119 = vst [vmem:[%s178 + $0x6b0] sm:$0xff] %v8755
        %9120 = vst.msk [vmem:[%s178 + $0x6b8] sm:$0xff] %vm580, %v8756
        %9121 = vst [vmem:[%s178 + $0x6c0] sm:$0xff] %v8757
        %9122 = vst.msk [vmem:[%s178 + $0x6c8] sm:$0xff] %vm580, %v8758
        %9123 = vst [vmem:[%s178 + $0x6d0] sm:$0xff] %v8759
        %9124 = vst.msk [vmem:[%s178 + $0x6d8] sm:$0xff] %vm580, %v8760
        %9125 = vst [vmem:[%s178 + $0x6e0] sm:$0xff] %v8761
        %9126 = vst.msk [vmem:[%s178 + $0x6e8] sm:$0xff] %vm580, %v8762
        %9127 = vst [vmem:[%s178 + $0x6f0] sm:$0xff] %v8763
        %9128 = vst.msk [vmem:[%s178 + $0x6f8] sm:$0xff] %vm580, %v8764
        %9129 = vst [vmem:[%s178 + $0x700] sm:$0xff] %v8765
        %9130 = vst.msk [vmem:[%s178 + $0x708] sm:$0xff] %vm580, %v8766
        %9131 = vst [vmem:[%s178 + $0x710] sm:$0xff] %v8767
        %9132 = vst.msk [vmem:[%s178 + $0x718] sm:$0xff] %vm580, %v8768
        %9133 = vst [vmem:[%s178 + $0x720] sm:$0xff] %v8769
        %9134 = vst.msk [vmem:[%s178 + $0x728] sm:$0xff] %vm580, %v8770
        %9135 = vst [vmem:[%s178 + $0x730] sm:$0xff] %v8771
        %9136 = vst.msk [vmem:[%s178 + $0x738] sm:$0xff] %vm580, %v8772
        %9137 = vst [vmem:[%s178 + $0x740] sm:$0xff] %v8773
        %9138 = vst.msk [vmem:[%s178 + $0x748] sm:$0xff] %vm580, %v8774
        %9139 = vst [vmem:[%s178 + $0x750] sm:$0xff] %v8775
        %9140 = vst.msk [vmem:[%s178 + $0x758] sm:$0xff] %vm580, %v8776
        %9141 = vst [vmem:[%s178 + $0x760] sm:$0xff] %v8777
        %9142 = vst.msk [vmem:[%s178 + $0x768] sm:$0xff] %vm580, %v8778
        %9143 = vst [vmem:[%s178 + $0x770] sm:$0xff] %v8779
        %9144 = vst.msk [vmem:[%s178 + $0x778] sm:$0xff] %vm580, %v8780
        %9145 = vst [vmem:[%s178 + $0x780] sm:$0xff] %v8781
        %9146 = vst.msk [vmem:[%s178 + $0x788] sm:$0xff] %vm580, %v8782
        %9147 = vst [vmem:[%s178 + $0x790] sm:$0xff] %v8783
        %9148 = vst.msk [vmem:[%s178 + $0x798] sm:$0xff] %vm580, %v8784
        %9149 = vst [vmem:[%s178 + $0x7a0] sm:$0xff] %v8785
        %9150 = vst.msk [vmem:[%s178 + $0x7a8] sm:$0xff] %vm580, %v8786
        %9151 = vst [vmem:[%s178 + $0x7b0] sm:$0xff] %v8787
        %9152 = vst.msk [vmem:[%s178 + $0x7b8] sm:$0xff] %vm580, %v8788
        %9153 = vst [vmem:[%s178 + $0x7c0] sm:$0xff] %v8789
        %9154 = vst.msk [vmem:[%s178 + $0x7c8] sm:$0xff] %vm580, %v8790
        %9155 = vst [vmem:[%s178 + $0x7d0] sm:$0xff] %v8791
        %9156 = vst.msk [vmem:[%s178 + $0x7d8] sm:$0xff] %vm580, %v8792
        %9157 = vst [vmem:[%s178 + $0x7e0] sm:$0xff] %v8793
        %9158 = vst.msk [vmem:[%s178 + $0x7e8] sm:$0xff] %vm580, %v8794
        %9159 = vst [vmem:[%s178 + $0x7f0] sm:$0xff] %v8795
        %9160 = vst.msk [vmem:[%s178 + $0x7f8] sm:$0xff] %vm580, %v8796
        %9161 = vst [vmem:[%s178 + $0x800] sm:$0xff] %v8797
        %9162 = vst.msk [vmem:[%s178 + $0x808] sm:$0xff] %vm580, %v8798
        %9163 = vst [vmem:[%s178 + $0x810] sm:$0xff] %v8799
        %9164 = vst.msk [vmem:[%s178 + $0x818] sm:$0xff] %vm580, %v8800
        %9165 = vst [vmem:[%s178 + $0x820] sm:$0xff] %v8801
        %9166 = vst.msk [vmem:[%s178 + $0x828] sm:$0xff] %vm580, %v8802
        %9167 = vst [vmem:[%s178 + $0x830] sm:$0xff] %v8803
        %9168 = vst.msk [vmem:[%s178 + $0x838] sm:$0xff] %vm580, %v8804
        %9169 = vst [vmem:[%s178 + $0x840] sm:$0xff] %v8805
        %9170 = vst.msk [vmem:[%s178 + $0x848] sm:$0xff] %vm580, %v8806
        %9171 = vst [vmem:[%s178 + $0x850] sm:$0xff] %v8807
        %9172 = vst.msk [vmem:[%s178 + $0x858] sm:$0xff] %vm580, %v8808
        %9173 = vst [vmem:[%s178 + $0x860] sm:$0xff] %v8809
        %9174 = vst.msk [vmem:[%s178 + $0x868] sm:$0xff] %vm580, %v8810
        %9175 = vst [vmem:[%s178 + $0x870] sm:$0xff] %v8811
        %9176 = vst.msk [vmem:[%s178 + $0x878] sm:$0xff] %vm580, %v8812
        %9177 = vst [vmem:[%s178 + $0x880] sm:$0xff] %v8813
        %9178 = vst.msk [vmem:[%s178 + $0x888] sm:$0xff] %vm580, %v8814
        %9179 = vst [vmem:[%s178 + $0x890] sm:$0xff] %v8815
        %9180 = vst.msk [vmem:[%s178 + $0x898] sm:$0xff] %vm580, %v8816
        %9181 = vst [vmem:[%s178 + $0x8a0] sm:$0xff] %v8817
        %9182 = vst.msk [vmem:[%s178 + $0x8a8] sm:$0xff] %vm580, %v8818
        %9183 = vst [vmem:[%s178 + $0x8b0] sm:$0xff] %v8819
        %9184 = vst.msk [vmem:[%s178 + $0x8b8] sm:$0xff] %vm580, %v8820
        %9185 = vst [vmem:[%s178 + $0x8c0] sm:$0xff] %v8821
        %9186 = vst.msk [vmem:[%s178 + $0x8c8] sm:$0xff] %vm580, %v8822
        %9187 = vst [vmem:[%s178 + $0x8d0] sm:$0xff] %v8823
        %9188 = vst.msk [vmem:[%s178 + $0x8d8] sm:$0xff] %vm580, %v8824
        %9189 = vst [vmem:[%s178 + $0x8e0] sm:$0xff] %v8825
        %9190 = vst.msk [vmem:[%s178 + $0x8e8] sm:$0xff] %vm580, %v8826
        %9191 = vst [vmem:[%s178 + $0x8f0] sm:$0xff] %v8827
        %9192 = vst.msk [vmem:[%s178 + $0x8f8] sm:$0xff] %vm580, %v8828
        %9193 = vst [vmem:[%s178 + $0x900] sm:$0xff] %v8829
        %9194 = vst.msk [vmem:[%s178 + $0x908] sm:$0xff] %vm580, %v8830
        %9195 = vst [vmem:[%s178 + $0x910] sm:$0xff] %v8831
        %9196 = vst.msk [vmem:[%s178 + $0x918] sm:$0xff] %vm580, %v8832
        %9197 = vst [vmem:[%s178 + $0x920] sm:$0xff] %v8833
        %9198 = vst.msk [vmem:[%s178 + $0x928] sm:$0xff] %vm580, %v8834
        %9199 = vst [vmem:[%s178 + $0x930] sm:$0xff] %v8835
        %9200 = vst.msk [vmem:[%s178 + $0x938] sm:$0xff] %vm580, %v8836
        %9201 = vst [vmem:[%s178 + $0x940] sm:$0xff] %v8837
        %9202 = vst.msk [vmem:[%s178 + $0x948] sm:$0xff] %vm580, %v8838
        %9203 = vst [vmem:[%s178 + $0x950] sm:$0xff] %v8839
        %9204 = vst.msk [vmem:[%s178 + $0x958] sm:$0xff] %vm580, %v8840
        %9205 = vst [vmem:[%s178 + $0x960] sm:$0xff] %v8841
        %9206 = vst.msk [vmem:[%s178 + $0x968] sm:$0xff] %vm580, %v8842
        %9207 = vst [vmem:[%s178 + $0x970] sm:$0xff] %v8843
        %9208 = vst.msk [vmem:[%s178 + $0x978] sm:$0xff] %vm580, %v8844
        %9209 = vst [vmem:[%s178 + $0x980] sm:$0xff] %v8845
        %9210 = vst.msk [vmem:[%s178 + $0x988] sm:$0xff] %vm580, %v8846
        %9211 = vst [vmem:[%s178 + $0x990] sm:$0xff] %v8847
        %9212 = vst.msk [vmem:[%s178 + $0x998] sm:$0xff] %vm580, %v8848
        %9213 = vst [vmem:[%s178 + $0x9a0] sm:$0xff] %v8849
        %9214 = vst.msk [vmem:[%s178 + $0x9a8] sm:$0xff] %vm580, %v8850
        %9215 = vst [vmem:[%s178 + $0x9b0] sm:$0xff] %v8851
        %9216 = vst.msk [vmem:[%s178 + $0x9b8] sm:$0xff] %vm580, %v8852
        %9217 = vst [vmem:[%s178 + $0x9c0] sm:$0xff] %v8853
        %9218 = vst.msk [vmem:[%s178 + $0x9c8] sm:$0xff] %vm580, %v8854
        %9219 = vst [vmem:[%s178 + $0x9d0] sm:$0xff] %v8855
        %9220 = vst.msk [vmem:[%s178 + $0x9d8] sm:$0xff] %vm580, %v8856
        %9221 = vst [vmem:[%s178 + $0x9e0] sm:$0xff] %v8857
        %9222 = vst.msk [vmem:[%s178 + $0x9e8] sm:$0xff] %vm580, %v8858
        %9223 = vst [vmem:[%s178 + $0x9f0] sm:$0xff] %v8859
        %9224 = vst.msk [vmem:[%s178 + $0x9f8] sm:$0xff] %vm580, %v8860
        %9225 = vst [vmem:[%s178 + $0xa00] sm:$0xff] %v8861
        %9226 = vst.msk [vmem:[%s178 + $0xa08] sm:$0xff] %vm580, %v8862
        %9227 = vst [vmem:[%s178 + $0xa10] sm:$0xff] %v8863
        %9228 = vst.msk [vmem:[%s178 + $0xa18] sm:$0xff] %vm580, %v8864
        %9229 = vst [vmem:[%s178 + $0xa20] sm:$0xff] %v8865
        %9230 = vst.msk [vmem:[%s178 + $0xa28] sm:$0xff] %vm580, %v8866
        %9231 = vst [vmem:[%s178 + $0xa30] sm:$0xff] %v8867
        %9232 = vst.msk [vmem:[%s178 + $0xa38] sm:$0xff] %vm580, %v8868
        %9233 = vst [vmem:[%s178 + $0xa40] sm:$0xff] %v8869
        %9234 = vst.msk [vmem:[%s178 + $0xa48] sm:$0xff] %vm580, %v8870
        %9235 = vst [vmem:[%s178 + $0xa50] sm:$0xff] %v8871
        %9236 = vst.msk [vmem:[%s178 + $0xa58] sm:$0xff] %vm580, %v8872
        %9237 = vst [vmem:[%s178 + $0xa60] sm:$0xff] %v8873
        %9238 = vst.msk [vmem:[%s178 + $0xa68] sm:$0xff] %vm580, %v8874
        %9239 = vst [vmem:[%s178 + $0xa70] sm:$0xff] %v8875
        %9240 = vst.msk [vmem:[%s178 + $0xa78] sm:$0xff] %vm580, %v8876
        %9241 = vst [vmem:[%s178 + $0xa80] sm:$0xff] %v8877
        %9242 = vst.msk [vmem:[%s178 + $0xa88] sm:$0xff] %vm580, %v8878
        %9243 = vst [vmem:[%s178 + $0xa90] sm:$0xff] %v8879
        %9244 = vst.msk [vmem:[%s178 + $0xa98] sm:$0xff] %vm580, %v8880
        %9245 = vst [vmem:[%s178 + $0xaa0] sm:$0xff] %v8881
        %9246 = vst.msk [vmem:[%s178 + $0xaa8] sm:$0xff] %vm580, %v8882
        %9247 = vst [vmem:[%s178 + $0xab0] sm:$0xff] %v8883
        %9248 = vst.msk [vmem:[%s178 + $0xab8] sm:$0xff] %vm580, %v8884
        %9249 = vst [vmem:[%s178 + $0xac0] sm:$0xff] %v8885
        %9250 = vst.msk [vmem:[%s178 + $0xac8] sm:$0xff] %vm580, %v8886
        %9251 = vst [vmem:[%s178 + $0xad0] sm:$0xff] %v8887
        %9252 = vst.msk [vmem:[%s178 + $0xad8] sm:$0xff] %vm580, %v8888
        %9253 = vst [vmem:[%s178 + $0xae0] sm:$0xff] %v8889
        %9254 = vst.msk [vmem:[%s178 + $0xae8] sm:$0xff] %vm580, %v8890
        %9255 = vst [vmem:[%s178 + $0xaf0] sm:$0xff] %v8891
        %9256 = vst.msk [vmem:[%s178 + $0xaf8] sm:$0xff] %vm580, %v8892
        %9257 = vst [vmem:[%s178 + $0xb00] sm:$0xff] %v8893
        %9258 = vst.msk [vmem:[%s178 + $0xb08] sm:$0xff] %vm580, %v8894
        %9259 = vst [vmem:[%s178 + $0xb10] sm:$0xff] %v8895
        %9260 = vst.msk [vmem:[%s178 + $0xb18] sm:$0xff] %vm580, %v8896
        %9261 = vst [vmem:[%s178 + $0xb20] sm:$0xff] %v8897
        %9262 = vst.msk [vmem:[%s178 + $0xb28] sm:$0xff] %vm580, %v8898
        %9263 = vst [vmem:[%s178 + $0xb30] sm:$0xff] %v8899
        %9264 = vst.msk [vmem:[%s178 + $0xb38] sm:$0xff] %vm580, %v8900
        %9265 = vst [vmem:[%s178 + $0xb40] sm:$0xff] %v8901
        %9266 = vst.msk [vmem:[%s178 + $0xb48] sm:$0xff] %vm580, %v8902
        %9267 = vst [vmem:[%s178 + $0xb50] sm:$0xff] %v8903
        %9268 = vst.msk [vmem:[%s178 + $0xb58] sm:$0xff] %vm580, %v8904
        %s9269 = sand.u32 %s73, 1
        %s9270 = sand.u32 %s73, 1
        %s9271 = smul.addr %s9270, 2912
        %s9272 = scalar_lea.vmem [#allocation2], %s9271
        // Predicated region
        $region29: #{tpu_custom_call.1} parent=27 // pred_check
          %p9273 = pneg %p83
        $region30: #{tpu_custom_call.1} parent=27 // pred_check_branch
          %9275 = sbr.rel (%p9273) target = $region32
        $region31: #{tpu_custom_call.1} parent=27 // pred_region
          %s9276 = smul.u32 182, %s13
          %s9277 = ssub.s32 363, %s9276
          %p9278 = scmp.lt.s32.totalorder %s9277, 182
          %s9279 = scalar_select %p9278, %s9277, 182
          %s9280 = smul.u32 128, %s9279
          %s9281 = smul.u32 %s9280, 2
          %p9282 = scmp.ne.s32.totalorder 0, %s9281
          %s9283 = smul.addr %s9276, 2
          %s9284 = smul.addr %s9283, 8
          %s9285 = scalar_lea.vmem %s2, %s9284
          // Predicated region
          $region33: #{tpu_custom_call.1} parent=31 // pred_check
            %p9286 = pneg %p9282
          $region34: #{tpu_custom_call.1} parent=31 // pred_check_branch
            %9288 = sbr.rel (%p9286) target = $region36
          $region35: #{tpu_custom_call.1} parent=31 // pred_region
            // Predicated region
            $region37: #{tpu_custom_call.1} parent=35 // pred_check
              _
            $region38: #{tpu_custom_call.1} parent=35 // pred_check_branch
              %9290 = sbr.rel (0) target = $region40
            $region39: #{tpu_custom_call.1} parent=35 // pred_region
              %s9291 = sshrl.u32 %s9279, 5
              // While loop
              $region41: #{tpu_custom_call.1} parent=39 // loop_pre_header
                _
              $region42: #{tpu_custom_call.1} parent=39 // loop_header
                %s9293 = sphi 0, %s9295
                %p9294 = scmp.ge.s32.totalorder %s9293, %s9291
                %s9298 = sphi 0, %s9431
                %s9299 = sphi %s9272, %s9434
                %s9300 = sphi %s9285, %s9435
              $region43: #{tpu_custom_call.1} parent=39 // loop_header_branch
                %9297 = sbr.rel (%p9294) target = $region47
              $region44: #{tpu_custom_call.1} parent=39 // loop_body
                %v9301 = vld [vmem:[%s9299] sm:$0xff]
                %9302 = vst [vmem:[%s9300] sm:$0xff] %v9301
                %v9303 = vld [vmem:[%s9299 + $0x10] sm:$0xff]
                %9304 = vst [vmem:[%s9300 + $0x10] sm:$0xff] %v9303
                %v9305 = vld [vmem:[%s9299 + $0x20] sm:$0xff]
                %9306 = vst [vmem:[%s9300 + $0x20] sm:$0xff] %v9305
                %v9307 = vld [vmem:[%s9299 + $0x30] sm:$0xff]
                %9308 = vst [vmem:[%s9300 + $0x30] sm:$0xff] %v9307
                %v9309 = vld [vmem:[%s9299 + $0x40] sm:$0xff]
                %9310 = vst [vmem:[%s9300 + $0x40] sm:$0xff] %v9309
                %v9311 = vld [vmem:[%s9299 + $0x50] sm:$0xff]
                %9312 = vst [vmem:[%s9300 + $0x50] sm:$0xff] %v9311
                %v9313 = vld [vmem:[%s9299 + $0x60] sm:$0xff]
                %9314 = vst [vmem:[%s9300 + $0x60] sm:$0xff] %v9313
                %v9315 = vld [vmem:[%s9299 + $0x70] sm:$0xff]
                %9316 = vst [vmem:[%s9300 + $0x70] sm:$0xff] %v9315
                %v9317 = vld [vmem:[%s9299 + $0x80] sm:$0xff]
                %9318 = vst [vmem:[%s9300 + $0x80] sm:$0xff] %v9317
                %v9319 = vld [vmem:[%s9299 + $0x90] sm:$0xff]
                %9320 = vst [vmem:[%s9300 + $0x90] sm:$0xff] %v9319
                %v9321 = vld [vmem:[%s9299 + $0xa0] sm:$0xff]
                %9322 = vst [vmem:[%s9300 + $0xa0] sm:$0xff] %v9321
                %v9323 = vld [vmem:[%s9299 + $0xb0] sm:$0xff]
                %9324 = vst [vmem:[%s9300 + $0xb0] sm:$0xff] %v9323
                %v9325 = vld [vmem:[%s9299 + $0xc0] sm:$0xff]
                %9326 = vst [vmem:[%s9300 + $0xc0] sm:$0xff] %v9325
                %v9327 = vld [vmem:[%s9299 + $0xd0] sm:$0xff]
                %9328 = vst [vmem:[%s9300 + $0xd0] sm:$0xff] %v9327
                %v9329 = vld [vmem:[%s9299 + $0xe0] sm:$0xff]
                %9330 = vst [vmem:[%s9300 + $0xe0] sm:$0xff] %v9329
                %v9331 = vld [vmem:[%s9299 + $0xf0] sm:$0xff]
                %9332 = vst [vmem:[%s9300 + $0xf0] sm:$0xff] %v9331
                %v9333 = vld [vmem:[%s9299 + $0x100] sm:$0xff]
                %9334 = vst [vmem:[%s9300 + $0x100] sm:$0xff] %v9333
                %v9335 = vld [vmem:[%s9299 + $0x110] sm:$0xff]
                %9336 = vst [vmem:[%s9300 + $0x110] sm:$0xff] %v9335
                %v9337 = vld [vmem:[%s9299 + $0x120] sm:$0xff]
                %9338 = vst [vmem:[%s9300 + $0x120] sm:$0xff] %v9337
                %v9339 = vld [vmem:[%s9299 + $0x130] sm:$0xff]
                %9340 = vst [vmem:[%s9300 + $0x130] sm:$0xff] %v9339
                %v9341 = vld [vmem:[%s9299 + $0x140] sm:$0xff]
                %9342 = vst [vmem:[%s9300 + $0x140] sm:$0xff] %v9341
                %v9343 = vld [vmem:[%s9299 + $0x150] sm:$0xff]
                %9344 = vst [vmem:[%s9300 + $0x150] sm:$0xff] %v9343
                %v9345 = vld [vmem:[%s9299 + $0x160] sm:$0xff]
                %9346 = vst [vmem:[%s9300 + $0x160] sm:$0xff] %v9345
                %v9347 = vld [vmem:[%s9299 + $0x170] sm:$0xff]
                %9348 = vst [vmem:[%s9300 + $0x170] sm:$0xff] %v9347
                %v9349 = vld [vmem:[%s9299 + $0x180] sm:$0xff]
                %9350 = vst [vmem:[%s9300 + $0x180] sm:$0xff] %v9349
                %v9351 = vld [vmem:[%s9299 + $0x190] sm:$0xff]
                %9352 = vst [vmem:[%s9300 + $0x190] sm:$0xff] %v9351
                %v9353 = vld [vmem:[%s9299 + $0x1a0] sm:$0xff]
                %9354 = vst [vmem:[%s9300 + $0x1a0] sm:$0xff] %v9353
                %v9355 = vld [vmem:[%s9299 + $0x1b0] sm:$0xff]
                %9356 = vst [vmem:[%s9300 + $0x1b0] sm:$0xff] %v9355
                %v9357 = vld [vmem:[%s9299 + $0x1c0] sm:$0xff]
                %9358 = vst [vmem:[%s9300 + $0x1c0] sm:$0xff] %v9357
                %v9359 = vld [vmem:[%s9299 + $0x1d0] sm:$0xff]
                %9360 = vst [vmem:[%s9300 + $0x1d0] sm:$0xff] %v9359
                %v9361 = vld [vmem:[%s9299 + $0x1e0] sm:$0xff]
                %9362 = vst [vmem:[%s9300 + $0x1e0] sm:$0xff] %v9361
                %v9363 = vld [vmem:[%s9299 + $0x1f0] sm:$0xff]
                %9364 = vst [vmem:[%s9300 + $0x1f0] sm:$0xff] %v9363
                %v9365 = vld [vmem:[%s9299 + $0x8] sm:$0xff]
                %9366 = vst [vmem:[%s9300 + $0x8] sm:$0xff] %v9365
                %v9367 = vld [vmem:[%s9299 + $0x18] sm:$0xff]
                %9368 = vst [vmem:[%s9300 + $0x18] sm:$0xff] %v9367
                %v9369 = vld [vmem:[%s9299 + $0x28] sm:$0xff]
                %9370 = vst [vmem:[%s9300 + $0x28] sm:$0xff] %v9369
                %v9371 = vld [vmem:[%s9299 + $0x38] sm:$0xff]
                %9372 = vst [vmem:[%s9300 + $0x38] sm:$0xff] %v9371
                %v9373 = vld [vmem:[%s9299 + $0x48] sm:$0xff]
                %9374 = vst [vmem:[%s9300 + $0x48] sm:$0xff] %v9373
                %v9375 = vld [vmem:[%s9299 + $0x58] sm:$0xff]
                %9376 = vst [vmem:[%s9300 + $0x58] sm:$0xff] %v9375
                %v9377 = vld [vmem:[%s9299 + $0x68] sm:$0xff]
                %9378 = vst [vmem:[%s9300 + $0x68] sm:$0xff] %v9377
                %v9379 = vld [vmem:[%s9299 + $0x78] sm:$0xff]
                %9380 = vst [vmem:[%s9300 + $0x78] sm:$0xff] %v9379
                %v9381 = vld [vmem:[%s9299 + $0x88] sm:$0xff]
                %9382 = vst [vmem:[%s9300 + $0x88] sm:$0xff] %v9381
                %v9383 = vld [vmem:[%s9299 + $0x98] sm:$0xff]
                %9384 = vst [vmem:[%s9300 + $0x98] sm:$0xff] %v9383
                %v9385 = vld [vmem:[%s9299 + $0xa8] sm:$0xff]
                %9386 = vst [vmem:[%s9300 + $0xa8] sm:$0xff] %v9385
                %v9387 = vld [vmem:[%s9299 + $0xb8] sm:$0xff]
                %9388 = vst [vmem:[%s9300 + $0xb8] sm:$0xff] %v9387
                %v9389 = vld [vmem:[%s9299 + $0xc8] sm:$0xff]
                %9390 = vst [vmem:[%s9300 + $0xc8] sm:$0xff] %v9389
                %v9391 = vld [vmem:[%s9299 + $0xd8] sm:$0xff]
                %9392 = vst [vmem:[%s9300 + $0xd8] sm:$0xff] %v9391
                %v9393 = vld [vmem:[%s9299 + $0xe8] sm:$0xff]
                %9394 = vst [vmem:[%s9300 + $0xe8] sm:$0xff] %v9393
                %v9395 = vld [vmem:[%s9299 + $0xf8] sm:$0xff]
                %9396 = vst [vmem:[%s9300 + $0xf8] sm:$0xff] %v9395
                %v9397 = vld [vmem:[%s9299 + $0x108] sm:$0xff]
                %9398 = vst [vmem:[%s9300 + $0x108] sm:$0xff] %v9397
                %v9399 = vld [vmem:[%s9299 + $0x118] sm:$0xff]
                %9400 = vst [vmem:[%s9300 + $0x118] sm:$0xff] %v9399
                %v9401 = vld [vmem:[%s9299 + $0x128] sm:$0xff]
                %9402 = vst [vmem:[%s9300 + $0x128] sm:$0xff] %v9401
                %v9403 = vld [vmem:[%s9299 + $0x138] sm:$0xff]
                %9404 = vst [vmem:[%s9300 + $0x138] sm:$0xff] %v9403
                %v9405 = vld [vmem:[%s9299 + $0x148] sm:$0xff]
                %9406 = vst [vmem:[%s9300 + $0x148] sm:$0xff] %v9405
                %v9407 = vld [vmem:[%s9299 + $0x158] sm:$0xff]
                %9408 = vst [vmem:[%s9300 + $0x158] sm:$0xff] %v9407
                %v9409 = vld [vmem:[%s9299 + $0x168] sm:$0xff]
                %9410 = vst [vmem:[%s9300 + $0x168] sm:$0xff] %v9409
                %v9411 = vld [vmem:[%s9299 + $0x178] sm:$0xff]
                %9412 = vst [vmem:[%s9300 + $0x178] sm:$0xff] %v9411
                %v9413 = vld [vmem:[%s9299 + $0x188] sm:$0xff]
                %9414 = vst [vmem:[%s9300 + $0x188] sm:$0xff] %v9413
                %v9415 = vld [vmem:[%s9299 + $0x198] sm:$0xff]
                %9416 = vst [vmem:[%s9300 + $0x198] sm:$0xff] %v9415
                %v9417 = vld [vmem:[%s9299 + $0x1a8] sm:$0xff]
                %9418 = vst [vmem:[%s9300 + $0x1a8] sm:$0xff] %v9417
                %v9419 = vld [vmem:[%s9299 + $0x1b8] sm:$0xff]
                %9420 = vst [vmem:[%s9300 + $0x1b8] sm:$0xff] %v9419
                %v9421 = vld [vmem:[%s9299 + $0x1c8] sm:$0xff]
                %9422 = vst [vmem:[%s9300 + $0x1c8] sm:$0xff] %v9421
                %v9423 = vld [vmem:[%s9299 + $0x1d8] sm:$0xff]
                %9424 = vst [vmem:[%s9300 + $0x1d8] sm:$0xff] %v9423
                %v9425 = vld [vmem:[%s9299 + $0x1e8] sm:$0xff]
                %9426 = vst [vmem:[%s9300 + $0x1e8] sm:$0xff] %v9425
                %v9427 = vld [vmem:[%s9299 + $0x1f8] sm:$0xff]
                %9428 = vst [vmem:[%s9300 + $0x1f8] sm:$0xff] %v9427
                %s9429 = sadd.s32 1, %s9298
                %p9430 = scmp.ge.s32.totalorder %s9429, %s9291
                %s9431 = scalar_select %p9430, 0, %s9429
                %s9432 = smul.u32 %s9431, 512
                %s9433 = smul.u32 %s9431, 512
                %s9434 = scalar_lea.vmem %s9272, %s9432 [#allocation2]
                %s9435 = scalar_lea.vmem %s9285, %s9433
              $region45: #{tpu_custom_call.1} parent=39 // loop_footer
                %s9295 = sadd.s32 %s9293, 1
              $region46: #{tpu_custom_call.1} parent=39 // loop_footer_branch
                %9292 = sbr.rel target = $region42
              $region47: #{tpu_custom_call.1} parent=39 // loop_exit
                _
              %s9436 = sshrl.u32 %s9279, 5
              %s9437 = sand.u32 %s9279, 31
              %s9438 = smul.u32 %s9436, 32
              %s9439 = smul.u32 16, %s9438
              %s9440 = scalar_lea.vmem %s9272, %s9439 [#allocation2]
              %s9441 = smul.u32 16, %s9438
              %s9442 = scalar_lea.vmem %s9285, %s9441
              // While loop
              $region48: #{tpu_custom_call.1} parent=39 // loop_pre_header
                _
              $region49: #{tpu_custom_call.1} parent=39 // loop_header
                %s9444 = sphi 0, %s9446
                %p9445 = scmp.ge.s32.totalorder %s9444, %s9437
                %s9449 = sphi 0, %s9458
                %s9450 = sphi %s9440, %s9461
                %s9451 = sphi %s9442, %s9462
              $region50: #{tpu_custom_call.1} parent=39 // loop_header_branch
                %9448 = sbr.rel (%p9445) target = $region54
              $region51: #{tpu_custom_call.1} parent=39 // loop_body
                %v9452 = vld [vmem:[%s9450] sm:$0xff]
                %9453 = vst [vmem:[%s9451] sm:$0xff] %v9452
                %v9454 = vld [vmem:[%s9450 + $0x8] sm:$0xff]
                %9455 = vst [vmem:[%s9451 + $0x8] sm:$0xff] %v9454
                %s9456 = sadd.s32 1, %s9449
                %p9457 = scmp.ge.s32.totalorder %s9456, %s9437
                %s9458 = scalar_select %p9457, 0, %s9456
                %s9459 = smul.u32 %s9458, 16
                %s9460 = smul.u32 %s9458, 16
                %s9461 = scalar_lea.vmem %s9440, %s9459 [#allocation2]
                %s9462 = scalar_lea.vmem %s9442, %s9460
              $region52: #{tpu_custom_call.1} parent=39 // loop_footer
                %s9446 = sadd.s32 %s9444, 1
              $region53: #{tpu_custom_call.1} parent=39 // loop_footer_branch
                %9443 = sbr.rel target = $region49
              $region54: #{tpu_custom_call.1} parent=39 // loop_exit
                _
            $region40: #{tpu_custom_call.1} parent=35 // pred_fallthru
              _
            // Predicated region
            $region55: #{tpu_custom_call.1} parent=35 // pred_check
              _
            $region56: #{tpu_custom_call.1} parent=35 // pred_check_branch
              %9464 = sbr.rel target = $region58
            $region57: #{tpu_custom_call.1} parent=35 // pred_region
              _
            $region58: #{tpu_custom_call.1} parent=35 // pred_fallthru
              _
          $region36: #{tpu_custom_call.1} parent=31 // pred_fallthru
            _
          %9465 = vnop
        $region32: #{tpu_custom_call.1} parent=27 // pred_fallthru
          _
      $region28: #{tpu_custom_call.1} parent=5 // pred_fallthru
        _
      %p9466 = scmp.le.s32.totalorder 2, %s8
      // Predicated region
      $region59: #{tpu_custom_call.1} parent=5 // pred_check
        %p9467 = pneg %p9466
      $region60: #{tpu_custom_call.1} parent=5 // pred_check_branch
        %9469 = sbr.rel (%p9467) target = $region62
      $region61: #{tpu_custom_call.1} parent=5 // pred_region
        %s9470 = ssub.s32 %s8, 2
        // Predicated region
        $region63: #{tpu_custom_call.1} parent=61 // pred_check
          %p9471 = pneg %p89
        $region64: #{tpu_custom_call.1} parent=61 // pred_check_branch
          %9473 = sbr.rel (%p9471) target = $region66
        $region65: #{tpu_custom_call.1} parent=61 // pred_region
          %s9474 = sand.u32 %s74, 1
          %s9475 = sand.u32 %s74, 1
          %s9476 = smul.addr %s9475, 2912
          %s9477 = scalar_lea.vmem [#allocation2], %s9476
        $region66: #{tpu_custom_call.1} parent=61 // pred_fallthru
          _
      $region62: #{tpu_custom_call.1} parent=5 // pred_fallthru
        _
    $region6: #{tpu_custom_call.1} parent=1 // loop_footer
      %s12 = sadd.s32 1, %s8
    $region7: #{tpu_custom_call.1} parent=1 // loop_footer_branch
      %7 = sbr.rel target = $region3
    $region8: #{tpu_custom_call.1} parent=1 // loop_exit
      _

</llo_original>
